<compile_context>
chip_gen: v7x
topology: tpu7x:2x2x1
jax: 0.10.0
libtpu: 0.0.40
codegen_flags: <defaults>
</compile_context>

<pallas_src>
import functools

import jax
import jax.numpy as jnp
from jax import lax
from jax.experimental import pallas as pl
from jax.experimental.pallas import tpu as pltpu


# ----------------------------------------------------------------------------
# Fused Pallas kernel: one batch image per grid step, everything in VMEM.
# ----------------------------------------------------------------------------
def _merge_tail_kernel(x3_ref, x13_ref, x23_ref,
                       w13_ref, w23_ref, b1_ref,
                       wm_ref, bm_ref, wt_ref, bt_ref,
                       o_ref,
                       pad_c, pad_t, accm_ref, acct_ref,
                       *, H, W, nf4, cout):
    f32 = jnp.float32
    bf16 = jnp.bfloat16
    HW = H * W
    C3 = 3 * nf4

    # ---- conv13 / conv23 (1x1) + ReLU : bf16 MXU operands, f32 accumulate ----
    y13 = jnp.dot(x13_ref[...], w13_ref[...], preferred_element_type=f32)
    y13 = jnp.maximum(y13 + b1_ref[0:1, :], 0.0)                   # (HW, nf4) f32
    y23 = jnp.dot(x23_ref[...], w23_ref[...], preferred_element_type=f32)
    y23 = jnp.maximum(y23 + b1_ref[1:2, :], 0.0)                   # (HW, nf4) f32

    # ---- fused channel concat  cat(x3, relu(conv13), relu(conv23))  in bf16 ----
    z = jnp.concatenate(
        [x3_ref[...], y13.astype(bf16), y23.astype(bf16)], axis=-1)
    z = z.reshape(H, W, C3)                                        # (H, W, 3*nf4)

    # ---- dx-shifted copies into the H-padded scratch -------------------------
    # pad_c[kx, y+1, x, :] = in[y, x + kx - 1, :]  (zero outside the image), so a
    # (ky,kx) tap is the major-axis slice pad_c[kx, ky:ky+H]  (no relayout copy).
    zc = jnp.zeros((H, 1, C3), bf16)
    pad_c[0, 1:H + 1] = jnp.concatenate([zc, z[:, :W - 1, :]], axis=1)
    pad_c[1, 1:H + 1] = z
    pad_c[2, 1:H + 1] = jnp.concatenate([z[:, 1:, :], zc], axis=1)
    # Re-zero only the tiny H-border rows each step (megacore-safe, ~nothing).
    pad_c[:, 0:1] = jnp.zeros((3, 1, W, C3), bf16)
    pad_c[:, H + 1:H + 2] = jnp.zeros((3, 1, W, C3), bf16)

    # ---- conv_merge: single 3x3 conv with Cin = 3*nf4, VMEM f32 accumulator ---
    accm_ref[...] = jnp.broadcast_to(bm_ref[...], (HW, cout)).astype(f32)
    for ky in range(3):
        for kx in range(3):
            patch = pad_c[kx, ky:ky + H].reshape(HW, C3)           # bf16
            accm_ref[...] += jnp.dot(patch, wm_ref[ky * 3 + kx],
                                     preferred_element_type=f32)
    ym = jnp.maximum(accm_ref[...], 0.0).astype(bf16).reshape(H, W, cout)

    # ---- conv_tail1: 3x3, no activation, computed transposed -> (cout, HW) ----
    zt = jnp.zeros((H, 1, cout), bf16)
    pad_t[0, 1:H + 1] = jnp.concatenate([zt, ym[:, :W - 1, :]], axis=1)
    pad_t[1, 1:H + 1] = ym
    pad_t[2, 1:H + 1] = jnp.concatenate([ym[:, 1:, :], zt], axis=1)
    pad_t[:, 0:1] = jnp.zeros((3, 1, W, cout), bf16)
    pad_t[:, H + 1:H + 2] = jnp.zeros((3, 1, W, cout), bf16)

    acct_ref[...] = jnp.broadcast_to(bt_ref[...], (cout, HW)).astype(f32)
    nt_dims = (((1,), (1,)), ((), ()))          # contract Cin of both operands
    for ky in range(3):
        for kx in range(3):
            patch = pad_t[kx, ky:ky + H].reshape(HW, cout)         # (HW, Cin) bf16
            # (cout, Cin) x (HW, Cin)^T -> (cout, HW): lane-dense accumulator.
            acct_ref[...] += lax.dot_general(wt_ref[ky * 3 + kx], patch, nt_dims,
                                             preferred_element_type=f32)

    # lane-dense (cout, HW) output; the wrapper reshapes to NCHW for free.
    o_ref[...] = acct_ref[...].astype(o_ref.dtype)


def merge_tail_fused(params, x3f, x13f, x23f, *, H, W):
    """x3f: (B, H*W, nf/4), x13f: (B, H*W, nf), x23f: (B, H*W, nf/2), all bf16."""
    B, HW, nf4 = x3f.shape
    nf = x13f.shape[2]
    nf2 = x23f.shape[2]
    cout = params["bt"].shape[0]

    kernel = functools.partial(_merge_tail_kernel, H=H, W=W, nf4=nf4, cout=cout)
    per_b = lambda b: (b, 0, 0)
    full2 = lambda b: (0, 0)
    full3 = lambda b: (0, 0, 0)

    return pl.pallas_call(
        kernel,
        out_shape=jax.ShapeDtypeStruct((B, cout, HW), jnp.float32),
        grid_spec=pltpu.PrefetchScalarGridSpec(
            num_scalar_prefetch=0,
            grid=(B,),                                   # one image per step
            in_specs=[
                pl.BlockSpec((None, HW, nf4), per_b),    # x3
                pl.BlockSpec((None, HW, nf), per_b),     # upsampled x1
                pl.BlockSpec((None, HW, nf2), per_b),    # upsampled x2
                pl.BlockSpec((nf, nf4), full2),          # w13 (bf16)
                pl.BlockSpec((nf2, nf4), full2),         # w23 (bf16)
                pl.BlockSpec((2, nf4), full2),           # b13/b23 stacked (f32)
                pl.BlockSpec((9, 3 * nf4, cout), full3), # w_merge (bf16, fused Cin)
                pl.BlockSpec((1, cout), full2),          # b_merge (f32)
                pl.BlockSpec((9, cout, cout), full3),    # w_tail1 (bf16, (out,in))
                pl.BlockSpec((cout, 1), full2),          # b_tail1 (f32, column)
            ],
            out_specs=pl.BlockSpec((None, cout, HW), per_b),
            scratch_shapes=[
                pltpu.VMEM((3, H + 2, W, 3 * nf4), jnp.bfloat16),  # merge pad (3 dx)
                pltpu.VMEM((3, H + 2, W, cout), jnp.bfloat16),     # tail pad (3 dx)
                pltpu.VMEM((HW, cout), jnp.float32),               # merge accumulator
                pltpu.VMEM((cout, HW), jnp.float32),               # tail accumulator
            ],
        ),
        compiler_params=pltpu.CompilerParams(
            dimension_semantics=("parallel",),
            vmem_limit_bytes=32 * 1024 * 1024),
    )(x3f, x13f, x23f,
      params["w13"], params["w23"], params["b1"],
      params["wm"], params["bm"], params["wt"], params["bt"])


# ----------------------------------------------------------------------------
# Plain-JAX glue: bicubic upsample (PyTorch semantics) as resize matmuls.
# ----------------------------------------------------------------------------
def _bicubic_matrix(in_size, scale):
    A = -0.75
    out_size = in_size * scale
    i = jnp.arange(out_size, dtype=jnp.float32)
    src = (i + 0.5) / scale - 0.5
    f = jnp.floor(src)
    t = src - f
    fi = f.astype(jnp.int32)

    def cc1(z):  # |z| <= 1
        return ((A + 2.0) * z - (A + 3.0)) * z * z + 1.0

    def cc2(z):  # 1 < |z| < 2
        return ((A * z - 5.0 * A) * z + 8.0 * A) * z - 4.0 * A

    weights = [cc2(t + 1.0), cc1(t), cc1(1.0 - t), cc2(2.0 - t)]
    taps = [fi - 1, fi, fi + 1, fi + 2]
    m = jnp.zeros((out_size, in_size), jnp.float32)
    for w, idx in zip(weights, taps):
        idx = jnp.clip(idx, 0, in_size - 1)             # border clamp
        m = m + w[:, None] * jax.nn.one_hot(idx, in_size, dtype=jnp.float32)
    return m                                            # (out, in)


def bicubic_upsample_nhwc_flat(x, scale, out_dtype=jnp.bfloat16):
    """x: (B, C, h, w) NCHW -> (B, (h*s)*(w*s), C) channels-last flat, bf16 out."""
    B, C, h, w = x.shape
    Rh = _bicubic_matrix(h, scale)                      # (H, h)
    Rw = _bicubic_matrix(w, scale)                      # (W, w)
    y = jnp.einsum('bchw,Hh,Ww->bHWc', x, Rh, Rw)
    return y.reshape(B, (h * scale) * (w * scale), C).astype(out_dtype)


# ----------------------------------------------------------------------------
# Parameters (deterministic; PyTorch-shaped, then converted to kernel layout)
# ----------------------------------------------------------------------------
def init_merge_tail_params(key, n_feats, out_channels):
    nf4 = n_feats // 4
    nf2 = n_feats // 2
    keys = jax.random.split(key, 8)

    def conv_w(k, cout, cin, kh, kw):
        return 0.05 * jax.random.normal(k, (cout, cin, kh, kw), jnp.float32)

    def conv_b(k, cout):
        return 0.01 * jax.random.normal(k, (cout,), jnp.float32)

    w13 = conv_w(keys[0], nf4, n_feats, 1, 1)
    b13 = conv_b(keys[1], nf4)
    w23 = conv_w(keys[2], nf4, nf2, 1, 1)
    b23 = conv_b(keys[3], nf4)
    wm = conv_w(keys[4], out_channels, 3 * nf4, 3, 3)
    bm = conv_b(keys[5], out_channels)
    wt1 = conv_w(keys[6], out_channels, out_channels, 3, 3)
    bt1 = conv_b(keys[7], out_channels)
    # conv_tail2 exists in __init__ but is unused in forward(); omitted.

    bf16 = jnp.bfloat16

    def w1x1(wt):   # (Cout, Cin, 1, 1) -> (Cin, Cout) bf16
        return jnp.transpose(wt[:, :, 0, 0], (1, 0)).astype(bf16)

    def w3x3_in_out(wt):   # (Cout, Cin, 3, 3) -> (9, Cin, Cout) bf16, k = ky*3+kx
        return jnp.transpose(wt, (2, 3, 1, 0)).reshape(
            9, wt.shape[1], wt.shape[0]).astype(bf16)

    def w3x3_out_in(wt):   # (Cout, Cin, 3, 3) -> (9, Cout, Cin) bf16, k = ky*3+kx
        return jnp.transpose(wt, (2, 3, 0, 1)).reshape(
            9, wt.shape[0], wt.shape[1]).astype(bf16)

    return {
        "w13": w1x1(w13),
        "w23": w1x1(w23),
        "b1": jnp.stack([b13, b23], axis=0),            # (2, nf4) f32
        "wm": w3x3_in_out(wm),                          # (9, 3*nf4, cout) bf16
        "bm": bm.reshape(1, -1),                        # (1, cout) f32
        "wt": w3x3_out_in(wt1),                         # (9, cout, cout) bf16
        "bt": bt1.reshape(-1, 1),                       # (cout, 1) f32
    }


# ----------------------------------------------------------------------------
# Forward pass (semantics of MergeTail.forward)
# ----------------------------------------------------------------------------
@jax.jit
def merge_tail_forward(params, x1, x2, x3):
    # x1: (B, nf, H/4, W/4), x2: (B, nf/2, H/2, W/2), x3: (B, nf/4, H, W) NCHW
    B, nf4, H, W = x3.shape
    cout = params["bt"].shape[0]
    act_dt = jnp.bfloat16

    x13f = bicubic_upsample_nhwc_flat(x1, 4, act_dt)    # (B, H*W, nf)   bf16
    x23f = bicubic_upsample_nhwc_flat(x2, 2, act_dt)    # (B, H*W, nf/2) bf16
    x3f = jnp.transpose(x3, (0, 2, 3, 1)).reshape(B, H * W, nf4).astype(act_dt)

    out = merge_tail_fused(params, x3f, x13f, x23f, H=H, W=W)  # (B, cout, H*W)
    return out.reshape(B, cout, H, W)                   # NCHW, pure reshape


# ----------------------------------------------------------------------------
if __name__ == "__main__":
    n_feats = 32
    out_channels = 8
    B, hs, ws = 2, 4, 4            # x1 spatial; x3 is 4x larger -> 16x16
    H, W = 4 * hs, 4 * ws

    key = jax.random.PRNGKey(0)
    kp, k1, k2, k3 = jax.random.split(key, 4)

    params = init_merge_tail_params(kp, n_feats, out_channels)

    x1 = jax.random.normal(k1, (B, n_feats, hs, ws), jnp.float32)
    x2 = jax.random.normal(k2, (B, n_feats // 2, 2 * hs, 2 * ws), jnp.float32)
    x3 = jax.random.normal(k3, (B, n_feats // 4, H, W), jnp.float32)

    out = merge_tail_forward(params, x1, x2, x3)
    jax.block_until_ready(out)
    assert out.shape == (B, out_channels, H, W), out.shape
    assert bool(jnp.all(jnp.isfinite(out)))
    print("KERNEL_OK")
</pallas_src>

<mosaic_0001>
module attributes {stable_mosaic.version = 11 : i64} {
  func.func @_merge_tail_kernel(%arg0: i32, %arg1: memref<1x256x8xbf16, #tpu.memory_space<vmem>>, %arg2: memref<1x256x32xbf16, #tpu.memory_space<vmem>>, %arg3: memref<1x256x16xbf16, #tpu.memory_space<vmem>>, %arg4: memref<32x8xbf16, #tpu.memory_space<vmem>>, %arg5: memref<16x8xbf16, #tpu.memory_space<vmem>>, %arg6: memref<2x8xf32, #tpu.memory_space<vmem>>, %arg7: memref<9x24x8xbf16, #tpu.memory_space<vmem>>, %arg8: memref<1x8xf32, #tpu.memory_space<vmem>>, %arg9: memref<9x8x8xbf16, #tpu.memory_space<vmem>>, %arg10: memref<8x1xf32, #tpu.memory_space<vmem>>, %arg11: memref<1x8x256xf32, #tpu.memory_space<vmem>>, %arg12: memref<3x18x16x24xbf16, #tpu.memory_space<vmem>>, %arg13: memref<3x18x16x8xbf16, #tpu.memory_space<vmem>>, %arg14: memref<256x8xf32, #tpu.memory_space<vmem>>, %arg15: memref<8x256xf32, #tpu.memory_space<vmem>>) attributes {dimension_semantics = [#tpu.dimension_semantics<parallel>], iteration_bounds = array<i64: 2>, scalar_prefetch = 0 : i64, scratch_operands = 4 : i64, tpu.core_type = #tpu.core_type<tc>, window_params = [{transform_indices = @transform_0, window_bounds = array<i64: 1, 256, 8>}, {transform_indices = @transform_1, window_bounds = array<i64: 1, 256, 32>}, {transform_indices = @transform_2, window_bounds = array<i64: 1, 256, 16>}, {pipeline_mode = #tpu.pipeline_mode<synchronous>, transform_indices = @transform_3, window_bounds = array<i64: 32, 8>}, {pipeline_mode = #tpu.pipeline_mode<synchronous>, transform_indices = @transform_4, window_bounds = array<i64: 16, 8>}, {pipeline_mode = #tpu.pipeline_mode<synchronous>, transform_indices = @transform_5, window_bounds = array<i64: 2, 8>}, {pipeline_mode = #tpu.pipeline_mode<synchronous>, transform_indices = @transform_6, window_bounds = array<i64: 9, 24, 8>}, {pipeline_mode = #tpu.pipeline_mode<synchronous>, transform_indices = @transform_7, window_bounds = array<i64: 1, 8>}, {pipeline_mode = #tpu.pipeline_mode<synchronous>, transform_indices = @transform_8, window_bounds = array<i64: 9, 8, 8>}, {pipeline_mode = #tpu.pipeline_mode<synchronous>, transform_indices = @transform_9, window_bounds = array<i64: 8, 1>}, {transform_indices = @transform_10, window_bounds = array<i64: 1, 8, 256>}]} {
    %c0 = arith.constant 0 : index
    %c0_0 = arith.constant 0 : index
    %c0_1 = arith.constant 0 : index
    %0 = vector.load %arg2[%c0, %c0_0, %c0_1] : memref<1x256x32xbf16, #tpu.memory_space<vmem>>, vector<1x256x32xbf16>
    %1 = vector.shape_cast %0 : vector<1x256x32xbf16> to vector<256x32xbf16>
    %c0_2 = arith.constant 0 : index
    %c0_3 = arith.constant 0 : index
    %2 = vector.load %arg4[%c0_2, %c0_3] : memref<32x8xbf16, #tpu.memory_space<vmem>>, vector<32x8xbf16>
    %cst = arith.constant dense<0.000000e+00> : vector<256x8xf32>
    %3 = tpu.matmul %1, %2, %cst {dimension_numbers = #tpu.dot_dimension_numbers<[1], [0], [0], [1], [0, 0, 1, 1], [], []>} : vector<256x32xbf16>, vector<32x8xbf16>, vector<256x8xf32> -> vector<256x8xf32>
    %c0_4 = arith.constant 0 : index
    %c0_5 = arith.constant 0 : index
    %4 = vector.load %arg6[%c0_4, %c0_5] : memref<2x8xf32, #tpu.memory_space<vmem>>, vector<1x8xf32>
    %5 = vector.broadcast %4 : vector<1x8xf32> to vector<256x8xf32>
    %6 = arith.addf %3, %5 : vector<256x8xf32>
    %cst_6 = arith.constant 0.000000e+00 : f32
    %7 = vector.broadcast %cst_6 : f32 to vector<256x8xf32>
    %8 = arith.maximumf %6, %7 : vector<256x8xf32>
    %c0_7 = arith.constant 0 : index
    %c0_8 = arith.constant 0 : index
    %c0_9 = arith.constant 0 : index
    %9 = vector.load %arg3[%c0_7, %c0_8, %c0_9] : memref<1x256x16xbf16, #tpu.memory_space<vmem>>, vector<1x256x16xbf16>
    %10 = vector.shape_cast %9 : vector<1x256x16xbf16> to vector<256x16xbf16>
    %c0_10 = arith.constant 0 : index
    %c0_11 = arith.constant 0 : index
    %11 = vector.load %arg5[%c0_10, %c0_11] : memref<16x8xbf16, #tpu.memory_space<vmem>>, vector<16x8xbf16>
    %cst_12 = arith.constant dense<0.000000e+00> : vector<256x8xf32>
    %12 = tpu.matmul %10, %11, %cst_12 {dimension_numbers = #tpu.dot_dimension_numbers<[1], [0], [0], [1], [0, 0, 1, 1], [], []>} : vector<256x16xbf16>, vector<16x8xbf16>, vector<256x8xf32> -> vector<256x8xf32>
    %c1 = arith.constant 1 : index
    %c0_13 = arith.constant 0 : index
    %13 = vector.load %arg6[%c1, %c0_13] : memref<2x8xf32, #tpu.memory_space<vmem>>, vector<1x8xf32>
    %14 = vector.broadcast %13 : vector<1x8xf32> to vector<256x8xf32>
    %15 = arith.addf %12, %14 : vector<256x8xf32>
    %cst_14 = arith.constant 0.000000e+00 : f32
    %16 = vector.broadcast %cst_14 : f32 to vector<256x8xf32>
    %17 = arith.maximumf %15, %16 : vector<256x8xf32>
    %c0_15 = arith.constant 0 : index
    %c0_16 = arith.constant 0 : index
    %c0_17 = arith.constant 0 : index
    %18 = vector.load %arg1[%c0_15, %c0_16, %c0_17] : memref<1x256x8xbf16, #tpu.memory_space<vmem>>, vector<1x256x8xbf16>
    %19 = vector.shape_cast %18 : vector<1x256x8xbf16> to vector<256x8xbf16>
    %20 = arith.truncf %8 : vector<256x8xf32> to vector<256x8xbf16>
    %21 = arith.truncf %17 : vector<256x8xf32> to vector<256x8xbf16>
    %22 = tpu.concatenate %19, %20, %21 in 1 : vector<256x8xbf16>, vector<256x8xbf16>, vector<256x8xbf16> -> vector<256x24xbf16>
    %23 = vector.shape_cast %22 : vector<256x24xbf16> to vector<16x16x24xbf16>
    %cst_18 = arith.constant 0.000000e+00 : bf16
    %24 = vector.broadcast %cst_18 : bf16 to vector<16x1x24xbf16>
    %25 = vector.extract_strided_slice %23 {offsets = [0, 0, 0], sizes = [16, 15, 24], strides = [1, 1, 1]} : vector<16x16x24xbf16> to vector<16x15x24xbf16>
    %26 = tpu.concatenate %24, %25 in 1 : vector<16x1x24xbf16>, vector<16x15x24xbf16> -> vector<16x16x24xbf16>
    %c0_19 = arith.constant 0 : index
    %c1_20 = arith.constant 1 : index
    %c0_21 = arith.constant 0 : index
    %c0_22 = arith.constant 0 : index
    %27 = vector.load %arg12[%c0_19, %c1_20, %c0_21, %c0_22] : memref<3x18x16x24xbf16, #tpu.memory_space<vmem>>, vector<1x16x16x24xbf16>
    %28 = vector.shape_cast %27 : vector<1x16x16x24xbf16> to vector<16x16x24xbf16>
    %29 = vector.shape_cast %26 : vector<16x16x24xbf16> to vector<1x16x16x24xbf16>
    tpu.vector_store %arg12[%c0_19, %c1_20, %c0_21, %c0_22], %29 {strides = array<i32>} : memref<3x18x16x24xbf16, #tpu.memory_space<vmem>>, vector<1x16x16x24xbf16>,
    %c1_23 = arith.constant 1 : index
    %c1_24 = arith.constant 1 : index
    %c0_25 = arith.constant 0 : index
    %c0_26 = arith.constant 0 : index
    %30 = vector.load %arg12[%c1_23, %c1_24, %c0_25, %c0_26] : memref<3x18x16x24xbf16, #tpu.memory_space<vmem>>, vector<1x16x16x24xbf16>
    %31 = vector.shape_cast %30 : vector<1x16x16x24xbf16> to vector<16x16x24xbf16>
    %32 = vector.shape_cast %23 : vector<16x16x24xbf16> to vector<1x16x16x24xbf16>
    tpu.vector_store %arg12[%c1_23, %c1_24, %c0_25, %c0_26], %32 {strides = array<i32>} : memref<3x18x16x24xbf16, #tpu.memory_space<vmem>>, vector<1x16x16x24xbf16>,
    %33 = vector.extract_strided_slice %23 {offsets = [0, 1, 0], sizes = [16, 15, 24], strides = [1, 1, 1]} : vector<16x16x24xbf16> to vector<16x15x24xbf16>
    %34 = tpu.concatenate %33, %24 in 1 : vector<16x15x24xbf16>, vector<16x1x24xbf16> -> vector<16x16x24xbf16>
    %c2 = arith.constant 2 : index
    %c1_27 = arith.constant 1 : index
    %c0_28 = arith.constant 0 : index
    %c0_29 = arith.constant 0 : index
    %35 = vector.load %arg12[%c2, %c1_27, %c0_28, %c0_29] : memref<3x18x16x24xbf16, #tpu.memory_space<vmem>>, vector<1x16x16x24xbf16>
    %36 = vector.shape_cast %35 : vector<1x16x16x24xbf16> to vector<16x16x24xbf16>
    %37 = vector.shape_cast %34 : vector<16x16x24xbf16> to vector<1x16x16x24xbf16>
    tpu.vector_store %arg12[%c2, %c1_27, %c0_28, %c0_29], %37 {strides = array<i32>} : memref<3x18x16x24xbf16, #tpu.memory_space<vmem>>, vector<1x16x16x24xbf16>,
    %cst_30 = arith.constant 0.000000e+00 : bf16
    %38 = vector.broadcast %cst_30 : bf16 to vector<3x1x16x24xbf16>
    %c0_31 = arith.constant 0 : index
    %c0_32 = arith.constant 0 : index
    %c0_33 = arith.constant 0 : index
    %c0_34 = arith.constant 0 : index
    %39 = vector.load %arg12[%c0_31, %c0_32, %c0_33, %c0_34] : memref<3x18x16x24xbf16, #tpu.memory_space<vmem>>, vector<3x1x16x24xbf16>
    tpu.vector_store %arg12[%c0_31, %c0_32, %c0_33, %c0_34], %38 {strides = array<i32>} : memref<3x18x16x24xbf16, #tpu.memory_space<vmem>>, vector<3x1x16x24xbf16>,
    %cst_35 = arith.constant 0.000000e+00 : bf16
    %40 = vector.broadcast %cst_35 : bf16 to vector<3x1x16x24xbf16>
    %c0_36 = arith.constant 0 : index
    %c17 = arith.constant 17 : index
    %c0_37 = arith.constant 0 : index
    %c0_38 = arith.constant 0 : index
    %41 = vector.load %arg12[%c0_36, %c17, %c0_37, %c0_38] : memref<3x18x16x24xbf16, #tpu.memory_space<vmem>>, vector<3x1x16x24xbf16>
    tpu.vector_store %arg12[%c0_36, %c17, %c0_37, %c0_38], %40 {strides = array<i32>} : memref<3x18x16x24xbf16, #tpu.memory_space<vmem>>, vector<3x1x16x24xbf16>,
    %c0_39 = arith.constant 0 : index
    %c0_40 = arith.constant 0 : index
    %42 = vector.load %arg8[%c0_39, %c0_40] : memref<1x8xf32, #tpu.memory_space<vmem>>, vector<1x8xf32>
    %43 = vector.shape_cast %42 : vector<1x8xf32> to vector<1x8xf32>
    %44 = vector.broadcast %43 : vector<1x8xf32> to vector<256x8xf32>
    %c0_41 = arith.constant 0 : index
    %c0_42 = arith.constant 0 : index
    %45 = vector.load %arg14[%c0_41, %c0_42] : memref<256x8xf32, #tpu.memory_space<vmem>>, vector<256x8xf32>
    tpu.vector_store %arg14[%c0_41, %c0_42], %44 {strides = array<i32>} : memref<256x8xf32, #tpu.memory_space<vmem>>, vector<256x8xf32>,
    %c0_43 = arith.constant 0 : index
    %c0_44 = arith.constant 0 : index
    %c0_45 = arith.constant 0 : index
    %c0_46 = arith.constant 0 : index
    %46 = vector.load %arg12[%c0_43, %c0_44, %c0_45, %c0_46] : memref<3x18x16x24xbf16, #tpu.memory_space<vmem>>, vector<1x16x16x24xbf16>
    %47 = vector.shape_cast %46 : vector<1x16x16x24xbf16> to vector<16x16x24xbf16>
    %48 = vector.shape_cast %47 : vector<16x16x24xbf16> to vector<256x24xbf16>
    %c0_47 = arith.constant 0 : index
    %c0_48 = arith.constant 0 : index
    %49 = vector.load %arg14[%c0_47, %c0_48] : memref<256x8xf32, #tpu.memory_space<vmem>>, vector<256x8xf32>
    %c0_49 = arith.constant 0 : index
    %c0_50 = arith.constant 0 : index
    %c0_51 = arith.constant 0 : index
    %50 = vector.load %arg7[%c0_49, %c0_50, %c0_51] : memref<9x24x8xbf16, #tpu.memory_space<vmem>>, vector<1x24x8xbf16>
    %51 = vector.shape_cast %50 : vector<1x24x8xbf16> to vector<24x8xbf16>
    %cst_52 = arith.constant dense<0.000000e+00> : vector<256x8xf32>
    %52 = tpu.matmul %48, %51, %cst_52 {dimension_numbers = #tpu.dot_dimension_numbers<[1], [0], [0], [1], [0, 0, 1, 1], [], []>} : vector<256x24xbf16>, vector<24x8xbf16>, vector<256x8xf32> -> vector<256x8xf32>
    %53 = arith.addf %49, %52 : vector<256x8xf32>
    %c0_53 = arith.constant 0 : index
    %c0_54 = arith.constant 0 : index
    %54 = vector.load %arg14[%c0_53, %c0_54] : memref<256x8xf32, #tpu.memory_space<vmem>>, vector<256x8xf32>
    tpu.vector_store %arg14[%c0_53, %c0_54], %53 {strides = array<i32>} : memref<256x8xf32, #tpu.memory_space<vmem>>, vector<256x8xf32>,
    %c1_55 = arith.constant 1 : index
    %c0_56 = arith.constant 0 : index
    %c0_57 = arith.constant 0 : index
    %c0_58 = arith.constant 0 : index
    %55 = vector.load %arg12[%c1_55, %c0_56, %c0_57, %c0_58] : memref<3x18x16x24xbf16, #tpu.memory_space<vmem>>, vector<1x16x16x24xbf16>
    %56 = vector.shape_cast %55 : vector<1x16x16x24xbf16> to vector<16x16x24xbf16>
    %57 = vector.shape_cast %56 : vector<16x16x24xbf16> to vector<256x24xbf16>
    %c0_59 = arith.constant 0 : index
    %c0_60 = arith.constant 0 : index
    %58 = vector.load %arg14[%c0_59, %c0_60] : memref<256x8xf32, #tpu.memory_space<vmem>>, vector<256x8xf32>
    %c1_61 = arith.constant 1 : index
    %c0_62 = arith.constant 0 : index
    %c0_63 = arith.constant 0 : index
    %59 = vector.load %arg7[%c1_61, %c0_62, %c0_63] : memref<9x24x8xbf16, #tpu.memory_space<vmem>>, vector<1x24x8xbf16>
    %60 = vector.shape_cast %59 : vector<1x24x8xbf16> to vector<24x8xbf16>
    %cst_64 = arith.constant dense<0.000000e+00> : vector<256x8xf32>
    %61 = tpu.matmul %57, %60, %cst_64 {dimension_numbers = #tpu.dot_dimension_numbers<[1], [0], [0], [1], [0, 0, 1, 1], [], []>} : vector<256x24xbf16>, vector<24x8xbf16>, vector<256x8xf32> -> vector<256x8xf32>
    %62 = arith.addf %58, %61 : vector<256x8xf32>
    %c0_65 = arith.constant 0 : index
    %c0_66 = arith.constant 0 : index
    %63 = vector.load %arg14[%c0_65, %c0_66] : memref<256x8xf32, #tpu.memory_space<vmem>>, vector<256x8xf32>
    tpu.vector_store %arg14[%c0_65, %c0_66], %62 {strides = array<i32>} : memref<256x8xf32, #tpu.memory_space<vmem>>, vector<256x8xf32>,
    %c2_67 = arith.constant 2 : index
    %c0_68 = arith.constant 0 : index
    %c0_69 = arith.constant 0 : index
    %c0_70 = arith.constant 0 : index
    %64 = vector.load %arg12[%c2_67, %c0_68, %c0_69, %c0_70] : memref<3x18x16x24xbf16, #tpu.memory_space<vmem>>, vector<1x16x16x24xbf16>
    %65 = vector.shape_cast %64 : vector<1x16x16x24xbf16> to vector<16x16x24xbf16>
    %66 = vector.shape_cast %65 : vector<16x16x24xbf16> to vector<256x24xbf16>
    %c0_71 = arith.constant 0 : index
    %c0_72 = arith.constant 0 : index
    %67 = vector.load %arg14[%c0_71, %c0_72] : memref<256x8xf32, #tpu.memory_space<vmem>>, vector<256x8xf32>
    %c2_73 = arith.constant 2 : index
    %c0_74 = arith.constant 0 : index
    %c0_75 = arith.constant 0 : index
    %68 = vector.load %arg7[%c2_73, %c0_74, %c0_75] : memref<9x24x8xbf16, #tpu.memory_space<vmem>>, vector<1x24x8xbf16>
    %69 = vector.shape_cast %68 : vector<1x24x8xbf16> to vector<24x8xbf16>
    %cst_76 = arith.constant dense<0.000000e+00> : vector<256x8xf32>
    %70 = tpu.matmul %66, %69, %cst_76 {dimension_numbers = #tpu.dot_dimension_numbers<[1], [0], [0], [1], [0, 0, 1, 1], [], []>} : vector<256x24xbf16>, vector<24x8xbf16>, vector<256x8xf32> -> vector<256x8xf32>
    %71 = arith.addf %67, %70 : vector<256x8xf32>
    %c0_77 = arith.constant 0 : index
    %c0_78 = arith.constant 0 : index
    %72 = vector.load %arg14[%c0_77, %c0_78] : memref<256x8xf32, #tpu.memory_space<vmem>>, vector<256x8xf32>
    tpu.vector_store %arg14[%c0_77, %c0_78], %71 {strides = array<i32>} : memref<256x8xf32, #tpu.memory_space<vmem>>, vector<256x8xf32>,
    %c0_79 = arith.constant 0 : index
    %c1_80 = arith.constant 1 : index
    %c0_81 = arith.constant 0 : index
    %c0_82 = arith.constant 0 : index
    %73 = vector.load %arg12[%c0_79, %c1_80, %c0_81, %c0_82] : memref<3x18x16x24xbf16, #tpu.memory_space<vmem>>, vector<1x16x16x24xbf16>
    %74 = vector.shape_cast %73 : vector<1x16x16x24xbf16> to vector<16x16x24xbf16>
    %75 = vector.shape_cast %74 : vector<16x16x24xbf16> to vector<256x24xbf16>
    %c0_83 = arith.constant 0 : index
    %c0_84 = arith.constant 0 : index
    %76 = vector.load %arg14[%c0_83, %c0_84] : memref<256x8xf32, #tpu.memory_space<vmem>>, vector<256x8xf32>
    %c3 = arith.constant 3 : index
    %c0_85 = arith.constant 0 : index
    %c0_86 = arith.constant 0 : index
    %77 = vector.load %arg7[%c3, %c0_85, %c0_86] : memref<9x24x8xbf16, #tpu.memory_space<vmem>>, vector<1x24x8xbf16>
    %78 = vector.shape_cast %77 : vector<1x24x8xbf16> to vector<24x8xbf16>
    %cst_87 = arith.constant dense<0.000000e+00> : vector<256x8xf32>
    %79 = tpu.matmul %75, %78, %cst_87 {dimension_numbers = #tpu.dot_dimension_numbers<[1], [0], [0], [1], [0, 0, 1, 1], [], []>} : vector<256x24xbf16>, vector<24x8xbf16>, vector<256x8xf32> -> vector<256x8xf32>
    %80 = arith.addf %76, %79 : vector<256x8xf32>
    %c0_88 = arith.constant 0 : index
    %c0_89 = arith.constant 0 : index
    %81 = vector.load %arg14[%c0_88, %c0_89] : memref<256x8xf32, #tpu.memory_space<vmem>>, vector<256x8xf32>
    tpu.vector_store %arg14[%c0_88, %c0_89], %80 {strides = array<i32>} : memref<256x8xf32, #tpu.memory_space<vmem>>, vector<256x8xf32>,
    %c1_90 = arith.constant 1 : index
    %c1_91 = arith.constant 1 : index
    %c0_92 = arith.constant 0 : index
    %c0_93 = arith.constant 0 : index
    %82 = vector.load %arg12[%c1_90, %c1_91, %c0_92, %c0_93] : memref<3x18x16x24xbf16, #tpu.memory_space<vmem>>, vector<1x16x16x24xbf16>
    %83 = vector.shape_cast %82 : vector<1x16x16x24xbf16> to vector<16x16x24xbf16>
    %84 = vector.shape_cast %83 : vector<16x16x24xbf16> to vector<256x24xbf16>
    %c0_94 = arith.constant 0 : index
    %c0_95 = arith.constant 0 : index
    %85 = vector.load %arg14[%c0_94, %c0_95] : memref<256x8xf32, #tpu.memory_space<vmem>>, vector<256x8xf32>
    %c4 = arith.constant 4 : index
    %c0_96 = arith.constant 0 : index
    %c0_97 = arith.constant 0 : index
    %86 = vector.load %arg7[%c4, %c0_96, %c0_97] : memref<9x24x8xbf16, #tpu.memory_space<vmem>>, vector<1x24x8xbf16>
    %87 = vector.shape_cast %86 : vector<1x24x8xbf16> to vector<24x8xbf16>
    %cst_98 = arith.constant dense<0.000000e+00> : vector<256x8xf32>
    %88 = tpu.matmul %84, %87, %cst_98 {dimension_numbers = #tpu.dot_dimension_numbers<[1], [0], [0], [1], [0, 0, 1, 1], [], []>} : vector<256x24xbf16>, vector<24x8xbf16>, vector<256x8xf32> -> vector<256x8xf32>
    %89 = arith.addf %85, %88 : vector<256x8xf32>
    %c0_99 = arith.constant 0 : index
    %c0_100 = arith.constant 0 : index
    %90 = vector.load %arg14[%c0_99, %c0_100] : memref<256x8xf32, #tpu.memory_space<vmem>>, vector<256x8xf32>
    tpu.vector_store %arg14[%c0_99, %c0_100], %89 {strides = array<i32>} : memref<256x8xf32, #tpu.memory_space<vmem>>, vector<256x8xf32>,
    %c2_101 = arith.constant 2 : index
    %c1_102 = arith.constant 1 : index
    %c0_103 = arith.constant 0 : index
    %c0_104 = arith.constant 0 : index
    %91 = vector.load %arg12[%c2_101, %c1_102, %c0_103, %c0_104] : memref<3x18x16x24xbf16, #tpu.memory_space<vmem>>, vector<1x16x16x24xbf16>
    %92 = vector.shape_cast %91 : vector<1x16x16x24xbf16> to vector<16x16x24xbf16>
    %93 = vector.shape_cast %92 : vector<16x16x24xbf16> to vector<256x24xbf16>
    %c0_105 = arith.constant 0 : index
    %c0_106 = arith.constant 0 : index
    %94 = vector.load %arg14[%c0_105, %c0_106] : memref<256x8xf32, #tpu.memory_space<vmem>>, vector<256x8xf32>
    %c5 = arith.constant 5 : index
    %c0_107 = arith.constant 0 : index
    %c0_108 = arith.constant 0 : index
    %95 = vector.load %arg7[%c5, %c0_107, %c0_108] : memref<9x24x8xbf16, #tpu.memory_space<vmem>>, vector<1x24x8xbf16>
    %96 = vector.shape_cast %95 : vector<1x24x8xbf16> to vector<24x8xbf16>
    %cst_109 = arith.constant dense<0.000000e+00> : vector<256x8xf32>
    %97 = tpu.matmul %93, %96, %cst_109 {dimension_numbers = #tpu.dot_dimension_numbers<[1], [0], [0], [1], [0, 0, 1, 1], [], []>} : vector<256x24xbf16>, vector<24x8xbf16>, vector<256x8xf32> -> vector<256x8xf32>
    %98 = arith.addf %94, %97 : vector<256x8xf32>
    %c0_110 = arith.constant 0 : index
    %c0_111 = arith.constant 0 : index
    %99 = vector.load %arg14[%c0_110, %c0_111] : memref<256x8xf32, #tpu.memory_space<vmem>>, vector<256x8xf32>
    tpu.vector_store %arg14[%c0_110, %c0_111], %98 {strides = array<i32>} : memref<256x8xf32, #tpu.memory_space<vmem>>, vector<256x8xf32>,
    %c0_112 = arith.constant 0 : index
    %c2_113 = arith.constant 2 : index
    %c0_114 = arith.constant 0 : index
    %c0_115 = arith.constant 0 : index
    %100 = vector.load %arg12[%c0_112, %c2_113, %c0_114, %c0_115] : memref<3x18x16x24xbf16, #tpu.memory_space<vmem>>, vector<1x16x16x24xbf16>
    %101 = vector.shape_cast %100 : vector<1x16x16x24xbf16> to vector<16x16x24xbf16>
    %102 = vector.shape_cast %101 : vector<16x16x24xbf16> to vector<256x24xbf16>
    %c0_116 = arith.constant 0 : index
    %c0_117 = arith.constant 0 : index
    %103 = vector.load %arg14[%c0_116, %c0_117] : memref<256x8xf32, #tpu.memory_space<vmem>>, vector<256x8xf32>
    %c6 = arith.constant 6 : index
    %c0_118 = arith.constant 0 : index
    %c0_119 = arith.constant 0 : index
    %104 = vector.load %arg7[%c6, %c0_118, %c0_119] : memref<9x24x8xbf16, #tpu.memory_space<vmem>>, vector<1x24x8xbf16>
    %105 = vector.shape_cast %104 : vector<1x24x8xbf16> to vector<24x8xbf16>
    %cst_120 = arith.constant dense<0.000000e+00> : vector<256x8xf32>
    %106 = tpu.matmul %102, %105, %cst_120 {dimension_numbers = #tpu.dot_dimension_numbers<[1], [0], [0], [1], [0, 0, 1, 1], [], []>} : vector<256x24xbf16>, vector<24x8xbf16>, vector<256x8xf32> -> vector<256x8xf32>
    %107 = arith.addf %103, %106 : vector<256x8xf32>
    %c0_121 = arith.constant 0 : index
    %c0_122 = arith.constant 0 : index
    %108 = vector.load %arg14[%c0_121, %c0_122] : memref<256x8xf32, #tpu.memory_space<vmem>>, vector<256x8xf32>
    tpu.vector_store %arg14[%c0_121, %c0_122], %107 {strides = array<i32>} : memref<256x8xf32, #tpu.memory_space<vmem>>, vector<256x8xf32>,
    %c1_123 = arith.constant 1 : index
    %c2_124 = arith.constant 2 : index
    %c0_125 = arith.constant 0 : index
    %c0_126 = arith.constant 0 : index
    %109 = vector.load %arg12[%c1_123, %c2_124, %c0_125, %c0_126] : memref<3x18x16x24xbf16, #tpu.memory_space<vmem>>, vector<1x16x16x24xbf16>
    %110 = vector.shape_cast %109 : vector<1x16x16x24xbf16> to vector<16x16x24xbf16>
    %111 = vector.shape_cast %110 : vector<16x16x24xbf16> to vector<256x24xbf16>
    %c0_127 = arith.constant 0 : index
    %c0_128 = arith.constant 0 : index
    %112 = vector.load %arg14[%c0_127, %c0_128] : memref<256x8xf32, #tpu.memory_space<vmem>>, vector<256x8xf32>
    %c7 = arith.constant 7 : index
    %c0_129 = arith.constant 0 : index
    %c0_130 = arith.constant 0 : index
    %113 = vector.load %arg7[%c7, %c0_129, %c0_130] : memref<9x24x8xbf16, #tpu.memory_space<vmem>>, vector<1x24x8xbf16>
    %114 = vector.shape_cast %113 : vector<1x24x8xbf16> to vector<24x8xbf16>
    %cst_131 = arith.constant dense<0.000000e+00> : vector<256x8xf32>
    %115 = tpu.matmul %111, %114, %cst_131 {dimension_numbers = #tpu.dot_dimension_numbers<[1], [0], [0], [1], [0, 0, 1, 1], [], []>} : vector<256x24xbf16>, vector<24x8xbf16>, vector<256x8xf32> -> vector<256x8xf32>
    %116 = arith.addf %112, %115 : vector<256x8xf32>
    %c0_132 = arith.constant 0 : index
    %c0_133 = arith.constant 0 : index
    %117 = vector.load %arg14[%c0_132, %c0_133] : memref<256x8xf32, #tpu.memory_space<vmem>>, vector<256x8xf32>
    tpu.vector_store %arg14[%c0_132, %c0_133], %116 {strides = array<i32>} : memref<256x8xf32, #tpu.memory_space<vmem>>, vector<256x8xf32>,
    %c2_134 = arith.constant 2 : index
    %c2_135 = arith.constant 2 : index
    %c0_136 = arith.constant 0 : index
    %c0_137 = arith.constant 0 : index
    %118 = vector.load %arg12[%c2_134, %c2_135, %c0_136, %c0_137] : memref<3x18x16x24xbf16, #tpu.memory_space<vmem>>, vector<1x16x16x24xbf16>
    %119 = vector.shape_cast %118 : vector<1x16x16x24xbf16> to vector<16x16x24xbf16>
    %120 = vector.shape_cast %119 : vector<16x16x24xbf16> to vector<256x24xbf16>
    %c0_138 = arith.constant 0 : index
    %c0_139 = arith.constant 0 : index
    %121 = vector.load %arg14[%c0_138, %c0_139] : memref<256x8xf32, #tpu.memory_space<vmem>>, vector<256x8xf32>
    %c8 = arith.constant 8 : index
    %c0_140 = arith.constant 0 : index
    %c0_141 = arith.constant 0 : index
    %122 = vector.load %arg7[%c8, %c0_140, %c0_141] : memref<9x24x8xbf16, #tpu.memory_space<vmem>>, vector<1x24x8xbf16>
    %123 = vector.shape_cast %122 : vector<1x24x8xbf16> to vector<24x8xbf16>
    %cst_142 = arith.constant dense<0.000000e+00> : vector<256x8xf32>
    %124 = tpu.matmul %120, %123, %cst_142 {dimension_numbers = #tpu.dot_dimension_numbers<[1], [0], [0], [1], [0, 0, 1, 1], [], []>} : vector<256x24xbf16>, vector<24x8xbf16>, vector<256x8xf32> -> vector<256x8xf32>
    %125 = arith.addf %121, %124 : vector<256x8xf32>
    %c0_143 = arith.constant 0 : index
    %c0_144 = arith.constant 0 : index
    %126 = vector.load %arg14[%c0_143, %c0_144] : memref<256x8xf32, #tpu.memory_space<vmem>>, vector<256x8xf32>
    tpu.vector_store %arg14[%c0_143, %c0_144], %125 {strides = array<i32>} : memref<256x8xf32, #tpu.memory_space<vmem>>, vector<256x8xf32>,
    %c0_145 = arith.constant 0 : index
    %c0_146 = arith.constant 0 : index
    %127 = vector.load %arg14[%c0_145, %c0_146] : memref<256x8xf32, #tpu.memory_space<vmem>>, vector<256x8xf32>
    %cst_147 = arith.constant 0.000000e+00 : f32
    %128 = vector.broadcast %cst_147 : f32 to vector<256x8xf32>
    %129 = arith.maximumf %127, %128 : vector<256x8xf32>
    %130 = arith.truncf %129 : vector<256x8xf32> to vector<256x8xbf16>
    %131 = vector.shape_cast %130 : vector<256x8xbf16> to vector<16x16x8xbf16>
    %cst_148 = arith.constant 0.000000e+00 : bf16
    %132 = vector.broadcast %cst_148 : bf16 to vector<16x1x8xbf16>
    %133 = vector.extract_strided_slice %131 {offsets = [0, 0, 0], sizes = [16, 15, 8], strides = [1, 1, 1]} : vector<16x16x8xbf16> to vector<16x15x8xbf16>
    %134 = tpu.concatenate %132, %133 in 1 : vector<16x1x8xbf16>, vector<16x15x8xbf16> -> vector<16x16x8xbf16>
    %c0_149 = arith.constant 0 : index
    %c1_150 = arith.constant 1 : index
    %c0_151 = arith.constant 0 : index
    %c0_152 = arith.constant 0 : index
    %135 = vector.load %arg13[%c0_149, %c1_150, %c0_151, %c0_152] : memref<3x18x16x8xbf16, #tpu.memory_space<vmem>>, vector<1x16x16x8xbf16>
    %136 = vector.shape_cast %135 : vector<1x16x16x8xbf16> to vector<16x16x8xbf16>
    %137 = vector.shape_cast %134 : vector<16x16x8xbf16> to vector<1x16x16x8xbf16>
    tpu.vector_store %arg13[%c0_149, %c1_150, %c0_151, %c0_152], %137 {strides = array<i32>} : memref<3x18x16x8xbf16, #tpu.memory_space<vmem>>, vector<1x16x16x8xbf16>,
    %c1_153 = arith.constant 1 : index
    %c1_154 = arith.constant 1 : index
    %c0_155 = arith.constant 0 : index
    %c0_156 = arith.constant 0 : index
    %138 = vector.load %arg13[%c1_153, %c1_154, %c0_155, %c0_156] : memref<3x18x16x8xbf16, #tpu.memory_space<vmem>>, vector<1x16x16x8xbf16>
    %139 = vector.shape_cast %138 : vector<1x16x16x8xbf16> to vector<16x16x8xbf16>
    %140 = vector.shape_cast %131 : vector<16x16x8xbf16> to vector<1x16x16x8xbf16>
    tpu.vector_store %arg13[%c1_153, %c1_154, %c0_155, %c0_156], %140 {strides = array<i32>} : memref<3x18x16x8xbf16, #tpu.memory_space<vmem>>, vector<1x16x16x8xbf16>,
    %141 = vector.extract_strided_slice %131 {offsets = [0, 1, 0], sizes = [16, 15, 8], strides = [1, 1, 1]} : vector<16x16x8xbf16> to vector<16x15x8xbf16>
    %142 = tpu.concatenate %141, %132 in 1 : vector<16x15x8xbf16>, vector<16x1x8xbf16> -> vector<16x16x8xbf16>
    %c2_157 = arith.constant 2 : index
    %c1_158 = arith.constant 1 : index
    %c0_159 = arith.constant 0 : index
    %c0_160 = arith.constant 0 : index
    %143 = vector.load %arg13[%c2_157, %c1_158, %c0_159, %c0_160] : memref<3x18x16x8xbf16, #tpu.memory_space<vmem>>, vector<1x16x16x8xbf16>
    %144 = vector.shape_cast %143 : vector<1x16x16x8xbf16> to vector<16x16x8xbf16>
    %145 = vector.shape_cast %142 : vector<16x16x8xbf16> to vector<1x16x16x8xbf16>
    tpu.vector_store %arg13[%c2_157, %c1_158, %c0_159, %c0_160], %145 {strides = array<i32>} : memref<3x18x16x8xbf16, #tpu.memory_space<vmem>>, vector<1x16x16x8xbf16>,
    %cst_161 = arith.constant 0.000000e+00 : bf16
    %146 = vector.broadcast %cst_161 : bf16 to vector<3x1x16x8xbf16>
    %c0_162 = arith.constant 0 : index
    %c0_163 = arith.constant 0 : index
    %c0_164 = arith.constant 0 : index
    %c0_165 = arith.constant 0 : index
    %147 = vector.load %arg13[%c0_162, %c0_163, %c0_164, %c0_165] : memref<3x18x16x8xbf16, #tpu.memory_space<vmem>>, vector<3x1x16x8xbf16>
    tpu.vector_store %arg13[%c0_162, %c0_163, %c0_164, %c0_165], %146 {strides = array<i32>} : memref<3x18x16x8xbf16, #tpu.memory_space<vmem>>, vector<3x1x16x8xbf16>,
    %cst_166 = arith.constant 0.000000e+00 : bf16
    %148 = vector.broadcast %cst_166 : bf16 to vector<3x1x16x8xbf16>
    %c0_167 = arith.constant 0 : index
    %c17_168 = arith.constant 17 : index
    %c0_169 = arith.constant 0 : index
    %c0_170 = arith.constant 0 : index
    %149 = vector.load %arg13[%c0_167, %c17_168, %c0_169, %c0_170] : memref<3x18x16x8xbf16, #tpu.memory_space<vmem>>, vector<3x1x16x8xbf16>
    tpu.vector_store %arg13[%c0_167, %c17_168, %c0_169, %c0_170], %148 {strides = array<i32>} : memref<3x18x16x8xbf16, #tpu.memory_space<vmem>>, vector<3x1x16x8xbf16>,
    %c0_171 = arith.constant 0 : index
    %c0_172 = arith.constant 0 : index
    %150 = vector.load %arg10[%c0_171, %c0_172] : memref<8x1xf32, #tpu.memory_space<vmem>>, vector<8x1xf32>
    %151 = vector.shape_cast %150 : vector<8x1xf32> to vector<8x1xf32>
    %152 = vector.broadcast %151 : vector<8x1xf32> to vector<8x256xf32>
    %c0_173 = arith.constant 0 : index
    %c0_174 = arith.constant 0 : index
    %153 = vector.load %arg15[%c0_173, %c0_174] : memref<8x256xf32, #tpu.memory_space<vmem>>, vector<8x256xf32>
    tpu.vector_store %arg15[%c0_173, %c0_174], %152 {strides = array<i32>} : memref<8x256xf32, #tpu.memory_space<vmem>>, vector<8x256xf32>,
    %c0_175 = arith.constant 0 : index
    %c0_176 = arith.constant 0 : index
    %c0_177 = arith.constant 0 : index
    %c0_178 = arith.constant 0 : index
    %154 = vector.load %arg13[%c0_175, %c0_176, %c0_177, %c0_178] : memref<3x18x16x8xbf16, #tpu.memory_space<vmem>>, vector<1x16x16x8xbf16>
    %155 = vector.shape_cast %154 : vector<1x16x16x8xbf16> to vector<16x16x8xbf16>
    %156 = vector.shape_cast %155 : vector<16x16x8xbf16> to vector<256x8xbf16>
    %c0_179 = arith.constant 0 : index
    %c0_180 = arith.constant 0 : index
    %157 = vector.load %arg15[%c0_179, %c0_180] : memref<8x256xf32, #tpu.memory_space<vmem>>, vector<8x256xf32>
    %c0_181 = arith.constant 0 : index
    %c0_182 = arith.constant 0 : index
    %c0_183 = arith.constant 0 : index
    %158 = vector.load %arg9[%c0_181, %c0_182, %c0_183] : memref<9x8x8xbf16, #tpu.memory_space<vmem>>, vector<1x8x8xbf16>
    %159 = vector.shape_cast %158 : vector<1x8x8xbf16> to vector<8x8xbf16>
    %cst_184 = arith.constant dense<0.000000e+00> : vector<8x256xf32>
    %160 = tpu.matmul %159, %156, %cst_184 {dimension_numbers = #tpu.dot_dimension_numbers<[1], [1], [0], [0], [0, 0, 1, 0], [], []>} : vector<8x8xbf16>, vector<256x8xbf16>, vector<8x256xf32> -> vector<8x256xf32>
    %161 = arith.addf %157, %160 : vector<8x256xf32>
    %c0_185 = arith.constant 0 : index
    %c0_186 = arith.constant 0 : index
    %162 = vector.load %arg15[%c0_185, %c0_186] : memref<8x256xf32, #tpu.memory_space<vmem>>, vector<8x256xf32>
    tpu.vector_store %arg15[%c0_185, %c0_186], %161 {strides = array<i32>} : memref<8x256xf32, #tpu.memory_space<vmem>>, vector<8x256xf32>,
    %c1_187 = arith.constant 1 : index
    %c0_188 = arith.constant 0 : index
    %c0_189 = arith.constant 0 : index
    %c0_190 = arith.constant 0 : index
    %163 = vector.load %arg13[%c1_187, %c0_188, %c0_189, %c0_190] : memref<3x18x16x8xbf16, #tpu.memory_space<vmem>>, vector<1x16x16x8xbf16>
    %164 = vector.shape_cast %163 : vector<1x16x16x8xbf16> to vector<16x16x8xbf16>
    %165 = vector.shape_cast %164 : vector<16x16x8xbf16> to vector<256x8xbf16>
    %c0_191 = arith.constant 0 : index
    %c0_192 = arith.constant 0 : index
    %166 = vector.load %arg15[%c0_191, %c0_192] : memref<8x256xf32, #tpu.memory_space<vmem>>, vector<8x256xf32>
    %c1_193 = arith.constant 1 : index
    %c0_194 = arith.constant 0 : index
    %c0_195 = arith.constant 0 : index
    %167 = vector.load %arg9[%c1_193, %c0_194, %c0_195] : memref<9x8x8xbf16, #tpu.memory_space<vmem>>, vector<1x8x8xbf16>
    %168 = vector.shape_cast %167 : vector<1x8x8xbf16> to vector<8x8xbf16>
    %cst_196 = arith.constant dense<0.000000e+00> : vector<8x256xf32>
    %169 = tpu.matmul %168, %165, %cst_196 {dimension_numbers = #tpu.dot_dimension_numbers<[1], [1], [0], [0], [0, 0, 1, 0], [], []>} : vector<8x8xbf16>, vector<256x8xbf16>, vector<8x256xf32> -> vector<8x256xf32>
    %170 = arith.addf %166, %169 : vector<8x256xf32>
    %c0_197 = arith.constant 0 : index
    %c0_198 = arith.constant 0 : index
    %171 = vector.load %arg15[%c0_197, %c0_198] : memref<8x256xf32, #tpu.memory_space<vmem>>, vector<8x256xf32>
    tpu.vector_store %arg15[%c0_197, %c0_198], %170 {strides = array<i32>} : memref<8x256xf32, #tpu.memory_space<vmem>>, vector<8x256xf32>,
    %c2_199 = arith.constant 2 : index
    %c0_200 = arith.constant 0 : index
    %c0_201 = arith.constant 0 : index
    %c0_202 = arith.constant 0 : index
    %172 = vector.load %arg13[%c2_199, %c0_200, %c0_201, %c0_202] : memref<3x18x16x8xbf16, #tpu.memory_space<vmem>>, vector<1x16x16x8xbf16>
    %173 = vector.shape_cast %172 : vector<1x16x16x8xbf16> to vector<16x16x8xbf16>
    %174 = vector.shape_cast %173 : vector<16x16x8xbf16> to vector<256x8xbf16>
    %c0_203 = arith.constant 0 : index
    %c0_204 = arith.constant 0 : index
    %175 = vector.load %arg15[%c0_203, %c0_204] : memref<8x256xf32, #tpu.memory_space<vmem>>, vector<8x256xf32>
    %c2_205 = arith.constant 2 : index
    %c0_206 = arith.constant 0 : index
    %c0_207 = arith.constant 0 : index
    %176 = vector.load %arg9[%c2_205, %c0_206, %c0_207] : memref<9x8x8xbf16, #tpu.memory_space<vmem>>, vector<1x8x8xbf16>
    %177 = vector.shape_cast %176 : vector<1x8x8xbf16> to vector<8x8xbf16>
    %cst_208 = arith.constant dense<0.000000e+00> : vector<8x256xf32>
    %178 = tpu.matmul %177, %174, %cst_208 {dimension_numbers = #tpu.dot_dimension_numbers<[1], [1], [0], [0], [0, 0, 1, 0], [], []>} : vector<8x8xbf16>, vector<256x8xbf16>, vector<8x256xf32> -> vector<8x256xf32>
    %179 = arith.addf %175, %178 : vector<8x256xf32>
    %c0_209 = arith.constant 0 : index
    %c0_210 = arith.constant 0 : index
    %180 = vector.load %arg15[%c0_209, %c0_210] : memref<8x256xf32, #tpu.memory_space<vmem>>, vector<8x256xf32>
    tpu.vector_store %arg15[%c0_209, %c0_210], %179 {strides = array<i32>} : memref<8x256xf32, #tpu.memory_space<vmem>>, vector<8x256xf32>,
    %c0_211 = arith.constant 0 : index
    %c1_212 = arith.constant 1 : index
    %c0_213 = arith.constant 0 : index
    %c0_214 = arith.constant 0 : index
    %181 = vector.load %arg13[%c0_211, %c1_212, %c0_213, %c0_214] : memref<3x18x16x8xbf16, #tpu.memory_space<vmem>>, vector<1x16x16x8xbf16>
    %182 = vector.shape_cast %181 : vector<1x16x16x8xbf16> to vector<16x16x8xbf16>
    %183 = vector.shape_cast %182 : vector<16x16x8xbf16> to vector<256x8xbf16>
    %c0_215 = arith.constant 0 : index
    %c0_216 = arith.constant 0 : index
    %184 = vector.load %arg15[%c0_215, %c0_216] : memref<8x256xf32, #tpu.memory_space<vmem>>, vector<8x256xf32>
    %c3_217 = arith.constant 3 : index
    %c0_218 = arith.constant 0 : index
    %c0_219 = arith.constant 0 : index
    %185 = vector.load %arg9[%c3_217, %c0_218, %c0_219] : memref<9x8x8xbf16, #tpu.memory_space<vmem>>, vector<1x8x8xbf16>
    %186 = vector.shape_cast %185 : vector<1x8x8xbf16> to vector<8x8xbf16>
    %cst_220 = arith.constant dense<0.000000e+00> : vector<8x256xf32>
    %187 = tpu.matmul %186, %183, %cst_220 {dimension_numbers = #tpu.dot_dimension_numbers<[1], [1], [0], [0], [0, 0, 1, 0], [], []>} : vector<8x8xbf16>, vector<256x8xbf16>, vector<8x256xf32> -> vector<8x256xf32>
    %188 = arith.addf %184, %187 : vector<8x256xf32>
    %c0_221 = arith.constant 0 : index
    %c0_222 = arith.constant 0 : index
    %189 = vector.load %arg15[%c0_221, %c0_222] : memref<8x256xf32, #tpu.memory_space<vmem>>, vector<8x256xf32>
    tpu.vector_store %arg15[%c0_221, %c0_222], %188 {strides = array<i32>} : memref<8x256xf32, #tpu.memory_space<vmem>>, vector<8x256xf32>,
    %c1_223 = arith.constant 1 : index
    %c1_224 = arith.constant 1 : index
    %c0_225 = arith.constant 0 : index
    %c0_226 = arith.constant 0 : index
    %190 = vector.load %arg13[%c1_223, %c1_224, %c0_225, %c0_226] : memref<3x18x16x8xbf16, #tpu.memory_space<vmem>>, vector<1x16x16x8xbf16>
    %191 = vector.shape_cast %190 : vector<1x16x16x8xbf16> to vector<16x16x8xbf16>
    %192 = vector.shape_cast %191 : vector<16x16x8xbf16> to vector<256x8xbf16>
    %c0_227 = arith.constant 0 : index
    %c0_228 = arith.constant 0 : index
    %193 = vector.load %arg15[%c0_227, %c0_228] : memref<8x256xf32, #tpu.memory_space<vmem>>, vector<8x256xf32>
    %c4_229 = arith.constant 4 : index
    %c0_230 = arith.constant 0 : index
    %c0_231 = arith.constant 0 : index
    %194 = vector.load %arg9[%c4_229, %c0_230, %c0_231] : memref<9x8x8xbf16, #tpu.memory_space<vmem>>, vector<1x8x8xbf16>
    %195 = vector.shape_cast %194 : vector<1x8x8xbf16> to vector<8x8xbf16>
    %cst_232 = arith.constant dense<0.000000e+00> : vector<8x256xf32>
    %196 = tpu.matmul %195, %192, %cst_232 {dimension_numbers = #tpu.dot_dimension_numbers<[1], [1], [0], [0], [0, 0, 1, 0], [], []>} : vector<8x8xbf16>, vector<256x8xbf16>, vector<8x256xf32> -> vector<8x256xf32>
    %197 = arith.addf %193, %196 : vector<8x256xf32>
    %c0_233 = arith.constant 0 : index
    %c0_234 = arith.constant 0 : index
    %198 = vector.load %arg15[%c0_233, %c0_234] : memref<8x256xf32, #tpu.memory_space<vmem>>, vector<8x256xf32>
    tpu.vector_store %arg15[%c0_233, %c0_234], %197 {strides = array<i32>} : memref<8x256xf32, #tpu.memory_space<vmem>>, vector<8x256xf32>,
    %c2_235 = arith.constant 2 : index
    %c1_236 = arith.constant 1 : index
    %c0_237 = arith.constant 0 : index
    %c0_238 = arith.constant 0 : index
    %199 = vector.load %arg13[%c2_235, %c1_236, %c0_237, %c0_238] : memref<3x18x16x8xbf16, #tpu.memory_space<vmem>>, vector<1x16x16x8xbf16>
    %200 = vector.shape_cast %199 : vector<1x16x16x8xbf16> to vector<16x16x8xbf16>
    %201 = vector.shape_cast %200 : vector<16x16x8xbf16> to vector<256x8xbf16>
    %c0_239 = arith.constant 0 : index
    %c0_240 = arith.constant 0 : index
    %202 = vector.load %arg15[%c0_239, %c0_240] : memref<8x256xf32, #tpu.memory_space<vmem>>, vector<8x256xf32>
    %c5_241 = arith.constant 5 : index
    %c0_242 = arith.constant 0 : index
    %c0_243 = arith.constant 0 : index
    %203 = vector.load %arg9[%c5_241, %c0_242, %c0_243] : memref<9x8x8xbf16, #tpu.memory_space<vmem>>, vector<1x8x8xbf16>
    %204 = vector.shape_cast %203 : vector<1x8x8xbf16> to vector<8x8xbf16>
    %cst_244 = arith.constant dense<0.000000e+00> : vector<8x256xf32>
    %205 = tpu.matmul %204, %201, %cst_244 {dimension_numbers = #tpu.dot_dimension_numbers<[1], [1], [0], [0], [0, 0, 1, 0], [], []>} : vector<8x8xbf16>, vector<256x8xbf16>, vector<8x256xf32> -> vector<8x256xf32>
    %206 = arith.addf %202, %205 : vector<8x256xf32>
    %c0_245 = arith.constant 0 : index
    %c0_246 = arith.constant 0 : index
    %207 = vector.load %arg15[%c0_245, %c0_246] : memref<8x256xf32, #tpu.memory_space<vmem>>, vector<8x256xf32>
    tpu.vector_store %arg15[%c0_245, %c0_246], %206 {strides = array<i32>} : memref<8x256xf32, #tpu.memory_space<vmem>>, vector<8x256xf32>,
    %c0_247 = arith.constant 0 : index
    %c2_248 = arith.constant 2 : index
    %c0_249 = arith.constant 0 : index
    %c0_250 = arith.constant 0 : index
    %208 = vector.load %arg13[%c0_247, %c2_248, %c0_249, %c0_250] : memref<3x18x16x8xbf16, #tpu.memory_space<vmem>>, vector<1x16x16x8xbf16>
    %209 = vector.shape_cast %208 : vector<1x16x16x8xbf16> to vector<16x16x8xbf16>
    %210 = vector.shape_cast %209 : vector<16x16x8xbf16> to vector<256x8xbf16>
    %c0_251 = arith.constant 0 : index
    %c0_252 = arith.constant 0 : index
    %211 = vector.load %arg15[%c0_251, %c0_252] : memref<8x256xf32, #tpu.memory_space<vmem>>, vector<8x256xf32>
    %c6_253 = arith.constant 6 : index
    %c0_254 = arith.constant 0 : index
    %c0_255 = arith.constant 0 : index
    %212 = vector.load %arg9[%c6_253, %c0_254, %c0_255] : memref<9x8x8xbf16, #tpu.memory_space<vmem>>, vector<1x8x8xbf16>
    %213 = vector.shape_cast %212 : vector<1x8x8xbf16> to vector<8x8xbf16>
    %cst_256 = arith.constant dense<0.000000e+00> : vector<8x256xf32>
    %214 = tpu.matmul %213, %210, %cst_256 {dimension_numbers = #tpu.dot_dimension_numbers<[1], [1], [0], [0], [0, 0, 1, 0], [], []>} : vector<8x8xbf16>, vector<256x8xbf16>, vector<8x256xf32> -> vector<8x256xf32>
    %215 = arith.addf %211, %214 : vector<8x256xf32>
    %c0_257 = arith.constant 0 : index
    %c0_258 = arith.constant 0 : index
    %216 = vector.load %arg15[%c0_257, %c0_258] : memref<8x256xf32, #tpu.memory_space<vmem>>, vector<8x256xf32>
    tpu.vector_store %arg15[%c0_257, %c0_258], %215 {strides = array<i32>} : memref<8x256xf32, #tpu.memory_space<vmem>>, vector<8x256xf32>,
    %c1_259 = arith.constant 1 : index
    %c2_260 = arith.constant 2 : index
    %c0_261 = arith.constant 0 : index
    %c0_262 = arith.constant 0 : index
    %217 = vector.load %arg13[%c1_259, %c2_260, %c0_261, %c0_262] : memref<3x18x16x8xbf16, #tpu.memory_space<vmem>>, vector<1x16x16x8xbf16>
    %218 = vector.shape_cast %217 : vector<1x16x16x8xbf16> to vector<16x16x8xbf16>
    %219 = vector.shape_cast %218 : vector<16x16x8xbf16> to vector<256x8xbf16>
    %c0_263 = arith.constant 0 : index
    %c0_264 = arith.constant 0 : index
    %220 = vector.load %arg15[%c0_263, %c0_264] : memref<8x256xf32, #tpu.memory_space<vmem>>, vector<8x256xf32>
    %c7_265 = arith.constant 7 : index
    %c0_266 = arith.constant 0 : index
    %c0_267 = arith.constant 0 : index
    %221 = vector.load %arg9[%c7_265, %c0_266, %c0_267] : memref<9x8x8xbf16, #tpu.memory_space<vmem>>, vector<1x8x8xbf16>
    %222 = vector.shape_cast %221 : vector<1x8x8xbf16> to vector<8x8xbf16>
    %cst_268 = arith.constant dense<0.000000e+00> : vector<8x256xf32>
    %223 = tpu.matmul %222, %219, %cst_268 {dimension_numbers = #tpu.dot_dimension_numbers<[1], [1], [0], [0], [0, 0, 1, 0], [], []>} : vector<8x8xbf16>, vector<256x8xbf16>, vector<8x256xf32> -> vector<8x256xf32>
    %224 = arith.addf %220, %223 : vector<8x256xf32>
    %c0_269 = arith.constant 0 : index
    %c0_270 = arith.constant 0 : index
    %225 = vector.load %arg15[%c0_269, %c0_270] : memref<8x256xf32, #tpu.memory_space<vmem>>, vector<8x256xf32>
    tpu.vector_store %arg15[%c0_269, %c0_270], %224 {strides = array<i32>} : memref<8x256xf32, #tpu.memory_space<vmem>>, vector<8x256xf32>,
    %c2_271 = arith.constant 2 : index
    %c2_272 = arith.constant 2 : index
    %c0_273 = arith.constant 0 : index
    %c0_274 = arith.constant 0 : index
    %226 = vector.load %arg13[%c2_271, %c2_272, %c0_273, %c0_274] : memref<3x18x16x8xbf16, #tpu.memory_space<vmem>>, vector<1x16x16x8xbf16>
    %227 = vector.shape_cast %226 : vector<1x16x16x8xbf16> to vector<16x16x8xbf16>
    %228 = vector.shape_cast %227 : vector<16x16x8xbf16> to vector<256x8xbf16>
    %c0_275 = arith.constant 0 : index
    %c0_276 = arith.constant 0 : index
    %229 = vector.load %arg15[%c0_275, %c0_276] : memref<8x256xf32, #tpu.memory_space<vmem>>, vector<8x256xf32>
    %c8_277 = arith.constant 8 : index
    %c0_278 = arith.constant 0 : index
    %c0_279 = arith.constant 0 : index
    %230 = vector.load %arg9[%c8_277, %c0_278, %c0_279] : memref<9x8x8xbf16, #tpu.memory_space<vmem>>, vector<1x8x8xbf16>
    %231 = vector.shape_cast %230 : vector<1x8x8xbf16> to vector<8x8xbf16>
    %cst_280 = arith.constant dense<0.000000e+00> : vector<8x256xf32>
    %232 = tpu.matmul %231, %228, %cst_280 {dimension_numbers = #tpu.dot_dimension_numbers<[1], [1], [0], [0], [0, 0, 1, 0], [], []>} : vector<8x8xbf16>, vector<256x8xbf16>, vector<8x256xf32> -> vector<8x256xf32>
    %233 = arith.addf %229, %232 : vector<8x256xf32>
    %c0_281 = arith.constant 0 : index
    %c0_282 = arith.constant 0 : index
    %234 = vector.load %arg15[%c0_281, %c0_282] : memref<8x256xf32, #tpu.memory_space<vmem>>, vector<8x256xf32>
    tpu.vector_store %arg15[%c0_281, %c0_282], %233 {strides = array<i32>} : memref<8x256xf32, #tpu.memory_space<vmem>>, vector<8x256xf32>,
    %c0_283 = arith.constant 0 : index
    %c0_284 = arith.constant 0 : index
    %235 = vector.load %arg15[%c0_283, %c0_284] : memref<8x256xf32, #tpu.memory_space<vmem>>, vector<8x256xf32>
    %c0_285 = arith.constant 0 : index
    %c0_286 = arith.constant 0 : index
    %c0_287 = arith.constant 0 : index
    %236 = vector.load %arg11[%c0_285, %c0_286, %c0_287] : memref<1x8x256xf32, #tpu.memory_space<vmem>>, vector<1x8x256xf32>
    %237 = vector.shape_cast %236 : vector<1x8x256xf32> to vector<8x256xf32>
    %238 = vector.shape_cast %235 : vector<8x256xf32> to vector<1x8x256xf32>
    tpu.vector_store %arg11[%c0_285, %c0_286, %c0_287], %238 {strides = array<i32>} : memref<1x8x256xf32, #tpu.memory_space<vmem>>, vector<1x8x256xf32>,
    return
  }
  func.func @transform_0(%arg0: i32) -> (i32, i32, i32) {
    %c0_i32 = arith.constant 0 : i32
    %c0_i32_0 = arith.constant 0 : i32
    %c0_i32_1 = arith.constant 0 : i32
    return %arg0, %c0_i32, %c0_i32_0 : i32, i32, i32
  }
  func.func @transform_1(%arg0: i32) -> (i32, i32, i32) {
    %c0_i32 = arith.constant 0 : i32
    %c0_i32_0 = arith.constant 0 : i32
    %c0_i32_1 = arith.constant 0 : i32
    return %arg0, %c0_i32, %c0_i32_0 : i32, i32, i32
  }
  func.func @transform_2(%arg0: i32) -> (i32, i32, i32) {
    %c0_i32 = arith.constant 0 : i32
    %c0_i32_0 = arith.constant 0 : i32
    %c0_i32_1 = arith.constant 0 : i32
    return %arg0, %c0_i32, %c0_i32_0 : i32, i32, i32
  }
  func.func @transform_3(%arg0: i32) -> (i32, i32) {
    %c0_i32 = arith.constant 0 : i32
    %c0_i32_0 = arith.constant 0 : i32
    %c0_i32_1 = arith.constant 0 : i32
    return %c0_i32, %c0_i32_0 : i32, i32
  }
  func.func @transform_4(%arg0: i32) -> (i32, i32) {
    %c0_i32 = arith.constant 0 : i32
    %c0_i32_0 = arith.constant 0 : i32
    %c0_i32_1 = arith.constant 0 : i32
    return %c0_i32, %c0_i32_0 : i32, i32
  }
  func.func @transform_5(%arg0: i32) -> (i32, i32) {
    %c0_i32 = arith.constant 0 : i32
    %c0_i32_0 = arith.constant 0 : i32
    %c0_i32_1 = arith.constant 0 : i32
    return %c0_i32, %c0_i32_0 : i32, i32
  }
  func.func @transform_6(%arg0: i32) -> (i32, i32, i32) {
    %c0_i32 = arith.constant 0 : i32
    %c0_i32_0 = arith.constant 0 : i32
    %c0_i32_1 = arith.constant 0 : i32
    %c0_i32_2 = arith.constant 0 : i32
    return %c0_i32, %c0_i32_0, %c0_i32_1 : i32, i32, i32
  }
  func.func @transform_7(%arg0: i32) -> (i32, i32) {
    %c0_i32 = arith.constant 0 : i32
    %c0_i32_0 = arith.constant 0 : i32
    %c0_i32_1 = arith.constant 0 : i32
    return %c0_i32, %c0_i32_0 : i32, i32
  }
  func.func @transform_8(%arg0: i32) -> (i32, i32, i32) {
    %c0_i32 = arith.constant 0 : i32
    %c0_i32_0 = arith.constant 0 : i32
    %c0_i32_1 = arith.constant 0 : i32
    %c0_i32_2 = arith.constant 0 : i32
    return %c0_i32, %c0_i32_0, %c0_i32_1 : i32, i32, i32
  }
  func.func @transform_9(%arg0: i32) -> (i32, i32) {
    %c0_i32 = arith.constant 0 : i32
    %c0_i32_0 = arith.constant 0 : i32
    %c0_i32_1 = arith.constant 0 : i32
    return %c0_i32, %c0_i32_0 : i32, i32
  }
  func.func @transform_10(%arg0: i32) -> (i32, i32, i32) {
    %c0_i32 = arith.constant 0 : i32
    %c0_i32_0 = arith.constant 0 : i32
    %c0_i32_1 = arith.constant 0 : i32
    return %arg0, %c0_i32, %c0_i32_0 : i32, i32, i32
  }
}

</mosaic_0001>

<llo_original>
// kernel: merge_tail_forward.1
$region0: #{merge_tail_forward.1}
  #allocation0 [shape = 'u32[]', space=smem, size = 0x4, offset = 0x4, fixed_abs, tag = 'smem constant byte address 0x4 - core index']
  #allocation1 [shape = 'u32[144,128]{1,0:T(1,128)}', space=vmem, size = 0x12000, scoped, tag = 'internal scratch']
  #allocation2 [shape = 'bf16[3,18,16,24]{3,2,1,0:T(16,128)(2,1)}', space=vmem, size = 0x36000, scoped, tag = 'scratch operand']
  #allocation3 [shape = 'bf16[3,18,16,8]{3,2,1,0:T(16,128)(2,1)}', space=vmem, size = 0x36000, scoped, tag = 'scratch operand']
  #allocation4 [shape = 'f32[256,8]{1,0:T(8,128)}', space=vmem, size = 0x20000, scoped, tag = 'scratch operand']
  #allocation5 [shape = 'f32[8,256]{1,0:T(8,128)}', space=vmem, size = 0x2000, scoped, tag = 'scratch operand']
  %s0 = inlined_call_operand.vmem [shape: bf16[2,256,8], index: 0, kind: input, shape index: {}]
  %s1 = inlined_call_operand.vmem [shape: bf16[2,256,32], index: 1, kind: input, shape index: {}]
  %s2 = inlined_call_operand.vmem [shape: bf16[2,256,16], index: 2, kind: input, shape index: {}]
  %s3 = inlined_call_operand.vmem [shape: bf16[32,8], index: 3, kind: input, shape index: {}]
  %s4 = inlined_call_operand.vmem [shape: bf16[16,8], index: 4, kind: input, shape index: {}]
  %s5 = inlined_call_operand.vmem [shape: f32[2,8], index: 5, kind: input, shape index: {}]
  %s6 = inlined_call_operand.vmem [shape: bf16[9,24,8], index: 6, kind: input, shape index: {}]
  %s7 = inlined_call_operand.vmem [shape: f32[1,8], index: 7, kind: input, shape index: {}]
  %s8 = inlined_call_operand.vmem [shape: bf16[9,8,8], index: 8, kind: input, shape index: {}]
  %s9 = inlined_call_operand.vmem [shape: f32[8,1], index: 9, kind: input, shape index: {}]
  %s10 = inlined_call_operand.vmem [shape: f32[2,8,256], index: 10, kind: output, shape index: {}]
  %s11 = sld [smem:[#allocation0]]
  $region73: #{merge_tail_forward.1} parent=0
    _
  %s13 = ssub.s32 1, %s11
  %s14 = scalar_select 0, %s13, %s11
  loop: start=0, step=1, limit=4
  $region2: #{merge_tail_forward.1} parent=0 // loop_pre_header
    _
  $region3: #{merge_tail_forward.1} parent=0 // loop_header
    %s16 = sphi 0, %s20
    %p17 = scmp.ge.s32.totalorder %s16, 4
    %s26 = sphi 0, %s28
    %s29 = sphi 0, %s26
    %s30 = sphi 0, %s29
    %s46 = sphi 0, %s30
    %s52 = sphi 0, %s54
    %s55 = sphi 0, %s52
    %s56 = sphi 0, %s55
    %s72 = sphi 0, %s56
    %s78 = sphi 0, %s80
    %s81 = sphi 0, %s78
    %s82 = sphi 0, %s81
    %s98 = sphi 0, %s82
    %s102 = sphi 0, %s102
    %s104 = sphi 0, %s102
    %s105 = sphi 0, %s104
    %s119 = sphi 0, %s105
    %s123 = sphi 0, %s123
    %s125 = sphi 0, %s123
    %s126 = sphi 0, %s125
    %s140 = sphi 0, %s126
    %s144 = sphi 0, %s144
    %s146 = sphi 0, %s144
    %s147 = sphi 0, %s146
    %s161 = sphi 0, %s147
    %s165 = sphi 0, %s165
    %s167 = sphi 0, %s165
    %s168 = sphi 0, %s167
    %s182 = sphi 0, %s168
    %s186 = sphi 0, %s186
    %s188 = sphi 0, %s186
    %s189 = sphi 0, %s188
    %s203 = sphi 0, %s189
    %s207 = sphi 0, %s207
    %s209 = sphi 0, %s207
    %s210 = sphi 0, %s209
    %s224 = sphi 0, %s210
    %s228 = sphi 0, %s228
    %s230 = sphi 0, %s228
    %s231 = sphi 0, %s230
    %s245 = sphi 0, %s231
    %s251 = sphi 0, %s253
    %s254 = sphi 0, %s251
    %s255 = sphi 0, %s254
    %s271 = sphi 0, %s255
  $region4: #{merge_tail_forward.1} parent=0 // loop_header_branch
    %19 = sbr.rel (%p17) target = $region8
  $region5: #{merge_tail_forward.1} parent=0 // loop_body
    %s21 = ssub.s32 %s16, 1
    %s22 = ssub.s32 %s16, 2
    %s23 = sadd.s32 %s16, 1
    %s24 = ssub.s32 %s16, %s23
    %p25 = scmp.eq.s32.totalorder %s24, 0
    %s27 = sadd.s32 %s26, 1
    %s28 = scalar_select %p25, %s26, %s27
    %p31 = pneg %p25
    %p32 = scmp.eq.s32.totalorder %s16, 1
    %p33 = por %p31, %p32
    %p34 = scmp.ne.s32.totalorder %s26, %s29
    %p35 = scmp.eq.s32.totalorder %s16, 0
    %p36 = por %p34, %p35
    %p37 = scmp.ne.s32.totalorder %s26, %s29
    %p38 = scmp.eq.s32.totalorder %s21, 1
    %p39 = por %p37, %p38
    %p40 = scmp.ne.s32.totalorder %s29, %s30
    %p41 = scmp.eq.s32.totalorder %s21, 0
    %p42 = por %p40, %p41
    %p43 = scmp.ne.s32.totalorder %s29, %s30
    %p44 = scmp.eq.s32.totalorder %s22, 1
    %p45 = por %p43, %p44
    %p47 = scmp.ne.s32.totalorder %s30, %s46
    %p48 = scmp.eq.s32.totalorder %s22, 0
    %p49 = por %p47, %p48
    %s50 = ssub.s32 %s16, %s23
    %p51 = scmp.eq.s32.totalorder %s50, 0
    %s53 = sadd.s32 %s52, 1
    %s54 = scalar_select %p51, %s52, %s53
    %p57 = pneg %p51
    %p58 = scmp.eq.s32.totalorder %s16, 1
    %p59 = por %p57, %p58
    %p60 = scmp.ne.s32.totalorder %s52, %s55
    %p61 = scmp.eq.s32.totalorder %s16, 0
    %p62 = por %p60, %p61
    %p63 = scmp.ne.s32.totalorder %s52, %s55
    %p64 = scmp.eq.s32.totalorder %s21, 1
    %p65 = por %p63, %p64
    %p66 = scmp.ne.s32.totalorder %s55, %s56
    %p67 = scmp.eq.s32.totalorder %s21, 0
    %p68 = por %p66, %p67
    %p69 = scmp.ne.s32.totalorder %s55, %s56
    %p70 = scmp.eq.s32.totalorder %s22, 1
    %p71 = por %p69, %p70
    %p73 = scmp.ne.s32.totalorder %s56, %s72
    %p74 = scmp.eq.s32.totalorder %s22, 0
    %p75 = por %p73, %p74
    %s76 = ssub.s32 %s16, %s23
    %p77 = scmp.eq.s32.totalorder %s76, 0
    %s79 = sadd.s32 %s78, 1
    %s80 = scalar_select %p77, %s78, %s79
    %p83 = pneg %p77
    %p84 = scmp.eq.s32.totalorder %s16, 1
    %p85 = por %p83, %p84
    %p86 = scmp.ne.s32.totalorder %s78, %s81
    %p87 = scmp.eq.s32.totalorder %s16, 0
    %p88 = por %p86, %p87
    %p89 = scmp.ne.s32.totalorder %s78, %s81
    %p90 = scmp.eq.s32.totalorder %s21, 1
    %p91 = por %p89, %p90
    %p92 = scmp.ne.s32.totalorder %s81, %s82
    %p93 = scmp.eq.s32.totalorder %s21, 0
    %p94 = por %p92, %p93
    %p95 = scmp.ne.s32.totalorder %s81, %s82
    %p96 = scmp.eq.s32.totalorder %s22, 1
    %p97 = por %p95, %p96
    %p99 = scmp.ne.s32.totalorder %s82, %s98
    %p100 = scmp.eq.s32.totalorder %s22, 0
    %p101 = por %p99, %p100
    %s103 = sadd.s32 %s102, 1
    %p106 = scmp.eq.s32.totalorder %s16, 1
    %p107 = scmp.ne.s32.totalorder %s102, %s104
    %p108 = scmp.eq.s32.totalorder %s16, 0
    %p109 = por %p107, %p108
    %p110 = scmp.ne.s32.totalorder %s102, %s104
    %p111 = scmp.eq.s32.totalorder %s21, 1
    %p112 = por %p110, %p111
    %p113 = scmp.ne.s32.totalorder %s104, %s105
    %p114 = scmp.eq.s32.totalorder %s21, 0
    %p115 = por %p113, %p114
    %p116 = scmp.ne.s32.totalorder %s104, %s105
    %p117 = scmp.eq.s32.totalorder %s22, 1
    %p118 = por %p116, %p117
    %p120 = scmp.ne.s32.totalorder %s105, %s119
    %p121 = scmp.eq.s32.totalorder %s22, 0
    %p122 = por %p120, %p121
    %s124 = sadd.s32 %s123, 1
    %p127 = scmp.eq.s32.totalorder %s16, 1
    %p128 = scmp.ne.s32.totalorder %s123, %s125
    %p129 = scmp.eq.s32.totalorder %s16, 0
    %p130 = por %p128, %p129
    %p131 = scmp.ne.s32.totalorder %s123, %s125
    %p132 = scmp.eq.s32.totalorder %s21, 1
    %p133 = por %p131, %p132
    %p134 = scmp.ne.s32.totalorder %s125, %s126
    %p135 = scmp.eq.s32.totalorder %s21, 0
    %p136 = por %p134, %p135
    %p137 = scmp.ne.s32.totalorder %s125, %s126
    %p138 = scmp.eq.s32.totalorder %s22, 1
    %p139 = por %p137, %p138
    %p141 = scmp.ne.s32.totalorder %s126, %s140
    %p142 = scmp.eq.s32.totalorder %s22, 0
    %p143 = por %p141, %p142
    %s145 = sadd.s32 %s144, 1
    %p148 = scmp.eq.s32.totalorder %s16, 1
    %p149 = scmp.ne.s32.totalorder %s144, %s146
    %p150 = scmp.eq.s32.totalorder %s16, 0
    %p151 = por %p149, %p150
    %p152 = scmp.ne.s32.totalorder %s144, %s146
    %p153 = scmp.eq.s32.totalorder %s21, 1
    %p154 = por %p152, %p153
    %p155 = scmp.ne.s32.totalorder %s146, %s147
    %p156 = scmp.eq.s32.totalorder %s21, 0
    %p157 = por %p155, %p156
    %p158 = scmp.ne.s32.totalorder %s146, %s147
    %p159 = scmp.eq.s32.totalorder %s22, 1
    %p160 = por %p158, %p159
    %p162 = scmp.ne.s32.totalorder %s147, %s161
    %p163 = scmp.eq.s32.totalorder %s22, 0
    %p164 = por %p162, %p163
    %s166 = sadd.s32 %s165, 1
    %p169 = scmp.eq.s32.totalorder %s16, 1
    %p170 = scmp.ne.s32.totalorder %s165, %s167
    %p171 = scmp.eq.s32.totalorder %s16, 0
    %p172 = por %p170, %p171
    %p173 = scmp.ne.s32.totalorder %s165, %s167
    %p174 = scmp.eq.s32.totalorder %s21, 1
    %p175 = por %p173, %p174
    %p176 = scmp.ne.s32.totalorder %s167, %s168
    %p177 = scmp.eq.s32.totalorder %s21, 0
    %p178 = por %p176, %p177
    %p179 = scmp.ne.s32.totalorder %s167, %s168
    %p180 = scmp.eq.s32.totalorder %s22, 1
    %p181 = por %p179, %p180
    %p183 = scmp.ne.s32.totalorder %s168, %s182
    %p184 = scmp.eq.s32.totalorder %s22, 0
    %p185 = por %p183, %p184
    %s187 = sadd.s32 %s186, 1
    %p190 = scmp.eq.s32.totalorder %s16, 1
    %p191 = scmp.ne.s32.totalorder %s186, %s188
    %p192 = scmp.eq.s32.totalorder %s16, 0
    %p193 = por %p191, %p192
    %p194 = scmp.ne.s32.totalorder %s186, %s188
    %p195 = scmp.eq.s32.totalorder %s21, 1
    %p196 = por %p194, %p195
    %p197 = scmp.ne.s32.totalorder %s188, %s189
    %p198 = scmp.eq.s32.totalorder %s21, 0
    %p199 = por %p197, %p198
    %p200 = scmp.ne.s32.totalorder %s188, %s189
    %p201 = scmp.eq.s32.totalorder %s22, 1
    %p202 = por %p200, %p201
    %p204 = scmp.ne.s32.totalorder %s189, %s203
    %p205 = scmp.eq.s32.totalorder %s22, 0
    %p206 = por %p204, %p205
    %s208 = sadd.s32 %s207, 1
    %p211 = scmp.eq.s32.totalorder %s16, 1
    %p212 = scmp.ne.s32.totalorder %s207, %s209
    %p213 = scmp.eq.s32.totalorder %s16, 0
    %p214 = por %p212, %p213
    %p215 = scmp.ne.s32.totalorder %s207, %s209
    %p216 = scmp.eq.s32.totalorder %s21, 1
    %p217 = por %p215, %p216
    %p218 = scmp.ne.s32.totalorder %s209, %s210
    %p219 = scmp.eq.s32.totalorder %s21, 0
    %p220 = por %p218, %p219
    %p221 = scmp.ne.s32.totalorder %s209, %s210
    %p222 = scmp.eq.s32.totalorder %s22, 1
    %p223 = por %p221, %p222
    %p225 = scmp.ne.s32.totalorder %s210, %s224
    %p226 = scmp.eq.s32.totalorder %s22, 0
    %p227 = por %p225, %p226
    %s229 = sadd.s32 %s228, 1
    %p232 = scmp.eq.s32.totalorder %s16, 1
    %p233 = scmp.ne.s32.totalorder %s228, %s230
    %p234 = scmp.eq.s32.totalorder %s16, 0
    %p235 = por %p233, %p234
    %p236 = scmp.ne.s32.totalorder %s228, %s230
    %p237 = scmp.eq.s32.totalorder %s21, 1
    %p238 = por %p236, %p237
    %p239 = scmp.ne.s32.totalorder %s230, %s231
    %p240 = scmp.eq.s32.totalorder %s21, 0
    %p241 = por %p239, %p240
    %p242 = scmp.ne.s32.totalorder %s230, %s231
    %p243 = scmp.eq.s32.totalorder %s22, 1
    %p244 = por %p242, %p243
    %p246 = scmp.ne.s32.totalorder %s231, %s245
    %p247 = scmp.eq.s32.totalorder %s22, 0
    %p248 = por %p246, %p247
    %s249 = ssub.s32 %s16, %s23
    %p250 = scmp.eq.s32.totalorder %s249, 0
    %s252 = sadd.s32 %s251, 1
    %s253 = scalar_select %p250, %s251, %s252
    %p256 = pneg %p250
    %p257 = scmp.eq.s32.totalorder %s16, 1
    %p258 = por %p256, %p257
    %p259 = scmp.ne.s32.totalorder %s251, %s254
    %p260 = scmp.eq.s32.totalorder %s16, 0
    %p261 = por %p259, %p260
    %p262 = scmp.ne.s32.totalorder %s251, %s254
    %p263 = scmp.eq.s32.totalorder %s21, 1
    %p264 = por %p262, %p263
    %p265 = scmp.ne.s32.totalorder %s254, %s255
    %p266 = scmp.eq.s32.totalorder %s21, 0
    %p267 = por %p265, %p266
    %p268 = scmp.ne.s32.totalorder %s254, %s255
    %p269 = scmp.eq.s32.totalorder %s22, 1
    %p270 = por %p268, %p269
    %p272 = scmp.ne.s32.totalorder %s255, %s271
    %p273 = scmp.eq.s32.totalorder %s22, 0
    %p274 = por %p272, %p273
    %p275 = scmp.le.s32.totalorder 1, %s16
    %p276 = scmp.lt.s32.totalorder %s16, 3
    %p277 = pnand %p275, %p276
    %p278 = pneg %p277
    // Predicated region
    $region9: #{merge_tail_forward.1} parent=5 // pred_check
      _
    $region10: #{merge_tail_forward.1} parent=5 // pred_check_branch
      %280 = sbr.rel (%p277) target = $region12
    $region11: #{merge_tail_forward.1} parent=5 // pred_region
      %s281 = ssub.s32 %s16, 1
      // Predicated region
      $region13: #{merge_tail_forward.1} parent=11 // pred_check
        %p282 = pneg %p115
      $region14: #{merge_tail_forward.1} parent=11 // pred_check_branch
        %284 = sbr.rel (%p282) target = $region16
      $region15: #{merge_tail_forward.1} parent=11 // pred_region
        _
      $region16: #{merge_tail_forward.1} parent=11 // pred_fallthru
        _
      // Predicated region
      $region17: #{merge_tail_forward.1} parent=11 // pred_check
        %p285 = pneg %p136
      $region18: #{merge_tail_forward.1} parent=11 // pred_check_branch
        %287 = sbr.rel (%p285) target = $region20
      $region19: #{merge_tail_forward.1} parent=11 // pred_region
        _
      $region20: #{merge_tail_forward.1} parent=11 // pred_fallthru
        _
      // Predicated region
      $region21: #{merge_tail_forward.1} parent=11 // pred_check
        %p288 = pneg %p157
      $region22: #{merge_tail_forward.1} parent=11 // pred_check_branch
        %290 = sbr.rel (%p288) target = $region24
      $region23: #{merge_tail_forward.1} parent=11 // pred_region
        _
      $region24: #{merge_tail_forward.1} parent=11 // pred_fallthru
        _
      // Predicated region
      $region25: #{merge_tail_forward.1} parent=11 // pred_check
        %p291 = pneg %p178
      $region26: #{merge_tail_forward.1} parent=11 // pred_check_branch
        %293 = sbr.rel (%p291) target = $region28
      $region27: #{merge_tail_forward.1} parent=11 // pred_region
        _
      $region28: #{merge_tail_forward.1} parent=11 // pred_fallthru
        _
      // Predicated region
      $region29: #{merge_tail_forward.1} parent=11 // pred_check
        %p294 = pneg %p199
      $region30: #{merge_tail_forward.1} parent=11 // pred_check_branch
        %296 = sbr.rel (%p294) target = $region32
      $region31: #{merge_tail_forward.1} parent=11 // pred_region
        _
      $region32: #{merge_tail_forward.1} parent=11 // pred_fallthru
        _
      // Predicated region
      $region33: #{merge_tail_forward.1} parent=11 // pred_check
        %p297 = pneg %p220
      $region34: #{merge_tail_forward.1} parent=11 // pred_check_branch
        %299 = sbr.rel (%p297) target = $region36
      $region35: #{merge_tail_forward.1} parent=11 // pred_region
        _
      $region36: #{merge_tail_forward.1} parent=11 // pred_fallthru
        _
      // Predicated region
      $region37: #{merge_tail_forward.1} parent=11 // pred_check
        %p300 = pneg %p241
      $region38: #{merge_tail_forward.1} parent=11 // pred_check_branch
        %302 = sbr.rel (%p300) target = $region40
      $region39: #{merge_tail_forward.1} parent=11 // pred_region
        _
      $region40: #{merge_tail_forward.1} parent=11 // pred_fallthru
        _
    $region12: #{merge_tail_forward.1} parent=5 // pred_fallthru
      _
    %p303 = scmp.lt.s32.totalorder %s16, 2
    // Predicated region
    $region41: #{merge_tail_forward.1} parent=5 // pred_check
      %p304 = pneg %p303
    $region42: #{merge_tail_forward.1} parent=5 // pred_check_branch
      %306 = sbr.rel (%p304) target = $region44
    $region43: #{merge_tail_forward.1} parent=5 // pred_region
      // Predicated region
      $region45: #{merge_tail_forward.1} parent=43 // pred_check
        %p307 = pneg %p36
      $region46: #{merge_tail_forward.1} parent=43 // pred_check_branch
        %309 = sbr.rel (%p307) target = $region48
      $region47: #{merge_tail_forward.1} parent=43 // pred_region
        %p310 = scmp.lt.s32.totalorder %s16, 1
        %s311 = scalar_select %p310, %s16, 1
        %s312 = smul.addr %s311, 32
        %s313 = smul.addr %s312, 4
        %s314 = scalar_lea.vmem %s0, %s313
      $region48: #{merge_tail_forward.1} parent=43 // pred_fallthru
        _
      // Predicated region
      $region49: #{merge_tail_forward.1} parent=43 // pred_check
        %p315 = pneg %p62
      $region50: #{merge_tail_forward.1} parent=43 // pred_check_branch
        %317 = sbr.rel (%p315) target = $region52
      $region51: #{merge_tail_forward.1} parent=43 // pred_region
        %p318 = scmp.lt.s32.totalorder %s16, 1
        %s319 = scalar_select %p318, %s16, 1
        %s320 = smul.addr %s319, 32
        %s321 = smul.addr %s320, 4
        %s322 = scalar_lea.vmem %s1, %s321
      $region52: #{merge_tail_forward.1} parent=43 // pred_fallthru
        _
      // Predicated region
      $region53: #{merge_tail_forward.1} parent=43 // pred_check
        %p323 = pneg %p88
      $region54: #{merge_tail_forward.1} parent=43 // pred_check_branch
        %325 = sbr.rel (%p323) target = $region56
      $region55: #{merge_tail_forward.1} parent=43 // pred_region
        %p326 = scmp.lt.s32.totalorder %s16, 1
        %s327 = scalar_select %p326, %s16, 1
        %s328 = smul.addr %s327, 32
        %s329 = smul.addr %s328, 4
        %s330 = scalar_lea.vmem %s2, %s329
      $region56: #{merge_tail_forward.1} parent=43 // pred_fallthru
        _
    $region44: #{merge_tail_forward.1} parent=5 // pred_fallthru
      _
    %p331 = scmp.le.s32.totalorder 1, %s16
    %p332 = scmp.lt.s32.totalorder %s16, 3
    %p333 = pnand %p331, %p332
    %p334 = pneg %p333
    // Predicated region
    $region57: #{merge_tail_forward.1} parent=5 // pred_check
      _
    $region58: #{merge_tail_forward.1} parent=5 // pred_check_branch
      %336 = sbr.rel (%p333) target = $region60
    $region59: #{merge_tail_forward.1} parent=5 // pred_region
      %s337 = ssub.s32 %s16, 1
      %p338 = scmp.lt.s32.totalorder %s21, 1
      %s339 = scalar_select %p338, %s21, 1
      %s340 = smul.addr %s339, 32
      %s341 = smul.addr %s340, 4
      %s342 = scalar_lea.vmem %s0, %s341
      %p343 = pneg %p42
      %p344 = pneg %p39
      %p345 = scmp.lt.s32.totalorder %s21, 1
      %s346 = scalar_select %p345, %s21, 1
      %s347 = smul.addr %s346, 32
      %s348 = smul.addr %s347, 4
      %s349 = scalar_lea.vmem %s1, %s348
      %p350 = pneg %p68
      %p351 = pneg %p65
      %p352 = scmp.lt.s32.totalorder %s21, 1
      %s353 = scalar_select %p352, %s21, 1
      %s354 = smul.addr %s353, 32
      %s355 = smul.addr %s354, 4
      %s356 = scalar_lea.vmem %s2, %s355
      %p357 = pneg %p94
      %p358 = pneg %p91
      %p359 = pneg %p115
      %p360 = pneg %p112
      %p361 = pneg %p136
      %p362 = pneg %p133
      %p363 = pneg %p157
      %p364 = pneg %p154
      %p365 = pneg %p178
      %p366 = pneg %p175
      %p367 = pneg %p199
      %p368 = pneg %p196
      %p369 = pneg %p220
      %p370 = pneg %p217
      %p371 = pneg %p241
      %p372 = pneg %p238
      %p373 = pneg %p267
      %p374 = pneg %p264
      %p375 = scmp.lt.s32.totalorder %s21, 1
      %s376 = scalar_select %p375, %s21, 1
      %s377 = smul.addr %s376, 2
      %s378 = smul.addr %s377, 8
      %s379 = scalar_lea.vmem %s10, %s378
      %p380 = scmp.lt.s32.totalorder %s21, 1
      %s381 = scalar_select %p380, %s21, 1
      %s382 = smul.addr %s381, 32
      %s383 = smul.addr %s382, 4
      %s384 = scalar_lea.vmem %s0, %s383
      %p385 = scmp.lt.s32.totalorder %s21, 1
      %s386 = scalar_select %p385, %s21, 1
      %s387 = smul.addr %s386, 32
      %s388 = smul.addr %s387, 4
      %s389 = scalar_lea.vmem %s1, %s388
      %p390 = scmp.lt.s32.totalorder %s21, 1
      %s391 = scalar_select %p390, %s21, 1
      %s392 = smul.addr %s391, 32
      %s393 = smul.addr %s392, 4
      %s394 = scalar_lea.vmem %s2, %s393
      %p395 = scmp.lt.s32.totalorder %s21, 1
      %s396 = scalar_select %p395, %s21, 1
      %s397 = smul.addr %s396, 2
      %s398 = smul.addr %s397, 8
      %s399 = scalar_lea.vmem %s10, %s398
      %v401 = vld [vmem:[%s389] sm:$0xf]
      %v402 = vld [vmem:[%s389 + $0x4] sm:$0xf]
      %v403 = vld [vmem:[%s389 + $0x8] sm:$0xf]
      %v404 = vld [vmem:[%s389 + $0xc] sm:$0xf]
      %v405 = vld [vmem:[%s389 + $0x10] sm:$0xf]
      %v406 = vld [vmem:[%s389 + $0x14] sm:$0xf]
      %v407 = vld [vmem:[%s389 + $0x18] sm:$0xf]
      %v408 = vld [vmem:[%s389 + $0x1c] sm:$0xf]
      %v409 = vld [vmem:[%s389 + $0x20] sm:$0xf]
      %v410 = vld [vmem:[%s389 + $0x24] sm:$0xf]
      %v411 = vld [vmem:[%s389 + $0x28] sm:$0xf]
      %v412 = vld [vmem:[%s389 + $0x2c] sm:$0xf]
      %v413 = vld [vmem:[%s389 + $0x30] sm:$0xf]
      %v414 = vld [vmem:[%s389 + $0x34] sm:$0xf]
      %v415 = vld [vmem:[%s389 + $0x38] sm:$0xf]
      %v416 = vld [vmem:[%s389 + $0x3c] sm:$0xf]
      %v417 = vld [vmem:[%s389 + $0x40] sm:$0xf]
      %v418 = vld [vmem:[%s389 + $0x44] sm:$0xf]
      %v419 = vld [vmem:[%s389 + $0x48] sm:$0xf]
      %v420 = vld [vmem:[%s389 + $0x4c] sm:$0xf]
      %v421 = vld [vmem:[%s389 + $0x50] sm:$0xf]
      %v422 = vld [vmem:[%s389 + $0x54] sm:$0xf]
      %v423 = vld [vmem:[%s389 + $0x58] sm:$0xf]
      %v424 = vld [vmem:[%s389 + $0x5c] sm:$0xf]
      %v425 = vld [vmem:[%s389 + $0x60] sm:$0xf]
      %v426 = vld [vmem:[%s389 + $0x64] sm:$0xf]
      %v427 = vld [vmem:[%s389 + $0x68] sm:$0xf]
      %v428 = vld [vmem:[%s389 + $0x6c] sm:$0xf]
      %v429 = vld [vmem:[%s389 + $0x70] sm:$0xf]
      %v430 = vld [vmem:[%s389 + $0x74] sm:$0xf]
      %v431 = vld [vmem:[%s389 + $0x78] sm:$0xf]
      %v432 = vld [vmem:[%s389 + $0x7c] sm:$0xf]
      %v433 = vld [vmem:[%s3] sm:$0xf]
      %v434 = vld [vmem:[%s3 + $0x4] sm:$0xf]
      %v435 = vld [vmem:[%s3 + $0x8] sm:$0xf]
      %v436 = vld [vmem:[%s3 + $0xc] sm:$0xf]
      %v437 = vld [vmem:[%s5] sm:$0x1]
      %v438 = vlaneseq
      %v439 = vshrl.u32 %v438, 7
      %v440 = vsub.s32 0, %v439
      %v441 = vrot.slane %v437, %v440
      %v474 = vunpack.c.l.b16 %v401
      %v475 = vunpack.c.l.b16 %v402
      %v476 = vunpack.c.l.b16 %v403
      %v477 = vunpack.c.l.b16 %v404
      %v478 = vunpack.c.l.b16 %v405
      %v479 = vunpack.c.l.b16 %v406
      %v480 = vunpack.c.l.b16 %v407
      %v481 = vunpack.c.l.b16 %v408
      %v482 = vunpack.c.l.b16 %v409
      %v483 = vunpack.c.l.b16 %v410
      %v484 = vunpack.c.l.b16 %v411
      %v485 = vunpack.c.l.b16 %v412
      %v486 = vunpack.c.l.b16 %v413
      %v487 = vunpack.c.l.b16 %v414
      %v488 = vunpack.c.l.b16 %v415
      %v489 = vunpack.c.l.b16 %v416
      %v490 = vunpack.c.l.b16 %v417
      %v491 = vunpack.c.l.b16 %v418
      %v492 = vunpack.c.l.b16 %v419
      %v493 = vunpack.c.l.b16 %v420
      %v494 = vunpack.c.l.b16 %v421
      %v495 = vunpack.c.l.b16 %v422
      %v496 = vunpack.c.l.b16 %v423
      %v497 = vunpack.c.l.b16 %v424
      %v498 = vunpack.c.l.b16 %v425
      %v499 = vunpack.c.l.b16 %v426
      %v500 = vunpack.c.l.b16 %v427
      %v501 = vunpack.c.l.b16 %v428
      %v502 = vunpack.c.l.b16 %v429
      %v503 = vunpack.c.l.b16 %v430
      %v504 = vunpack.c.l.b16 %v431
      %v505 = vunpack.c.l.b16 %v432
      %v506 = vpack.c.b16 %v475, %v474
      %v507 = vpack.c.b16 %v477, %v476
      %v508 = vpack.c.b16 %v479, %v478
      %v509 = vpack.c.b16 %v481, %v480
      %v510 = vpack.c.b16 %v483, %v482
      %v511 = vpack.c.b16 %v485, %v484
      %v512 = vpack.c.b16 %v487, %v486
      %v513 = vpack.c.b16 %v489, %v488
      %v514 = vpack.c.b16 %v491, %v490
      %v515 = vpack.c.b16 %v493, %v492
      %v516 = vpack.c.b16 %v495, %v494
      %v517 = vpack.c.b16 %v497, %v496
      %v518 = vpack.c.b16 %v499, %v498
      %v519 = vpack.c.b16 %v501, %v500
      %v520 = vpack.c.b16 %v503, %v502
      %v521 = vpack.c.b16 %v505, %v504
      %v526 = vunpack.c.l.b16 %v433
      %v527 = vunpack.c.l.b16 %v434
      %v528 = vunpack.c.l.b16 %v435
      %v529 = vunpack.c.l.b16 %v436
      %v530 = vpack.c.b16 %v527, %v526
      %v531 = vpack.c.b16 %v529, %v528
      %vm534 = vcmask 261120
      %v536 = vsel %vm534, %v506, 0
      %v539 = vsel %vm534, %v507, 0
      %v542 = vsel %vm534, %v508, 0
      %v545 = vsel %vm534, %v509, 0
      %v548 = vsel %vm534, %v510, 0
      %v551 = vsel %vm534, %v511, 0
      %v554 = vsel %vm534, %v512, 0
      %v557 = vsel %vm534, %v513, 0
      %v560 = vsel %vm534, %v514, 0
      %v563 = vsel %vm534, %v515, 0
      %v566 = vsel %vm534, %v516, 0
      %v569 = vsel %vm534, %v517, 0
      %v572 = vsel %vm534, %v518, 0
      %v575 = vsel %vm534, %v519, 0
      %v578 = vsel %vm534, %v520, 0
      %v581 = vsel %vm534, %v521, 0
      %583 = vmatprep.subr.bf16.mxu0 0
      %584 = vmatpush1.bf16.msra.mxu0 %v530
      %585 = vmatprep.subr.bf16.mxu0 0
      %586 = vmatpush1.bf16.msra.mxu0 %v531
      %587 = vmatprep.subr.bf16.mxu0 0
      %588 = vmatpush1.bf16.msra.mxu0 0
      %589 = vmatprep.subr.bf16.mxu0 0
      %590 = vmatpush1.bf16.msra.mxu0 0
      %591 = vmatprep.subr.bf16.mxu0 0
      %592 = vmatpush1.bf16.msra.mxu0 0
      %593 = vmatprep.subr.bf16.mxu0 0
      %594 = vmatpush1.bf16.msra.mxu0 0
      %595 = vmatprep.subr.bf16.mxu0 0
      %596 = vmatpush1.bf16.msra.mxu0 0
      %597 = vmatprep.subr.bf16.mxu0 0
      %598 = vmatpush1.bf16.msra.mxu0 0
      %599 = vmatprep.subr.bf16.mxu0 0
      %600 = vmatpush1.bf16.msra.mxu0 0
      %601 = vmatprep.subr.bf16.mxu0 0
      %602 = vmatpush1.bf16.msra.mxu0 0
      %603 = vmatprep.subr.bf16.mxu0 0
      %604 = vmatpush1.bf16.msra.mxu0 0
      %605 = vmatprep.subr.bf16.mxu0 0
      %606 = vmatpush1.bf16.msra.mxu0 0
      %607 = vmatprep.subr.bf16.mxu0 0
      %608 = vmatpush1.bf16.msra.mxu0 0
      %609 = vmatprep.subr.bf16.mxu0 0
      %610 = vmatpush1.bf16.msra.mxu0 0
      %611 = vmatprep.subr.bf16.mxu0 0
      %612 = vmatpush1.bf16.msra.mxu0 0
      %613 = vmatprep.subr.bf16.mxu0 0
      %614 = vmatpush1.bf16.msra.mxu0 0
      %615 = vmatprep.mubr.bf16.mxu0 0
      %616 = vmatmul.mubr.bf16.gmra.mrb[0].mxu0 %v536
      %v617 = vpop.f32.mrb[0].mxu0
      %v618 = vadd.f32 %v441, %v617
      %v619 = vpop.f32.mrb[0].mxu0
      %v620 = vpop.f32.mrb[0].mxu0
      %v621 = vadd.f32 %v441, %v620
      %v622 = vpop.f32.mrb[0].mxu0
      %623 = vmatprep.mubr.bf16.mxu0 0
      %624 = vmatmul.mubr.bf16.gmra.mrb[0].mxu0 %v539
      %v625 = vpop.f32.mrb[0].mxu0
      %v626 = vadd.f32 %v441, %v625
      %v627 = vpop.f32.mrb[0].mxu0
      %v628 = vpop.f32.mrb[0].mxu0
      %v629 = vadd.f32 %v441, %v628
      %v630 = vpop.f32.mrb[0].mxu0
      %631 = vmatprep.mubr.bf16.mxu0 0
      %632 = vmatmul.mubr.bf16.gmra.mrb[0].mxu0 %v542
      %v633 = vpop.f32.mrb[0].mxu0
      %v634 = vadd.f32 %v441, %v633
      %v635 = vpop.f32.mrb[0].mxu0
      %v636 = vpop.f32.mrb[0].mxu0
      %v637 = vadd.f32 %v441, %v636
      %v638 = vpop.f32.mrb[0].mxu0
      %639 = vmatprep.mubr.bf16.mxu0 0
      %640 = vmatmul.mubr.bf16.gmra.mrb[0].mxu0 %v545
      %v641 = vpop.f32.mrb[0].mxu0
      %v642 = vadd.f32 %v441, %v641
      %v643 = vpop.f32.mrb[0].mxu0
      %v644 = vpop.f32.mrb[0].mxu0
      %v645 = vadd.f32 %v441, %v644
      %v646 = vpop.f32.mrb[0].mxu0
      %647 = vmatprep.mubr.bf16.mxu0 0
      %648 = vmatmul.mubr.bf16.gmra.mrb[0].mxu0 %v548
      %v649 = vpop.f32.mrb[0].mxu0
      %v650 = vadd.f32 %v441, %v649
      %v651 = vpop.f32.mrb[0].mxu0
      %v652 = vpop.f32.mrb[0].mxu0
      %v653 = vadd.f32 %v441, %v652
      %v654 = vpop.f32.mrb[0].mxu0
      %655 = vmatprep.mubr.bf16.mxu0 0
      %656 = vmatmul.mubr.bf16.gmra.mrb[0].mxu0 %v551
      %v657 = vpop.f32.mrb[0].mxu0
      %v658 = vadd.f32 %v441, %v657
      %v659 = vpop.f32.mrb[0].mxu0
      %v660 = vpop.f32.mrb[0].mxu0
      %v661 = vadd.f32 %v441, %v660
      %v662 = vpop.f32.mrb[0].mxu0
      %663 = vmatprep.mubr.bf16.mxu0 0
      %664 = vmatmul.mubr.bf16.gmra.mrb[0].mxu0 %v554
      %v665 = vpop.f32.mrb[0].mxu0
      %v666 = vadd.f32 %v441, %v665
      %v667 = vpop.f32.mrb[0].mxu0
      %v668 = vpop.f32.mrb[0].mxu0
      %v669 = vadd.f32 %v441, %v668
      %v670 = vpop.f32.mrb[0].mxu0
      %671 = vmatprep.mubr.bf16.mxu0 0
      %672 = vmatmul.mubr.bf16.gmra.mrb[0].mxu0 %v557
      %v673 = vpop.f32.mrb[0].mxu0
      %v674 = vadd.f32 %v441, %v673
      %v675 = vpop.f32.mrb[0].mxu0
      %v676 = vpop.f32.mrb[0].mxu0
      %v677 = vadd.f32 %v441, %v676
      %v678 = vpop.f32.mrb[0].mxu0
      %679 = vmatprep.mubr.bf16.mxu0 0
      %680 = vmatmul.mubr.bf16.gmra.mrb[0].mxu0 %v560
      %v681 = vpop.f32.mrb[0].mxu0
      %v682 = vadd.f32 %v441, %v681
      %v683 = vpop.f32.mrb[0].mxu0
      %v684 = vpop.f32.mrb[0].mxu0
      %v685 = vadd.f32 %v441, %v684
      %v686 = vpop.f32.mrb[0].mxu0
      %687 = vmatprep.mubr.bf16.mxu0 0
      %688 = vmatmul.mubr.bf16.gmra.mrb[0].mxu0 %v563
      %v689 = vpop.f32.mrb[0].mxu0
      %v690 = vadd.f32 %v441, %v689
      %v691 = vpop.f32.mrb[0].mxu0
      %v692 = vpop.f32.mrb[0].mxu0
      %v693 = vadd.f32 %v441, %v692
      %v694 = vpop.f32.mrb[0].mxu0
      %695 = vmatprep.mubr.bf16.mxu0 0
      %696 = vmatmul.mubr.bf16.gmra.mrb[0].mxu0 %v566
      %v697 = vpop.f32.mrb[0].mxu0
      %v698 = vadd.f32 %v441, %v697
      %v699 = vpop.f32.mrb[0].mxu0
      %v700 = vpop.f32.mrb[0].mxu0
      %v701 = vadd.f32 %v441, %v700
      %v702 = vpop.f32.mrb[0].mxu0
      %703 = vmatprep.mubr.bf16.mxu0 0
      %704 = vmatmul.mubr.bf16.gmra.mrb[0].mxu0 %v569
      %v705 = vpop.f32.mrb[0].mxu0
      %v706 = vadd.f32 %v441, %v705
      %v707 = vpop.f32.mrb[0].mxu0
      %v708 = vpop.f32.mrb[0].mxu0
      %v709 = vadd.f32 %v441, %v708
      %v710 = vpop.f32.mrb[0].mxu0
      %711 = vmatprep.mubr.bf16.mxu0 0
      %712 = vmatmul.mubr.bf16.gmra.mrb[0].mxu0 %v572
      %v713 = vpop.f32.mrb[0].mxu0
      %v714 = vadd.f32 %v441, %v713
      %v715 = vpop.f32.mrb[0].mxu0
      %v716 = vpop.f32.mrb[0].mxu0
      %v717 = vadd.f32 %v441, %v716
      %v718 = vpop.f32.mrb[0].mxu0
      %719 = vmatprep.mubr.bf16.mxu0 0
      %720 = vmatmul.mubr.bf16.gmra.mrb[0].mxu0 %v575
      %v721 = vpop.f32.mrb[0].mxu0
      %v722 = vadd.f32 %v441, %v721
      %v723 = vpop.f32.mrb[0].mxu0
      %v724 = vpop.f32.mrb[0].mxu0
      %v725 = vadd.f32 %v441, %v724
      %v726 = vpop.f32.mrb[0].mxu0
      %727 = vmatprep.mubr.bf16.mxu0 0
      %728 = vmatmul.mubr.bf16.gmra.mrb[0].mxu0 %v578
      %v729 = vpop.f32.mrb[0].mxu0
      %v730 = vadd.f32 %v441, %v729
      %v731 = vpop.f32.mrb[0].mxu0
      %v732 = vpop.f32.mrb[0].mxu0
      %v733 = vadd.f32 %v441, %v732
      %v734 = vpop.f32.mrb[0].mxu0
      %735 = vmatprep.mubr.bf16.mxu0 0
      %736 = vmatmul.mubr.bf16.gmra.mrb[0].mxu0 %v581
      %v737 = vpop.f32.mrb[0].mxu0
      %v738 = vadd.f32 %v441, %v737
      %v739 = vpop.f32.mrb[0].mxu0
      %v740 = vpop.f32.mrb[0].mxu0
      %v741 = vadd.f32 %v441, %v740
      %v742 = vpop.f32.mrb[0].mxu0
      %743 = vdwg.mxu0
      %v744 = vmax.f32 %v618, 0.0
      %v745 = vmax.f32 %v621, 0.0
      %v746 = vmax.f32 %v626, 0.0
      %v747 = vmax.f32 %v629, 0.0
      %v748 = vmax.f32 %v634, 0.0
      %v749 = vmax.f32 %v637, 0.0
      %v750 = vmax.f32 %v642, 0.0
      %v751 = vmax.f32 %v645, 0.0
      %v752 = vmax.f32 %v650, 0.0
      %v753 = vmax.f32 %v653, 0.0
      %v754 = vmax.f32 %v658, 0.0
      %v755 = vmax.f32 %v661, 0.0
      %v756 = vmax.f32 %v666, 0.0
      %v757 = vmax.f32 %v669, 0.0
      %v758 = vmax.f32 %v674, 0.0
      %v759 = vmax.f32 %v677, 0.0
      %v760 = vmax.f32 %v682, 0.0
      %v761 = vmax.f32 %v685, 0.0
      %v762 = vmax.f32 %v690, 0.0
      %v763 = vmax.f32 %v693, 0.0
      %v764 = vmax.f32 %v698, 0.0
      %v765 = vmax.f32 %v701, 0.0
      %v766 = vmax.f32 %v706, 0.0
      %v767 = vmax.f32 %v709, 0.0
      %v768 = vmax.f32 %v714, 0.0
      %v769 = vmax.f32 %v717, 0.0
      %v770 = vmax.f32 %v722, 0.0
      %v771 = vmax.f32 %v725, 0.0
      %v772 = vmax.f32 %v730, 0.0
      %v773 = vmax.f32 %v733, 0.0
      %v774 = vmax.f32 %v738, 0.0
      %v775 = vmax.f32 %v741, 0.0
      %v776 = vld [vmem:[%s394] sm:$0xf]
      %v777 = vld [vmem:[%s394 + $0x4] sm:$0xf]
      %v778 = vld [vmem:[%s394 + $0x8] sm:$0xf]
      %v779 = vld [vmem:[%s394 + $0xc] sm:$0xf]
      %v780 = vld [vmem:[%s394 + $0x10] sm:$0xf]
      %v781 = vld [vmem:[%s394 + $0x14] sm:$0xf]
      %v782 = vld [vmem:[%s394 + $0x18] sm:$0xf]
      %v783 = vld [vmem:[%s394 + $0x1c] sm:$0xf]
      %v784 = vld [vmem:[%s394 + $0x20] sm:$0xf]
      %v785 = vld [vmem:[%s394 + $0x24] sm:$0xf]
      %v786 = vld [vmem:[%s394 + $0x28] sm:$0xf]
      %v787 = vld [vmem:[%s394 + $0x2c] sm:$0xf]
      %v788 = vld [vmem:[%s394 + $0x30] sm:$0xf]
      %v789 = vld [vmem:[%s394 + $0x34] sm:$0xf]
      %v790 = vld [vmem:[%s394 + $0x38] sm:$0xf]
      %v791 = vld [vmem:[%s394 + $0x3c] sm:$0xf]
      %v792 = vld [vmem:[%s394 + $0x40] sm:$0xf]
      %v793 = vld [vmem:[%s394 + $0x44] sm:$0xf]
      %v794 = vld [vmem:[%s394 + $0x48] sm:$0xf]
      %v795 = vld [vmem:[%s394 + $0x4c] sm:$0xf]
      %v796 = vld [vmem:[%s394 + $0x50] sm:$0xf]
      %v797 = vld [vmem:[%s394 + $0x54] sm:$0xf]
      %v798 = vld [vmem:[%s394 + $0x58] sm:$0xf]
      %v799 = vld [vmem:[%s394 + $0x5c] sm:$0xf]
      %v800 = vld [vmem:[%s394 + $0x60] sm:$0xf]
      %v801 = vld [vmem:[%s394 + $0x64] sm:$0xf]
      %v802 = vld [vmem:[%s394 + $0x68] sm:$0xf]
      %v803 = vld [vmem:[%s394 + $0x6c] sm:$0xf]
      %v804 = vld [vmem:[%s394 + $0x70] sm:$0xf]
      %v805 = vld [vmem:[%s394 + $0x74] sm:$0xf]
      %v806 = vld [vmem:[%s394 + $0x78] sm:$0xf]
      %v807 = vld [vmem:[%s394 + $0x7c] sm:$0xf]
      %v808 = vld [vmem:[%s4] sm:$0xf]
      %v809 = vld [vmem:[%s4 + $0x4] sm:$0xf]
      %v810 = vld [vmem:[%s5 + $0x1] sm:$0x1]
      %v811 = vlaneseq
      %v812 = vshrl.u32 %v811, 7
      %v813 = vsub.s32 0, %v812
      %v814 = vrot.slane %v810, %v813
      %v847 = vunpack.c.l.b16 %v776
      %v848 = vunpack.c.l.b16 %v777
      %v849 = vunpack.c.l.b16 %v778
      %v850 = vunpack.c.l.b16 %v779
      %v851 = vunpack.c.l.b16 %v780
      %v852 = vunpack.c.l.b16 %v781
      %v853 = vunpack.c.l.b16 %v782
      %v854 = vunpack.c.l.b16 %v783
      %v855 = vunpack.c.l.b16 %v784
      %v856 = vunpack.c.l.b16 %v785
      %v857 = vunpack.c.l.b16 %v786
      %v858 = vunpack.c.l.b16 %v787
      %v859 = vunpack.c.l.b16 %v788
      %v860 = vunpack.c.l.b16 %v789
      %v861 = vunpack.c.l.b16 %v790
      %v862 = vunpack.c.l.b16 %v791
      %v863 = vunpack.c.l.b16 %v792
      %v864 = vunpack.c.l.b16 %v793
      %v865 = vunpack.c.l.b16 %v794
      %v866 = vunpack.c.l.b16 %v795
      %v867 = vunpack.c.l.b16 %v796
      %v868 = vunpack.c.l.b16 %v797
      %v869 = vunpack.c.l.b16 %v798
      %v870 = vunpack.c.l.b16 %v799
      %v871 = vunpack.c.l.b16 %v800
      %v872 = vunpack.c.l.b16 %v801
      %v873 = vunpack.c.l.b16 %v802
      %v874 = vunpack.c.l.b16 %v803
      %v875 = vunpack.c.l.b16 %v804
      %v876 = vunpack.c.l.b16 %v805
      %v877 = vunpack.c.l.b16 %v806
      %v878 = vunpack.c.l.b16 %v807
      %v879 = vpack.c.b16 %v848, %v847
      %v880 = vpack.c.b16 %v850, %v849
      %v881 = vpack.c.b16 %v852, %v851
      %v882 = vpack.c.b16 %v854, %v853
      %v883 = vpack.c.b16 %v856, %v855
      %v884 = vpack.c.b16 %v858, %v857
      %v885 = vpack.c.b16 %v860, %v859
      %v886 = vpack.c.b16 %v862, %v861
      %v887 = vpack.c.b16 %v864, %v863
      %v888 = vpack.c.b16 %v866, %v865
      %v889 = vpack.c.b16 %v868, %v867
      %v890 = vpack.c.b16 %v870, %v869
      %v891 = vpack.c.b16 %v872, %v871
      %v892 = vpack.c.b16 %v874, %v873
      %v893 = vpack.c.b16 %v876, %v875
      %v894 = vpack.c.b16 %v878, %v877
      %v897 = vunpack.c.l.b16 %v808
      %v898 = vunpack.c.l.b16 %v809
      %v899 = vpack.c.b16 %v898, %v897
      %vm901 = vcmask 130048
      %v903 = vsel %vm901, %v879, 0
      %v906 = vsel %vm901, %v880, 0
      %v909 = vsel %vm901, %v881, 0
      %v912 = vsel %vm901, %v882, 0
      %v915 = vsel %vm901, %v883, 0
      %v918 = vsel %vm901, %v884, 0
      %v921 = vsel %vm901, %v885, 0
      %v924 = vsel %vm901, %v886, 0
      %v927 = vsel %vm901, %v887, 0
      %v930 = vsel %vm901, %v888, 0
      %v933 = vsel %vm901, %v889, 0
      %v936 = vsel %vm901, %v890, 0
      %v939 = vsel %vm901, %v891, 0
      %v942 = vsel %vm901, %v892, 0
      %v945 = vsel %vm901, %v893, 0
      %v948 = vsel %vm901, %v894, 0
      %950 = vmatprep.subr.bf16.mxu0 0
      %951 = vmatpush1.bf16.msra.mxu0 %v899
      %952 = vmatprep.subr.bf16.mxu0 0
      %953 = vmatpush1.bf16.msra.mxu0 0
      %954 = vmatprep.subr.bf16.mxu0 0
      %955 = vmatpush1.bf16.msra.mxu0 0
      %956 = vmatprep.subr.bf16.mxu0 0
      %957 = vmatpush1.bf16.msra.mxu0 0
      %958 = vmatprep.subr.bf16.mxu0 0
      %959 = vmatpush1.bf16.msra.mxu0 0
      %960 = vmatprep.subr.bf16.mxu0 0
      %961 = vmatpush1.bf16.msra.mxu0 0
      %962 = vmatprep.subr.bf16.mxu0 0
      %963 = vmatpush1.bf16.msra.mxu0 0
      %964 = vmatprep.subr.bf16.mxu0 0
      %965 = vmatpush1.bf16.msra.mxu0 0
      %966 = vmatprep.subr.bf16.mxu0 0
      %967 = vmatpush1.bf16.msra.mxu0 0
      %968 = vmatprep.subr.bf16.mxu0 0
      %969 = vmatpush1.bf16.msra.mxu0 0
      %970 = vmatprep.subr.bf16.mxu0 0
      %971 = vmatpush1.bf16.msra.mxu0 0
      %972 = vmatprep.subr.bf16.mxu0 0
      %973 = vmatpush1.bf16.msra.mxu0 0
      %974 = vmatprep.subr.bf16.mxu0 0
      %975 = vmatpush1.bf16.msra.mxu0 0
      %976 = vmatprep.subr.bf16.mxu0 0
      %977 = vmatpush1.bf16.msra.mxu0 0
      %978 = vmatprep.subr.bf16.mxu0 0
      %979 = vmatpush1.bf16.msra.mxu0 0
      %980 = vmatprep.subr.bf16.mxu0 0
      %981 = vmatpush1.bf16.msra.mxu0 0
      %982 = vmatprep.mubr.bf16.mxu0 0
      %983 = vmatmul.mubr.bf16.gmra.mrb[0].mxu0 %v903
      %v984 = vpop.f32.mrb[0].mxu0
      %v985 = vadd.f32 %v814, %v984
      %v986 = vpop.f32.mrb[0].mxu0
      %v987 = vpop.f32.mrb[0].mxu0
      %v988 = vadd.f32 %v814, %v987
      %v989 = vpop.f32.mrb[0].mxu0
      %990 = vmatprep.mubr.bf16.mxu0 0
      %991 = vmatmul.mubr.bf16.gmra.mrb[0].mxu0 %v906
      %v992 = vpop.f32.mrb[0].mxu0
      %v993 = vadd.f32 %v814, %v992
      %v994 = vpop.f32.mrb[0].mxu0
      %v995 = vpop.f32.mrb[0].mxu0
      %v996 = vadd.f32 %v814, %v995
      %v997 = vpop.f32.mrb[0].mxu0
      %998 = vmatprep.mubr.bf16.mxu0 0
      %999 = vmatmul.mubr.bf16.gmra.mrb[0].mxu0 %v909
      %v1000 = vpop.f32.mrb[0].mxu0
      %v1001 = vadd.f32 %v814, %v1000
      %v1002 = vpop.f32.mrb[0].mxu0
      %v1003 = vpop.f32.mrb[0].mxu0
      %v1004 = vadd.f32 %v814, %v1003
      %v1005 = vpop.f32.mrb[0].mxu0
      %1006 = vmatprep.mubr.bf16.mxu0 0
      %1007 = vmatmul.mubr.bf16.gmra.mrb[0].mxu0 %v912
      %v1008 = vpop.f32.mrb[0].mxu0
      %v1009 = vadd.f32 %v814, %v1008
      %v1010 = vpop.f32.mrb[0].mxu0
      %v1011 = vpop.f32.mrb[0].mxu0
      %v1012 = vadd.f32 %v814, %v1011
      %v1013 = vpop.f32.mrb[0].mxu0
      %1014 = vmatprep.mubr.bf16.mxu0 0
      %1015 = vmatmul.mubr.bf16.gmra.mrb[0].mxu0 %v915
      %v1016 = vpop.f32.mrb[0].mxu0
      %v1017 = vadd.f32 %v814, %v1016
      %v1018 = vpop.f32.mrb[0].mxu0
      %v1019 = vpop.f32.mrb[0].mxu0
      %v1020 = vadd.f32 %v814, %v1019
      %v1021 = vpop.f32.mrb[0].mxu0
      %1022 = vmatprep.mubr.bf16.mxu0 0
      %1023 = vmatmul.mubr.bf16.gmra.mrb[0].mxu0 %v918
      %v1024 = vpop.f32.mrb[0].mxu0
      %v1025 = vadd.f32 %v814, %v1024
      %v1026 = vpop.f32.mrb[0].mxu0
      %v1027 = vpop.f32.mrb[0].mxu0
      %v1028 = vadd.f32 %v814, %v1027
      %v1029 = vpop.f32.mrb[0].mxu0
      %1030 = vmatprep.mubr.bf16.mxu0 0
      %1031 = vmatmul.mubr.bf16.gmra.mrb[0].mxu0 %v921
      %v1032 = vpop.f32.mrb[0].mxu0
      %v1033 = vadd.f32 %v814, %v1032
      %v1034 = vpop.f32.mrb[0].mxu0
      %v1035 = vpop.f32.mrb[0].mxu0
      %v1036 = vadd.f32 %v814, %v1035
      %v1037 = vpop.f32.mrb[0].mxu0
      %1038 = vmatprep.mubr.bf16.mxu0 0
      %1039 = vmatmul.mubr.bf16.gmra.mrb[0].mxu0 %v924
      %v1040 = vpop.f32.mrb[0].mxu0
      %v1041 = vadd.f32 %v814, %v1040
      %v1042 = vpop.f32.mrb[0].mxu0
      %v1043 = vpop.f32.mrb[0].mxu0
      %v1044 = vadd.f32 %v814, %v1043
      %v1045 = vpop.f32.mrb[0].mxu0
      %1046 = vmatprep.mubr.bf16.mxu0 0
      %1047 = vmatmul.mubr.bf16.gmra.mrb[0].mxu0 %v927
      %v1048 = vpop.f32.mrb[0].mxu0
      %v1049 = vadd.f32 %v814, %v1048
      %v1050 = vpop.f32.mrb[0].mxu0
      %v1051 = vpop.f32.mrb[0].mxu0
      %v1052 = vadd.f32 %v814, %v1051
      %v1053 = vpop.f32.mrb[0].mxu0
      %1054 = vmatprep.mubr.bf16.mxu0 0
      %1055 = vmatmul.mubr.bf16.gmra.mrb[0].mxu0 %v930
      %v1056 = vpop.f32.mrb[0].mxu0
      %v1057 = vadd.f32 %v814, %v1056
      %v1058 = vpop.f32.mrb[0].mxu0
      %v1059 = vpop.f32.mrb[0].mxu0
      %v1060 = vadd.f32 %v814, %v1059
      %v1061 = vpop.f32.mrb[0].mxu0
      %1062 = vmatprep.mubr.bf16.mxu0 0
      %1063 = vmatmul.mubr.bf16.gmra.mrb[0].mxu0 %v933
      %v1064 = vpop.f32.mrb[0].mxu0
      %v1065 = vadd.f32 %v814, %v1064
      %v1066 = vpop.f32.mrb[0].mxu0
      %v1067 = vpop.f32.mrb[0].mxu0
      %v1068 = vadd.f32 %v814, %v1067
      %v1069 = vpop.f32.mrb[0].mxu0
      %1070 = vmatprep.mubr.bf16.mxu0 0
      %1071 = vmatmul.mubr.bf16.gmra.mrb[0].mxu0 %v936
      %v1072 = vpop.f32.mrb[0].mxu0
      %v1073 = vadd.f32 %v814, %v1072
      %v1074 = vpop.f32.mrb[0].mxu0
      %v1075 = vpop.f32.mrb[0].mxu0
      %v1076 = vadd.f32 %v814, %v1075
      %v1077 = vpop.f32.mrb[0].mxu0
      %1078 = vmatprep.mubr.bf16.mxu0 0
      %1079 = vmatmul.mubr.bf16.gmra.mrb[0].mxu0 %v939
      %v1080 = vpop.f32.mrb[0].mxu0
      %v1081 = vadd.f32 %v814, %v1080
      %v1082 = vpop.f32.mrb[0].mxu0
      %v1083 = vpop.f32.mrb[0].mxu0
      %v1084 = vadd.f32 %v814, %v1083
      %v1085 = vpop.f32.mrb[0].mxu0
      %1086 = vmatprep.mubr.bf16.mxu0 0
      %1087 = vmatmul.mubr.bf16.gmra.mrb[0].mxu0 %v942
      %v1088 = vpop.f32.mrb[0].mxu0
      %v1089 = vadd.f32 %v814, %v1088
      %v1090 = vpop.f32.mrb[0].mxu0
      %v1091 = vpop.f32.mrb[0].mxu0
      %v1092 = vadd.f32 %v814, %v1091
      %v1093 = vpop.f32.mrb[0].mxu0
      %1094 = vmatprep.mubr.bf16.mxu0 0
      %1095 = vmatmul.mubr.bf16.gmra.mrb[0].mxu0 %v945
      %v1096 = vpop.f32.mrb[0].mxu0
      %v1097 = vadd.f32 %v814, %v1096
      %v1098 = vpop.f32.mrb[0].mxu0
      %v1099 = vpop.f32.mrb[0].mxu0
      %v1100 = vadd.f32 %v814, %v1099
      %v1101 = vpop.f32.mrb[0].mxu0
      %1102 = vmatprep.mubr.bf16.mxu0 0
      %1103 = vmatmul.mubr.bf16.gmra.mrb[0].mxu0 %v948
      %v1104 = vpop.f32.mrb[0].mxu0
      %v1105 = vadd.f32 %v814, %v1104
      %v1106 = vpop.f32.mrb[0].mxu0
      %v1107 = vpop.f32.mrb[0].mxu0
      %v1108 = vadd.f32 %v814, %v1107
      %v1109 = vpop.f32.mrb[0].mxu0
      %1110 = vdwg.mxu0
      %v1111 = vmax.f32 %v985, 0.0
      %v1112 = vmax.f32 %v988, 0.0
      %v1113 = vmax.f32 %v993, 0.0
      %v1114 = vmax.f32 %v996, 0.0
      %v1115 = vmax.f32 %v1001, 0.0
      %v1116 = vmax.f32 %v1004, 0.0
      %v1117 = vmax.f32 %v1009, 0.0
      %v1118 = vmax.f32 %v1012, 0.0
      %v1119 = vmax.f32 %v1017, 0.0
      %v1120 = vmax.f32 %v1020, 0.0
      %v1121 = vmax.f32 %v1025, 0.0
      %v1122 = vmax.f32 %v1028, 0.0
      %v1123 = vmax.f32 %v1033, 0.0
      %v1124 = vmax.f32 %v1036, 0.0
      %v1125 = vmax.f32 %v1041, 0.0
      %v1126 = vmax.f32 %v1044, 0.0
      %v1127 = vmax.f32 %v1049, 0.0
      %v1128 = vmax.f32 %v1052, 0.0
      %v1129 = vmax.f32 %v1057, 0.0
      %v1130 = vmax.f32 %v1060, 0.0
      %v1131 = vmax.f32 %v1065, 0.0
      %v1132 = vmax.f32 %v1068, 0.0
      %v1133 = vmax.f32 %v1073, 0.0
      %v1134 = vmax.f32 %v1076, 0.0
      %v1135 = vmax.f32 %v1081, 0.0
      %v1136 = vmax.f32 %v1084, 0.0
      %v1137 = vmax.f32 %v1089, 0.0
      %v1138 = vmax.f32 %v1092, 0.0
      %v1139 = vmax.f32 %v1097, 0.0
      %v1140 = vmax.f32 %v1100, 0.0
      %v1141 = vmax.f32 %v1105, 0.0
      %v1142 = vmax.f32 %v1108, 0.0
      %v1143 = vld [vmem:[%s384] sm:$0xf]
      %v1144 = vld [vmem:[%s384 + $0x4] sm:$0xf]
      %v1145 = vld [vmem:[%s384 + $0x8] sm:$0xf]
      %v1146 = vld [vmem:[%s384 + $0xc] sm:$0xf]
      %v1147 = vld [vmem:[%s384 + $0x10] sm:$0xf]
      %v1148 = vld [vmem:[%s384 + $0x14] sm:$0xf]
      %v1149 = vld [vmem:[%s384 + $0x18] sm:$0xf]
      %v1150 = vld [vmem:[%s384 + $0x1c] sm:$0xf]
      %v1151 = vld [vmem:[%s384 + $0x20] sm:$0xf]
      %v1152 = vld [vmem:[%s384 + $0x24] sm:$0xf]
      %v1153 = vld [vmem:[%s384 + $0x28] sm:$0xf]
      %v1154 = vld [vmem:[%s384 + $0x2c] sm:$0xf]
      %v1155 = vld [vmem:[%s384 + $0x30] sm:$0xf]
      %v1156 = vld [vmem:[%s384 + $0x34] sm:$0xf]
      %v1157 = vld [vmem:[%s384 + $0x38] sm:$0xf]
      %v1158 = vld [vmem:[%s384 + $0x3c] sm:$0xf]
      %v1159 = vld [vmem:[%s384 + $0x40] sm:$0xf]
      %v1160 = vld [vmem:[%s384 + $0x44] sm:$0xf]
      %v1161 = vld [vmem:[%s384 + $0x48] sm:$0xf]
      %v1162 = vld [vmem:[%s384 + $0x4c] sm:$0xf]
      %v1163 = vld [vmem:[%s384 + $0x50] sm:$0xf]
      %v1164 = vld [vmem:[%s384 + $0x54] sm:$0xf]
      %v1165 = vld [vmem:[%s384 + $0x58] sm:$0xf]
      %v1166 = vld [vmem:[%s384 + $0x5c] sm:$0xf]
      %v1167 = vld [vmem:[%s384 + $0x60] sm:$0xf]
      %v1168 = vld [vmem:[%s384 + $0x64] sm:$0xf]
      %v1169 = vld [vmem:[%s384 + $0x68] sm:$0xf]
      %v1170 = vld [vmem:[%s384 + $0x6c] sm:$0xf]
      %v1171 = vld [vmem:[%s384 + $0x70] sm:$0xf]
      %v1172 = vld [vmem:[%s384 + $0x74] sm:$0xf]
      %v1173 = vld [vmem:[%s384 + $0x78] sm:$0xf]
      %v1174 = vld [vmem:[%s384 + $0x7c] sm:$0xf]
      %v1175 = vpack.c.bf16 %v745, %v744
      %v1176 = vpack.c.bf16 %v747, %v746
      %v1177 = vpack.c.bf16 %v749, %v748
      %v1178 = vpack.c.bf16 %v751, %v750
      %v1179 = vpack.c.bf16 %v753, %v752
      %v1180 = vpack.c.bf16 %v755, %v754
      %v1181 = vpack.c.bf16 %v757, %v756
      %v1182 = vpack.c.bf16 %v759, %v758
      %v1183 = vpack.c.bf16 %v761, %v760
      %v1184 = vpack.c.bf16 %v763, %v762
      %v1185 = vpack.c.bf16 %v765, %v764
      %v1186 = vpack.c.bf16 %v767, %v766
      %v1187 = vpack.c.bf16 %v769, %v768
      %v1188 = vpack.c.bf16 %v771, %v770
      %v1189 = vpack.c.bf16 %v773, %v772
      %v1190 = vpack.c.bf16 %v775, %v774
      %v1191 = vpack.c.bf16 %v1112, %v1111
      %v1192 = vpack.c.bf16 %v1114, %v1113
      %v1193 = vpack.c.bf16 %v1116, %v1115
      %v1194 = vpack.c.bf16 %v1118, %v1117
      %v1195 = vpack.c.bf16 %v1120, %v1119
      %v1196 = vpack.c.bf16 %v1122, %v1121
      %v1197 = vpack.c.bf16 %v1124, %v1123
      %v1198 = vpack.c.bf16 %v1126, %v1125
      %v1199 = vpack.c.bf16 %v1128, %v1127
      %v1200 = vpack.c.bf16 %v1130, %v1129
      %v1201 = vpack.c.bf16 %v1132, %v1131
      %v1202 = vpack.c.bf16 %v1134, %v1133
      %v1203 = vpack.c.bf16 %v1136, %v1135
      %v1204 = vpack.c.bf16 %v1138, %v1137
      %v1205 = vpack.c.bf16 %v1140, %v1139
      %v1206 = vpack.c.bf16 %v1142, %v1141
      %v1239 = vunpack.c.l.b16 %v1143
      %v1240 = vunpack.c.l.b16 %v1144
      %v1241 = vunpack.c.l.b16 %v1145
      %v1242 = vunpack.c.l.b16 %v1146
      %v1243 = vunpack.c.l.b16 %v1147
      %v1244 = vunpack.c.l.b16 %v1148
      %v1245 = vunpack.c.l.b16 %v1149
      %v1246 = vunpack.c.l.b16 %v1150
      %v1247 = vunpack.c.l.b16 %v1151
      %v1248 = vunpack.c.l.b16 %v1152
      %v1249 = vunpack.c.l.b16 %v1153
      %v1250 = vunpack.c.l.b16 %v1154
      %v1251 = vunpack.c.l.b16 %v1155
      %v1252 = vunpack.c.l.b16 %v1156
      %v1253 = vunpack.c.l.b16 %v1157
      %v1254 = vunpack.c.l.b16 %v1158
      %v1255 = vunpack.c.l.b16 %v1159
      %v1256 = vunpack.c.l.b16 %v1160
      %v1257 = vunpack.c.l.b16 %v1161
      %v1258 = vunpack.c.l.b16 %v1162
      %v1259 = vunpack.c.l.b16 %v1163
      %v1260 = vunpack.c.l.b16 %v1164
      %v1261 = vunpack.c.l.b16 %v1165
      %v1262 = vunpack.c.l.b16 %v1166
      %v1263 = vunpack.c.l.b16 %v1167
      %v1264 = vunpack.c.l.b16 %v1168
      %v1265 = vunpack.c.l.b16 %v1169
      %v1266 = vunpack.c.l.b16 %v1170
      %v1267 = vunpack.c.l.b16 %v1171
      %v1268 = vunpack.c.l.b16 %v1172
      %v1269 = vunpack.c.l.b16 %v1173
      %v1270 = vunpack.c.l.b16 %v1174
      %v1271 = vpack.c.b16 %v1240, %v1239
      %v1272 = vpack.c.b16 %v1242, %v1241
      %v1273 = vpack.c.b16 %v1244, %v1243
      %v1274 = vpack.c.b16 %v1246, %v1245
      %v1275 = vpack.c.b16 %v1248, %v1247
      %v1276 = vpack.c.b16 %v1250, %v1249
      %v1277 = vpack.c.b16 %v1252, %v1251
      %v1278 = vpack.c.b16 %v1254, %v1253
      %v1279 = vpack.c.b16 %v1256, %v1255
      %v1280 = vpack.c.b16 %v1258, %v1257
      %v1281 = vpack.c.b16 %v1260, %v1259
      %v1282 = vpack.c.b16 %v1262, %v1261
      %v1283 = vpack.c.b16 %v1264, %v1263
      %v1284 = vpack.c.b16 %v1266, %v1265
      %v1285 = vpack.c.b16 %v1268, %v1267
      %v1286 = vpack.c.b16 %v1270, %v1269
      %1303 = vrot.lane.b32.xlu0 %v1175, 8
      %v1304 = vpop.permute.xlu0 %1303
      %1305 = vrot.lane.b32.xlu0 %v1176, 8
      %v1306 = vpop.permute.xlu0 %1305
      %1307 = vrot.lane.b32.xlu0 %v1177, 8
      %v1308 = vpop.permute.xlu0 %1307
      %1309 = vrot.lane.b32.xlu0 %v1178, 8
      %v1310 = vpop.permute.xlu0 %1309
      %1311 = vrot.lane.b32.xlu0 %v1179, 8
      %v1312 = vpop.permute.xlu0 %1311
      %1313 = vrot.lane.b32.xlu0 %v1180, 8
      %v1314 = vpop.permute.xlu0 %1313
      %1315 = vrot.lane.b32.xlu0 %v1181, 8
      %v1316 = vpop.permute.xlu0 %1315
      %1317 = vrot.lane.b32.xlu0 %v1182, 8
      %v1318 = vpop.permute.xlu0 %1317
      %1319 = vrot.lane.b32.xlu0 %v1183, 8
      %v1320 = vpop.permute.xlu0 %1319
      %1321 = vrot.lane.b32.xlu0 %v1184, 8
      %v1322 = vpop.permute.xlu0 %1321
      %1323 = vrot.lane.b32.xlu0 %v1185, 8
      %v1324 = vpop.permute.xlu0 %1323
      %1325 = vrot.lane.b32.xlu0 %v1186, 8
      %v1326 = vpop.permute.xlu0 %1325
      %1327 = vrot.lane.b32.xlu0 %v1187, 8
      %v1328 = vpop.permute.xlu0 %1327
      %1329 = vrot.lane.b32.xlu0 %v1188, 8
      %v1330 = vpop.permute.xlu0 %1329
      %1331 = vrot.lane.b32.xlu0 %v1189, 8
      %v1332 = vpop.permute.xlu0 %1331
      %1333 = vrot.lane.b32.xlu0 %v1190, 8
      %v1334 = vpop.permute.xlu0 %1333
      %1351 = vrot.lane.b32.xlu0 %v1191, 16
      %v1352 = vpop.permute.xlu0 %1351
      %1353 = vrot.lane.b32.xlu0 %v1192, 16
      %v1354 = vpop.permute.xlu0 %1353
      %1355 = vrot.lane.b32.xlu0 %v1193, 16
      %v1356 = vpop.permute.xlu0 %1355
      %1357 = vrot.lane.b32.xlu0 %v1194, 16
      %v1358 = vpop.permute.xlu0 %1357
      %1359 = vrot.lane.b32.xlu0 %v1195, 16
      %v1360 = vpop.permute.xlu0 %1359
      %1361 = vrot.lane.b32.xlu0 %v1196, 16
      %v1362 = vpop.permute.xlu0 %1361
      %1363 = vrot.lane.b32.xlu0 %v1197, 16
      %v1364 = vpop.permute.xlu0 %1363
      %1365 = vrot.lane.b32.xlu0 %v1198, 16
      %v1366 = vpop.permute.xlu0 %1365
      %1367 = vrot.lane.b32.xlu0 %v1199, 16
      %v1368 = vpop.permute.xlu0 %1367
      %1369 = vrot.lane.b32.xlu0 %v1200, 16
      %v1370 = vpop.permute.xlu0 %1369
      %1371 = vrot.lane.b32.xlu0 %v1201, 16
      %v1372 = vpop.permute.xlu0 %1371
      %1373 = vrot.lane.b32.xlu0 %v1202, 16
      %v1374 = vpop.permute.xlu0 %1373
      %1375 = vrot.lane.b32.xlu0 %v1203, 16
      %v1376 = vpop.permute.xlu0 %1375
      %1377 = vrot.lane.b32.xlu0 %v1204, 16
      %v1378 = vpop.permute.xlu0 %1377
      %1379 = vrot.lane.b32.xlu0 %v1205, 16
      %v1380 = vpop.permute.xlu0 %1379
      %1381 = vrot.lane.b32.xlu0 %v1206, 16
      %v1382 = vpop.permute.xlu0 %1381
      %vm1383 = vcmask 64512
      %v1386 = vsel %vm1383, %v1271, %v1304
      %v1389 = vsel %vm1383, %v1272, %v1306
      %v1392 = vsel %vm1383, %v1273, %v1308
      %v1395 = vsel %vm1383, %v1274, %v1310
      %v1398 = vsel %vm1383, %v1275, %v1312
      %v1401 = vsel %vm1383, %v1276, %v1314
      %v1404 = vsel %vm1383, %v1277, %v1316
      %v1407 = vsel %vm1383, %v1278, %v1318
      %v1410 = vsel %vm1383, %v1279, %v1320
      %v1413 = vsel %vm1383, %v1280, %v1322
      %v1416 = vsel %vm1383, %v1281, %v1324
      %v1419 = vsel %vm1383, %v1282, %v1326
      %v1422 = vsel %vm1383, %v1283, %v1328
      %v1425 = vsel %vm1383, %v1284, %v1330
      %v1428 = vsel %vm1383, %v1285, %v1332
      %v1431 = vsel %vm1383, %v1286, %v1334
      %v1433 = vsel %vm901, %v1386, %v1352
      %v1436 = vsel %vm901, %v1389, %v1354
      %v1439 = vsel %vm901, %v1392, %v1356
      %v1442 = vsel %vm901, %v1395, %v1358
      %v1445 = vsel %vm901, %v1398, %v1360
      %v1448 = vsel %vm901, %v1401, %v1362
      %v1451 = vsel %vm901, %v1404, %v1364
      %v1454 = vsel %vm901, %v1407, %v1366
      %v1457 = vsel %vm901, %v1410, %v1368
      %v1460 = vsel %vm901, %v1413, %v1370
      %v1463 = vsel %vm901, %v1416, %v1372
      %v1466 = vsel %vm901, %v1419, %v1374
      %v1469 = vsel %vm901, %v1422, %v1376
      %v1472 = vsel %vm901, %v1425, %v1378
      %v1475 = vsel %vm901, %v1428, %v1380
      %v1478 = vsel %vm901, %v1431, %v1382
      %v1480 = vshrl.u32 %v1433, 16
      %v1482 = vrot.slane %v1480, 7
      %v1483 = vshll.u32 %v1433, 16
      %v1485 = vor.u32 %v1482, %v1483
      %v1486 = vshrl.u32 %v1436, 16
      %v1488 = vrot.slane %v1486, 7
      %v1489 = vshll.u32 %v1436, 16
      %v1491 = vor.u32 %v1488, %v1489
      %v1492 = vshrl.u32 %v1439, 16
      %v1494 = vrot.slane %v1492, 7
      %v1495 = vshll.u32 %v1439, 16
      %v1497 = vor.u32 %v1494, %v1495
      %v1498 = vshrl.u32 %v1442, 16
      %v1500 = vrot.slane %v1498, 7
      %v1501 = vshll.u32 %v1442, 16
      %v1503 = vor.u32 %v1500, %v1501
      %v1504 = vshrl.u32 %v1445, 16
      %v1506 = vrot.slane %v1504, 7
      %v1507 = vshll.u32 %v1445, 16
      %v1509 = vor.u32 %v1506, %v1507
      %v1510 = vshrl.u32 %v1448, 16
      %v1512 = vrot.slane %v1510, 7
      %v1513 = vshll.u32 %v1448, 16
      %v1515 = vor.u32 %v1512, %v1513
      %v1516 = vshrl.u32 %v1451, 16
      %v1518 = vrot.slane %v1516, 7
      %v1519 = vshll.u32 %v1451, 16
      %v1521 = vor.u32 %v1518, %v1519
      %v1522 = vshrl.u32 %v1454, 16
      %v1524 = vrot.slane %v1522, 7
      %v1525 = vshll.u32 %v1454, 16
      %v1527 = vor.u32 %v1524, %v1525
      %v1528 = vshrl.u32 %v1457, 16
      %v1530 = vrot.slane %v1528, 7
      %v1531 = vshll.u32 %v1457, 16
      %v1533 = vor.u32 %v1530, %v1531
      %v1534 = vshrl.u32 %v1460, 16
      %v1536 = vrot.slane %v1534, 7
      %v1537 = vshll.u32 %v1460, 16
      %v1539 = vor.u32 %v1536, %v1537
      %v1540 = vshrl.u32 %v1463, 16
      %v1542 = vrot.slane %v1540, 7
      %v1543 = vshll.u32 %v1463, 16
      %v1545 = vor.u32 %v1542, %v1543
      %v1546 = vshrl.u32 %v1466, 16
      %v1548 = vrot.slane %v1546, 7
      %v1549 = vshll.u32 %v1466, 16
      %v1551 = vor.u32 %v1548, %v1549
      %v1552 = vshrl.u32 %v1469, 16
      %v1554 = vrot.slane %v1552, 7
      %v1555 = vshll.u32 %v1469, 16
      %v1557 = vor.u32 %v1554, %v1555
      %v1558 = vshrl.u32 %v1472, 16
      %v1560 = vrot.slane %v1558, 7
      %v1561 = vshll.u32 %v1472, 16
      %v1563 = vor.u32 %v1560, %v1561
      %v1564 = vshrl.u32 %v1475, 16
      %v1566 = vrot.slane %v1564, 7
      %v1567 = vshll.u32 %v1475, 16
      %v1569 = vor.u32 %v1566, %v1567
      %v1570 = vshrl.u32 %v1478, 16
      %v1572 = vrot.slane %v1570, 7
      %v1573 = vshll.u32 %v1478, 16
      %v1575 = vor.u32 %v1572, %v1573
      %vm1592 = vcmask 1040384
      %vm1593 = vsmask.f32 256
      %vm1594 = vmand %vm1592, %vm1593
      %v1595 = vsel %vm1594, 0, %v1485
      %v1596 = vsel %vm1594, 0, %v1491
      %v1597 = vsel %vm1594, 0, %v1497
      %v1598 = vsel %vm1594, 0, %v1503
      %v1599 = vsel %vm1594, 0, %v1509
      %v1600 = vsel %vm1594, 0, %v1515
      %v1601 = vsel %vm1594, 0, %v1521
      %v1602 = vsel %vm1594, 0, %v1527
      %v1603 = vsel %vm1594, 0, %v1533
      %v1604 = vsel %vm1594, 0, %v1539
      %v1605 = vsel %vm1594, 0, %v1545
      %v1606 = vsel %vm1594, 0, %v1551
      %v1607 = vsel %vm1594, 0, %v1557
      %v1608 = vsel %vm1594, 0, %v1563
      %v1609 = vsel %vm1594, 0, %v1569
      %v1610 = vsel %vm1594, 0, %v1575
      %s1611 = scalar_lea.vmem [#allocation2], 8
      %vm1612 = vcmask 195584
      %1613 = vst.msk [vmem:[%s1611] sm:$0xff] %vm1612, %v1595
      %1614 = vst.msk [vmem:[%s1611 + $0x8] sm:$0xff] %vm1612, %v1596
      %1615 = vst.msk [vmem:[%s1611 + $0x10] sm:$0xff] %vm1612, %v1597
      %1616 = vst.msk [vmem:[%s1611 + $0x18] sm:$0xff] %vm1612, %v1598
      %1617 = vst.msk [vmem:[%s1611 + $0x20] sm:$0xff] %vm1612, %v1599
      %1618 = vst.msk [vmem:[%s1611 + $0x28] sm:$0xff] %vm1612, %v1600
      %1619 = vst.msk [vmem:[%s1611 + $0x30] sm:$0xff] %vm1612, %v1601
      %1620 = vst.msk [vmem:[%s1611 + $0x38] sm:$0xff] %vm1612, %v1602
      %1621 = vst.msk [vmem:[%s1611 + $0x40] sm:$0xff] %vm1612, %v1603
      %1622 = vst.msk [vmem:[%s1611 + $0x48] sm:$0xff] %vm1612, %v1604
      %1623 = vst.msk [vmem:[%s1611 + $0x50] sm:$0xff] %vm1612, %v1605
      %1624 = vst.msk [vmem:[%s1611 + $0x58] sm:$0xff] %vm1612, %v1606
      %1625 = vst.msk [vmem:[%s1611 + $0x60] sm:$0xff] %vm1612, %v1607
      %1626 = vst.msk [vmem:[%s1611 + $0x68] sm:$0xff] %vm1612, %v1608
      %1627 = vst.msk [vmem:[%s1611 + $0x70] sm:$0xff] %vm1612, %v1609
      %1628 = vst.msk [vmem:[%s1611 + $0x78] sm:$0xff] %vm1612, %v1610
      %s1629 = scalar_lea.vmem [#allocation2], 152
      %1630 = vst.msk [vmem:[%s1629] sm:$0xff] %vm1612, %v1433
      %1631 = vst.msk [vmem:[%s1629 + $0x8] sm:$0xff] %vm1612, %v1436
      %1632 = vst.msk [vmem:[%s1629 + $0x10] sm:$0xff] %vm1612, %v1439
      %1633 = vst.msk [vmem:[%s1629 + $0x18] sm:$0xff] %vm1612, %v1442
      %1634 = vst.msk [vmem:[%s1629 + $0x20] sm:$0xff] %vm1612, %v1445
      %1635 = vst.msk [vmem:[%s1629 + $0x28] sm:$0xff] %vm1612, %v1448
      %1636 = vst.msk [vmem:[%s1629 + $0x30] sm:$0xff] %vm1612, %v1451
      %1637 = vst.msk [vmem:[%s1629 + $0x38] sm:$0xff] %vm1612, %v1454
      %1638 = vst.msk [vmem:[%s1629 + $0x40] sm:$0xff] %vm1612, %v1457
      %1639 = vst.msk [vmem:[%s1629 + $0x48] sm:$0xff] %vm1612, %v1460
      %1640 = vst.msk [vmem:[%s1629 + $0x50] sm:$0xff] %vm1612, %v1463
      %1641 = vst.msk [vmem:[%s1629 + $0x58] sm:$0xff] %vm1612, %v1466
      %1642 = vst.msk [vmem:[%s1629 + $0x60] sm:$0xff] %vm1612, %v1469
      %1643 = vst.msk [vmem:[%s1629 + $0x68] sm:$0xff] %vm1612, %v1472
      %1644 = vst.msk [vmem:[%s1629 + $0x70] sm:$0xff] %vm1612, %v1475
      %1645 = vst.msk [vmem:[%s1629 + $0x78] sm:$0xff] %vm1612, %v1478
      %v1646 = vrot.slane %v1483, 1
      %v1647 = vor.u32 %v1480, %v1646
      %v1648 = vrot.slane %v1489, 1
      %v1649 = vor.u32 %v1486, %v1648
      %v1650 = vrot.slane %v1495, 1
      %v1651 = vor.u32 %v1492, %v1650
      %v1652 = vrot.slane %v1501, 1
      %v1653 = vor.u32 %v1498, %v1652
      %v1654 = vrot.slane %v1507, 1
      %v1655 = vor.u32 %v1504, %v1654
      %v1656 = vrot.slane %v1513, 1
      %v1657 = vor.u32 %v1510, %v1656
      %v1658 = vrot.slane %v1519, 1
      %v1659 = vor.u32 %v1516, %v1658
      %v1660 = vrot.slane %v1525, 1
      %v1661 = vor.u32 %v1522, %v1660
      %v1662 = vrot.slane %v1531, 1
      %v1663 = vor.u32 %v1528, %v1662
      %v1664 = vrot.slane %v1537, 1
      %v1665 = vor.u32 %v1534, %v1664
      %v1666 = vrot.slane %v1543, 1
      %v1667 = vor.u32 %v1540, %v1666
      %v1668 = vrot.slane %v1549, 1
      %v1669 = vor.u32 %v1546, %v1668
      %v1670 = vrot.slane %v1555, 1
      %v1671 = vor.u32 %v1552, %v1670
      %v1672 = vrot.slane %v1561, 1
      %v1673 = vor.u32 %v1558, %v1672
      %v1674 = vrot.slane %v1567, 1
      %v1675 = vor.u32 %v1564, %v1674
      %v1676 = vrot.slane %v1573, 1
      %v1677 = vor.u32 %v1570, %v1676
      %vm1694 = vcmask 1047552
      %vm1695 = vsmask.f32 7424
      %vm1696 = vmand %vm1694, %vm1695
      %v1697 = vsel %vm1696, %v1647, 0
      %v1698 = vsel %vm1696, %v1649, 0
      %v1699 = vsel %vm1696, %v1651, 0
      %v1700 = vsel %vm1696, %v1653, 0
      %v1701 = vsel %vm1696, %v1655, 0
      %v1702 = vsel %vm1696, %v1657, 0
      %v1703 = vsel %vm1696, %v1659, 0
      %v1704 = vsel %vm1696, %v1661, 0
      %v1705 = vsel %vm1696, %v1663, 0
      %v1706 = vsel %vm1696, %v1665, 0
      %v1707 = vsel %vm1696, %v1667, 0
      %v1708 = vsel %vm1696, %v1669, 0
      %v1709 = vsel %vm1696, %v1671, 0
      %v1710 = vsel %vm1696, %v1673, 0
      %v1711 = vsel %vm1696, %v1675, 0
      %v1712 = vsel %vm1696, %v1677, 0
      %s1713 = scalar_lea.vmem [#allocation2], 296
      %1714 = vst.msk [vmem:[%s1713] sm:$0xff] %vm1612, %v1697
      %1715 = vst.msk [vmem:[%s1713 + $0x8] sm:$0xff] %vm1612, %v1698
      %1716 = vst.msk [vmem:[%s1713 + $0x10] sm:$0xff] %vm1612, %v1699
      %1717 = vst.msk [vmem:[%s1713 + $0x18] sm:$0xff] %vm1612, %v1700
      %1718 = vst.msk [vmem:[%s1713 + $0x20] sm:$0xff] %vm1612, %v1701
      %1719 = vst.msk [vmem:[%s1713 + $0x28] sm:$0xff] %vm1612, %v1702
      %1720 = vst.msk [vmem:[%s1713 + $0x30] sm:$0xff] %vm1612, %v1703
      %1721 = vst.msk [vmem:[%s1713 + $0x38] sm:$0xff] %vm1612, %v1704
      %1722 = vst.msk [vmem:[%s1713 + $0x40] sm:$0xff] %vm1612, %v1705
      %1723 = vst.msk [vmem:[%s1713 + $0x48] sm:$0xff] %vm1612, %v1706
      %1724 = vst.msk [vmem:[%s1713 + $0x50] sm:$0xff] %vm1612, %v1707
      %1725 = vst.msk [vmem:[%s1713 + $0x58] sm:$0xff] %vm1612, %v1708
      %1726 = vst.msk [vmem:[%s1713 + $0x60] sm:$0xff] %vm1612, %v1709
      %1727 = vst.msk [vmem:[%s1713 + $0x68] sm:$0xff] %vm1612, %v1710
      %1728 = vst.msk [vmem:[%s1713 + $0x70] sm:$0xff] %vm1612, %v1711
      %1729 = vst.msk [vmem:[%s1713 + $0x78] sm:$0xff] %vm1612, %v1712
      %1730 = vst.msk [vmem:[#allocation2] sm:$0xff] %vm1612, 0
      %1731 = vst.msk [vmem:[#allocation2 + $0x90] sm:$0xff] %vm1612, 0
      %1732 = vst.msk [vmem:[#allocation2 + $0x120] sm:$0xff] %vm1612, 0
      %s1733 = scalar_lea.vmem [#allocation2], 136
      %1734 = vst.msk [vmem:[%s1733] sm:$0xff] %vm1612, 0
      %1735 = vst.msk [vmem:[%s1733 + $0x90] sm:$0xff] %vm1612, 0
      %1736 = vst.msk [vmem:[%s1733 + $0x120] sm:$0xff] %vm1612, 0
      %v1737 = vld [vmem:[%s7] sm:$0x1]
      %v1739 = vlaneseq
      %v1740 = vshrl.u32 %v1739, 7
      %v1741 = vsub.s32 0, %v1740
      %v1742 = vrot.slane %v1737, %v1741
      %1744 = vst.msk [vmem:[#allocation4] sm:$0xff] %vm1383, %v1742
      %1745 = vst.msk [vmem:[#allocation4 + $0x8] sm:$0xff] %vm1383, %v1742
      %1746 = vst.msk [vmem:[#allocation4 + $0x10] sm:$0xff] %vm1383, %v1742
      %1747 = vst.msk [vmem:[#allocation4 + $0x18] sm:$0xff] %vm1383, %v1742
      %1748 = vst.msk [vmem:[#allocation4 + $0x20] sm:$0xff] %vm1383, %v1742
      %1749 = vst.msk [vmem:[#allocation4 + $0x28] sm:$0xff] %vm1383, %v1742
      %1750 = vst.msk [vmem:[#allocation4 + $0x30] sm:$0xff] %vm1383, %v1742
      %1751 = vst.msk [vmem:[#allocation4 + $0x38] sm:$0xff] %vm1383, %v1742
      %1752 = vst.msk [vmem:[#allocation4 + $0x40] sm:$0xff] %vm1383, %v1742
      %1753 = vst.msk [vmem:[#allocation4 + $0x48] sm:$0xff] %vm1383, %v1742
      %1754 = vst.msk [vmem:[#allocation4 + $0x50] sm:$0xff] %vm1383, %v1742
      %1755 = vst.msk [vmem:[#allocation4 + $0x58] sm:$0xff] %vm1383, %v1742
      %1756 = vst.msk [vmem:[#allocation4 + $0x60] sm:$0xff] %vm1383, %v1742
      %1757 = vst.msk [vmem:[#allocation4 + $0x68] sm:$0xff] %vm1383, %v1742
      %1758 = vst.msk [vmem:[#allocation4 + $0x70] sm:$0xff] %vm1383, %v1742
      %1759 = vst.msk [vmem:[#allocation4 + $0x78] sm:$0xff] %vm1383, %v1742
      %1760 = vst.msk [vmem:[#allocation4 + $0x80] sm:$0xff] %vm1383, %v1742
      %1761 = vst.msk [vmem:[#allocation4 + $0x88] sm:$0xff] %vm1383, %v1742
      %1762 = vst.msk [vmem:[#allocation4 + $0x90] sm:$0xff] %vm1383, %v1742
      %1763 = vst.msk [vmem:[#allocation4 + $0x98] sm:$0xff] %vm1383, %v1742
      %1764 = vst.msk [vmem:[#allocation4 + $0xa0] sm:$0xff] %vm1383, %v1742
      %1765 = vst.msk [vmem:[#allocation4 + $0xa8] sm:$0xff] %vm1383, %v1742
      %1766 = vst.msk [vmem:[#allocation4 + $0xb0] sm:$0xff] %vm1383, %v1742
      %1767 = vst.msk [vmem:[#allocation4 + $0xb8] sm:$0xff] %vm1383, %v1742
      %1768 = vst.msk [vmem:[#allocation4 + $0xc0] sm:$0xff] %vm1383, %v1742
      %1769 = vst.msk [vmem:[#allocation4 + $0xc8] sm:$0xff] %vm1383, %v1742
      %1770 = vst.msk [vmem:[#allocation4 + $0xd0] sm:$0xff] %vm1383, %v1742
      %1771 = vst.msk [vmem:[#allocation4 + $0xd8] sm:$0xff] %vm1383, %v1742
      %1772 = vst.msk [vmem:[#allocation4 + $0xe0] sm:$0xff] %vm1383, %v1742
      %1773 = vst.msk [vmem:[#allocation4 + $0xe8] sm:$0xff] %vm1383, %v1742
      %1774 = vst.msk [vmem:[#allocation4 + $0xf0] sm:$0xff] %vm1383, %v1742
      %1775 = vst.msk [vmem:[#allocation4 + $0xf8] sm:$0xff] %vm1383, %v1742
      %v1776 = vld [vmem:[#allocation2] sm:$0xff]
      %v1777 = vld [vmem:[#allocation2 + $0x8] sm:$0xff]
      %v1778 = vld [vmem:[#allocation2 + $0x10] sm:$0xff]
      %v1779 = vld [vmem:[#allocation2 + $0x18] sm:$0xff]
      %v1780 = vld [vmem:[#allocation2 + $0x20] sm:$0xff]
      %v1781 = vld [vmem:[#allocation2 + $0x28] sm:$0xff]
      %v1782 = vld [vmem:[#allocation2 + $0x30] sm:$0xff]
      %v1783 = vld [vmem:[#allocation2 + $0x38] sm:$0xff]
      %v1784 = vld [vmem:[#allocation2 + $0x40] sm:$0xff]
      %v1785 = vld [vmem:[#allocation2 + $0x48] sm:$0xff]
      %v1786 = vld [vmem:[#allocation2 + $0x50] sm:$0xff]
      %v1787 = vld [vmem:[#allocation2 + $0x58] sm:$0xff]
      %v1788 = vld [vmem:[#allocation2 + $0x60] sm:$0xff]
      %v1789 = vld [vmem:[#allocation2 + $0x68] sm:$0xff]
      %v1790 = vld [vmem:[#allocation2 + $0x70] sm:$0xff]
      %v1791 = vld [vmem:[#allocation2 + $0x78] sm:$0xff]
      %v1792 = vld [vmem:[#allocation4] sm:$0xff]
      %v1793 = vld [vmem:[#allocation4 + $0x8] sm:$0xff]
      %v1794 = vld [vmem:[#allocation4 + $0x10] sm:$0xff]
      %v1795 = vld [vmem:[#allocation4 + $0x18] sm:$0xff]
      %v1796 = vld [vmem:[#allocation4 + $0x20] sm:$0xff]
      %v1797 = vld [vmem:[#allocation4 + $0x28] sm:$0xff]
      %v1798 = vld [vmem:[#allocation4 + $0x30] sm:$0xff]
      %v1799 = vld [vmem:[#allocation4 + $0x38] sm:$0xff]
      %v1800 = vld [vmem:[#allocation4 + $0x40] sm:$0xff]
      %v1801 = vld [vmem:[#allocation4 + $0x48] sm:$0xff]
      %v1802 = vld [vmem:[#allocation4 + $0x50] sm:$0xff]
      %v1803 = vld [vmem:[#allocation4 + $0x58] sm:$0xff]
      %v1804 = vld [vmem:[#allocation4 + $0x60] sm:$0xff]
      %v1805 = vld [vmem:[#allocation4 + $0x68] sm:$0xff]
      %v1806 = vld [vmem:[#allocation4 + $0x70] sm:$0xff]
      %v1807 = vld [vmem:[#allocation4 + $0x78] sm:$0xff]
      %v1808 = vld [vmem:[#allocation4 + $0x80] sm:$0xff]
      %v1809 = vld [vmem:[#allocation4 + $0x88] sm:$0xff]
      %v1810 = vld [vmem:[#allocation4 + $0x90] sm:$0xff]
      %v1811 = vld [vmem:[#allocation4 + $0x98] sm:$0xff]
      %v1812 = vld [vmem:[#allocation4 + $0xa0] sm:$0xff]
      %v1813 = vld [vmem:[#allocation4 + $0xa8] sm:$0xff]
      %v1814 = vld [vmem:[#allocation4 + $0xb0] sm:$0xff]
      %v1815 = vld [vmem:[#allocation4 + $0xb8] sm:$0xff]
      %v1816 = vld [vmem:[#allocation4 + $0xc0] sm:$0xff]
      %v1817 = vld [vmem:[#allocation4 + $0xc8] sm:$0xff]
      %v1818 = vld [vmem:[#allocation4 + $0xd0] sm:$0xff]
      %v1819 = vld [vmem:[#allocation4 + $0xd8] sm:$0xff]
      %v1820 = vld [vmem:[#allocation4 + $0xe0] sm:$0xff]
      %v1821 = vld [vmem:[#allocation4 + $0xe8] sm:$0xff]
      %v1822 = vld [vmem:[#allocation4 + $0xf0] sm:$0xff]
      %v1823 = vld [vmem:[#allocation4 + $0xf8] sm:$0xff]
      %v1824 = vld [vmem:[%s6] sm:$0xf]
      %v1825 = vld [vmem:[%s6 + $0x4] sm:$0xf]
      %v1826 = vld [vmem:[%s6 + $0x8] sm:$0xf]
      %v1830 = vunpack.c.l.b16 %v1824
      %v1831 = vunpack.c.l.b16 %v1825
      %v1832 = vunpack.c.l.b16 %v1826
      %v1833 = vpack.c.b16 %v1831, %v1830
      %v1834 = vpack.c.b16 %v1832, %v1832
      %v1837 = vsel %vm1612, %v1776, 0
      %v1840 = vsel %vm1612, %v1777, 0
      %v1843 = vsel %vm1612, %v1778, 0
      %v1846 = vsel %vm1612, %v1779, 0
      %v1849 = vsel %vm1612, %v1780, 0
      %v1852 = vsel %vm1612, %v1781, 0
      %v1855 = vsel %vm1612, %v1782, 0
      %v1858 = vsel %vm1612, %v1783, 0
      %v1861 = vsel %vm1612, %v1784, 0
      %v1864 = vsel %vm1612, %v1785, 0
      %v1867 = vsel %vm1612, %v1786, 0
      %v1870 = vsel %vm1612, %v1787, 0
      %v1873 = vsel %vm1612, %v1788, 0
      %v1876 = vsel %vm1612, %v1789, 0
      %v1879 = vsel %vm1612, %v1790, 0
      %v1882 = vsel %vm1612, %v1791, 0
      %vm1884 = vcmask 1043456
      %v1886 = vsel %vm1884, %v1834, 0
      %1888 = vmatprep.subr.bf16.mxu0 0
      %1889 = vmatpush1.bf16.msra.mxu0 %v1833
      %1890 = vmatprep.subr.bf16.mxu0 0
      %1891 = vmatpush1.bf16.msra.mxu0 %v1886
      %1892 = vmatprep.subr.bf16.mxu0 0
      %1893 = vmatpush1.bf16.msra.mxu0 0
      %1894 = vmatprep.subr.bf16.mxu0 0
      %1895 = vmatpush1.bf16.msra.mxu0 0
      %1896 = vmatprep.subr.bf16.mxu0 0
      %1897 = vmatpush1.bf16.msra.mxu0 0
      %1898 = vmatprep.subr.bf16.mxu0 0
      %1899 = vmatpush1.bf16.msra.mxu0 0
      %1900 = vmatprep.subr.bf16.mxu0 0
      %1901 = vmatpush1.bf16.msra.mxu0 0
      %1902 = vmatprep.subr.bf16.mxu0 0
      %1903 = vmatpush1.bf16.msra.mxu0 0
      %1904 = vmatprep.subr.bf16.mxu0 0
      %1905 = vmatpush1.bf16.msra.mxu0 0
      %1906 = vmatprep.subr.bf16.mxu0 0
      %1907 = vmatpush1.bf16.msra.mxu0 0
      %1908 = vmatprep.subr.bf16.mxu0 0
      %1909 = vmatpush1.bf16.msra.mxu0 0
      %1910 = vmatprep.subr.bf16.mxu0 0
      %1911 = vmatpush1.bf16.msra.mxu0 0
      %1912 = vmatprep.subr.bf16.mxu0 0
      %1913 = vmatpush1.bf16.msra.mxu0 0
      %1914 = vmatprep.subr.bf16.mxu0 0
      %1915 = vmatpush1.bf16.msra.mxu0 0
      %1916 = vmatprep.subr.bf16.mxu0 0
      %1917 = vmatpush1.bf16.msra.mxu0 0
      %1918 = vmatprep.subr.bf16.mxu0 0
      %1919 = vmatpush1.bf16.msra.mxu0 0
      %1920 = vmatprep.mubr.bf16.mxu0 0
      %1921 = vmatmul.mubr.bf16.gmra.mrb[0].mxu0 %v1837
      %v1922 = vpop.f32.mrb[0].mxu0
      %v1923 = vadd.f32 0.0, %v1922
      %v1924 = vpop.f32.mrb[0].mxu0
      %v1925 = vpop.f32.mrb[0].mxu0
      %v1926 = vadd.f32 0.0, %v1925
      %v1927 = vpop.f32.mrb[0].mxu0
      %1928 = vmatprep.mubr.bf16.mxu0 0
      %1929 = vmatmul.mubr.bf16.gmra.mrb[0].mxu0 %v1840
      %v1930 = vpop.f32.mrb[0].mxu0
      %v1931 = vadd.f32 0.0, %v1930
      %v1932 = vpop.f32.mrb[0].mxu0
      %v1933 = vpop.f32.mrb[0].mxu0
      %v1934 = vadd.f32 0.0, %v1933
      %v1935 = vpop.f32.mrb[0].mxu0
      %1936 = vmatprep.mubr.bf16.mxu0 0
      %1937 = vmatmul.mubr.bf16.gmra.mrb[0].mxu0 %v1843
      %v1938 = vpop.f32.mrb[0].mxu0
      %v1939 = vadd.f32 0.0, %v1938
      %v1940 = vpop.f32.mrb[0].mxu0
      %v1941 = vpop.f32.mrb[0].mxu0
      %v1942 = vadd.f32 0.0, %v1941
      %v1943 = vpop.f32.mrb[0].mxu0
      %1944 = vmatprep.mubr.bf16.mxu0 0
      %1945 = vmatmul.mubr.bf16.gmra.mrb[0].mxu0 %v1846
      %v1946 = vpop.f32.mrb[0].mxu0
      %v1947 = vadd.f32 0.0, %v1946
      %v1948 = vpop.f32.mrb[0].mxu0
      %v1949 = vpop.f32.mrb[0].mxu0
      %v1950 = vadd.f32 0.0, %v1949
      %v1951 = vpop.f32.mrb[0].mxu0
      %1952 = vmatprep.mubr.bf16.mxu0 0
      %1953 = vmatmul.mubr.bf16.gmra.mrb[0].mxu0 %v1849
      %v1954 = vpop.f32.mrb[0].mxu0
      %v1955 = vadd.f32 0.0, %v1954
      %v1956 = vpop.f32.mrb[0].mxu0
      %v1957 = vpop.f32.mrb[0].mxu0
      %v1958 = vadd.f32 0.0, %v1957
      %v1959 = vpop.f32.mrb[0].mxu0
      %1960 = vmatprep.mubr.bf16.mxu0 0
      %1961 = vmatmul.mubr.bf16.gmra.mrb[0].mxu0 %v1852
      %v1962 = vpop.f32.mrb[0].mxu0
      %v1963 = vadd.f32 0.0, %v1962
      %v1964 = vpop.f32.mrb[0].mxu0
      %v1965 = vpop.f32.mrb[0].mxu0
      %v1966 = vadd.f32 0.0, %v1965
      %v1967 = vpop.f32.mrb[0].mxu0
      %1968 = vmatprep.mubr.bf16.mxu0 0
      %1969 = vmatmul.mubr.bf16.gmra.mrb[0].mxu0 %v1855
      %v1970 = vpop.f32.mrb[0].mxu0
      %v1971 = vadd.f32 0.0, %v1970
      %v1972 = vpop.f32.mrb[0].mxu0
      %v1973 = vpop.f32.mrb[0].mxu0
      %v1974 = vadd.f32 0.0, %v1973
      %v1975 = vpop.f32.mrb[0].mxu0
      %1976 = vmatprep.mubr.bf16.mxu0 0
      %1977 = vmatmul.mubr.bf16.gmra.mrb[0].mxu0 %v1858
      %v1978 = vpop.f32.mrb[0].mxu0
      %v1979 = vadd.f32 0.0, %v1978
      %v1980 = vpop.f32.mrb[0].mxu0
      %v1981 = vpop.f32.mrb[0].mxu0
      %v1982 = vadd.f32 0.0, %v1981
      %v1983 = vpop.f32.mrb[0].mxu0
      %1984 = vmatprep.mubr.bf16.mxu0 0
      %1985 = vmatmul.mubr.bf16.gmra.mrb[0].mxu0 %v1861
      %v1986 = vpop.f32.mrb[0].mxu0
      %v1987 = vadd.f32 0.0, %v1986
      %v1988 = vpop.f32.mrb[0].mxu0
      %v1989 = vpop.f32.mrb[0].mxu0
      %v1990 = vadd.f32 0.0, %v1989
      %v1991 = vpop.f32.mrb[0].mxu0
      %1992 = vmatprep.mubr.bf16.mxu0 0
      %1993 = vmatmul.mubr.bf16.gmra.mrb[0].mxu0 %v1864
      %v1994 = vpop.f32.mrb[0].mxu0
      %v1995 = vadd.f32 0.0, %v1994
      %v1996 = vpop.f32.mrb[0].mxu0
      %v1997 = vpop.f32.mrb[0].mxu0
      %v1998 = vadd.f32 0.0, %v1997
      %v1999 = vpop.f32.mrb[0].mxu0
      %2000 = vmatprep.mubr.bf16.mxu0 0
      %2001 = vmatmul.mubr.bf16.gmra.mrb[0].mxu0 %v1867
      %v2002 = vpop.f32.mrb[0].mxu0
      %v2003 = vadd.f32 0.0, %v2002
      %v2004 = vpop.f32.mrb[0].mxu0
      %v2005 = vpop.f32.mrb[0].mxu0
      %v2006 = vadd.f32 0.0, %v2005
      %v2007 = vpop.f32.mrb[0].mxu0
      %2008 = vmatprep.mubr.bf16.mxu0 0
      %2009 = vmatmul.mubr.bf16.gmra.mrb[0].mxu0 %v1870
      %v2010 = vpop.f32.mrb[0].mxu0
      %v2011 = vadd.f32 0.0, %v2010
      %v2012 = vpop.f32.mrb[0].mxu0
      %v2013 = vpop.f32.mrb[0].mxu0
      %v2014 = vadd.f32 0.0, %v2013
      %v2015 = vpop.f32.mrb[0].mxu0
      %2016 = vmatprep.mubr.bf16.mxu0 0
      %2017 = vmatmul.mubr.bf16.gmra.mrb[0].mxu0 %v1873
      %v2018 = vpop.f32.mrb[0].mxu0
      %v2019 = vadd.f32 0.0, %v2018
      %v2020 = vpop.f32.mrb[0].mxu0
      %v2021 = vpop.f32.mrb[0].mxu0
      %v2022 = vadd.f32 0.0, %v2021
      %v2023 = vpop.f32.mrb[0].mxu0
      %2024 = vmatprep.mubr.bf16.mxu0 0
      %2025 = vmatmul.mubr.bf16.gmra.mrb[0].mxu0 %v1876
      %v2026 = vpop.f32.mrb[0].mxu0
      %v2027 = vadd.f32 0.0, %v2026
      %v2028 = vpop.f32.mrb[0].mxu0
      %v2029 = vpop.f32.mrb[0].mxu0
      %v2030 = vadd.f32 0.0, %v2029
      %v2031 = vpop.f32.mrb[0].mxu0
      %2032 = vmatprep.mubr.bf16.mxu0 0
      %2033 = vmatmul.mubr.bf16.gmra.mrb[0].mxu0 %v1879
      %v2034 = vpop.f32.mrb[0].mxu0
      %v2035 = vadd.f32 0.0, %v2034
      %v2036 = vpop.f32.mrb[0].mxu0
      %v2037 = vpop.f32.mrb[0].mxu0
      %v2038 = vadd.f32 0.0, %v2037
      %v2039 = vpop.f32.mrb[0].mxu0
      %2040 = vmatprep.mubr.bf16.mxu0 0
      %2041 = vmatmul.mubr.bf16.gmra.mrb[0].mxu0 %v1882
      %v2042 = vpop.f32.mrb[0].mxu0
      %v2043 = vadd.f32 0.0, %v2042
      %v2044 = vpop.f32.mrb[0].mxu0
      %v2045 = vpop.f32.mrb[0].mxu0
      %v2046 = vadd.f32 0.0, %v2045
      %v2047 = vpop.f32.mrb[0].mxu0
      %2048 = vdwg.mxu0
      %v2049 = vadd.f32 %v1792, %v1923
      %v2050 = vadd.f32 %v1793, %v1926
      %v2051 = vadd.f32 %v1794, %v1931
      %v2052 = vadd.f32 %v1795, %v1934
      %v2053 = vadd.f32 %v1796, %v1939
      %v2054 = vadd.f32 %v1797, %v1942
      %v2055 = vadd.f32 %v1798, %v1947
      %v2056 = vadd.f32 %v1799, %v1950
      %v2057 = vadd.f32 %v1800, %v1955
      %v2058 = vadd.f32 %v1801, %v1958
      %v2059 = vadd.f32 %v1802, %v1963
      %v2060 = vadd.f32 %v1803, %v1966
      %v2061 = vadd.f32 %v1804, %v1971
      %v2062 = vadd.f32 %v1805, %v1974
      %v2063 = vadd.f32 %v1806, %v1979
      %v2064 = vadd.f32 %v1807, %v1982
      %v2065 = vadd.f32 %v1808, %v1987
      %v2066 = vadd.f32 %v1809, %v1990
      %v2067 = vadd.f32 %v1810, %v1995
      %v2068 = vadd.f32 %v1811, %v1998
      %v2069 = vadd.f32 %v1812, %v2003
      %v2070 = vadd.f32 %v1813, %v2006
      %v2071 = vadd.f32 %v1814, %v2011
      %v2072 = vadd.f32 %v1815, %v2014
      %v2073 = vadd.f32 %v1816, %v2019
      %v2074 = vadd.f32 %v1817, %v2022
      %v2075 = vadd.f32 %v1818, %v2027
      %v2076 = vadd.f32 %v1819, %v2030
      %v2077 = vadd.f32 %v1820, %v2035
      %v2078 = vadd.f32 %v1821, %v2038
      %v2079 = vadd.f32 %v1822, %v2043
      %v2080 = vadd.f32 %v1823, %v2046
      %2081 = vst.msk [vmem:[#allocation4] sm:$0xff] %vm1383, %v2049
      %2082 = vst.msk [vmem:[#allocation4 + $0x8] sm:$0xff] %vm1383, %v2050
      %2083 = vst.msk [vmem:[#allocation4 + $0x10] sm:$0xff] %vm1383, %v2051
      %2084 = vst.msk [vmem:[#allocation4 + $0x18] sm:$0xff] %vm1383, %v2052
      %2085 = vst.msk [vmem:[#allocation4 + $0x20] sm:$0xff] %vm1383, %v2053
      %2086 = vst.msk [vmem:[#allocation4 + $0x28] sm:$0xff] %vm1383, %v2054
      %2087 = vst.msk [vmem:[#allocation4 + $0x30] sm:$0xff] %vm1383, %v2055
      %2088 = vst.msk [vmem:[#allocation4 + $0x38] sm:$0xff] %vm1383, %v2056
      %2089 = vst.msk [vmem:[#allocation4 + $0x40] sm:$0xff] %vm1383, %v2057
      %2090 = vst.msk [vmem:[#allocation4 + $0x48] sm:$0xff] %vm1383, %v2058
      %2091 = vst.msk [vmem:[#allocation4 + $0x50] sm:$0xff] %vm1383, %v2059
      %2092 = vst.msk [vmem:[#allocation4 + $0x58] sm:$0xff] %vm1383, %v2060
      %2093 = vst.msk [vmem:[#allocation4 + $0x60] sm:$0xff] %vm1383, %v2061
      %2094 = vst.msk [vmem:[#allocation4 + $0x68] sm:$0xff] %vm1383, %v2062
      %2095 = vst.msk [vmem:[#allocation4 + $0x70] sm:$0xff] %vm1383, %v2063
      %2096 = vst.msk [vmem:[#allocation4 + $0x78] sm:$0xff] %vm1383, %v2064
      %2097 = vst.msk [vmem:[#allocation4 + $0x80] sm:$0xff] %vm1383, %v2065
      %2098 = vst.msk [vmem:[#allocation4 + $0x88] sm:$0xff] %vm1383, %v2066
      %2099 = vst.msk [vmem:[#allocation4 + $0x90] sm:$0xff] %vm1383, %v2067
      %2100 = vst.msk [vmem:[#allocation4 + $0x98] sm:$0xff] %vm1383, %v2068
      %2101 = vst.msk [vmem:[#allocation4 + $0xa0] sm:$0xff] %vm1383, %v2069
      %2102 = vst.msk [vmem:[#allocation4 + $0xa8] sm:$0xff] %vm1383, %v2070
      %2103 = vst.msk [vmem:[#allocation4 + $0xb0] sm:$0xff] %vm1383, %v2071
      %2104 = vst.msk [vmem:[#allocation4 + $0xb8] sm:$0xff] %vm1383, %v2072
      %2105 = vst.msk [vmem:[#allocation4 + $0xc0] sm:$0xff] %vm1383, %v2073
      %2106 = vst.msk [vmem:[#allocation4 + $0xc8] sm:$0xff] %vm1383, %v2074
      %2107 = vst.msk [vmem:[#allocation4 + $0xd0] sm:$0xff] %vm1383, %v2075
      %2108 = vst.msk [vmem:[#allocation4 + $0xd8] sm:$0xff] %vm1383, %v2076
      %2109 = vst.msk [vmem:[#allocation4 + $0xe0] sm:$0xff] %vm1383, %v2077
      %2110 = vst.msk [vmem:[#allocation4 + $0xe8] sm:$0xff] %vm1383, %v2078
      %2111 = vst.msk [vmem:[#allocation4 + $0xf0] sm:$0xff] %vm1383, %v2079
      %2112 = vst.msk [vmem:[#allocation4 + $0xf8] sm:$0xff] %vm1383, %v2080
      %s2113 = scalar_lea.vmem [#allocation2], 144
      %v2114 = vld [vmem:[%s2113] sm:$0xff]
      %v2115 = vld [vmem:[%s2113 + $0x8] sm:$0xff]
      %v2116 = vld [vmem:[%s2113 + $0x10] sm:$0xff]
      %v2117 = vld [vmem:[%s2113 + $0x18] sm:$0xff]
      %v2118 = vld [vmem:[%s2113 + $0x20] sm:$0xff]
      %v2119 = vld [vmem:[%s2113 + $0x28] sm:$0xff]
      %v2120 = vld [vmem:[%s2113 + $0x30] sm:$0xff]
      %v2121 = vld [vmem:[%s2113 + $0x38] sm:$0xff]
      %v2122 = vld [vmem:[%s2113 + $0x40] sm:$0xff]
      %v2123 = vld [vmem:[%s2113 + $0x48] sm:$0xff]
      %v2124 = vld [vmem:[%s2113 + $0x50] sm:$0xff]
      %v2125 = vld [vmem:[%s2113 + $0x58] sm:$0xff]
      %v2126 = vld [vmem:[%s2113 + $0x60] sm:$0xff]
      %v2127 = vld [vmem:[%s2113 + $0x68] sm:$0xff]
      %v2128 = vld [vmem:[%s2113 + $0x70] sm:$0xff]
      %v2129 = vld [vmem:[%s2113 + $0x78] sm:$0xff]
      %v2130 = vld [vmem:[#allocation4] sm:$0xff]
      %v2131 = vld [vmem:[#allocation4 + $0x8] sm:$0xff]
      %v2132 = vld [vmem:[#allocation4 + $0x10] sm:$0xff]
      %v2133 = vld [vmem:[#allocation4 + $0x18] sm:$0xff]
      %v2134 = vld [vmem:[#allocation4 + $0x20] sm:$0xff]
      %v2135 = vld [vmem:[#allocation4 + $0x28] sm:$0xff]
      %v2136 = vld [vmem:[#allocation4 + $0x30] sm:$0xff]
      %v2137 = vld [vmem:[#allocation4 + $0x38] sm:$0xff]
      %v2138 = vld [vmem:[#allocation4 + $0x40] sm:$0xff]
      %v2139 = vld [vmem:[#allocation4 + $0x48] sm:$0xff]
      %v2140 = vld [vmem:[#allocation4 + $0x50] sm:$0xff]
      %v2141 = vld [vmem:[#allocation4 + $0x58] sm:$0xff]
      %v2142 = vld [vmem:[#allocation4 + $0x60] sm:$0xff]
      %v2143 = vld [vmem:[#allocation4 + $0x68] sm:$0xff]
      %v2144 = vld [vmem:[#allocation4 + $0x70] sm:$0xff]
      %v2145 = vld [vmem:[#allocation4 + $0x78] sm:$0xff]
      %v2146 = vld [vmem:[#allocation4 + $0x80] sm:$0xff]
      %v2147 = vld [vmem:[#allocation4 + $0x88] sm:$0xff]
      %v2148 = vld [vmem:[#allocation4 + $0x90] sm:$0xff]
      %v2149 = vld [vmem:[#allocation4 + $0x98] sm:$0xff]
      %v2150 = vld [vmem:[#allocation4 + $0xa0] sm:$0xff]
      %v2151 = vld [vmem:[#allocation4 + $0xa8] sm:$0xff]
      %v2152 = vld [vmem:[#allocation4 + $0xb0] sm:$0xff]
      %v2153 = vld [vmem:[#allocation4 + $0xb8] sm:$0xff]
      %v2154 = vld [vmem:[#allocation4 + $0xc0] sm:$0xff]
      %v2155 = vld [vmem:[#allocation4 + $0xc8] sm:$0xff]
      %v2156 = vld [vmem:[#allocation4 + $0xd0] sm:$0xff]
      %v2157 = vld [vmem:[#allocation4 + $0xd8] sm:$0xff]
      %v2158 = vld [vmem:[#allocation4 + $0xe0] sm:$0xff]
      %v2159 = vld [vmem:[#allocation4 + $0xe8] sm:$0xff]
      %v2160 = vld [vmem:[#allocation4 + $0xf0] sm:$0xff]
      %v2161 = vld [vmem:[#allocation4 + $0xf8] sm:$0xff]
      %s2162 = scalar_lea.vmem %s6, 12
      %v2163 = vld [vmem:[%s2162] sm:$0xf]
      %v2164 = vld [vmem:[%s2162 + $0x4] sm:$0xf]
      %v2165 = vld [vmem:[%s2162 + $0x8] sm:$0xf]
      %v2169 = vunpack.c.l.b16 %v2163
      %v2170 = vunpack.c.l.b16 %v2164
      %v2171 = vunpack.c.l.b16 %v2165
      %v2172 = vpack.c.b16 %v2170, %v2169
      %v2173 = vpack.c.b16 %v2171, %v2171
      %v2176 = vsel %vm1612, %v2114, 0
      %v2179 = vsel %vm1612, %v2115, 0
      %v2182 = vsel %vm1612, %v2116, 0
      %v2185 = vsel %vm1612, %v2117, 0
      %v2188 = vsel %vm1612, %v2118, 0
      %v2191 = vsel %vm1612, %v2119, 0
      %v2194 = vsel %vm1612, %v2120, 0
      %v2197 = vsel %vm1612, %v2121, 0
      %v2200 = vsel %vm1612, %v2122, 0
      %v2203 = vsel %vm1612, %v2123, 0
      %v2206 = vsel %vm1612, %v2124, 0
      %v2209 = vsel %vm1612, %v2125, 0
      %v2212 = vsel %vm1612, %v2126, 0
      %v2215 = vsel %vm1612, %v2127, 0
      %v2218 = vsel %vm1612, %v2128, 0
      %v2221 = vsel %vm1612, %v2129, 0
      %v2224 = vsel %vm1884, %v2173, 0
      %2226 = vmatprep.subr.bf16.mxu0 0
      %2227 = vmatpush1.bf16.msra.mxu0 %v2172
      %2228 = vmatprep.subr.bf16.mxu0 0
      %2229 = vmatpush1.bf16.msra.mxu0 %v2224
      %2230 = vmatprep.subr.bf16.mxu0 0
      %2231 = vmatpush1.bf16.msra.mxu0 0
      %2232 = vmatprep.subr.bf16.mxu0 0
      %2233 = vmatpush1.bf16.msra.mxu0 0
      %2234 = vmatprep.subr.bf16.mxu0 0
      %2235 = vmatpush1.bf16.msra.mxu0 0
      %2236 = vmatprep.subr.bf16.mxu0 0
      %2237 = vmatpush1.bf16.msra.mxu0 0
      %2238 = vmatprep.subr.bf16.mxu0 0
      %2239 = vmatpush1.bf16.msra.mxu0 0
      %2240 = vmatprep.subr.bf16.mxu0 0
      %2241 = vmatpush1.bf16.msra.mxu0 0
      %2242 = vmatprep.subr.bf16.mxu0 0
      %2243 = vmatpush1.bf16.msra.mxu0 0
      %2244 = vmatprep.subr.bf16.mxu0 0
      %2245 = vmatpush1.bf16.msra.mxu0 0
      %2246 = vmatprep.subr.bf16.mxu0 0
      %2247 = vmatpush1.bf16.msra.mxu0 0
      %2248 = vmatprep.subr.bf16.mxu0 0
      %2249 = vmatpush1.bf16.msra.mxu0 0
      %2250 = vmatprep.subr.bf16.mxu0 0
      %2251 = vmatpush1.bf16.msra.mxu0 0
      %2252 = vmatprep.subr.bf16.mxu0 0
      %2253 = vmatpush1.bf16.msra.mxu0 0
      %2254 = vmatprep.subr.bf16.mxu0 0
      %2255 = vmatpush1.bf16.msra.mxu0 0
      %2256 = vmatprep.subr.bf16.mxu0 0
      %2257 = vmatpush1.bf16.msra.mxu0 0
      %2258 = vmatprep.mubr.bf16.mxu0 0
      %2259 = vmatmul.mubr.bf16.gmra.mrb[0].mxu0 %v2176
      %v2260 = vpop.f32.mrb[0].mxu0
      %v2261 = vadd.f32 0.0, %v2260
      %v2262 = vpop.f32.mrb[0].mxu0
      %v2263 = vpop.f32.mrb[0].mxu0
      %v2264 = vadd.f32 0.0, %v2263
      %v2265 = vpop.f32.mrb[0].mxu0
      %2266 = vmatprep.mubr.bf16.mxu0 0
      %2267 = vmatmul.mubr.bf16.gmra.mrb[0].mxu0 %v2179
      %v2268 = vpop.f32.mrb[0].mxu0
      %v2269 = vadd.f32 0.0, %v2268
      %v2270 = vpop.f32.mrb[0].mxu0
      %v2271 = vpop.f32.mrb[0].mxu0
      %v2272 = vadd.f32 0.0, %v2271
      %v2273 = vpop.f32.mrb[0].mxu0
      %2274 = vmatprep.mubr.bf16.mxu0 0
      %2275 = vmatmul.mubr.bf16.gmra.mrb[0].mxu0 %v2182
      %v2276 = vpop.f32.mrb[0].mxu0
      %v2277 = vadd.f32 0.0, %v2276
      %v2278 = vpop.f32.mrb[0].mxu0
      %v2279 = vpop.f32.mrb[0].mxu0
      %v2280 = vadd.f32 0.0, %v2279
      %v2281 = vpop.f32.mrb[0].mxu0
      %2282 = vmatprep.mubr.bf16.mxu0 0
      %2283 = vmatmul.mubr.bf16.gmra.mrb[0].mxu0 %v2185
      %v2284 = vpop.f32.mrb[0].mxu0
      %v2285 = vadd.f32 0.0, %v2284
      %v2286 = vpop.f32.mrb[0].mxu0
      %v2287 = vpop.f32.mrb[0].mxu0
      %v2288 = vadd.f32 0.0, %v2287
      %v2289 = vpop.f32.mrb[0].mxu0
      %2290 = vmatprep.mubr.bf16.mxu0 0
      %2291 = vmatmul.mubr.bf16.gmra.mrb[0].mxu0 %v2188
      %v2292 = vpop.f32.mrb[0].mxu0
      %v2293 = vadd.f32 0.0, %v2292
      %v2294 = vpop.f32.mrb[0].mxu0
      %v2295 = vpop.f32.mrb[0].mxu0
      %v2296 = vadd.f32 0.0, %v2295
      %v2297 = vpop.f32.mrb[0].mxu0
      %2298 = vmatprep.mubr.bf16.mxu0 0
      %2299 = vmatmul.mubr.bf16.gmra.mrb[0].mxu0 %v2191
      %v2300 = vpop.f32.mrb[0].mxu0
      %v2301 = vadd.f32 0.0, %v2300
      %v2302 = vpop.f32.mrb[0].mxu0
      %v2303 = vpop.f32.mrb[0].mxu0
      %v2304 = vadd.f32 0.0, %v2303
      %v2305 = vpop.f32.mrb[0].mxu0
      %2306 = vmatprep.mubr.bf16.mxu0 0
      %2307 = vmatmul.mubr.bf16.gmra.mrb[0].mxu0 %v2194
      %v2308 = vpop.f32.mrb[0].mxu0
      %v2309 = vadd.f32 0.0, %v2308
      %v2310 = vpop.f32.mrb[0].mxu0
      %v2311 = vpop.f32.mrb[0].mxu0
      %v2312 = vadd.f32 0.0, %v2311
      %v2313 = vpop.f32.mrb[0].mxu0
      %2314 = vmatprep.mubr.bf16.mxu0 0
      %2315 = vmatmul.mubr.bf16.gmra.mrb[0].mxu0 %v2197
      %v2316 = vpop.f32.mrb[0].mxu0
      %v2317 = vadd.f32 0.0, %v2316
      %v2318 = vpop.f32.mrb[0].mxu0
      %v2319 = vpop.f32.mrb[0].mxu0
      %v2320 = vadd.f32 0.0, %v2319
      %v2321 = vpop.f32.mrb[0].mxu0
      %2322 = vmatprep.mubr.bf16.mxu0 0
      %2323 = vmatmul.mubr.bf16.gmra.mrb[0].mxu0 %v2200
      %v2324 = vpop.f32.mrb[0].mxu0
      %v2325 = vadd.f32 0.0, %v2324
      %v2326 = vpop.f32.mrb[0].mxu0
      %v2327 = vpop.f32.mrb[0].mxu0
      %v2328 = vadd.f32 0.0, %v2327
      %v2329 = vpop.f32.mrb[0].mxu0
      %2330 = vmatprep.mubr.bf16.mxu0 0
      %2331 = vmatmul.mubr.bf16.gmra.mrb[0].mxu0 %v2203
      %v2332 = vpop.f32.mrb[0].mxu0
      %v2333 = vadd.f32 0.0, %v2332
      %v2334 = vpop.f32.mrb[0].mxu0
      %v2335 = vpop.f32.mrb[0].mxu0
      %v2336 = vadd.f32 0.0, %v2335
      %v2337 = vpop.f32.mrb[0].mxu0
      %2338 = vmatprep.mubr.bf16.mxu0 0
      %2339 = vmatmul.mubr.bf16.gmra.mrb[0].mxu0 %v2206
      %v2340 = vpop.f32.mrb[0].mxu0
      %v2341 = vadd.f32 0.0, %v2340
      %v2342 = vpop.f32.mrb[0].mxu0
      %v2343 = vpop.f32.mrb[0].mxu0
      %v2344 = vadd.f32 0.0, %v2343
      %v2345 = vpop.f32.mrb[0].mxu0
      %2346 = vmatprep.mubr.bf16.mxu0 0
      %2347 = vmatmul.mubr.bf16.gmra.mrb[0].mxu0 %v2209
      %v2348 = vpop.f32.mrb[0].mxu0
      %v2349 = vadd.f32 0.0, %v2348
      %v2350 = vpop.f32.mrb[0].mxu0
      %v2351 = vpop.f32.mrb[0].mxu0
      %v2352 = vadd.f32 0.0, %v2351
      %v2353 = vpop.f32.mrb[0].mxu0
      %2354 = vmatprep.mubr.bf16.mxu0 0
      %2355 = vmatmul.mubr.bf16.gmra.mrb[0].mxu0 %v2212
      %v2356 = vpop.f32.mrb[0].mxu0
      %v2357 = vadd.f32 0.0, %v2356
      %v2358 = vpop.f32.mrb[0].mxu0
      %v2359 = vpop.f32.mrb[0].mxu0
      %v2360 = vadd.f32 0.0, %v2359
      %v2361 = vpop.f32.mrb[0].mxu0
      %2362 = vmatprep.mubr.bf16.mxu0 0
      %2363 = vmatmul.mubr.bf16.gmra.mrb[0].mxu0 %v2215
      %v2364 = vpop.f32.mrb[0].mxu0
      %v2365 = vadd.f32 0.0, %v2364
      %v2366 = vpop.f32.mrb[0].mxu0
      %v2367 = vpop.f32.mrb[0].mxu0
      %v2368 = vadd.f32 0.0, %v2367
      %v2369 = vpop.f32.mrb[0].mxu0
      %2370 = vmatprep.mubr.bf16.mxu0 0
      %2371 = vmatmul.mubr.bf16.gmra.mrb[0].mxu0 %v2218
      %v2372 = vpop.f32.mrb[0].mxu0
      %v2373 = vadd.f32 0.0, %v2372
      %v2374 = vpop.f32.mrb[0].mxu0
      %v2375 = vpop.f32.mrb[0].mxu0
      %v2376 = vadd.f32 0.0, %v2375
      %v2377 = vpop.f32.mrb[0].mxu0
      %2378 = vmatprep.mubr.bf16.mxu0 0
      %2379 = vmatmul.mubr.bf16.gmra.mrb[0].mxu0 %v2221
      %v2380 = vpop.f32.mrb[0].mxu0
      %v2381 = vadd.f32 0.0, %v2380
      %v2382 = vpop.f32.mrb[0].mxu0
      %v2383 = vpop.f32.mrb[0].mxu0
      %v2384 = vadd.f32 0.0, %v2383
      %v2385 = vpop.f32.mrb[0].mxu0
      %2386 = vdwg.mxu0
      %v2387 = vadd.f32 %v2130, %v2261
      %v2388 = vadd.f32 %v2131, %v2264
      %v2389 = vadd.f32 %v2132, %v2269
      %v2390 = vadd.f32 %v2133, %v2272
      %v2391 = vadd.f32 %v2134, %v2277
      %v2392 = vadd.f32 %v2135, %v2280
      %v2393 = vadd.f32 %v2136, %v2285
      %v2394 = vadd.f32 %v2137, %v2288
      %v2395 = vadd.f32 %v2138, %v2293
      %v2396 = vadd.f32 %v2139, %v2296
      %v2397 = vadd.f32 %v2140, %v2301
      %v2398 = vadd.f32 %v2141, %v2304
      %v2399 = vadd.f32 %v2142, %v2309
      %v2400 = vadd.f32 %v2143, %v2312
      %v2401 = vadd.f32 %v2144, %v2317
      %v2402 = vadd.f32 %v2145, %v2320
      %v2403 = vadd.f32 %v2146, %v2325
      %v2404 = vadd.f32 %v2147, %v2328
      %v2405 = vadd.f32 %v2148, %v2333
      %v2406 = vadd.f32 %v2149, %v2336
      %v2407 = vadd.f32 %v2150, %v2341
      %v2408 = vadd.f32 %v2151, %v2344
      %v2409 = vadd.f32 %v2152, %v2349
      %v2410 = vadd.f32 %v2153, %v2352
      %v2411 = vadd.f32 %v2154, %v2357
      %v2412 = vadd.f32 %v2155, %v2360
      %v2413 = vadd.f32 %v2156, %v2365
      %v2414 = vadd.f32 %v2157, %v2368
      %v2415 = vadd.f32 %v2158, %v2373
      %v2416 = vadd.f32 %v2159, %v2376
      %v2417 = vadd.f32 %v2160, %v2381
      %v2418 = vadd.f32 %v2161, %v2384
      %2419 = vst.msk [vmem:[#allocation4] sm:$0xff] %vm1383, %v2387
      %2420 = vst.msk [vmem:[#allocation4 + $0x8] sm:$0xff] %vm1383, %v2388
      %2421 = vst.msk [vmem:[#allocation4 + $0x10] sm:$0xff] %vm1383, %v2389
      %2422 = vst.msk [vmem:[#allocation4 + $0x18] sm:$0xff] %vm1383, %v2390
      %2423 = vst.msk [vmem:[#allocation4 + $0x20] sm:$0xff] %vm1383, %v2391
      %2424 = vst.msk [vmem:[#allocation4 + $0x28] sm:$0xff] %vm1383, %v2392
      %2425 = vst.msk [vmem:[#allocation4 + $0x30] sm:$0xff] %vm1383, %v2393
      %2426 = vst.msk [vmem:[#allocation4 + $0x38] sm:$0xff] %vm1383, %v2394
      %2427 = vst.msk [vmem:[#allocation4 + $0x40] sm:$0xff] %vm1383, %v2395
      %2428 = vst.msk [vmem:[#allocation4 + $0x48] sm:$0xff] %vm1383, %v2396
      %2429 = vst.msk [vmem:[#allocation4 + $0x50] sm:$0xff] %vm1383, %v2397
      %2430 = vst.msk [vmem:[#allocation4 + $0x58] sm:$0xff] %vm1383, %v2398
      %2431 = vst.msk [vmem:[#allocation4 + $0x60] sm:$0xff] %vm1383, %v2399
      %2432 = vst.msk [vmem:[#allocation4 + $0x68] sm:$0xff] %vm1383, %v2400
      %2433 = vst.msk [vmem:[#allocation4 + $0x70] sm:$0xff] %vm1383, %v2401
      %2434 = vst.msk [vmem:[#allocation4 + $0x78] sm:$0xff] %vm1383, %v2402
      %2435 = vst.msk [vmem:[#allocation4 + $0x80] sm:$0xff] %vm1383, %v2403
      %2436 = vst.msk [vmem:[#allocation4 + $0x88] sm:$0xff] %vm1383, %v2404
      %2437 = vst.msk [vmem:[#allocation4 + $0x90] sm:$0xff] %vm1383, %v2405
      %2438 = vst.msk [vmem:[#allocation4 + $0x98] sm:$0xff] %vm1383, %v2406
      %2439 = vst.msk [vmem:[#allocation4 + $0xa0] sm:$0xff] %vm1383, %v2407
      %2440 = vst.msk [vmem:[#allocation4 + $0xa8] sm:$0xff] %vm1383, %v2408
      %2441 = vst.msk [vmem:[#allocation4 + $0xb0] sm:$0xff] %vm1383, %v2409
      %2442 = vst.msk [vmem:[#allocation4 + $0xb8] sm:$0xff] %vm1383, %v2410
      %2443 = vst.msk [vmem:[#allocation4 + $0xc0] sm:$0xff] %vm1383, %v2411
      %2444 = vst.msk [vmem:[#allocation4 + $0xc8] sm:$0xff] %vm1383, %v2412
      %2445 = vst.msk [vmem:[#allocation4 + $0xd0] sm:$0xff] %vm1383, %v2413
      %2446 = vst.msk [vmem:[#allocation4 + $0xd8] sm:$0xff] %vm1383, %v2414
      %2447 = vst.msk [vmem:[#allocation4 + $0xe0] sm:$0xff] %vm1383, %v2415
      %2448 = vst.msk [vmem:[#allocation4 + $0xe8] sm:$0xff] %vm1383, %v2416
      %2449 = vst.msk [vmem:[#allocation4 + $0xf0] sm:$0xff] %vm1383, %v2417
      %2450 = vst.msk [vmem:[#allocation4 + $0xf8] sm:$0xff] %vm1383, %v2418
      %s2451 = scalar_lea.vmem [#allocation2], 288
      %v2452 = vld [vmem:[%s2451] sm:$0xff]
      %v2453 = vld [vmem:[%s2451 + $0x8] sm:$0xff]
      %v2454 = vld [vmem:[%s2451 + $0x10] sm:$0xff]
      %v2455 = vld [vmem:[%s2451 + $0x18] sm:$0xff]
      %v2456 = vld [vmem:[%s2451 + $0x20] sm:$0xff]
      %v2457 = vld [vmem:[%s2451 + $0x28] sm:$0xff]
      %v2458 = vld [vmem:[%s2451 + $0x30] sm:$0xff]
      %v2459 = vld [vmem:[%s2451 + $0x38] sm:$0xff]
      %v2460 = vld [vmem:[%s2451 + $0x40] sm:$0xff]
      %v2461 = vld [vmem:[%s2451 + $0x48] sm:$0xff]
      %v2462 = vld [vmem:[%s2451 + $0x50] sm:$0xff]
      %v2463 = vld [vmem:[%s2451 + $0x58] sm:$0xff]
      %v2464 = vld [vmem:[%s2451 + $0x60] sm:$0xff]
      %v2465 = vld [vmem:[%s2451 + $0x68] sm:$0xff]
      %v2466 = vld [vmem:[%s2451 + $0x70] sm:$0xff]
      %v2467 = vld [vmem:[%s2451 + $0x78] sm:$0xff]
      %v2468 = vld [vmem:[#allocation4] sm:$0xff]
      %v2469 = vld [vmem:[#allocation4 + $0x8] sm:$0xff]
      %v2470 = vld [vmem:[#allocation4 + $0x10] sm:$0xff]
      %v2471 = vld [vmem:[#allocation4 + $0x18] sm:$0xff]
      %v2472 = vld [vmem:[#allocation4 + $0x20] sm:$0xff]
      %v2473 = vld [vmem:[#allocation4 + $0x28] sm:$0xff]
      %v2474 = vld [vmem:[#allocation4 + $0x30] sm:$0xff]
      %v2475 = vld [vmem:[#allocation4 + $0x38] sm:$0xff]
      %v2476 = vld [vmem:[#allocation4 + $0x40] sm:$0xff]
      %v2477 = vld [vmem:[#allocation4 + $0x48] sm:$0xff]
      %v2478 = vld [vmem:[#allocation4 + $0x50] sm:$0xff]
      %v2479 = vld [vmem:[#allocation4 + $0x58] sm:$0xff]
      %v2480 = vld [vmem:[#allocation4 + $0x60] sm:$0xff]
      %v2481 = vld [vmem:[#allocation4 + $0x68] sm:$0xff]
      %v2482 = vld [vmem:[#allocation4 + $0x70] sm:$0xff]
      %v2483 = vld [vmem:[#allocation4 + $0x78] sm:$0xff]
      %v2484 = vld [vmem:[#allocation4 + $0x80] sm:$0xff]
      %v2485 = vld [vmem:[#allocation4 + $0x88] sm:$0xff]
      %v2486 = vld [vmem:[#allocation4 + $0x90] sm:$0xff]
      %v2487 = vld [vmem:[#allocation4 + $0x98] sm:$0xff]
      %v2488 = vld [vmem:[#allocation4 + $0xa0] sm:$0xff]
      %v2489 = vld [vmem:[#allocation4 + $0xa8] sm:$0xff]
      %v2490 = vld [vmem:[#allocation4 + $0xb0] sm:$0xff]
      %v2491 = vld [vmem:[#allocation4 + $0xb8] sm:$0xff]
      %v2492 = vld [vmem:[#allocation4 + $0xc0] sm:$0xff]
      %v2493 = vld [vmem:[#allocation4 + $0xc8] sm:$0xff]
      %v2494 = vld [vmem:[#allocation4 + $0xd0] sm:$0xff]
      %v2495 = vld [vmem:[#allocation4 + $0xd8] sm:$0xff]
      %v2496 = vld [vmem:[#allocation4 + $0xe0] sm:$0xff]
      %v2497 = vld [vmem:[#allocation4 + $0xe8] sm:$0xff]
      %v2498 = vld [vmem:[#allocation4 + $0xf0] sm:$0xff]
      %v2499 = vld [vmem:[#allocation4 + $0xf8] sm:$0xff]
      %s2500 = scalar_lea.vmem %s6, 24
      %v2501 = vld [vmem:[%s2500] sm:$0xf]
      %v2502 = vld [vmem:[%s2500 + $0x4] sm:$0xf]
      %v2503 = vld [vmem:[%s2500 + $0x8] sm:$0xf]
      %v2507 = vunpack.c.l.b16 %v2501
      %v2508 = vunpack.c.l.b16 %v2502
      %v2509 = vunpack.c.l.b16 %v2503
      %v2510 = vpack.c.b16 %v2508, %v2507
      %v2511 = vpack.c.b16 %v2509, %v2509
      %v2514 = vsel %vm1612, %v2452, 0
      %v2517 = vsel %vm1612, %v2453, 0
      %v2520 = vsel %vm1612, %v2454, 0
      %v2523 = vsel %vm1612, %v2455, 0
      %v2526 = vsel %vm1612, %v2456, 0
      %v2529 = vsel %vm1612, %v2457, 0
      %v2532 = vsel %vm1612, %v2458, 0
      %v2535 = vsel %vm1612, %v2459, 0
      %v2538 = vsel %vm1612, %v2460, 0
      %v2541 = vsel %vm1612, %v2461, 0
      %v2544 = vsel %vm1612, %v2462, 0
      %v2547 = vsel %vm1612, %v2463, 0
      %v2550 = vsel %vm1612, %v2464, 0
      %v2553 = vsel %vm1612, %v2465, 0
      %v2556 = vsel %vm1612, %v2466, 0
      %v2559 = vsel %vm1612, %v2467, 0
      %v2562 = vsel %vm1884, %v2511, 0
      %2564 = vmatprep.subr.bf16.mxu0 0
      %2565 = vmatpush1.bf16.msra.mxu0 %v2510
      %2566 = vmatprep.subr.bf16.mxu0 0
      %2567 = vmatpush1.bf16.msra.mxu0 %v2562
      %2568 = vmatprep.subr.bf16.mxu0 0
      %2569 = vmatpush1.bf16.msra.mxu0 0
      %2570 = vmatprep.subr.bf16.mxu0 0
      %2571 = vmatpush1.bf16.msra.mxu0 0
      %2572 = vmatprep.subr.bf16.mxu0 0
      %2573 = vmatpush1.bf16.msra.mxu0 0
      %2574 = vmatprep.subr.bf16.mxu0 0
      %2575 = vmatpush1.bf16.msra.mxu0 0
      %2576 = vmatprep.subr.bf16.mxu0 0
      %2577 = vmatpush1.bf16.msra.mxu0 0
      %2578 = vmatprep.subr.bf16.mxu0 0
      %2579 = vmatpush1.bf16.msra.mxu0 0
      %2580 = vmatprep.subr.bf16.mxu0 0
      %2581 = vmatpush1.bf16.msra.mxu0 0
      %2582 = vmatprep.subr.bf16.mxu0 0
      %2583 = vmatpush1.bf16.msra.mxu0 0
      %2584 = vmatprep.subr.bf16.mxu0 0
      %2585 = vmatpush1.bf16.msra.mxu0 0
      %2586 = vmatprep.subr.bf16.mxu0 0
      %2587 = vmatpush1.bf16.msra.mxu0 0
      %2588 = vmatprep.subr.bf16.mxu0 0
      %2589 = vmatpush1.bf16.msra.mxu0 0
      %2590 = vmatprep.subr.bf16.mxu0 0
      %2591 = vmatpush1.bf16.msra.mxu0 0
      %2592 = vmatprep.subr.bf16.mxu0 0
      %2593 = vmatpush1.bf16.msra.mxu0 0
      %2594 = vmatprep.subr.bf16.mxu0 0
      %2595 = vmatpush1.bf16.msra.mxu0 0
      %2596 = vmatprep.mubr.bf16.mxu0 0
      %2597 = vmatmul.mubr.bf16.gmra.mrb[0].mxu0 %v2514
      %v2598 = vpop.f32.mrb[0].mxu0
      %v2599 = vadd.f32 0.0, %v2598
      %v2600 = vpop.f32.mrb[0].mxu0
      %v2601 = vpop.f32.mrb[0].mxu0
      %v2602 = vadd.f32 0.0, %v2601
      %v2603 = vpop.f32.mrb[0].mxu0
      %2604 = vmatprep.mubr.bf16.mxu0 0
      %2605 = vmatmul.mubr.bf16.gmra.mrb[0].mxu0 %v2517
      %v2606 = vpop.f32.mrb[0].mxu0
      %v2607 = vadd.f32 0.0, %v2606
      %v2608 = vpop.f32.mrb[0].mxu0
      %v2609 = vpop.f32.mrb[0].mxu0
      %v2610 = vadd.f32 0.0, %v2609
      %v2611 = vpop.f32.mrb[0].mxu0
      %2612 = vmatprep.mubr.bf16.mxu0 0
      %2613 = vmatmul.mubr.bf16.gmra.mrb[0].mxu0 %v2520
      %v2614 = vpop.f32.mrb[0].mxu0
      %v2615 = vadd.f32 0.0, %v2614
      %v2616 = vpop.f32.mrb[0].mxu0
      %v2617 = vpop.f32.mrb[0].mxu0
      %v2618 = vadd.f32 0.0, %v2617
      %v2619 = vpop.f32.mrb[0].mxu0
      %2620 = vmatprep.mubr.bf16.mxu0 0
      %2621 = vmatmul.mubr.bf16.gmra.mrb[0].mxu0 %v2523
      %v2622 = vpop.f32.mrb[0].mxu0
      %v2623 = vadd.f32 0.0, %v2622
      %v2624 = vpop.f32.mrb[0].mxu0
      %v2625 = vpop.f32.mrb[0].mxu0
      %v2626 = vadd.f32 0.0, %v2625
      %v2627 = vpop.f32.mrb[0].mxu0
      %2628 = vmatprep.mubr.bf16.mxu0 0
      %2629 = vmatmul.mubr.bf16.gmra.mrb[0].mxu0 %v2526
      %v2630 = vpop.f32.mrb[0].mxu0
      %v2631 = vadd.f32 0.0, %v2630
      %v2632 = vpop.f32.mrb[0].mxu0
      %v2633 = vpop.f32.mrb[0].mxu0
      %v2634 = vadd.f32 0.0, %v2633
      %v2635 = vpop.f32.mrb[0].mxu0
      %2636 = vmatprep.mubr.bf16.mxu0 0
      %2637 = vmatmul.mubr.bf16.gmra.mrb[0].mxu0 %v2529
      %v2638 = vpop.f32.mrb[0].mxu0
      %v2639 = vadd.f32 0.0, %v2638
      %v2640 = vpop.f32.mrb[0].mxu0
      %v2641 = vpop.f32.mrb[0].mxu0
      %v2642 = vadd.f32 0.0, %v2641
      %v2643 = vpop.f32.mrb[0].mxu0
      %2644 = vmatprep.mubr.bf16.mxu0 0
      %2645 = vmatmul.mubr.bf16.gmra.mrb[0].mxu0 %v2532
      %v2646 = vpop.f32.mrb[0].mxu0
      %v2647 = vadd.f32 0.0, %v2646
      %v2648 = vpop.f32.mrb[0].mxu0
      %v2649 = vpop.f32.mrb[0].mxu0
      %v2650 = vadd.f32 0.0, %v2649
      %v2651 = vpop.f32.mrb[0].mxu0
      %2652 = vmatprep.mubr.bf16.mxu0 0
      %2653 = vmatmul.mubr.bf16.gmra.mrb[0].mxu0 %v2535
      %v2654 = vpop.f32.mrb[0].mxu0
      %v2655 = vadd.f32 0.0, %v2654
      %v2656 = vpop.f32.mrb[0].mxu0
      %v2657 = vpop.f32.mrb[0].mxu0
      %v2658 = vadd.f32 0.0, %v2657
      %v2659 = vpop.f32.mrb[0].mxu0
      %2660 = vmatprep.mubr.bf16.mxu0 0
      %2661 = vmatmul.mubr.bf16.gmra.mrb[0].mxu0 %v2538
      %v2662 = vpop.f32.mrb[0].mxu0
      %v2663 = vadd.f32 0.0, %v2662
      %v2664 = vpop.f32.mrb[0].mxu0
      %v2665 = vpop.f32.mrb[0].mxu0
      %v2666 = vadd.f32 0.0, %v2665
      %v2667 = vpop.f32.mrb[0].mxu0
      %2668 = vmatprep.mubr.bf16.mxu0 0
      %2669 = vmatmul.mubr.bf16.gmra.mrb[0].mxu0 %v2541
      %v2670 = vpop.f32.mrb[0].mxu0
      %v2671 = vadd.f32 0.0, %v2670
      %v2672 = vpop.f32.mrb[0].mxu0
      %v2673 = vpop.f32.mrb[0].mxu0
      %v2674 = vadd.f32 0.0, %v2673
      %v2675 = vpop.f32.mrb[0].mxu0
      %2676 = vmatprep.mubr.bf16.mxu0 0
      %2677 = vmatmul.mubr.bf16.gmra.mrb[0].mxu0 %v2544
      %v2678 = vpop.f32.mrb[0].mxu0
      %v2679 = vadd.f32 0.0, %v2678
      %v2680 = vpop.f32.mrb[0].mxu0
      %v2681 = vpop.f32.mrb[0].mxu0
      %v2682 = vadd.f32 0.0, %v2681
      %v2683 = vpop.f32.mrb[0].mxu0
      %2684 = vmatprep.mubr.bf16.mxu0 0
      %2685 = vmatmul.mubr.bf16.gmra.mrb[0].mxu0 %v2547
      %v2686 = vpop.f32.mrb[0].mxu0
      %v2687 = vadd.f32 0.0, %v2686
      %v2688 = vpop.f32.mrb[0].mxu0
      %v2689 = vpop.f32.mrb[0].mxu0
      %v2690 = vadd.f32 0.0, %v2689
      %v2691 = vpop.f32.mrb[0].mxu0
      %2692 = vmatprep.mubr.bf16.mxu0 0
      %2693 = vmatmul.mubr.bf16.gmra.mrb[0].mxu0 %v2550
      %v2694 = vpop.f32.mrb[0].mxu0
      %v2695 = vadd.f32 0.0, %v2694
      %v2696 = vpop.f32.mrb[0].mxu0
      %v2697 = vpop.f32.mrb[0].mxu0
      %v2698 = vadd.f32 0.0, %v2697
      %v2699 = vpop.f32.mrb[0].mxu0
      %2700 = vmatprep.mubr.bf16.mxu0 0
      %2701 = vmatmul.mubr.bf16.gmra.mrb[0].mxu0 %v2553
      %v2702 = vpop.f32.mrb[0].mxu0
      %v2703 = vadd.f32 0.0, %v2702
      %v2704 = vpop.f32.mrb[0].mxu0
      %v2705 = vpop.f32.mrb[0].mxu0
      %v2706 = vadd.f32 0.0, %v2705
      %v2707 = vpop.f32.mrb[0].mxu0
      %2708 = vmatprep.mubr.bf16.mxu0 0
      %2709 = vmatmul.mubr.bf16.gmra.mrb[0].mxu0 %v2556
      %v2710 = vpop.f32.mrb[0].mxu0
      %v2711 = vadd.f32 0.0, %v2710
      %v2712 = vpop.f32.mrb[0].mxu0
      %v2713 = vpop.f32.mrb[0].mxu0
      %v2714 = vadd.f32 0.0, %v2713
      %v2715 = vpop.f32.mrb[0].mxu0
      %2716 = vmatprep.mubr.bf16.mxu0 0
      %2717 = vmatmul.mubr.bf16.gmra.mrb[0].mxu0 %v2559
      %v2718 = vpop.f32.mrb[0].mxu0
      %v2719 = vadd.f32 0.0, %v2718
      %v2720 = vpop.f32.mrb[0].mxu0
      %v2721 = vpop.f32.mrb[0].mxu0
      %v2722 = vadd.f32 0.0, %v2721
      %v2723 = vpop.f32.mrb[0].mxu0
      %2724 = vdwg.mxu0
      %v2725 = vadd.f32 %v2468, %v2599
      %v2726 = vadd.f32 %v2469, %v2602
      %v2727 = vadd.f32 %v2470, %v2607
      %v2728 = vadd.f32 %v2471, %v2610
      %v2729 = vadd.f32 %v2472, %v2615
      %v2730 = vadd.f32 %v2473, %v2618
      %v2731 = vadd.f32 %v2474, %v2623
      %v2732 = vadd.f32 %v2475, %v2626
      %v2733 = vadd.f32 %v2476, %v2631
      %v2734 = vadd.f32 %v2477, %v2634
      %v2735 = vadd.f32 %v2478, %v2639
      %v2736 = vadd.f32 %v2479, %v2642
      %v2737 = vadd.f32 %v2480, %v2647
      %v2738 = vadd.f32 %v2481, %v2650
      %v2739 = vadd.f32 %v2482, %v2655
      %v2740 = vadd.f32 %v2483, %v2658
      %v2741 = vadd.f32 %v2484, %v2663
      %v2742 = vadd.f32 %v2485, %v2666
      %v2743 = vadd.f32 %v2486, %v2671
      %v2744 = vadd.f32 %v2487, %v2674
      %v2745 = vadd.f32 %v2488, %v2679
      %v2746 = vadd.f32 %v2489, %v2682
      %v2747 = vadd.f32 %v2490, %v2687
      %v2748 = vadd.f32 %v2491, %v2690
      %v2749 = vadd.f32 %v2492, %v2695
      %v2750 = vadd.f32 %v2493, %v2698
      %v2751 = vadd.f32 %v2494, %v2703
      %v2752 = vadd.f32 %v2495, %v2706
      %v2753 = vadd.f32 %v2496, %v2711
      %v2754 = vadd.f32 %v2497, %v2714
      %v2755 = vadd.f32 %v2498, %v2719
      %v2756 = vadd.f32 %v2499, %v2722
      %2757 = vst.msk [vmem:[#allocation4] sm:$0xff] %vm1383, %v2725
      %2758 = vst.msk [vmem:[#allocation4 + $0x8] sm:$0xff] %vm1383, %v2726
      %2759 = vst.msk [vmem:[#allocation4 + $0x10] sm:$0xff] %vm1383, %v2727
      %2760 = vst.msk [vmem:[#allocation4 + $0x18] sm:$0xff] %vm1383, %v2728
      %2761 = vst.msk [vmem:[#allocation4 + $0x20] sm:$0xff] %vm1383, %v2729
      %2762 = vst.msk [vmem:[#allocation4 + $0x28] sm:$0xff] %vm1383, %v2730
      %2763 = vst.msk [vmem:[#allocation4 + $0x30] sm:$0xff] %vm1383, %v2731
      %2764 = vst.msk [vmem:[#allocation4 + $0x38] sm:$0xff] %vm1383, %v2732
      %2765 = vst.msk [vmem:[#allocation4 + $0x40] sm:$0xff] %vm1383, %v2733
      %2766 = vst.msk [vmem:[#allocation4 + $0x48] sm:$0xff] %vm1383, %v2734
      %2767 = vst.msk [vmem:[#allocation4 + $0x50] sm:$0xff] %vm1383, %v2735
      %2768 = vst.msk [vmem:[#allocation4 + $0x58] sm:$0xff] %vm1383, %v2736
      %2769 = vst.msk [vmem:[#allocation4 + $0x60] sm:$0xff] %vm1383, %v2737
      %2770 = vst.msk [vmem:[#allocation4 + $0x68] sm:$0xff] %vm1383, %v2738
      %2771 = vst.msk [vmem:[#allocation4 + $0x70] sm:$0xff] %vm1383, %v2739
      %2772 = vst.msk [vmem:[#allocation4 + $0x78] sm:$0xff] %vm1383, %v2740
      %2773 = vst.msk [vmem:[#allocation4 + $0x80] sm:$0xff] %vm1383, %v2741
      %2774 = vst.msk [vmem:[#allocation4 + $0x88] sm:$0xff] %vm1383, %v2742
      %2775 = vst.msk [vmem:[#allocation4 + $0x90] sm:$0xff] %vm1383, %v2743
      %2776 = vst.msk [vmem:[#allocation4 + $0x98] sm:$0xff] %vm1383, %v2744
      %2777 = vst.msk [vmem:[#allocation4 + $0xa0] sm:$0xff] %vm1383, %v2745
      %2778 = vst.msk [vmem:[#allocation4 + $0xa8] sm:$0xff] %vm1383, %v2746
      %2779 = vst.msk [vmem:[#allocation4 + $0xb0] sm:$0xff] %vm1383, %v2747
      %2780 = vst.msk [vmem:[#allocation4 + $0xb8] sm:$0xff] %vm1383, %v2748
      %2781 = vst.msk [vmem:[#allocation4 + $0xc0] sm:$0xff] %vm1383, %v2749
      %2782 = vst.msk [vmem:[#allocation4 + $0xc8] sm:$0xff] %vm1383, %v2750
      %2783 = vst.msk [vmem:[#allocation4 + $0xd0] sm:$0xff] %vm1383, %v2751
      %2784 = vst.msk [vmem:[#allocation4 + $0xd8] sm:$0xff] %vm1383, %v2752
      %2785 = vst.msk [vmem:[#allocation4 + $0xe0] sm:$0xff] %vm1383, %v2753
      %2786 = vst.msk [vmem:[#allocation4 + $0xe8] sm:$0xff] %vm1383, %v2754
      %2787 = vst.msk [vmem:[#allocation4 + $0xf0] sm:$0xff] %vm1383, %v2755
      %2788 = vst.msk [vmem:[#allocation4 + $0xf8] sm:$0xff] %vm1383, %v2756
      %v2789 = vld [vmem:[%s1611] sm:$0xff]
      %v2790 = vld [vmem:[%s1611 + $0x8] sm:$0xff]
      %v2791 = vld [vmem:[%s1611 + $0x10] sm:$0xff]
      %v2792 = vld [vmem:[%s1611 + $0x18] sm:$0xff]
      %v2793 = vld [vmem:[%s1611 + $0x20] sm:$0xff]
      %v2794 = vld [vmem:[%s1611 + $0x28] sm:$0xff]
      %v2795 = vld [vmem:[%s1611 + $0x30] sm:$0xff]
      %v2796 = vld [vmem:[%s1611 + $0x38] sm:$0xff]
      %v2797 = vld [vmem:[%s1611 + $0x40] sm:$0xff]
      %v2798 = vld [vmem:[%s1611 + $0x48] sm:$0xff]
      %v2799 = vld [vmem:[%s1611 + $0x50] sm:$0xff]
      %v2800 = vld [vmem:[%s1611 + $0x58] sm:$0xff]
      %v2801 = vld [vmem:[%s1611 + $0x60] sm:$0xff]
      %v2802 = vld [vmem:[%s1611 + $0x68] sm:$0xff]
      %v2803 = vld [vmem:[%s1611 + $0x70] sm:$0xff]
      %v2804 = vld [vmem:[%s1611 + $0x78] sm:$0xff]
      %v2805 = vld [vmem:[#allocation4] sm:$0xff]
      %v2806 = vld [vmem:[#allocation4 + $0x8] sm:$0xff]
      %v2807 = vld [vmem:[#allocation4 + $0x10] sm:$0xff]
      %v2808 = vld [vmem:[#allocation4 + $0x18] sm:$0xff]
      %v2809 = vld [vmem:[#allocation4 + $0x20] sm:$0xff]
      %v2810 = vld [vmem:[#allocation4 + $0x28] sm:$0xff]
      %v2811 = vld [vmem:[#allocation4 + $0x30] sm:$0xff]
      %v2812 = vld [vmem:[#allocation4 + $0x38] sm:$0xff]
      %v2813 = vld [vmem:[#allocation4 + $0x40] sm:$0xff]
      %v2814 = vld [vmem:[#allocation4 + $0x48] sm:$0xff]
      %v2815 = vld [vmem:[#allocation4 + $0x50] sm:$0xff]
      %v2816 = vld [vmem:[#allocation4 + $0x58] sm:$0xff]
      %v2817 = vld [vmem:[#allocation4 + $0x60] sm:$0xff]
      %v2818 = vld [vmem:[#allocation4 + $0x68] sm:$0xff]
      %v2819 = vld [vmem:[#allocation4 + $0x70] sm:$0xff]
      %v2820 = vld [vmem:[#allocation4 + $0x78] sm:$0xff]
      %v2821 = vld [vmem:[#allocation4 + $0x80] sm:$0xff]
      %v2822 = vld [vmem:[#allocation4 + $0x88] sm:$0xff]
      %v2823 = vld [vmem:[#allocation4 + $0x90] sm:$0xff]
      %v2824 = vld [vmem:[#allocation4 + $0x98] sm:$0xff]
      %v2825 = vld [vmem:[#allocation4 + $0xa0] sm:$0xff]
      %v2826 = vld [vmem:[#allocation4 + $0xa8] sm:$0xff]
      %v2827 = vld [vmem:[#allocation4 + $0xb0] sm:$0xff]
      %v2828 = vld [vmem:[#allocation4 + $0xb8] sm:$0xff]
      %v2829 = vld [vmem:[#allocation4 + $0xc0] sm:$0xff]
      %v2830 = vld [vmem:[#allocation4 + $0xc8] sm:$0xff]
      %v2831 = vld [vmem:[#allocation4 + $0xd0] sm:$0xff]
      %v2832 = vld [vmem:[#allocation4 + $0xd8] sm:$0xff]
      %v2833 = vld [vmem:[#allocation4 + $0xe0] sm:$0xff]
      %v2834 = vld [vmem:[#allocation4 + $0xe8] sm:$0xff]
      %v2835 = vld [vmem:[#allocation4 + $0xf0] sm:$0xff]
      %v2836 = vld [vmem:[#allocation4 + $0xf8] sm:$0xff]
      %s2837 = scalar_lea.vmem %s6, 36
      %v2838 = vld [vmem:[%s2837] sm:$0xf]
      %v2839 = vld [vmem:[%s2837 + $0x4] sm:$0xf]
      %v2840 = vld [vmem:[%s2837 + $0x8] sm:$0xf]
      %v2844 = vunpack.c.l.b16 %v2838
      %v2845 = vunpack.c.l.b16 %v2839
      %v2846 = vunpack.c.l.b16 %v2840
      %v2847 = vpack.c.b16 %v2845, %v2844
      %v2848 = vpack.c.b16 %v2846, %v2846
      %v2851 = vsel %vm1612, %v2789, 0
      %v2854 = vsel %vm1612, %v2790, 0
      %v2857 = vsel %vm1612, %v2791, 0
      %v2860 = vsel %vm1612, %v2792, 0
      %v2863 = vsel %vm1612, %v2793, 0
      %v2866 = vsel %vm1612, %v2794, 0
      %v2869 = vsel %vm1612, %v2795, 0
      %v2872 = vsel %vm1612, %v2796, 0
      %v2875 = vsel %vm1612, %v2797, 0
      %v2878 = vsel %vm1612, %v2798, 0
      %v2881 = vsel %vm1612, %v2799, 0
      %v2884 = vsel %vm1612, %v2800, 0
      %v2887 = vsel %vm1612, %v2801, 0
      %v2890 = vsel %vm1612, %v2802, 0
      %v2893 = vsel %vm1612, %v2803, 0
      %v2896 = vsel %vm1612, %v2804, 0
      %v2899 = vsel %vm1884, %v2848, 0
      %2901 = vmatprep.subr.bf16.mxu0 0
      %2902 = vmatpush1.bf16.msra.mxu0 %v2847
      %2903 = vmatprep.subr.bf16.mxu0 0
      %2904 = vmatpush1.bf16.msra.mxu0 %v2899
      %2905 = vmatprep.subr.bf16.mxu0 0
      %2906 = vmatpush1.bf16.msra.mxu0 0
      %2907 = vmatprep.subr.bf16.mxu0 0
      %2908 = vmatpush1.bf16.msra.mxu0 0
      %2909 = vmatprep.subr.bf16.mxu0 0
      %2910 = vmatpush1.bf16.msra.mxu0 0
      %2911 = vmatprep.subr.bf16.mxu0 0
      %2912 = vmatpush1.bf16.msra.mxu0 0
      %2913 = vmatprep.subr.bf16.mxu0 0
      %2914 = vmatpush1.bf16.msra.mxu0 0
      %2915 = vmatprep.subr.bf16.mxu0 0
      %2916 = vmatpush1.bf16.msra.mxu0 0
      %2917 = vmatprep.subr.bf16.mxu0 0
      %2918 = vmatpush1.bf16.msra.mxu0 0
      %2919 = vmatprep.subr.bf16.mxu0 0
      %2920 = vmatpush1.bf16.msra.mxu0 0
      %2921 = vmatprep.subr.bf16.mxu0 0
      %2922 = vmatpush1.bf16.msra.mxu0 0
      %2923 = vmatprep.subr.bf16.mxu0 0
      %2924 = vmatpush1.bf16.msra.mxu0 0
      %2925 = vmatprep.subr.bf16.mxu0 0
      %2926 = vmatpush1.bf16.msra.mxu0 0
      %2927 = vmatprep.subr.bf16.mxu0 0
      %2928 = vmatpush1.bf16.msra.mxu0 0
      %2929 = vmatprep.subr.bf16.mxu0 0
      %2930 = vmatpush1.bf16.msra.mxu0 0
      %2931 = vmatprep.subr.bf16.mxu0 0
      %2932 = vmatpush1.bf16.msra.mxu0 0
      %2933 = vmatprep.mubr.bf16.mxu0 0
      %2934 = vmatmul.mubr.bf16.gmra.mrb[0].mxu0 %v2851
      %v2935 = vpop.f32.mrb[0].mxu0
      %v2936 = vadd.f32 0.0, %v2935
      %v2937 = vpop.f32.mrb[0].mxu0
      %v2938 = vpop.f32.mrb[0].mxu0
      %v2939 = vadd.f32 0.0, %v2938
      %v2940 = vpop.f32.mrb[0].mxu0
      %2941 = vmatprep.mubr.bf16.mxu0 0
      %2942 = vmatmul.mubr.bf16.gmra.mrb[0].mxu0 %v2854
      %v2943 = vpop.f32.mrb[0].mxu0
      %v2944 = vadd.f32 0.0, %v2943
      %v2945 = vpop.f32.mrb[0].mxu0
      %v2946 = vpop.f32.mrb[0].mxu0
      %v2947 = vadd.f32 0.0, %v2946
      %v2948 = vpop.f32.mrb[0].mxu0
      %2949 = vmatprep.mubr.bf16.mxu0 0
      %2950 = vmatmul.mubr.bf16.gmra.mrb[0].mxu0 %v2857
      %v2951 = vpop.f32.mrb[0].mxu0
      %v2952 = vadd.f32 0.0, %v2951
      %v2953 = vpop.f32.mrb[0].mxu0
      %v2954 = vpop.f32.mrb[0].mxu0
      %v2955 = vadd.f32 0.0, %v2954
      %v2956 = vpop.f32.mrb[0].mxu0
      %2957 = vmatprep.mubr.bf16.mxu0 0
      %2958 = vmatmul.mubr.bf16.gmra.mrb[0].mxu0 %v2860
      %v2959 = vpop.f32.mrb[0].mxu0
      %v2960 = vadd.f32 0.0, %v2959
      %v2961 = vpop.f32.mrb[0].mxu0
      %v2962 = vpop.f32.mrb[0].mxu0
      %v2963 = vadd.f32 0.0, %v2962
      %v2964 = vpop.f32.mrb[0].mxu0
      %2965 = vmatprep.mubr.bf16.mxu0 0
      %2966 = vmatmul.mubr.bf16.gmra.mrb[0].mxu0 %v2863
      %v2967 = vpop.f32.mrb[0].mxu0
      %v2968 = vadd.f32 0.0, %v2967
      %v2969 = vpop.f32.mrb[0].mxu0
      %v2970 = vpop.f32.mrb[0].mxu0
      %v2971 = vadd.f32 0.0, %v2970
      %v2972 = vpop.f32.mrb[0].mxu0
      %2973 = vmatprep.mubr.bf16.mxu0 0
      %2974 = vmatmul.mubr.bf16.gmra.mrb[0].mxu0 %v2866
      %v2975 = vpop.f32.mrb[0].mxu0
      %v2976 = vadd.f32 0.0, %v2975
      %v2977 = vpop.f32.mrb[0].mxu0
      %v2978 = vpop.f32.mrb[0].mxu0
      %v2979 = vadd.f32 0.0, %v2978
      %v2980 = vpop.f32.mrb[0].mxu0
      %2981 = vmatprep.mubr.bf16.mxu0 0
      %2982 = vmatmul.mubr.bf16.gmra.mrb[0].mxu0 %v2869
      %v2983 = vpop.f32.mrb[0].mxu0
      %v2984 = vadd.f32 0.0, %v2983
      %v2985 = vpop.f32.mrb[0].mxu0
      %v2986 = vpop.f32.mrb[0].mxu0
      %v2987 = vadd.f32 0.0, %v2986
      %v2988 = vpop.f32.mrb[0].mxu0
      %2989 = vmatprep.mubr.bf16.mxu0 0
      %2990 = vmatmul.mubr.bf16.gmra.mrb[0].mxu0 %v2872
      %v2991 = vpop.f32.mrb[0].mxu0
      %v2992 = vadd.f32 0.0, %v2991
      %v2993 = vpop.f32.mrb[0].mxu0
      %v2994 = vpop.f32.mrb[0].mxu0
      %v2995 = vadd.f32 0.0, %v2994
      %v2996 = vpop.f32.mrb[0].mxu0
      %2997 = vmatprep.mubr.bf16.mxu0 0
      %2998 = vmatmul.mubr.bf16.gmra.mrb[0].mxu0 %v2875
      %v2999 = vpop.f32.mrb[0].mxu0
      %v3000 = vadd.f32 0.0, %v2999
      %v3001 = vpop.f32.mrb[0].mxu0
      %v3002 = vpop.f32.mrb[0].mxu0
      %v3003 = vadd.f32 0.0, %v3002
      %v3004 = vpop.f32.mrb[0].mxu0
      %3005 = vmatprep.mubr.bf16.mxu0 0
      %3006 = vmatmul.mubr.bf16.gmra.mrb[0].mxu0 %v2878
      %v3007 = vpop.f32.mrb[0].mxu0
      %v3008 = vadd.f32 0.0, %v3007
      %v3009 = vpop.f32.mrb[0].mxu0
      %v3010 = vpop.f32.mrb[0].mxu0
      %v3011 = vadd.f32 0.0, %v3010
      %v3012 = vpop.f32.mrb[0].mxu0
      %3013 = vmatprep.mubr.bf16.mxu0 0
      %3014 = vmatmul.mubr.bf16.gmra.mrb[0].mxu0 %v2881
      %v3015 = vpop.f32.mrb[0].mxu0
      %v3016 = vadd.f32 0.0, %v3015
      %v3017 = vpop.f32.mrb[0].mxu0
      %v3018 = vpop.f32.mrb[0].mxu0
      %v3019 = vadd.f32 0.0, %v3018
      %v3020 = vpop.f32.mrb[0].mxu0
      %3021 = vmatprep.mubr.bf16.mxu0 0
      %3022 = vmatmul.mubr.bf16.gmra.mrb[0].mxu0 %v2884
      %v3023 = vpop.f32.mrb[0].mxu0
      %v3024 = vadd.f32 0.0, %v3023
      %v3025 = vpop.f32.mrb[0].mxu0
      %v3026 = vpop.f32.mrb[0].mxu0
      %v3027 = vadd.f32 0.0, %v3026
      %v3028 = vpop.f32.mrb[0].mxu0
      %3029 = vmatprep.mubr.bf16.mxu0 0
      %3030 = vmatmul.mubr.bf16.gmra.mrb[0].mxu0 %v2887
      %v3031 = vpop.f32.mrb[0].mxu0
      %v3032 = vadd.f32 0.0, %v3031
      %v3033 = vpop.f32.mrb[0].mxu0
      %v3034 = vpop.f32.mrb[0].mxu0
      %v3035 = vadd.f32 0.0, %v3034
      %v3036 = vpop.f32.mrb[0].mxu0
      %3037 = vmatprep.mubr.bf16.mxu0 0
      %3038 = vmatmul.mubr.bf16.gmra.mrb[0].mxu0 %v2890
      %v3039 = vpop.f32.mrb[0].mxu0
      %v3040 = vadd.f32 0.0, %v3039
      %v3041 = vpop.f32.mrb[0].mxu0
      %v3042 = vpop.f32.mrb[0].mxu0
      %v3043 = vadd.f32 0.0, %v3042
      %v3044 = vpop.f32.mrb[0].mxu0
      %3045 = vmatprep.mubr.bf16.mxu0 0
      %3046 = vmatmul.mubr.bf16.gmra.mrb[0].mxu0 %v2893
      %v3047 = vpop.f32.mrb[0].mxu0
      %v3048 = vadd.f32 0.0, %v3047
      %v3049 = vpop.f32.mrb[0].mxu0
      %v3050 = vpop.f32.mrb[0].mxu0
      %v3051 = vadd.f32 0.0, %v3050
      %v3052 = vpop.f32.mrb[0].mxu0
      %3053 = vmatprep.mubr.bf16.mxu0 0
      %3054 = vmatmul.mubr.bf16.gmra.mrb[0].mxu0 %v2896
      %v3055 = vpop.f32.mrb[0].mxu0
      %v3056 = vadd.f32 0.0, %v3055
      %v3057 = vpop.f32.mrb[0].mxu0
      %v3058 = vpop.f32.mrb[0].mxu0
      %v3059 = vadd.f32 0.0, %v3058
      %v3060 = vpop.f32.mrb[0].mxu0
      %3061 = vdwg.mxu0
      %v3062 = vadd.f32 %v2805, %v2936
      %v3063 = vadd.f32 %v2806, %v2939
      %v3064 = vadd.f32 %v2807, %v2944
      %v3065 = vadd.f32 %v2808, %v2947
      %v3066 = vadd.f32 %v2809, %v2952
      %v3067 = vadd.f32 %v2810, %v2955
      %v3068 = vadd.f32 %v2811, %v2960
      %v3069 = vadd.f32 %v2812, %v2963
      %v3070 = vadd.f32 %v2813, %v2968
      %v3071 = vadd.f32 %v2814, %v2971
      %v3072 = vadd.f32 %v2815, %v2976
      %v3073 = vadd.f32 %v2816, %v2979
      %v3074 = vadd.f32 %v2817, %v2984
      %v3075 = vadd.f32 %v2818, %v2987
      %v3076 = vadd.f32 %v2819, %v2992
      %v3077 = vadd.f32 %v2820, %v2995
      %v3078 = vadd.f32 %v2821, %v3000
      %v3079 = vadd.f32 %v2822, %v3003
      %v3080 = vadd.f32 %v2823, %v3008
      %v3081 = vadd.f32 %v2824, %v3011
      %v3082 = vadd.f32 %v2825, %v3016
      %v3083 = vadd.f32 %v2826, %v3019
      %v3084 = vadd.f32 %v2827, %v3024
      %v3085 = vadd.f32 %v2828, %v3027
      %v3086 = vadd.f32 %v2829, %v3032
      %v3087 = vadd.f32 %v2830, %v3035
      %v3088 = vadd.f32 %v2831, %v3040
      %v3089 = vadd.f32 %v2832, %v3043
      %v3090 = vadd.f32 %v2833, %v3048
      %v3091 = vadd.f32 %v2834, %v3051
      %v3092 = vadd.f32 %v2835, %v3056
      %v3093 = vadd.f32 %v2836, %v3059
      %3094 = vst.msk [vmem:[#allocation4] sm:$0xff] %vm1383, %v3062
      %3095 = vst.msk [vmem:[#allocation4 + $0x8] sm:$0xff] %vm1383, %v3063
      %3096 = vst.msk [vmem:[#allocation4 + $0x10] sm:$0xff] %vm1383, %v3064
      %3097 = vst.msk [vmem:[#allocation4 + $0x18] sm:$0xff] %vm1383, %v3065
      %3098 = vst.msk [vmem:[#allocation4 + $0x20] sm:$0xff] %vm1383, %v3066
      %3099 = vst.msk [vmem:[#allocation4 + $0x28] sm:$0xff] %vm1383, %v3067
      %3100 = vst.msk [vmem:[#allocation4 + $0x30] sm:$0xff] %vm1383, %v3068
      %3101 = vst.msk [vmem:[#allocation4 + $0x38] sm:$0xff] %vm1383, %v3069
      %3102 = vst.msk [vmem:[#allocation4 + $0x40] sm:$0xff] %vm1383, %v3070
      %3103 = vst.msk [vmem:[#allocation4 + $0x48] sm:$0xff] %vm1383, %v3071
      %3104 = vst.msk [vmem:[#allocation4 + $0x50] sm:$0xff] %vm1383, %v3072
      %3105 = vst.msk [vmem:[#allocation4 + $0x58] sm:$0xff] %vm1383, %v3073
      %3106 = vst.msk [vmem:[#allocation4 + $0x60] sm:$0xff] %vm1383, %v3074
      %3107 = vst.msk [vmem:[#allocation4 + $0x68] sm:$0xff] %vm1383, %v3075
      %3108 = vst.msk [vmem:[#allocation4 + $0x70] sm:$0xff] %vm1383, %v3076
      %3109 = vst.msk [vmem:[#allocation4 + $0x78] sm:$0xff] %vm1383, %v3077
      %3110 = vst.msk [vmem:[#allocation4 + $0x80] sm:$0xff] %vm1383, %v3078
      %3111 = vst.msk [vmem:[#allocation4 + $0x88] sm:$0xff] %vm1383, %v3079
      %3112 = vst.msk [vmem:[#allocation4 + $0x90] sm:$0xff] %vm1383, %v3080
      %3113 = vst.msk [vmem:[#allocation4 + $0x98] sm:$0xff] %vm1383, %v3081
      %3114 = vst.msk [vmem:[#allocation4 + $0xa0] sm:$0xff] %vm1383, %v3082
      %3115 = vst.msk [vmem:[#allocation4 + $0xa8] sm:$0xff] %vm1383, %v3083
      %3116 = vst.msk [vmem:[#allocation4 + $0xb0] sm:$0xff] %vm1383, %v3084
      %3117 = vst.msk [vmem:[#allocation4 + $0xb8] sm:$0xff] %vm1383, %v3085
      %3118 = vst.msk [vmem:[#allocation4 + $0xc0] sm:$0xff] %vm1383, %v3086
      %3119 = vst.msk [vmem:[#allocation4 + $0xc8] sm:$0xff] %vm1383, %v3087
      %3120 = vst.msk [vmem:[#allocation4 + $0xd0] sm:$0xff] %vm1383, %v3088
      %3121 = vst.msk [vmem:[#allocation4 + $0xd8] sm:$0xff] %vm1383, %v3089
      %3122 = vst.msk [vmem:[#allocation4 + $0xe0] sm:$0xff] %vm1383, %v3090
      %3123 = vst.msk [vmem:[#allocation4 + $0xe8] sm:$0xff] %vm1383, %v3091
      %3124 = vst.msk [vmem:[#allocation4 + $0xf0] sm:$0xff] %vm1383, %v3092
      %3125 = vst.msk [vmem:[#allocation4 + $0xf8] sm:$0xff] %vm1383, %v3093
      %v3126 = vld [vmem:[%s1629] sm:$0xff]
      %v3127 = vld [vmem:[%s1629 + $0x8] sm:$0xff]
      %v3128 = vld [vmem:[%s1629 + $0x10] sm:$0xff]
      %v3129 = vld [vmem:[%s1629 + $0x18] sm:$0xff]
      %v3130 = vld [vmem:[%s1629 + $0x20] sm:$0xff]
      %v3131 = vld [vmem:[%s1629 + $0x28] sm:$0xff]
      %v3132 = vld [vmem:[%s1629 + $0x30] sm:$0xff]
      %v3133 = vld [vmem:[%s1629 + $0x38] sm:$0xff]
      %v3134 = vld [vmem:[%s1629 + $0x40] sm:$0xff]
      %v3135 = vld [vmem:[%s1629 + $0x48] sm:$0xff]
      %v3136 = vld [vmem:[%s1629 + $0x50] sm:$0xff]
      %v3137 = vld [vmem:[%s1629 + $0x58] sm:$0xff]
      %v3138 = vld [vmem:[%s1629 + $0x60] sm:$0xff]
      %v3139 = vld [vmem:[%s1629 + $0x68] sm:$0xff]
      %v3140 = vld [vmem:[%s1629 + $0x70] sm:$0xff]
      %v3141 = vld [vmem:[%s1629 + $0x78] sm:$0xff]
      %v3142 = vld [vmem:[#allocation4] sm:$0xff]
      %v3143 = vld [vmem:[#allocation4 + $0x8] sm:$0xff]
      %v3144 = vld [vmem:[#allocation4 + $0x10] sm:$0xff]
      %v3145 = vld [vmem:[#allocation4 + $0x18] sm:$0xff]
      %v3146 = vld [vmem:[#allocation4 + $0x20] sm:$0xff]
      %v3147 = vld [vmem:[#allocation4 + $0x28] sm:$0xff]
      %v3148 = vld [vmem:[#allocation4 + $0x30] sm:$0xff]
      %v3149 = vld [vmem:[#allocation4 + $0x38] sm:$0xff]
      %v3150 = vld [vmem:[#allocation4 + $0x40] sm:$0xff]
      %v3151 = vld [vmem:[#allocation4 + $0x48] sm:$0xff]
      %v3152 = vld [vmem:[#allocation4 + $0x50] sm:$0xff]
      %v3153 = vld [vmem:[#allocation4 + $0x58] sm:$0xff]
      %v3154 = vld [vmem:[#allocation4 + $0x60] sm:$0xff]
      %v3155 = vld [vmem:[#allocation4 + $0x68] sm:$0xff]
      %v3156 = vld [vmem:[#allocation4 + $0x70] sm:$0xff]
      %v3157 = vld [vmem:[#allocation4 + $0x78] sm:$0xff]
      %v3158 = vld [vmem:[#allocation4 + $0x80] sm:$0xff]
      %v3159 = vld [vmem:[#allocation4 + $0x88] sm:$0xff]
      %v3160 = vld [vmem:[#allocation4 + $0x90] sm:$0xff]
      %v3161 = vld [vmem:[#allocation4 + $0x98] sm:$0xff]
      %v3162 = vld [vmem:[#allocation4 + $0xa0] sm:$0xff]
      %v3163 = vld [vmem:[#allocation4 + $0xa8] sm:$0xff]
      %v3164 = vld [vmem:[#allocation4 + $0xb0] sm:$0xff]
      %v3165 = vld [vmem:[#allocation4 + $0xb8] sm:$0xff]
      %v3166 = vld [vmem:[#allocation4 + $0xc0] sm:$0xff]
      %v3167 = vld [vmem:[#allocation4 + $0xc8] sm:$0xff]
      %v3168 = vld [vmem:[#allocation4 + $0xd0] sm:$0xff]
      %v3169 = vld [vmem:[#allocation4 + $0xd8] sm:$0xff]
      %v3170 = vld [vmem:[#allocation4 + $0xe0] sm:$0xff]
      %v3171 = vld [vmem:[#allocation4 + $0xe8] sm:$0xff]
      %v3172 = vld [vmem:[#allocation4 + $0xf0] sm:$0xff]
      %v3173 = vld [vmem:[#allocation4 + $0xf8] sm:$0xff]
      %s3174 = scalar_lea.vmem %s6, 48
      %v3175 = vld [vmem:[%s3174] sm:$0xf]
      %v3176 = vld [vmem:[%s3174 + $0x4] sm:$0xf]
      %v3177 = vld [vmem:[%s3174 + $0x8] sm:$0xf]
      %v3181 = vunpack.c.l.b16 %v3175
      %v3182 = vunpack.c.l.b16 %v3176
      %v3183 = vunpack.c.l.b16 %v3177
      %v3184 = vpack.c.b16 %v3182, %v3181
      %v3185 = vpack.c.b16 %v3183, %v3183
      %v3188 = vsel %vm1612, %v3126, 0
      %v3191 = vsel %vm1612, %v3127, 0
      %v3194 = vsel %vm1612, %v3128, 0
      %v3197 = vsel %vm1612, %v3129, 0
      %v3200 = vsel %vm1612, %v3130, 0
      %v3203 = vsel %vm1612, %v3131, 0
      %v3206 = vsel %vm1612, %v3132, 0
      %v3209 = vsel %vm1612, %v3133, 0
      %v3212 = vsel %vm1612, %v3134, 0
      %v3215 = vsel %vm1612, %v3135, 0
      %v3218 = vsel %vm1612, %v3136, 0
      %v3221 = vsel %vm1612, %v3137, 0
      %v3224 = vsel %vm1612, %v3138, 0
      %v3227 = vsel %vm1612, %v3139, 0
      %v3230 = vsel %vm1612, %v3140, 0
      %v3233 = vsel %vm1612, %v3141, 0
      %v3236 = vsel %vm1884, %v3185, 0
      %3238 = vmatprep.subr.bf16.mxu0 0
      %3239 = vmatpush1.bf16.msra.mxu0 %v3184
      %3240 = vmatprep.subr.bf16.mxu0 0
      %3241 = vmatpush1.bf16.msra.mxu0 %v3236
      %3242 = vmatprep.subr.bf16.mxu0 0
      %3243 = vmatpush1.bf16.msra.mxu0 0
      %3244 = vmatprep.subr.bf16.mxu0 0
      %3245 = vmatpush1.bf16.msra.mxu0 0
      %3246 = vmatprep.subr.bf16.mxu0 0
      %3247 = vmatpush1.bf16.msra.mxu0 0
      %3248 = vmatprep.subr.bf16.mxu0 0
      %3249 = vmatpush1.bf16.msra.mxu0 0
      %3250 = vmatprep.subr.bf16.mxu0 0
      %3251 = vmatpush1.bf16.msra.mxu0 0
      %3252 = vmatprep.subr.bf16.mxu0 0
      %3253 = vmatpush1.bf16.msra.mxu0 0
      %3254 = vmatprep.subr.bf16.mxu0 0
      %3255 = vmatpush1.bf16.msra.mxu0 0
      %3256 = vmatprep.subr.bf16.mxu0 0
      %3257 = vmatpush1.bf16.msra.mxu0 0
      %3258 = vmatprep.subr.bf16.mxu0 0
      %3259 = vmatpush1.bf16.msra.mxu0 0
      %3260 = vmatprep.subr.bf16.mxu0 0
      %3261 = vmatpush1.bf16.msra.mxu0 0
      %3262 = vmatprep.subr.bf16.mxu0 0
      %3263 = vmatpush1.bf16.msra.mxu0 0
      %3264 = vmatprep.subr.bf16.mxu0 0
      %3265 = vmatpush1.bf16.msra.mxu0 0
      %3266 = vmatprep.subr.bf16.mxu0 0
      %3267 = vmatpush1.bf16.msra.mxu0 0
      %3268 = vmatprep.subr.bf16.mxu0 0
      %3269 = vmatpush1.bf16.msra.mxu0 0
      %3270 = vmatprep.mubr.bf16.mxu0 0
      %3271 = vmatmul.mubr.bf16.gmra.mrb[0].mxu0 %v3188
      %v3272 = vpop.f32.mrb[0].mxu0
      %v3273 = vadd.f32 0.0, %v3272
      %v3274 = vpop.f32.mrb[0].mxu0
      %v3275 = vpop.f32.mrb[0].mxu0
      %v3276 = vadd.f32 0.0, %v3275
      %v3277 = vpop.f32.mrb[0].mxu0
      %3278 = vmatprep.mubr.bf16.mxu0 0
      %3279 = vmatmul.mubr.bf16.gmra.mrb[0].mxu0 %v3191
      %v3280 = vpop.f32.mrb[0].mxu0
      %v3281 = vadd.f32 0.0, %v3280
      %v3282 = vpop.f32.mrb[0].mxu0
      %v3283 = vpop.f32.mrb[0].mxu0
      %v3284 = vadd.f32 0.0, %v3283
      %v3285 = vpop.f32.mrb[0].mxu0
      %3286 = vmatprep.mubr.bf16.mxu0 0
      %3287 = vmatmul.mubr.bf16.gmra.mrb[0].mxu0 %v3194
      %v3288 = vpop.f32.mrb[0].mxu0
      %v3289 = vadd.f32 0.0, %v3288
      %v3290 = vpop.f32.mrb[0].mxu0
      %v3291 = vpop.f32.mrb[0].mxu0
      %v3292 = vadd.f32 0.0, %v3291
      %v3293 = vpop.f32.mrb[0].mxu0
      %3294 = vmatprep.mubr.bf16.mxu0 0
      %3295 = vmatmul.mubr.bf16.gmra.mrb[0].mxu0 %v3197
      %v3296 = vpop.f32.mrb[0].mxu0
      %v3297 = vadd.f32 0.0, %v3296
      %v3298 = vpop.f32.mrb[0].mxu0
      %v3299 = vpop.f32.mrb[0].mxu0
      %v3300 = vadd.f32 0.0, %v3299
      %v3301 = vpop.f32.mrb[0].mxu0
      %3302 = vmatprep.mubr.bf16.mxu0 0
      %3303 = vmatmul.mubr.bf16.gmra.mrb[0].mxu0 %v3200
      %v3304 = vpop.f32.mrb[0].mxu0
      %v3305 = vadd.f32 0.0, %v3304
      %v3306 = vpop.f32.mrb[0].mxu0
      %v3307 = vpop.f32.mrb[0].mxu0
      %v3308 = vadd.f32 0.0, %v3307
      %v3309 = vpop.f32.mrb[0].mxu0
      %3310 = vmatprep.mubr.bf16.mxu0 0
      %3311 = vmatmul.mubr.bf16.gmra.mrb[0].mxu0 %v3203
      %v3312 = vpop.f32.mrb[0].mxu0
      %v3313 = vadd.f32 0.0, %v3312
      %v3314 = vpop.f32.mrb[0].mxu0
      %v3315 = vpop.f32.mrb[0].mxu0
      %v3316 = vadd.f32 0.0, %v3315
      %v3317 = vpop.f32.mrb[0].mxu0
      %3318 = vmatprep.mubr.bf16.mxu0 0
      %3319 = vmatmul.mubr.bf16.gmra.mrb[0].mxu0 %v3206
      %v3320 = vpop.f32.mrb[0].mxu0
      %v3321 = vadd.f32 0.0, %v3320
      %v3322 = vpop.f32.mrb[0].mxu0
      %v3323 = vpop.f32.mrb[0].mxu0
      %v3324 = vadd.f32 0.0, %v3323
      %v3325 = vpop.f32.mrb[0].mxu0
      %3326 = vmatprep.mubr.bf16.mxu0 0
      %3327 = vmatmul.mubr.bf16.gmra.mrb[0].mxu0 %v3209
      %v3328 = vpop.f32.mrb[0].mxu0
      %v3329 = vadd.f32 0.0, %v3328
      %v3330 = vpop.f32.mrb[0].mxu0
      %v3331 = vpop.f32.mrb[0].mxu0
      %v3332 = vadd.f32 0.0, %v3331
      %v3333 = vpop.f32.mrb[0].mxu0
      %3334 = vmatprep.mubr.bf16.mxu0 0
      %3335 = vmatmul.mubr.bf16.gmra.mrb[0].mxu0 %v3212
      %v3336 = vpop.f32.mrb[0].mxu0
      %v3337 = vadd.f32 0.0, %v3336
      %v3338 = vpop.f32.mrb[0].mxu0
      %v3339 = vpop.f32.mrb[0].mxu0
      %v3340 = vadd.f32 0.0, %v3339
      %v3341 = vpop.f32.mrb[0].mxu0
      %3342 = vmatprep.mubr.bf16.mxu0 0
      %3343 = vmatmul.mubr.bf16.gmra.mrb[0].mxu0 %v3215
      %v3344 = vpop.f32.mrb[0].mxu0
      %v3345 = vadd.f32 0.0, %v3344
      %v3346 = vpop.f32.mrb[0].mxu0
      %v3347 = vpop.f32.mrb[0].mxu0
      %v3348 = vadd.f32 0.0, %v3347
      %v3349 = vpop.f32.mrb[0].mxu0
      %3350 = vmatprep.mubr.bf16.mxu0 0
      %3351 = vmatmul.mubr.bf16.gmra.mrb[0].mxu0 %v3218
      %v3352 = vpop.f32.mrb[0].mxu0
      %v3353 = vadd.f32 0.0, %v3352
      %v3354 = vpop.f32.mrb[0].mxu0
      %v3355 = vpop.f32.mrb[0].mxu0
      %v3356 = vadd.f32 0.0, %v3355
      %v3357 = vpop.f32.mrb[0].mxu0
      %3358 = vmatprep.mubr.bf16.mxu0 0
      %3359 = vmatmul.mubr.bf16.gmra.mrb[0].mxu0 %v3221
      %v3360 = vpop.f32.mrb[0].mxu0
      %v3361 = vadd.f32 0.0, %v3360
      %v3362 = vpop.f32.mrb[0].mxu0
      %v3363 = vpop.f32.mrb[0].mxu0
      %v3364 = vadd.f32 0.0, %v3363
      %v3365 = vpop.f32.mrb[0].mxu0
      %3366 = vmatprep.mubr.bf16.mxu0 0
      %3367 = vmatmul.mubr.bf16.gmra.mrb[0].mxu0 %v3224
      %v3368 = vpop.f32.mrb[0].mxu0
      %v3369 = vadd.f32 0.0, %v3368
      %v3370 = vpop.f32.mrb[0].mxu0
      %v3371 = vpop.f32.mrb[0].mxu0
      %v3372 = vadd.f32 0.0, %v3371
      %v3373 = vpop.f32.mrb[0].mxu0
      %3374 = vmatprep.mubr.bf16.mxu0 0
      %3375 = vmatmul.mubr.bf16.gmra.mrb[0].mxu0 %v3227
      %v3376 = vpop.f32.mrb[0].mxu0
      %v3377 = vadd.f32 0.0, %v3376
      %v3378 = vpop.f32.mrb[0].mxu0
      %v3379 = vpop.f32.mrb[0].mxu0
      %v3380 = vadd.f32 0.0, %v3379
      %v3381 = vpop.f32.mrb[0].mxu0
      %3382 = vmatprep.mubr.bf16.mxu0 0
      %3383 = vmatmul.mubr.bf16.gmra.mrb[0].mxu0 %v3230
      %v3384 = vpop.f32.mrb[0].mxu0
      %v3385 = vadd.f32 0.0, %v3384
      %v3386 = vpop.f32.mrb[0].mxu0
      %v3387 = vpop.f32.mrb[0].mxu0
      %v3388 = vadd.f32 0.0, %v3387
      %v3389 = vpop.f32.mrb[0].mxu0
      %3390 = vmatprep.mubr.bf16.mxu0 0
      %3391 = vmatmul.mubr.bf16.gmra.mrb[0].mxu0 %v3233
      %v3392 = vpop.f32.mrb[0].mxu0
      %v3393 = vadd.f32 0.0, %v3392
      %v3394 = vpop.f32.mrb[0].mxu0
      %v3395 = vpop.f32.mrb[0].mxu0
      %v3396 = vadd.f32 0.0, %v3395
      %v3397 = vpop.f32.mrb[0].mxu0
      %3398 = vdwg.mxu0
      %v3399 = vadd.f32 %v3142, %v3273
      %v3400 = vadd.f32 %v3143, %v3276
      %v3401 = vadd.f32 %v3144, %v3281
      %v3402 = vadd.f32 %v3145, %v3284
      %v3403 = vadd.f32 %v3146, %v3289
      %v3404 = vadd.f32 %v3147, %v3292
      %v3405 = vadd.f32 %v3148, %v3297
      %v3406 = vadd.f32 %v3149, %v3300
      %v3407 = vadd.f32 %v3150, %v3305
      %v3408 = vadd.f32 %v3151, %v3308
      %v3409 = vadd.f32 %v3152, %v3313
      %v3410 = vadd.f32 %v3153, %v3316
      %v3411 = vadd.f32 %v3154, %v3321
      %v3412 = vadd.f32 %v3155, %v3324
      %v3413 = vadd.f32 %v3156, %v3329
      %v3414 = vadd.f32 %v3157, %v3332
      %v3415 = vadd.f32 %v3158, %v3337
      %v3416 = vadd.f32 %v3159, %v3340
      %v3417 = vadd.f32 %v3160, %v3345
      %v3418 = vadd.f32 %v3161, %v3348
      %v3419 = vadd.f32 %v3162, %v3353
      %v3420 = vadd.f32 %v3163, %v3356
      %v3421 = vadd.f32 %v3164, %v3361
      %v3422 = vadd.f32 %v3165, %v3364
      %v3423 = vadd.f32 %v3166, %v3369
      %v3424 = vadd.f32 %v3167, %v3372
      %v3425 = vadd.f32 %v3168, %v3377
      %v3426 = vadd.f32 %v3169, %v3380
      %v3427 = vadd.f32 %v3170, %v3385
      %v3428 = vadd.f32 %v3171, %v3388
      %v3429 = vadd.f32 %v3172, %v3393
      %v3430 = vadd.f32 %v3173, %v3396
      %3431 = vst.msk [vmem:[#allocation4] sm:$0xff] %vm1383, %v3399
      %3432 = vst.msk [vmem:[#allocation4 + $0x8] sm:$0xff] %vm1383, %v3400
      %3433 = vst.msk [vmem:[#allocation4 + $0x10] sm:$0xff] %vm1383, %v3401
      %3434 = vst.msk [vmem:[#allocation4 + $0x18] sm:$0xff] %vm1383, %v3402
      %3435 = vst.msk [vmem:[#allocation4 + $0x20] sm:$0xff] %vm1383, %v3403
      %3436 = vst.msk [vmem:[#allocation4 + $0x28] sm:$0xff] %vm1383, %v3404
      %3437 = vst.msk [vmem:[#allocation4 + $0x30] sm:$0xff] %vm1383, %v3405
      %3438 = vst.msk [vmem:[#allocation4 + $0x38] sm:$0xff] %vm1383, %v3406
      %3439 = vst.msk [vmem:[#allocation4 + $0x40] sm:$0xff] %vm1383, %v3407
      %3440 = vst.msk [vmem:[#allocation4 + $0x48] sm:$0xff] %vm1383, %v3408
      %3441 = vst.msk [vmem:[#allocation4 + $0x50] sm:$0xff] %vm1383, %v3409
      %3442 = vst.msk [vmem:[#allocation4 + $0x58] sm:$0xff] %vm1383, %v3410
      %3443 = vst.msk [vmem:[#allocation4 + $0x60] sm:$0xff] %vm1383, %v3411
      %3444 = vst.msk [vmem:[#allocation4 + $0x68] sm:$0xff] %vm1383, %v3412
      %3445 = vst.msk [vmem:[#allocation4 + $0x70] sm:$0xff] %vm1383, %v3413
      %3446 = vst.msk [vmem:[#allocation4 + $0x78] sm:$0xff] %vm1383, %v3414
      %3447 = vst.msk [vmem:[#allocation4 + $0x80] sm:$0xff] %vm1383, %v3415
      %3448 = vst.msk [vmem:[#allocation4 + $0x88] sm:$0xff] %vm1383, %v3416
      %3449 = vst.msk [vmem:[#allocation4 + $0x90] sm:$0xff] %vm1383, %v3417
      %3450 = vst.msk [vmem:[#allocation4 + $0x98] sm:$0xff] %vm1383, %v3418
      %3451 = vst.msk [vmem:[#allocation4 + $0xa0] sm:$0xff] %vm1383, %v3419
      %3452 = vst.msk [vmem:[#allocation4 + $0xa8] sm:$0xff] %vm1383, %v3420
      %3453 = vst.msk [vmem:[#allocation4 + $0xb0] sm:$0xff] %vm1383, %v3421
      %3454 = vst.msk [vmem:[#allocation4 + $0xb8] sm:$0xff] %vm1383, %v3422
      %3455 = vst.msk [vmem:[#allocation4 + $0xc0] sm:$0xff] %vm1383, %v3423
      %3456 = vst.msk [vmem:[#allocation4 + $0xc8] sm:$0xff] %vm1383, %v3424
      %3457 = vst.msk [vmem:[#allocation4 + $0xd0] sm:$0xff] %vm1383, %v3425
      %3458 = vst.msk [vmem:[#allocation4 + $0xd8] sm:$0xff] %vm1383, %v3426
      %3459 = vst.msk [vmem:[#allocation4 + $0xe0] sm:$0xff] %vm1383, %v3427
      %3460 = vst.msk [vmem:[#allocation4 + $0xe8] sm:$0xff] %vm1383, %v3428
      %3461 = vst.msk [vmem:[#allocation4 + $0xf0] sm:$0xff] %vm1383, %v3429
      %3462 = vst.msk [vmem:[#allocation4 + $0xf8] sm:$0xff] %vm1383, %v3430
      %v3463 = vld [vmem:[%s1713] sm:$0xff]
      %v3464 = vld [vmem:[%s1713 + $0x8] sm:$0xff]
      %v3465 = vld [vmem:[%s1713 + $0x10] sm:$0xff]
      %v3466 = vld [vmem:[%s1713 + $0x18] sm:$0xff]
      %v3467 = vld [vmem:[%s1713 + $0x20] sm:$0xff]
      %v3468 = vld [vmem:[%s1713 + $0x28] sm:$0xff]
      %v3469 = vld [vmem:[%s1713 + $0x30] sm:$0xff]
      %v3470 = vld [vmem:[%s1713 + $0x38] sm:$0xff]
      %v3471 = vld [vmem:[%s1713 + $0x40] sm:$0xff]
      %v3472 = vld [vmem:[%s1713 + $0x48] sm:$0xff]
      %v3473 = vld [vmem:[%s1713 + $0x50] sm:$0xff]
      %v3474 = vld [vmem:[%s1713 + $0x58] sm:$0xff]
      %v3475 = vld [vmem:[%s1713 + $0x60] sm:$0xff]
      %v3476 = vld [vmem:[%s1713 + $0x68] sm:$0xff]
      %v3477 = vld [vmem:[%s1713 + $0x70] sm:$0xff]
      %v3478 = vld [vmem:[%s1713 + $0x78] sm:$0xff]
      %v3479 = vld [vmem:[#allocation4] sm:$0xff]
      %v3480 = vld [vmem:[#allocation4 + $0x8] sm:$0xff]
      %v3481 = vld [vmem:[#allocation4 + $0x10] sm:$0xff]
      %v3482 = vld [vmem:[#allocation4 + $0x18] sm:$0xff]
      %v3483 = vld [vmem:[#allocation4 + $0x20] sm:$0xff]
      %v3484 = vld [vmem:[#allocation4 + $0x28] sm:$0xff]
      %v3485 = vld [vmem:[#allocation4 + $0x30] sm:$0xff]
      %v3486 = vld [vmem:[#allocation4 + $0x38] sm:$0xff]
      %v3487 = vld [vmem:[#allocation4 + $0x40] sm:$0xff]
      %v3488 = vld [vmem:[#allocation4 + $0x48] sm:$0xff]
      %v3489 = vld [vmem:[#allocation4 + $0x50] sm:$0xff]
      %v3490 = vld [vmem:[#allocation4 + $0x58] sm:$0xff]
      %v3491 = vld [vmem:[#allocation4 + $0x60] sm:$0xff]
      %v3492 = vld [vmem:[#allocation4 + $0x68] sm:$0xff]
      %v3493 = vld [vmem:[#allocation4 + $0x70] sm:$0xff]
      %v3494 = vld [vmem:[#allocation4 + $0x78] sm:$0xff]
      %v3495 = vld [vmem:[#allocation4 + $0x80] sm:$0xff]
      %v3496 = vld [vmem:[#allocation4 + $0x88] sm:$0xff]
      %v3497 = vld [vmem:[#allocation4 + $0x90] sm:$0xff]
      %v3498 = vld [vmem:[#allocation4 + $0x98] sm:$0xff]
      %v3499 = vld [vmem:[#allocation4 + $0xa0] sm:$0xff]
      %v3500 = vld [vmem:[#allocation4 + $0xa8] sm:$0xff]
      %v3501 = vld [vmem:[#allocation4 + $0xb0] sm:$0xff]
      %v3502 = vld [vmem:[#allocation4 + $0xb8] sm:$0xff]
      %v3503 = vld [vmem:[#allocation4 + $0xc0] sm:$0xff]
      %v3504 = vld [vmem:[#allocation4 + $0xc8] sm:$0xff]
      %v3505 = vld [vmem:[#allocation4 + $0xd0] sm:$0xff]
      %v3506 = vld [vmem:[#allocation4 + $0xd8] sm:$0xff]
      %v3507 = vld [vmem:[#allocation4 + $0xe0] sm:$0xff]
      %v3508 = vld [vmem:[#allocation4 + $0xe8] sm:$0xff]
      %v3509 = vld [vmem:[#allocation4 + $0xf0] sm:$0xff]
      %v3510 = vld [vmem:[#allocation4 + $0xf8] sm:$0xff]
      %s3511 = scalar_lea.vmem %s6, 60
      %v3512 = vld [vmem:[%s3511] sm:$0xf]
      %v3513 = vld [vmem:[%s3511 + $0x4] sm:$0xf]
      %v3514 = vld [vmem:[%s3511 + $0x8] sm:$0xf]
      %v3518 = vunpack.c.l.b16 %v3512
      %v3519 = vunpack.c.l.b16 %v3513
      %v3520 = vunpack.c.l.b16 %v3514
      %v3521 = vpack.c.b16 %v3519, %v3518
      %v3522 = vpack.c.b16 %v3520, %v3520
      %v3525 = vsel %vm1612, %v3463, 0
      %v3528 = vsel %vm1612, %v3464, 0
      %v3531 = vsel %vm1612, %v3465, 0
      %v3534 = vsel %vm1612, %v3466, 0
      %v3537 = vsel %vm1612, %v3467, 0
      %v3540 = vsel %vm1612, %v3468, 0
      %v3543 = vsel %vm1612, %v3469, 0
      %v3546 = vsel %vm1612, %v3470, 0
      %v3549 = vsel %vm1612, %v3471, 0
      %v3552 = vsel %vm1612, %v3472, 0
      %v3555 = vsel %vm1612, %v3473, 0
      %v3558 = vsel %vm1612, %v3474, 0
      %v3561 = vsel %vm1612, %v3475, 0
      %v3564 = vsel %vm1612, %v3476, 0
      %v3567 = vsel %vm1612, %v3477, 0
      %v3570 = vsel %vm1612, %v3478, 0
      %v3573 = vsel %vm1884, %v3522, 0
      %3575 = vmatprep.subr.bf16.mxu0 0
      %3576 = vmatpush1.bf16.msra.mxu0 %v3521
      %3577 = vmatprep.subr.bf16.mxu0 0
      %3578 = vmatpush1.bf16.msra.mxu0 %v3573
      %3579 = vmatprep.subr.bf16.mxu0 0
      %3580 = vmatpush1.bf16.msra.mxu0 0
      %3581 = vmatprep.subr.bf16.mxu0 0
      %3582 = vmatpush1.bf16.msra.mxu0 0
      %3583 = vmatprep.subr.bf16.mxu0 0
      %3584 = vmatpush1.bf16.msra.mxu0 0
      %3585 = vmatprep.subr.bf16.mxu0 0
      %3586 = vmatpush1.bf16.msra.mxu0 0
      %3587 = vmatprep.subr.bf16.mxu0 0
      %3588 = vmatpush1.bf16.msra.mxu0 0
      %3589 = vmatprep.subr.bf16.mxu0 0
      %3590 = vmatpush1.bf16.msra.mxu0 0
      %3591 = vmatprep.subr.bf16.mxu0 0
      %3592 = vmatpush1.bf16.msra.mxu0 0
      %3593 = vmatprep.subr.bf16.mxu0 0
      %3594 = vmatpush1.bf16.msra.mxu0 0
      %3595 = vmatprep.subr.bf16.mxu0 0
      %3596 = vmatpush1.bf16.msra.mxu0 0
      %3597 = vmatprep.subr.bf16.mxu0 0
      %3598 = vmatpush1.bf16.msra.mxu0 0
      %3599 = vmatprep.subr.bf16.mxu0 0
      %3600 = vmatpush1.bf16.msra.mxu0 0
      %3601 = vmatprep.subr.bf16.mxu0 0
      %3602 = vmatpush1.bf16.msra.mxu0 0
      %3603 = vmatprep.subr.bf16.mxu0 0
      %3604 = vmatpush1.bf16.msra.mxu0 0
      %3605 = vmatprep.subr.bf16.mxu0 0
      %3606 = vmatpush1.bf16.msra.mxu0 0
      %3607 = vmatprep.mubr.bf16.mxu0 0
      %3608 = vmatmul.mubr.bf16.gmra.mrb[0].mxu0 %v3525
      %v3609 = vpop.f32.mrb[0].mxu0
      %v3610 = vadd.f32 0.0, %v3609
      %v3611 = vpop.f32.mrb[0].mxu0
      %v3612 = vpop.f32.mrb[0].mxu0
      %v3613 = vadd.f32 0.0, %v3612
      %v3614 = vpop.f32.mrb[0].mxu0
      %3615 = vmatprep.mubr.bf16.mxu0 0
      %3616 = vmatmul.mubr.bf16.gmra.mrb[0].mxu0 %v3528
      %v3617 = vpop.f32.mrb[0].mxu0
      %v3618 = vadd.f32 0.0, %v3617
      %v3619 = vpop.f32.mrb[0].mxu0
      %v3620 = vpop.f32.mrb[0].mxu0
      %v3621 = vadd.f32 0.0, %v3620
      %v3622 = vpop.f32.mrb[0].mxu0
      %3623 = vmatprep.mubr.bf16.mxu0 0
      %3624 = vmatmul.mubr.bf16.gmra.mrb[0].mxu0 %v3531
      %v3625 = vpop.f32.mrb[0].mxu0
      %v3626 = vadd.f32 0.0, %v3625
      %v3627 = vpop.f32.mrb[0].mxu0
      %v3628 = vpop.f32.mrb[0].mxu0
      %v3629 = vadd.f32 0.0, %v3628
      %v3630 = vpop.f32.mrb[0].mxu0
      %3631 = vmatprep.mubr.bf16.mxu0 0
      %3632 = vmatmul.mubr.bf16.gmra.mrb[0].mxu0 %v3534
      %v3633 = vpop.f32.mrb[0].mxu0
      %v3634 = vadd.f32 0.0, %v3633
      %v3635 = vpop.f32.mrb[0].mxu0
      %v3636 = vpop.f32.mrb[0].mxu0
      %v3637 = vadd.f32 0.0, %v3636
      %v3638 = vpop.f32.mrb[0].mxu0
      %3639 = vmatprep.mubr.bf16.mxu0 0
      %3640 = vmatmul.mubr.bf16.gmra.mrb[0].mxu0 %v3537
      %v3641 = vpop.f32.mrb[0].mxu0
      %v3642 = vadd.f32 0.0, %v3641
      %v3643 = vpop.f32.mrb[0].mxu0
      %v3644 = vpop.f32.mrb[0].mxu0
      %v3645 = vadd.f32 0.0, %v3644
      %v3646 = vpop.f32.mrb[0].mxu0
      %3647 = vmatprep.mubr.bf16.mxu0 0
      %3648 = vmatmul.mubr.bf16.gmra.mrb[0].mxu0 %v3540
      %v3649 = vpop.f32.mrb[0].mxu0
      %v3650 = vadd.f32 0.0, %v3649
      %v3651 = vpop.f32.mrb[0].mxu0
      %v3652 = vpop.f32.mrb[0].mxu0
      %v3653 = vadd.f32 0.0, %v3652
      %v3654 = vpop.f32.mrb[0].mxu0
      %3655 = vmatprep.mubr.bf16.mxu0 0
      %3656 = vmatmul.mubr.bf16.gmra.mrb[0].mxu0 %v3543
      %v3657 = vpop.f32.mrb[0].mxu0
      %v3658 = vadd.f32 0.0, %v3657
      %v3659 = vpop.f32.mrb[0].mxu0
      %v3660 = vpop.f32.mrb[0].mxu0
      %v3661 = vadd.f32 0.0, %v3660
      %v3662 = vpop.f32.mrb[0].mxu0
      %3663 = vmatprep.mubr.bf16.mxu0 0
      %3664 = vmatmul.mubr.bf16.gmra.mrb[0].mxu0 %v3546
      %v3665 = vpop.f32.mrb[0].mxu0
      %v3666 = vadd.f32 0.0, %v3665
      %v3667 = vpop.f32.mrb[0].mxu0
      %v3668 = vpop.f32.mrb[0].mxu0
      %v3669 = vadd.f32 0.0, %v3668
      %v3670 = vpop.f32.mrb[0].mxu0
      %3671 = vmatprep.mubr.bf16.mxu0 0
      %3672 = vmatmul.mubr.bf16.gmra.mrb[0].mxu0 %v3549
      %v3673 = vpop.f32.mrb[0].mxu0
      %v3674 = vadd.f32 0.0, %v3673
      %v3675 = vpop.f32.mrb[0].mxu0
      %v3676 = vpop.f32.mrb[0].mxu0
      %v3677 = vadd.f32 0.0, %v3676
      %v3678 = vpop.f32.mrb[0].mxu0
      %3679 = vmatprep.mubr.bf16.mxu0 0
      %3680 = vmatmul.mubr.bf16.gmra.mrb[0].mxu0 %v3552
      %v3681 = vpop.f32.mrb[0].mxu0
      %v3682 = vadd.f32 0.0, %v3681
      %v3683 = vpop.f32.mrb[0].mxu0
      %v3684 = vpop.f32.mrb[0].mxu0
      %v3685 = vadd.f32 0.0, %v3684
      %v3686 = vpop.f32.mrb[0].mxu0
      %3687 = vmatprep.mubr.bf16.mxu0 0
      %3688 = vmatmul.mubr.bf16.gmra.mrb[0].mxu0 %v3555
      %v3689 = vpop.f32.mrb[0].mxu0
      %v3690 = vadd.f32 0.0, %v3689
      %v3691 = vpop.f32.mrb[0].mxu0
      %v3692 = vpop.f32.mrb[0].mxu0
      %v3693 = vadd.f32 0.0, %v3692
      %v3694 = vpop.f32.mrb[0].mxu0
      %3695 = vmatprep.mubr.bf16.mxu0 0
      %3696 = vmatmul.mubr.bf16.gmra.mrb[0].mxu0 %v3558
      %v3697 = vpop.f32.mrb[0].mxu0
      %v3698 = vadd.f32 0.0, %v3697
      %v3699 = vpop.f32.mrb[0].mxu0
      %v3700 = vpop.f32.mrb[0].mxu0
      %v3701 = vadd.f32 0.0, %v3700
      %v3702 = vpop.f32.mrb[0].mxu0
      %3703 = vmatprep.mubr.bf16.mxu0 0
      %3704 = vmatmul.mubr.bf16.gmra.mrb[0].mxu0 %v3561
      %v3705 = vpop.f32.mrb[0].mxu0
      %v3706 = vadd.f32 0.0, %v3705
      %v3707 = vpop.f32.mrb[0].mxu0
      %v3708 = vpop.f32.mrb[0].mxu0
      %v3709 = vadd.f32 0.0, %v3708
      %v3710 = vpop.f32.mrb[0].mxu0
      %3711 = vmatprep.mubr.bf16.mxu0 0
      %3712 = vmatmul.mubr.bf16.gmra.mrb[0].mxu0 %v3564
      %v3713 = vpop.f32.mrb[0].mxu0
      %v3714 = vadd.f32 0.0, %v3713
      %v3715 = vpop.f32.mrb[0].mxu0
      %v3716 = vpop.f32.mrb[0].mxu0
      %v3717 = vadd.f32 0.0, %v3716
      %v3718 = vpop.f32.mrb[0].mxu0
      %3719 = vmatprep.mubr.bf16.mxu0 0
      %3720 = vmatmul.mubr.bf16.gmra.mrb[0].mxu0 %v3567
      %v3721 = vpop.f32.mrb[0].mxu0
      %v3722 = vadd.f32 0.0, %v3721
      %v3723 = vpop.f32.mrb[0].mxu0
      %v3724 = vpop.f32.mrb[0].mxu0
      %v3725 = vadd.f32 0.0, %v3724
      %v3726 = vpop.f32.mrb[0].mxu0
      %3727 = vmatprep.mubr.bf16.mxu0 0
      %3728 = vmatmul.mubr.bf16.gmra.mrb[0].mxu0 %v3570
      %v3729 = vpop.f32.mrb[0].mxu0
      %v3730 = vadd.f32 0.0, %v3729
      %v3731 = vpop.f32.mrb[0].mxu0
      %v3732 = vpop.f32.mrb[0].mxu0
      %v3733 = vadd.f32 0.0, %v3732
      %v3734 = vpop.f32.mrb[0].mxu0
      %3735 = vdwg.mxu0
      %v3736 = vadd.f32 %v3479, %v3610
      %v3737 = vadd.f32 %v3480, %v3613
      %v3738 = vadd.f32 %v3481, %v3618
      %v3739 = vadd.f32 %v3482, %v3621
      %v3740 = vadd.f32 %v3483, %v3626
      %v3741 = vadd.f32 %v3484, %v3629
      %v3742 = vadd.f32 %v3485, %v3634
      %v3743 = vadd.f32 %v3486, %v3637
      %v3744 = vadd.f32 %v3487, %v3642
      %v3745 = vadd.f32 %v3488, %v3645
      %v3746 = vadd.f32 %v3489, %v3650
      %v3747 = vadd.f32 %v3490, %v3653
      %v3748 = vadd.f32 %v3491, %v3658
      %v3749 = vadd.f32 %v3492, %v3661
      %v3750 = vadd.f32 %v3493, %v3666
      %v3751 = vadd.f32 %v3494, %v3669
      %v3752 = vadd.f32 %v3495, %v3674
      %v3753 = vadd.f32 %v3496, %v3677
      %v3754 = vadd.f32 %v3497, %v3682
      %v3755 = vadd.f32 %v3498, %v3685
      %v3756 = vadd.f32 %v3499, %v3690
      %v3757 = vadd.f32 %v3500, %v3693
      %v3758 = vadd.f32 %v3501, %v3698
      %v3759 = vadd.f32 %v3502, %v3701
      %v3760 = vadd.f32 %v3503, %v3706
      %v3761 = vadd.f32 %v3504, %v3709
      %v3762 = vadd.f32 %v3505, %v3714
      %v3763 = vadd.f32 %v3506, %v3717
      %v3764 = vadd.f32 %v3507, %v3722
      %v3765 = vadd.f32 %v3508, %v3725
      %v3766 = vadd.f32 %v3509, %v3730
      %v3767 = vadd.f32 %v3510, %v3733
      %3768 = vst.msk [vmem:[#allocation4] sm:$0xff] %vm1383, %v3736
      %3769 = vst.msk [vmem:[#allocation4 + $0x8] sm:$0xff] %vm1383, %v3737
      %3770 = vst.msk [vmem:[#allocation4 + $0x10] sm:$0xff] %vm1383, %v3738
      %3771 = vst.msk [vmem:[#allocation4 + $0x18] sm:$0xff] %vm1383, %v3739
      %3772 = vst.msk [vmem:[#allocation4 + $0x20] sm:$0xff] %vm1383, %v3740
      %3773 = vst.msk [vmem:[#allocation4 + $0x28] sm:$0xff] %vm1383, %v3741
      %3774 = vst.msk [vmem:[#allocation4 + $0x30] sm:$0xff] %vm1383, %v3742
      %3775 = vst.msk [vmem:[#allocation4 + $0x38] sm:$0xff] %vm1383, %v3743
      %3776 = vst.msk [vmem:[#allocation4 + $0x40] sm:$0xff] %vm1383, %v3744
      %3777 = vst.msk [vmem:[#allocation4 + $0x48] sm:$0xff] %vm1383, %v3745
      %3778 = vst.msk [vmem:[#allocation4 + $0x50] sm:$0xff] %vm1383, %v3746
      %3779 = vst.msk [vmem:[#allocation4 + $0x58] sm:$0xff] %vm1383, %v3747
      %3780 = vst.msk [vmem:[#allocation4 + $0x60] sm:$0xff] %vm1383, %v3748
      %3781 = vst.msk [vmem:[#allocation4 + $0x68] sm:$0xff] %vm1383, %v3749
      %3782 = vst.msk [vmem:[#allocation4 + $0x70] sm:$0xff] %vm1383, %v3750
      %3783 = vst.msk [vmem:[#allocation4 + $0x78] sm:$0xff] %vm1383, %v3751
      %3784 = vst.msk [vmem:[#allocation4 + $0x80] sm:$0xff] %vm1383, %v3752
      %3785 = vst.msk [vmem:[#allocation4 + $0x88] sm:$0xff] %vm1383, %v3753
      %3786 = vst.msk [vmem:[#allocation4 + $0x90] sm:$0xff] %vm1383, %v3754
      %3787 = vst.msk [vmem:[#allocation4 + $0x98] sm:$0xff] %vm1383, %v3755
      %3788 = vst.msk [vmem:[#allocation4 + $0xa0] sm:$0xff] %vm1383, %v3756
      %3789 = vst.msk [vmem:[#allocation4 + $0xa8] sm:$0xff] %vm1383, %v3757
      %3790 = vst.msk [vmem:[#allocation4 + $0xb0] sm:$0xff] %vm1383, %v3758
      %3791 = vst.msk [vmem:[#allocation4 + $0xb8] sm:$0xff] %vm1383, %v3759
      %3792 = vst.msk [vmem:[#allocation4 + $0xc0] sm:$0xff] %vm1383, %v3760
      %3793 = vst.msk [vmem:[#allocation4 + $0xc8] sm:$0xff] %vm1383, %v3761
      %3794 = vst.msk [vmem:[#allocation4 + $0xd0] sm:$0xff] %vm1383, %v3762
      %3795 = vst.msk [vmem:[#allocation4 + $0xd8] sm:$0xff] %vm1383, %v3763
      %3796 = vst.msk [vmem:[#allocation4 + $0xe0] sm:$0xff] %vm1383, %v3764
      %3797 = vst.msk [vmem:[#allocation4 + $0xe8] sm:$0xff] %vm1383, %v3765
      %3798 = vst.msk [vmem:[#allocation4 + $0xf0] sm:$0xff] %vm1383, %v3766
      %3799 = vst.msk [vmem:[#allocation4 + $0xf8] sm:$0xff] %vm1383, %v3767
      %s3800 = scalar_lea.vmem [#allocation2], 16
      %v3801 = vld [vmem:[%s3800] sm:$0xff]
      %v3802 = vld [vmem:[%s3800 + $0x8] sm:$0xff]
      %v3803 = vld [vmem:[%s3800 + $0x10] sm:$0xff]
      %v3804 = vld [vmem:[%s3800 + $0x18] sm:$0xff]
      %v3805 = vld [vmem:[%s3800 + $0x20] sm:$0xff]
      %v3806 = vld [vmem:[%s3800 + $0x28] sm:$0xff]
      %v3807 = vld [vmem:[%s3800 + $0x30] sm:$0xff]
      %v3808 = vld [vmem:[%s3800 + $0x38] sm:$0xff]
      %v3809 = vld [vmem:[%s3800 + $0x40] sm:$0xff]
      %v3810 = vld [vmem:[%s3800 + $0x48] sm:$0xff]
      %v3811 = vld [vmem:[%s3800 + $0x50] sm:$0xff]
      %v3812 = vld [vmem:[%s3800 + $0x58] sm:$0xff]
      %v3813 = vld [vmem:[%s3800 + $0x60] sm:$0xff]
      %v3814 = vld [vmem:[%s3800 + $0x68] sm:$0xff]
      %v3815 = vld [vmem:[%s3800 + $0x70] sm:$0xff]
      %v3816 = vld [vmem:[%s3800 + $0x78] sm:$0xff]
      %v3817 = vld [vmem:[#allocation4] sm:$0xff]
      %v3818 = vld [vmem:[#allocation4 + $0x8] sm:$0xff]
      %v3819 = vld [vmem:[#allocation4 + $0x10] sm:$0xff]
      %v3820 = vld [vmem:[#allocation4 + $0x18] sm:$0xff]
      %v3821 = vld [vmem:[#allocation4 + $0x20] sm:$0xff]
      %v3822 = vld [vmem:[#allocation4 + $0x28] sm:$0xff]
      %v3823 = vld [vmem:[#allocation4 + $0x30] sm:$0xff]
      %v3824 = vld [vmem:[#allocation4 + $0x38] sm:$0xff]
      %v3825 = vld [vmem:[#allocation4 + $0x40] sm:$0xff]
      %v3826 = vld [vmem:[#allocation4 + $0x48] sm:$0xff]
      %v3827 = vld [vmem:[#allocation4 + $0x50] sm:$0xff]
      %v3828 = vld [vmem:[#allocation4 + $0x58] sm:$0xff]
      %v3829 = vld [vmem:[#allocation4 + $0x60] sm:$0xff]
      %v3830 = vld [vmem:[#allocation4 + $0x68] sm:$0xff]
      %v3831 = vld [vmem:[#allocation4 + $0x70] sm:$0xff]
      %v3832 = vld [vmem:[#allocation4 + $0x78] sm:$0xff]
      %v3833 = vld [vmem:[#allocation4 + $0x80] sm:$0xff]
      %v3834 = vld [vmem:[#allocation4 + $0x88] sm:$0xff]
      %v3835 = vld [vmem:[#allocation4 + $0x90] sm:$0xff]
      %v3836 = vld [vmem:[#allocation4 + $0x98] sm:$0xff]
      %v3837 = vld [vmem:[#allocation4 + $0xa0] sm:$0xff]
      %v3838 = vld [vmem:[#allocation4 + $0xa8] sm:$0xff]
      %v3839 = vld [vmem:[#allocation4 + $0xb0] sm:$0xff]
      %v3840 = vld [vmem:[#allocation4 + $0xb8] sm:$0xff]
      %v3841 = vld [vmem:[#allocation4 + $0xc0] sm:$0xff]
      %v3842 = vld [vmem:[#allocation4 + $0xc8] sm:$0xff]
      %v3843 = vld [vmem:[#allocation4 + $0xd0] sm:$0xff]
      %v3844 = vld [vmem:[#allocation4 + $0xd8] sm:$0xff]
      %v3845 = vld [vmem:[#allocation4 + $0xe0] sm:$0xff]
      %v3846 = vld [vmem:[#allocation4 + $0xe8] sm:$0xff]
      %v3847 = vld [vmem:[#allocation4 + $0xf0] sm:$0xff]
      %v3848 = vld [vmem:[#allocation4 + $0xf8] sm:$0xff]
      %s3849 = scalar_lea.vmem %s6, 72
      %v3850 = vld [vmem:[%s3849] sm:$0xf]
      %v3851 = vld [vmem:[%s3849 + $0x4] sm:$0xf]
      %v3852 = vld [vmem:[%s3849 + $0x8] sm:$0xf]
      %v3856 = vunpack.c.l.b16 %v3850
      %v3857 = vunpack.c.l.b16 %v3851
      %v3858 = vunpack.c.l.b16 %v3852
      %v3859 = vpack.c.b16 %v3857, %v3856
      %v3860 = vpack.c.b16 %v3858, %v3858
      %v3863 = vsel %vm1612, %v3801, 0
      %v3866 = vsel %vm1612, %v3802, 0
      %v3869 = vsel %vm1612, %v3803, 0
      %v3872 = vsel %vm1612, %v3804, 0
      %v3875 = vsel %vm1612, %v3805, 0
      %v3878 = vsel %vm1612, %v3806, 0
      %v3881 = vsel %vm1612, %v3807, 0
      %v3884 = vsel %vm1612, %v3808, 0
      %v3887 = vsel %vm1612, %v3809, 0
      %v3890 = vsel %vm1612, %v3810, 0
      %v3893 = vsel %vm1612, %v3811, 0
      %v3896 = vsel %vm1612, %v3812, 0
      %v3899 = vsel %vm1612, %v3813, 0
      %v3902 = vsel %vm1612, %v3814, 0
      %v3905 = vsel %vm1612, %v3815, 0
      %v3908 = vsel %vm1612, %v3816, 0
      %v3911 = vsel %vm1884, %v3860, 0
      %3913 = vmatprep.subr.bf16.mxu0 0
      %3914 = vmatpush1.bf16.msra.mxu0 %v3859
      %3915 = vmatprep.subr.bf16.mxu0 0
      %3916 = vmatpush1.bf16.msra.mxu0 %v3911
      %3917 = vmatprep.subr.bf16.mxu0 0
      %3918 = vmatpush1.bf16.msra.mxu0 0
      %3919 = vmatprep.subr.bf16.mxu0 0
      %3920 = vmatpush1.bf16.msra.mxu0 0
      %3921 = vmatprep.subr.bf16.mxu0 0
      %3922 = vmatpush1.bf16.msra.mxu0 0
      %3923 = vmatprep.subr.bf16.mxu0 0
      %3924 = vmatpush1.bf16.msra.mxu0 0
      %3925 = vmatprep.subr.bf16.mxu0 0
      %3926 = vmatpush1.bf16.msra.mxu0 0
      %3927 = vmatprep.subr.bf16.mxu0 0
      %3928 = vmatpush1.bf16.msra.mxu0 0
      %3929 = vmatprep.subr.bf16.mxu0 0
      %3930 = vmatpush1.bf16.msra.mxu0 0
      %3931 = vmatprep.subr.bf16.mxu0 0
      %3932 = vmatpush1.bf16.msra.mxu0 0
      %3933 = vmatprep.subr.bf16.mxu0 0
      %3934 = vmatpush1.bf16.msra.mxu0 0
      %3935 = vmatprep.subr.bf16.mxu0 0
      %3936 = vmatpush1.bf16.msra.mxu0 0
      %3937 = vmatprep.subr.bf16.mxu0 0
      %3938 = vmatpush1.bf16.msra.mxu0 0
      %3939 = vmatprep.subr.bf16.mxu0 0
      %3940 = vmatpush1.bf16.msra.mxu0 0
      %3941 = vmatprep.subr.bf16.mxu0 0
      %3942 = vmatpush1.bf16.msra.mxu0 0
      %3943 = vmatprep.subr.bf16.mxu0 0
      %3944 = vmatpush1.bf16.msra.mxu0 0
      %3945 = vmatprep.mubr.bf16.mxu0 0
      %3946 = vmatmul.mubr.bf16.gmra.mrb[0].mxu0 %v3863
      %v3947 = vpop.f32.mrb[0].mxu0
      %v3948 = vadd.f32 0.0, %v3947
      %v3949 = vpop.f32.mrb[0].mxu0
      %v3950 = vpop.f32.mrb[0].mxu0
      %v3951 = vadd.f32 0.0, %v3950
      %v3952 = vpop.f32.mrb[0].mxu0
      %3953 = vmatprep.mubr.bf16.mxu0 0
      %3954 = vmatmul.mubr.bf16.gmra.mrb[0].mxu0 %v3866
      %v3955 = vpop.f32.mrb[0].mxu0
      %v3956 = vadd.f32 0.0, %v3955
      %v3957 = vpop.f32.mrb[0].mxu0
      %v3958 = vpop.f32.mrb[0].mxu0
      %v3959 = vadd.f32 0.0, %v3958
      %v3960 = vpop.f32.mrb[0].mxu0
      %3961 = vmatprep.mubr.bf16.mxu0 0
      %3962 = vmatmul.mubr.bf16.gmra.mrb[0].mxu0 %v3869
      %v3963 = vpop.f32.mrb[0].mxu0
      %v3964 = vadd.f32 0.0, %v3963
      %v3965 = vpop.f32.mrb[0].mxu0
      %v3966 = vpop.f32.mrb[0].mxu0
      %v3967 = vadd.f32 0.0, %v3966
      %v3968 = vpop.f32.mrb[0].mxu0
      %3969 = vmatprep.mubr.bf16.mxu0 0
      %3970 = vmatmul.mubr.bf16.gmra.mrb[0].mxu0 %v3872
      %v3971 = vpop.f32.mrb[0].mxu0
      %v3972 = vadd.f32 0.0, %v3971
      %v3973 = vpop.f32.mrb[0].mxu0
      %v3974 = vpop.f32.mrb[0].mxu0
      %v3975 = vadd.f32 0.0, %v3974
      %v3976 = vpop.f32.mrb[0].mxu0
      %3977 = vmatprep.mubr.bf16.mxu0 0
      %3978 = vmatmul.mubr.bf16.gmra.mrb[0].mxu0 %v3875
      %v3979 = vpop.f32.mrb[0].mxu0
      %v3980 = vadd.f32 0.0, %v3979
      %v3981 = vpop.f32.mrb[0].mxu0
      %v3982 = vpop.f32.mrb[0].mxu0
      %v3983 = vadd.f32 0.0, %v3982
      %v3984 = vpop.f32.mrb[0].mxu0
      %3985 = vmatprep.mubr.bf16.mxu0 0
      %3986 = vmatmul.mubr.bf16.gmra.mrb[0].mxu0 %v3878
      %v3987 = vpop.f32.mrb[0].mxu0
      %v3988 = vadd.f32 0.0, %v3987
      %v3989 = vpop.f32.mrb[0].mxu0
      %v3990 = vpop.f32.mrb[0].mxu0
      %v3991 = vadd.f32 0.0, %v3990
      %v3992 = vpop.f32.mrb[0].mxu0
      %3993 = vmatprep.mubr.bf16.mxu0 0
      %3994 = vmatmul.mubr.bf16.gmra.mrb[0].mxu0 %v3881
      %v3995 = vpop.f32.mrb[0].mxu0
      %v3996 = vadd.f32 0.0, %v3995
      %v3997 = vpop.f32.mrb[0].mxu0
      %v3998 = vpop.f32.mrb[0].mxu0
      %v3999 = vadd.f32 0.0, %v3998
      %v4000 = vpop.f32.mrb[0].mxu0
      %4001 = vmatprep.mubr.bf16.mxu0 0
      %4002 = vmatmul.mubr.bf16.gmra.mrb[0].mxu0 %v3884
      %v4003 = vpop.f32.mrb[0].mxu0
      %v4004 = vadd.f32 0.0, %v4003
      %v4005 = vpop.f32.mrb[0].mxu0
      %v4006 = vpop.f32.mrb[0].mxu0
      %v4007 = vadd.f32 0.0, %v4006
      %v4008 = vpop.f32.mrb[0].mxu0
      %4009 = vmatprep.mubr.bf16.mxu0 0
      %4010 = vmatmul.mubr.bf16.gmra.mrb[0].mxu0 %v3887
      %v4011 = vpop.f32.mrb[0].mxu0
      %v4012 = vadd.f32 0.0, %v4011
      %v4013 = vpop.f32.mrb[0].mxu0
      %v4014 = vpop.f32.mrb[0].mxu0
      %v4015 = vadd.f32 0.0, %v4014
      %v4016 = vpop.f32.mrb[0].mxu0
      %4017 = vmatprep.mubr.bf16.mxu0 0
      %4018 = vmatmul.mubr.bf16.gmra.mrb[0].mxu0 %v3890
      %v4019 = vpop.f32.mrb[0].mxu0
      %v4020 = vadd.f32 0.0, %v4019
      %v4021 = vpop.f32.mrb[0].mxu0
      %v4022 = vpop.f32.mrb[0].mxu0
      %v4023 = vadd.f32 0.0, %v4022
      %v4024 = vpop.f32.mrb[0].mxu0
      %4025 = vmatprep.mubr.bf16.mxu0 0
      %4026 = vmatmul.mubr.bf16.gmra.mrb[0].mxu0 %v3893
      %v4027 = vpop.f32.mrb[0].mxu0
      %v4028 = vadd.f32 0.0, %v4027
      %v4029 = vpop.f32.mrb[0].mxu0
      %v4030 = vpop.f32.mrb[0].mxu0
      %v4031 = vadd.f32 0.0, %v4030
      %v4032 = vpop.f32.mrb[0].mxu0
      %4033 = vmatprep.mubr.bf16.mxu0 0
      %4034 = vmatmul.mubr.bf16.gmra.mrb[0].mxu0 %v3896
      %v4035 = vpop.f32.mrb[0].mxu0
      %v4036 = vadd.f32 0.0, %v4035
      %v4037 = vpop.f32.mrb[0].mxu0
      %v4038 = vpop.f32.mrb[0].mxu0
      %v4039 = vadd.f32 0.0, %v4038
      %v4040 = vpop.f32.mrb[0].mxu0
      %4041 = vmatprep.mubr.bf16.mxu0 0
      %4042 = vmatmul.mubr.bf16.gmra.mrb[0].mxu0 %v3899
      %v4043 = vpop.f32.mrb[0].mxu0
      %v4044 = vadd.f32 0.0, %v4043
      %v4045 = vpop.f32.mrb[0].mxu0
      %v4046 = vpop.f32.mrb[0].mxu0
      %v4047 = vadd.f32 0.0, %v4046
      %v4048 = vpop.f32.mrb[0].mxu0
      %4049 = vmatprep.mubr.bf16.mxu0 0
      %4050 = vmatmul.mubr.bf16.gmra.mrb[0].mxu0 %v3902
      %v4051 = vpop.f32.mrb[0].mxu0
      %v4052 = vadd.f32 0.0, %v4051
      %v4053 = vpop.f32.mrb[0].mxu0
      %v4054 = vpop.f32.mrb[0].mxu0
      %v4055 = vadd.f32 0.0, %v4054
      %v4056 = vpop.f32.mrb[0].mxu0
      %4057 = vmatprep.mubr.bf16.mxu0 0
      %4058 = vmatmul.mubr.bf16.gmra.mrb[0].mxu0 %v3905
      %v4059 = vpop.f32.mrb[0].mxu0
      %v4060 = vadd.f32 0.0, %v4059
      %v4061 = vpop.f32.mrb[0].mxu0
      %v4062 = vpop.f32.mrb[0].mxu0
      %v4063 = vadd.f32 0.0, %v4062
      %v4064 = vpop.f32.mrb[0].mxu0
      %4065 = vmatprep.mubr.bf16.mxu0 0
      %4066 = vmatmul.mubr.bf16.gmra.mrb[0].mxu0 %v3908
      %v4067 = vpop.f32.mrb[0].mxu0
      %v4068 = vadd.f32 0.0, %v4067
      %v4069 = vpop.f32.mrb[0].mxu0
      %v4070 = vpop.f32.mrb[0].mxu0
      %v4071 = vadd.f32 0.0, %v4070
      %v4072 = vpop.f32.mrb[0].mxu0
      %4073 = vdwg.mxu0
      %v4074 = vadd.f32 %v3817, %v3948
      %v4075 = vadd.f32 %v3818, %v3951
      %v4076 = vadd.f32 %v3819, %v3956
      %v4077 = vadd.f32 %v3820, %v3959
      %v4078 = vadd.f32 %v3821, %v3964
      %v4079 = vadd.f32 %v3822, %v3967
      %v4080 = vadd.f32 %v3823, %v3972
      %v4081 = vadd.f32 %v3824, %v3975
      %v4082 = vadd.f32 %v3825, %v3980
      %v4083 = vadd.f32 %v3826, %v3983
      %v4084 = vadd.f32 %v3827, %v3988
      %v4085 = vadd.f32 %v3828, %v3991
      %v4086 = vadd.f32 %v3829, %v3996
      %v4087 = vadd.f32 %v3830, %v3999
      %v4088 = vadd.f32 %v3831, %v4004
      %v4089 = vadd.f32 %v3832, %v4007
      %v4090 = vadd.f32 %v3833, %v4012
      %v4091 = vadd.f32 %v3834, %v4015
      %v4092 = vadd.f32 %v3835, %v4020
      %v4093 = vadd.f32 %v3836, %v4023
      %v4094 = vadd.f32 %v3837, %v4028
      %v4095 = vadd.f32 %v3838, %v4031
      %v4096 = vadd.f32 %v3839, %v4036
      %v4097 = vadd.f32 %v3840, %v4039
      %v4098 = vadd.f32 %v3841, %v4044
      %v4099 = vadd.f32 %v3842, %v4047
      %v4100 = vadd.f32 %v3843, %v4052
      %v4101 = vadd.f32 %v3844, %v4055
      %v4102 = vadd.f32 %v3845, %v4060
      %v4103 = vadd.f32 %v3846, %v4063
      %v4104 = vadd.f32 %v3847, %v4068
      %v4105 = vadd.f32 %v3848, %v4071
      %4106 = vst.msk [vmem:[#allocation4] sm:$0xff] %vm1383, %v4074
      %4107 = vst.msk [vmem:[#allocation4 + $0x8] sm:$0xff] %vm1383, %v4075
      %4108 = vst.msk [vmem:[#allocation4 + $0x10] sm:$0xff] %vm1383, %v4076
      %4109 = vst.msk [vmem:[#allocation4 + $0x18] sm:$0xff] %vm1383, %v4077
      %4110 = vst.msk [vmem:[#allocation4 + $0x20] sm:$0xff] %vm1383, %v4078
      %4111 = vst.msk [vmem:[#allocation4 + $0x28] sm:$0xff] %vm1383, %v4079
      %4112 = vst.msk [vmem:[#allocation4 + $0x30] sm:$0xff] %vm1383, %v4080
      %4113 = vst.msk [vmem:[#allocation4 + $0x38] sm:$0xff] %vm1383, %v4081
      %4114 = vst.msk [vmem:[#allocation4 + $0x40] sm:$0xff] %vm1383, %v4082
      %4115 = vst.msk [vmem:[#allocation4 + $0x48] sm:$0xff] %vm1383, %v4083
      %4116 = vst.msk [vmem:[#allocation4 + $0x50] sm:$0xff] %vm1383, %v4084
      %4117 = vst.msk [vmem:[#allocation4 + $0x58] sm:$0xff] %vm1383, %v4085
      %4118 = vst.msk [vmem:[#allocation4 + $0x60] sm:$0xff] %vm1383, %v4086
      %4119 = vst.msk [vmem:[#allocation4 + $0x68] sm:$0xff] %vm1383, %v4087
      %4120 = vst.msk [vmem:[#allocation4 + $0x70] sm:$0xff] %vm1383, %v4088
      %4121 = vst.msk [vmem:[#allocation4 + $0x78] sm:$0xff] %vm1383, %v4089
      %4122 = vst.msk [vmem:[#allocation4 + $0x80] sm:$0xff] %vm1383, %v4090
      %4123 = vst.msk [vmem:[#allocation4 + $0x88] sm:$0xff] %vm1383, %v4091
      %4124 = vst.msk [vmem:[#allocation4 + $0x90] sm:$0xff] %vm1383, %v4092
      %4125 = vst.msk [vmem:[#allocation4 + $0x98] sm:$0xff] %vm1383, %v4093
      %4126 = vst.msk [vmem:[#allocation4 + $0xa0] sm:$0xff] %vm1383, %v4094
      %4127 = vst.msk [vmem:[#allocation4 + $0xa8] sm:$0xff] %vm1383, %v4095
      %4128 = vst.msk [vmem:[#allocation4 + $0xb0] sm:$0xff] %vm1383, %v4096
      %4129 = vst.msk [vmem:[#allocation4 + $0xb8] sm:$0xff] %vm1383, %v4097
      %4130 = vst.msk [vmem:[#allocation4 + $0xc0] sm:$0xff] %vm1383, %v4098
      %4131 = vst.msk [vmem:[#allocation4 + $0xc8] sm:$0xff] %vm1383, %v4099
      %4132 = vst.msk [vmem:[#allocation4 + $0xd0] sm:$0xff] %vm1383, %v4100
      %4133 = vst.msk [vmem:[#allocation4 + $0xd8] sm:$0xff] %vm1383, %v4101
      %4134 = vst.msk [vmem:[#allocation4 + $0xe0] sm:$0xff] %vm1383, %v4102
      %4135 = vst.msk [vmem:[#allocation4 + $0xe8] sm:$0xff] %vm1383, %v4103
      %4136 = vst.msk [vmem:[#allocation4 + $0xf0] sm:$0xff] %vm1383, %v4104
      %4137 = vst.msk [vmem:[#allocation4 + $0xf8] sm:$0xff] %vm1383, %v4105
      %s4138 = scalar_lea.vmem [#allocation2], 160
      %v4139 = vld [vmem:[%s4138] sm:$0xff]
      %v4140 = vld [vmem:[%s4138 + $0x8] sm:$0xff]
      %v4141 = vld [vmem:[%s4138 + $0x10] sm:$0xff]
      %v4142 = vld [vmem:[%s4138 + $0x18] sm:$0xff]
      %v4143 = vld [vmem:[%s4138 + $0x20] sm:$0xff]
      %v4144 = vld [vmem:[%s4138 + $0x28] sm:$0xff]
      %v4145 = vld [vmem:[%s4138 + $0x30] sm:$0xff]
      %v4146 = vld [vmem:[%s4138 + $0x38] sm:$0xff]
      %v4147 = vld [vmem:[%s4138 + $0x40] sm:$0xff]
      %v4148 = vld [vmem:[%s4138 + $0x48] sm:$0xff]
      %v4149 = vld [vmem:[%s4138 + $0x50] sm:$0xff]
      %v4150 = vld [vmem:[%s4138 + $0x58] sm:$0xff]
      %v4151 = vld [vmem:[%s4138 + $0x60] sm:$0xff]
      %v4152 = vld [vmem:[%s4138 + $0x68] sm:$0xff]
      %v4153 = vld [vmem:[%s4138 + $0x70] sm:$0xff]
      %v4154 = vld [vmem:[%s4138 + $0x78] sm:$0xff]
      %v4155 = vld [vmem:[#allocation4] sm:$0xff]
      %v4156 = vld [vmem:[#allocation4 + $0x8] sm:$0xff]
      %v4157 = vld [vmem:[#allocation4 + $0x10] sm:$0xff]
      %v4158 = vld [vmem:[#allocation4 + $0x18] sm:$0xff]
      %v4159 = vld [vmem:[#allocation4 + $0x20] sm:$0xff]
      %v4160 = vld [vmem:[#allocation4 + $0x28] sm:$0xff]
      %v4161 = vld [vmem:[#allocation4 + $0x30] sm:$0xff]
      %v4162 = vld [vmem:[#allocation4 + $0x38] sm:$0xff]
      %v4163 = vld [vmem:[#allocation4 + $0x40] sm:$0xff]
      %v4164 = vld [vmem:[#allocation4 + $0x48] sm:$0xff]
      %v4165 = vld [vmem:[#allocation4 + $0x50] sm:$0xff]
      %v4166 = vld [vmem:[#allocation4 + $0x58] sm:$0xff]
      %v4167 = vld [vmem:[#allocation4 + $0x60] sm:$0xff]
      %v4168 = vld [vmem:[#allocation4 + $0x68] sm:$0xff]
      %v4169 = vld [vmem:[#allocation4 + $0x70] sm:$0xff]
      %v4170 = vld [vmem:[#allocation4 + $0x78] sm:$0xff]
      %v4171 = vld [vmem:[#allocation4 + $0x80] sm:$0xff]
      %v4172 = vld [vmem:[#allocation4 + $0x88] sm:$0xff]
      %v4173 = vld [vmem:[#allocation4 + $0x90] sm:$0xff]
      %v4174 = vld [vmem:[#allocation4 + $0x98] sm:$0xff]
      %v4175 = vld [vmem:[#allocation4 + $0xa0] sm:$0xff]
      %v4176 = vld [vmem:[#allocation4 + $0xa8] sm:$0xff]
      %v4177 = vld [vmem:[#allocation4 + $0xb0] sm:$0xff]
      %v4178 = vld [vmem:[#allocation4 + $0xb8] sm:$0xff]
      %v4179 = vld [vmem:[#allocation4 + $0xc0] sm:$0xff]
      %v4180 = vld [vmem:[#allocation4 + $0xc8] sm:$0xff]
      %v4181 = vld [vmem:[#allocation4 + $0xd0] sm:$0xff]
      %v4182 = vld [vmem:[#allocation4 + $0xd8] sm:$0xff]
      %v4183 = vld [vmem:[#allocation4 + $0xe0] sm:$0xff]
      %v4184 = vld [vmem:[#allocation4 + $0xe8] sm:$0xff]
      %v4185 = vld [vmem:[#allocation4 + $0xf0] sm:$0xff]
      %v4186 = vld [vmem:[#allocation4 + $0xf8] sm:$0xff]
      %s4187 = scalar_lea.vmem %s6, 84
      %v4188 = vld [vmem:[%s4187] sm:$0xf]
      %v4189 = vld [vmem:[%s4187 + $0x4] sm:$0xf]
      %v4190 = vld [vmem:[%s4187 + $0x8] sm:$0xf]
      %v4194 = vunpack.c.l.b16 %v4188
      %v4195 = vunpack.c.l.b16 %v4189
      %v4196 = vunpack.c.l.b16 %v4190
      %v4197 = vpack.c.b16 %v4195, %v4194
      %v4198 = vpack.c.b16 %v4196, %v4196
      %v4201 = vsel %vm1612, %v4139, 0
      %v4204 = vsel %vm1612, %v4140, 0
      %v4207 = vsel %vm1612, %v4141, 0
      %v4210 = vsel %vm1612, %v4142, 0
      %v4213 = vsel %vm1612, %v4143, 0
      %v4216 = vsel %vm1612, %v4144, 0
      %v4219 = vsel %vm1612, %v4145, 0
      %v4222 = vsel %vm1612, %v4146, 0
      %v4225 = vsel %vm1612, %v4147, 0
      %v4228 = vsel %vm1612, %v4148, 0
      %v4231 = vsel %vm1612, %v4149, 0
      %v4234 = vsel %vm1612, %v4150, 0
      %v4237 = vsel %vm1612, %v4151, 0
      %v4240 = vsel %vm1612, %v4152, 0
      %v4243 = vsel %vm1612, %v4153, 0
      %v4246 = vsel %vm1612, %v4154, 0
      %v4249 = vsel %vm1884, %v4198, 0
      %4251 = vmatprep.subr.bf16.mxu0 0
      %4252 = vmatpush1.bf16.msra.mxu0 %v4197
      %4253 = vmatprep.subr.bf16.mxu0 0
      %4254 = vmatpush1.bf16.msra.mxu0 %v4249
      %4255 = vmatprep.subr.bf16.mxu0 0
      %4256 = vmatpush1.bf16.msra.mxu0 0
      %4257 = vmatprep.subr.bf16.mxu0 0
      %4258 = vmatpush1.bf16.msra.mxu0 0
      %4259 = vmatprep.subr.bf16.mxu0 0
      %4260 = vmatpush1.bf16.msra.mxu0 0
      %4261 = vmatprep.subr.bf16.mxu0 0
      %4262 = vmatpush1.bf16.msra.mxu0 0
      %4263 = vmatprep.subr.bf16.mxu0 0
      %4264 = vmatpush1.bf16.msra.mxu0 0
      %4265 = vmatprep.subr.bf16.mxu0 0
      %4266 = vmatpush1.bf16.msra.mxu0 0
      %4267 = vmatprep.subr.bf16.mxu0 0
      %4268 = vmatpush1.bf16.msra.mxu0 0
      %4269 = vmatprep.subr.bf16.mxu0 0
      %4270 = vmatpush1.bf16.msra.mxu0 0
      %4271 = vmatprep.subr.bf16.mxu0 0
      %4272 = vmatpush1.bf16.msra.mxu0 0
      %4273 = vmatprep.subr.bf16.mxu0 0
      %4274 = vmatpush1.bf16.msra.mxu0 0
      %4275 = vmatprep.subr.bf16.mxu0 0
      %4276 = vmatpush1.bf16.msra.mxu0 0
      %4277 = vmatprep.subr.bf16.mxu0 0
      %4278 = vmatpush1.bf16.msra.mxu0 0
      %4279 = vmatprep.subr.bf16.mxu0 0
      %4280 = vmatpush1.bf16.msra.mxu0 0
      %4281 = vmatprep.subr.bf16.mxu0 0
      %4282 = vmatpush1.bf16.msra.mxu0 0
      %4283 = vmatprep.mubr.bf16.mxu0 0
      %4284 = vmatmul.mubr.bf16.gmra.mrb[0].mxu0 %v4201
      %v4285 = vpop.f32.mrb[0].mxu0
      %v4286 = vadd.f32 0.0, %v4285
      %v4287 = vpop.f32.mrb[0].mxu0
      %v4288 = vpop.f32.mrb[0].mxu0
      %v4289 = vadd.f32 0.0, %v4288
      %v4290 = vpop.f32.mrb[0].mxu0
      %4291 = vmatprep.mubr.bf16.mxu0 0
      %4292 = vmatmul.mubr.bf16.gmra.mrb[0].mxu0 %v4204
      %v4293 = vpop.f32.mrb[0].mxu0
      %v4294 = vadd.f32 0.0, %v4293
      %v4295 = vpop.f32.mrb[0].mxu0
      %v4296 = vpop.f32.mrb[0].mxu0
      %v4297 = vadd.f32 0.0, %v4296
      %v4298 = vpop.f32.mrb[0].mxu0
      %4299 = vmatprep.mubr.bf16.mxu0 0
      %4300 = vmatmul.mubr.bf16.gmra.mrb[0].mxu0 %v4207
      %v4301 = vpop.f32.mrb[0].mxu0
      %v4302 = vadd.f32 0.0, %v4301
      %v4303 = vpop.f32.mrb[0].mxu0
      %v4304 = vpop.f32.mrb[0].mxu0
      %v4305 = vadd.f32 0.0, %v4304
      %v4306 = vpop.f32.mrb[0].mxu0
      %4307 = vmatprep.mubr.bf16.mxu0 0
      %4308 = vmatmul.mubr.bf16.gmra.mrb[0].mxu0 %v4210
      %v4309 = vpop.f32.mrb[0].mxu0
      %v4310 = vadd.f32 0.0, %v4309
      %v4311 = vpop.f32.mrb[0].mxu0
      %v4312 = vpop.f32.mrb[0].mxu0
      %v4313 = vadd.f32 0.0, %v4312
      %v4314 = vpop.f32.mrb[0].mxu0
      %4315 = vmatprep.mubr.bf16.mxu0 0
      %4316 = vmatmul.mubr.bf16.gmra.mrb[0].mxu0 %v4213
      %v4317 = vpop.f32.mrb[0].mxu0
      %v4318 = vadd.f32 0.0, %v4317
      %v4319 = vpop.f32.mrb[0].mxu0
      %v4320 = vpop.f32.mrb[0].mxu0
      %v4321 = vadd.f32 0.0, %v4320
      %v4322 = vpop.f32.mrb[0].mxu0
      %4323 = vmatprep.mubr.bf16.mxu0 0
      %4324 = vmatmul.mubr.bf16.gmra.mrb[0].mxu0 %v4216
      %v4325 = vpop.f32.mrb[0].mxu0
      %v4326 = vadd.f32 0.0, %v4325
      %v4327 = vpop.f32.mrb[0].mxu0
      %v4328 = vpop.f32.mrb[0].mxu0
      %v4329 = vadd.f32 0.0, %v4328
      %v4330 = vpop.f32.mrb[0].mxu0
      %4331 = vmatprep.mubr.bf16.mxu0 0
      %4332 = vmatmul.mubr.bf16.gmra.mrb[0].mxu0 %v4219
      %v4333 = vpop.f32.mrb[0].mxu0
      %v4334 = vadd.f32 0.0, %v4333
      %v4335 = vpop.f32.mrb[0].mxu0
      %v4336 = vpop.f32.mrb[0].mxu0
      %v4337 = vadd.f32 0.0, %v4336
      %v4338 = vpop.f32.mrb[0].mxu0
      %4339 = vmatprep.mubr.bf16.mxu0 0
      %4340 = vmatmul.mubr.bf16.gmra.mrb[0].mxu0 %v4222
      %v4341 = vpop.f32.mrb[0].mxu0
      %v4342 = vadd.f32 0.0, %v4341
      %v4343 = vpop.f32.mrb[0].mxu0
      %v4344 = vpop.f32.mrb[0].mxu0
      %v4345 = vadd.f32 0.0, %v4344
      %v4346 = vpop.f32.mrb[0].mxu0
      %4347 = vmatprep.mubr.bf16.mxu0 0
      %4348 = vmatmul.mubr.bf16.gmra.mrb[0].mxu0 %v4225
      %v4349 = vpop.f32.mrb[0].mxu0
      %v4350 = vadd.f32 0.0, %v4349
      %v4351 = vpop.f32.mrb[0].mxu0
      %v4352 = vpop.f32.mrb[0].mxu0
      %v4353 = vadd.f32 0.0, %v4352
      %v4354 = vpop.f32.mrb[0].mxu0
      %4355 = vmatprep.mubr.bf16.mxu0 0
      %4356 = vmatmul.mubr.bf16.gmra.mrb[0].mxu0 %v4228
      %v4357 = vpop.f32.mrb[0].mxu0
      %v4358 = vadd.f32 0.0, %v4357
      %v4359 = vpop.f32.mrb[0].mxu0
      %v4360 = vpop.f32.mrb[0].mxu0
      %v4361 = vadd.f32 0.0, %v4360
      %v4362 = vpop.f32.mrb[0].mxu0
      %4363 = vmatprep.mubr.bf16.mxu0 0
      %4364 = vmatmul.mubr.bf16.gmra.mrb[0].mxu0 %v4231
      %v4365 = vpop.f32.mrb[0].mxu0
      %v4366 = vadd.f32 0.0, %v4365
      %v4367 = vpop.f32.mrb[0].mxu0
      %v4368 = vpop.f32.mrb[0].mxu0
      %v4369 = vadd.f32 0.0, %v4368
      %v4370 = vpop.f32.mrb[0].mxu0
      %4371 = vmatprep.mubr.bf16.mxu0 0
      %4372 = vmatmul.mubr.bf16.gmra.mrb[0].mxu0 %v4234
      %v4373 = vpop.f32.mrb[0].mxu0
      %v4374 = vadd.f32 0.0, %v4373
      %v4375 = vpop.f32.mrb[0].mxu0
      %v4376 = vpop.f32.mrb[0].mxu0
      %v4377 = vadd.f32 0.0, %v4376
      %v4378 = vpop.f32.mrb[0].mxu0
      %4379 = vmatprep.mubr.bf16.mxu0 0
      %4380 = vmatmul.mubr.bf16.gmra.mrb[0].mxu0 %v4237
      %v4381 = vpop.f32.mrb[0].mxu0
      %v4382 = vadd.f32 0.0, %v4381
      %v4383 = vpop.f32.mrb[0].mxu0
      %v4384 = vpop.f32.mrb[0].mxu0
      %v4385 = vadd.f32 0.0, %v4384
      %v4386 = vpop.f32.mrb[0].mxu0
      %4387 = vmatprep.mubr.bf16.mxu0 0
      %4388 = vmatmul.mubr.bf16.gmra.mrb[0].mxu0 %v4240
      %v4389 = vpop.f32.mrb[0].mxu0
      %v4390 = vadd.f32 0.0, %v4389
      %v4391 = vpop.f32.mrb[0].mxu0
      %v4392 = vpop.f32.mrb[0].mxu0
      %v4393 = vadd.f32 0.0, %v4392
      %v4394 = vpop.f32.mrb[0].mxu0
      %4395 = vmatprep.mubr.bf16.mxu0 0
      %4396 = vmatmul.mubr.bf16.gmra.mrb[0].mxu0 %v4243
      %v4397 = vpop.f32.mrb[0].mxu0
      %v4398 = vadd.f32 0.0, %v4397
      %v4399 = vpop.f32.mrb[0].mxu0
      %v4400 = vpop.f32.mrb[0].mxu0
      %v4401 = vadd.f32 0.0, %v4400
      %v4402 = vpop.f32.mrb[0].mxu0
      %4403 = vmatprep.mubr.bf16.mxu0 0
      %4404 = vmatmul.mubr.bf16.gmra.mrb[0].mxu0 %v4246
      %v4405 = vpop.f32.mrb[0].mxu0
      %v4406 = vadd.f32 0.0, %v4405
      %v4407 = vpop.f32.mrb[0].mxu0
      %v4408 = vpop.f32.mrb[0].mxu0
      %v4409 = vadd.f32 0.0, %v4408
      %v4410 = vpop.f32.mrb[0].mxu0
      %4411 = vdwg.mxu0
      %v4412 = vadd.f32 %v4155, %v4286
      %v4413 = vadd.f32 %v4156, %v4289
      %v4414 = vadd.f32 %v4157, %v4294
      %v4415 = vadd.f32 %v4158, %v4297
      %v4416 = vadd.f32 %v4159, %v4302
      %v4417 = vadd.f32 %v4160, %v4305
      %v4418 = vadd.f32 %v4161, %v4310
      %v4419 = vadd.f32 %v4162, %v4313
      %v4420 = vadd.f32 %v4163, %v4318
      %v4421 = vadd.f32 %v4164, %v4321
      %v4422 = vadd.f32 %v4165, %v4326
      %v4423 = vadd.f32 %v4166, %v4329
      %v4424 = vadd.f32 %v4167, %v4334
      %v4425 = vadd.f32 %v4168, %v4337
      %v4426 = vadd.f32 %v4169, %v4342
      %v4427 = vadd.f32 %v4170, %v4345
      %v4428 = vadd.f32 %v4171, %v4350
      %v4429 = vadd.f32 %v4172, %v4353
      %v4430 = vadd.f32 %v4173, %v4358
      %v4431 = vadd.f32 %v4174, %v4361
      %v4432 = vadd.f32 %v4175, %v4366
      %v4433 = vadd.f32 %v4176, %v4369
      %v4434 = vadd.f32 %v4177, %v4374
      %v4435 = vadd.f32 %v4178, %v4377
      %v4436 = vadd.f32 %v4179, %v4382
      %v4437 = vadd.f32 %v4180, %v4385
      %v4438 = vadd.f32 %v4181, %v4390
      %v4439 = vadd.f32 %v4182, %v4393
      %v4440 = vadd.f32 %v4183, %v4398
      %v4441 = vadd.f32 %v4184, %v4401
      %v4442 = vadd.f32 %v4185, %v4406
      %v4443 = vadd.f32 %v4186, %v4409
      %4444 = vst.msk [vmem:[#allocation4] sm:$0xff] %vm1383, %v4412
      %4445 = vst.msk [vmem:[#allocation4 + $0x8] sm:$0xff] %vm1383, %v4413
      %4446 = vst.msk [vmem:[#allocation4 + $0x10] sm:$0xff] %vm1383, %v4414
      %4447 = vst.msk [vmem:[#allocation4 + $0x18] sm:$0xff] %vm1383, %v4415
      %4448 = vst.msk [vmem:[#allocation4 + $0x20] sm:$0xff] %vm1383, %v4416
      %4449 = vst.msk [vmem:[#allocation4 + $0x28] sm:$0xff] %vm1383, %v4417
      %4450 = vst.msk [vmem:[#allocation4 + $0x30] sm:$0xff] %vm1383, %v4418
      %4451 = vst.msk [vmem:[#allocation4 + $0x38] sm:$0xff] %vm1383, %v4419
      %4452 = vst.msk [vmem:[#allocation4 + $0x40] sm:$0xff] %vm1383, %v4420
      %4453 = vst.msk [vmem:[#allocation4 + $0x48] sm:$0xff] %vm1383, %v4421
      %4454 = vst.msk [vmem:[#allocation4 + $0x50] sm:$0xff] %vm1383, %v4422
      %4455 = vst.msk [vmem:[#allocation4 + $0x58] sm:$0xff] %vm1383, %v4423
      %4456 = vst.msk [vmem:[#allocation4 + $0x60] sm:$0xff] %vm1383, %v4424
      %4457 = vst.msk [vmem:[#allocation4 + $0x68] sm:$0xff] %vm1383, %v4425
      %4458 = vst.msk [vmem:[#allocation4 + $0x70] sm:$0xff] %vm1383, %v4426
      %4459 = vst.msk [vmem:[#allocation4 + $0x78] sm:$0xff] %vm1383, %v4427
      %4460 = vst.msk [vmem:[#allocation4 + $0x80] sm:$0xff] %vm1383, %v4428
      %4461 = vst.msk [vmem:[#allocation4 + $0x88] sm:$0xff] %vm1383, %v4429
      %4462 = vst.msk [vmem:[#allocation4 + $0x90] sm:$0xff] %vm1383, %v4430
      %4463 = vst.msk [vmem:[#allocation4 + $0x98] sm:$0xff] %vm1383, %v4431
      %4464 = vst.msk [vmem:[#allocation4 + $0xa0] sm:$0xff] %vm1383, %v4432
      %4465 = vst.msk [vmem:[#allocation4 + $0xa8] sm:$0xff] %vm1383, %v4433
      %4466 = vst.msk [vmem:[#allocation4 + $0xb0] sm:$0xff] %vm1383, %v4434
      %4467 = vst.msk [vmem:[#allocation4 + $0xb8] sm:$0xff] %vm1383, %v4435
      %4468 = vst.msk [vmem:[#allocation4 + $0xc0] sm:$0xff] %vm1383, %v4436
      %4469 = vst.msk [vmem:[#allocation4 + $0xc8] sm:$0xff] %vm1383, %v4437
      %4470 = vst.msk [vmem:[#allocation4 + $0xd0] sm:$0xff] %vm1383, %v4438
      %4471 = vst.msk [vmem:[#allocation4 + $0xd8] sm:$0xff] %vm1383, %v4439
      %4472 = vst.msk [vmem:[#allocation4 + $0xe0] sm:$0xff] %vm1383, %v4440
      %4473 = vst.msk [vmem:[#allocation4 + $0xe8] sm:$0xff] %vm1383, %v4441
      %4474 = vst.msk [vmem:[#allocation4 + $0xf0] sm:$0xff] %vm1383, %v4442
      %4475 = vst.msk [vmem:[#allocation4 + $0xf8] sm:$0xff] %vm1383, %v4443
      %s4476 = scalar_lea.vmem [#allocation2], 304
      %v4477 = vld [vmem:[%s4476] sm:$0xff]
      %v4478 = vld [vmem:[%s4476 + $0x8] sm:$0xff]
      %v4479 = vld [vmem:[%s4476 + $0x10] sm:$0xff]
      %v4480 = vld [vmem:[%s4476 + $0x18] sm:$0xff]
      %v4481 = vld [vmem:[%s4476 + $0x20] sm:$0xff]
      %v4482 = vld [vmem:[%s4476 + $0x28] sm:$0xff]
      %v4483 = vld [vmem:[%s4476 + $0x30] sm:$0xff]
      %v4484 = vld [vmem:[%s4476 + $0x38] sm:$0xff]
      %v4485 = vld [vmem:[%s4476 + $0x40] sm:$0xff]
      %v4486 = vld [vmem:[%s4476 + $0x48] sm:$0xff]
      %v4487 = vld [vmem:[%s4476 + $0x50] sm:$0xff]
      %v4488 = vld [vmem:[%s4476 + $0x58] sm:$0xff]
      %v4489 = vld [vmem:[%s4476 + $0x60] sm:$0xff]
      %v4490 = vld [vmem:[%s4476 + $0x68] sm:$0xff]
      %v4491 = vld [vmem:[%s4476 + $0x70] sm:$0xff]
      %v4492 = vld [vmem:[%s4476 + $0x78] sm:$0xff]
      %v4493 = vld [vmem:[#allocation4] sm:$0xff]
      %v4494 = vld [vmem:[#allocation4 + $0x8] sm:$0xff]
      %v4495 = vld [vmem:[#allocation4 + $0x10] sm:$0xff]
      %v4496 = vld [vmem:[#allocation4 + $0x18] sm:$0xff]
      %v4497 = vld [vmem:[#allocation4 + $0x20] sm:$0xff]
      %v4498 = vld [vmem:[#allocation4 + $0x28] sm:$0xff]
      %v4499 = vld [vmem:[#allocation4 + $0x30] sm:$0xff]
      %v4500 = vld [vmem:[#allocation4 + $0x38] sm:$0xff]
      %v4501 = vld [vmem:[#allocation4 + $0x40] sm:$0xff]
      %v4502 = vld [vmem:[#allocation4 + $0x48] sm:$0xff]
      %v4503 = vld [vmem:[#allocation4 + $0x50] sm:$0xff]
      %v4504 = vld [vmem:[#allocation4 + $0x58] sm:$0xff]
      %v4505 = vld [vmem:[#allocation4 + $0x60] sm:$0xff]
      %v4506 = vld [vmem:[#allocation4 + $0x68] sm:$0xff]
      %v4507 = vld [vmem:[#allocation4 + $0x70] sm:$0xff]
      %v4508 = vld [vmem:[#allocation4 + $0x78] sm:$0xff]
      %v4509 = vld [vmem:[#allocation4 + $0x80] sm:$0xff]
      %v4510 = vld [vmem:[#allocation4 + $0x88] sm:$0xff]
      %v4511 = vld [vmem:[#allocation4 + $0x90] sm:$0xff]
      %v4512 = vld [vmem:[#allocation4 + $0x98] sm:$0xff]
      %v4513 = vld [vmem:[#allocation4 + $0xa0] sm:$0xff]
      %v4514 = vld [vmem:[#allocation4 + $0xa8] sm:$0xff]
      %v4515 = vld [vmem:[#allocation4 + $0xb0] sm:$0xff]
      %v4516 = vld [vmem:[#allocation4 + $0xb8] sm:$0xff]
      %v4517 = vld [vmem:[#allocation4 + $0xc0] sm:$0xff]
      %v4518 = vld [vmem:[#allocation4 + $0xc8] sm:$0xff]
      %v4519 = vld [vmem:[#allocation4 + $0xd0] sm:$0xff]
      %v4520 = vld [vmem:[#allocation4 + $0xd8] sm:$0xff]
      %v4521 = vld [vmem:[#allocation4 + $0xe0] sm:$0xff]
      %v4522 = vld [vmem:[#allocation4 + $0xe8] sm:$0xff]
      %v4523 = vld [vmem:[#allocation4 + $0xf0] sm:$0xff]
      %v4524 = vld [vmem:[#allocation4 + $0xf8] sm:$0xff]
      %s4525 = scalar_lea.vmem %s6, 96
      %v4526 = vld [vmem:[%s4525] sm:$0xf]
      %v4527 = vld [vmem:[%s4525 + $0x4] sm:$0xf]
      %v4528 = vld [vmem:[%s4525 + $0x8] sm:$0xf]
      %v4532 = vunpack.c.l.b16 %v4526
      %v4533 = vunpack.c.l.b16 %v4527
      %v4534 = vunpack.c.l.b16 %v4528
      %v4535 = vpack.c.b16 %v4533, %v4532
      %v4536 = vpack.c.b16 %v4534, %v4534
      %v4539 = vsel %vm1612, %v4477, 0
      %v4542 = vsel %vm1612, %v4478, 0
      %v4545 = vsel %vm1612, %v4479, 0
      %v4548 = vsel %vm1612, %v4480, 0
      %v4551 = vsel %vm1612, %v4481, 0
      %v4554 = vsel %vm1612, %v4482, 0
      %v4557 = vsel %vm1612, %v4483, 0
      %v4560 = vsel %vm1612, %v4484, 0
      %v4563 = vsel %vm1612, %v4485, 0
      %v4566 = vsel %vm1612, %v4486, 0
      %v4569 = vsel %vm1612, %v4487, 0
      %v4572 = vsel %vm1612, %v4488, 0
      %v4575 = vsel %vm1612, %v4489, 0
      %v4578 = vsel %vm1612, %v4490, 0
      %v4581 = vsel %vm1612, %v4491, 0
      %v4584 = vsel %vm1612, %v4492, 0
      %v4587 = vsel %vm1884, %v4536, 0
      %4589 = vmatprep.subr.bf16.mxu0 0
      %4590 = vmatpush1.bf16.msra.mxu0 %v4535
      %4591 = vmatprep.subr.bf16.mxu0 0
      %4592 = vmatpush1.bf16.msra.mxu0 %v4587
      %4593 = vmatprep.subr.bf16.mxu0 0
      %4594 = vmatpush1.bf16.msra.mxu0 0
      %4595 = vmatprep.subr.bf16.mxu0 0
      %4596 = vmatpush1.bf16.msra.mxu0 0
      %4597 = vmatprep.subr.bf16.mxu0 0
      %4598 = vmatpush1.bf16.msra.mxu0 0
      %4599 = vmatprep.subr.bf16.mxu0 0
      %4600 = vmatpush1.bf16.msra.mxu0 0
      %4601 = vmatprep.subr.bf16.mxu0 0
      %4602 = vmatpush1.bf16.msra.mxu0 0
      %4603 = vmatprep.subr.bf16.mxu0 0
      %4604 = vmatpush1.bf16.msra.mxu0 0
      %4605 = vmatprep.subr.bf16.mxu0 0
      %4606 = vmatpush1.bf16.msra.mxu0 0
      %4607 = vmatprep.subr.bf16.mxu0 0
      %4608 = vmatpush1.bf16.msra.mxu0 0
      %4609 = vmatprep.subr.bf16.mxu0 0
      %4610 = vmatpush1.bf16.msra.mxu0 0
      %4611 = vmatprep.subr.bf16.mxu0 0
      %4612 = vmatpush1.bf16.msra.mxu0 0
      %4613 = vmatprep.subr.bf16.mxu0 0
      %4614 = vmatpush1.bf16.msra.mxu0 0
      %4615 = vmatprep.subr.bf16.mxu0 0
      %4616 = vmatpush1.bf16.msra.mxu0 0
      %4617 = vmatprep.subr.bf16.mxu0 0
      %4618 = vmatpush1.bf16.msra.mxu0 0
      %4619 = vmatprep.subr.bf16.mxu0 0
      %4620 = vmatpush1.bf16.msra.mxu0 0
      %4621 = vmatprep.mubr.bf16.mxu0 0
      %4622 = vmatmul.mubr.bf16.gmra.mrb[0].mxu0 %v4539
      %v4623 = vpop.f32.mrb[0].mxu0
      %v4624 = vadd.f32 0.0, %v4623
      %v4625 = vpop.f32.mrb[0].mxu0
      %v4626 = vpop.f32.mrb[0].mxu0
      %v4627 = vadd.f32 0.0, %v4626
      %v4628 = vpop.f32.mrb[0].mxu0
      %4629 = vmatprep.mubr.bf16.mxu0 0
      %4630 = vmatmul.mubr.bf16.gmra.mrb[0].mxu0 %v4542
      %v4631 = vpop.f32.mrb[0].mxu0
      %v4632 = vadd.f32 0.0, %v4631
      %v4633 = vpop.f32.mrb[0].mxu0
      %v4634 = vpop.f32.mrb[0].mxu0
      %v4635 = vadd.f32 0.0, %v4634
      %v4636 = vpop.f32.mrb[0].mxu0
      %4637 = vmatprep.mubr.bf16.mxu0 0
      %4638 = vmatmul.mubr.bf16.gmra.mrb[0].mxu0 %v4545
      %v4639 = vpop.f32.mrb[0].mxu0
      %v4640 = vadd.f32 0.0, %v4639
      %v4641 = vpop.f32.mrb[0].mxu0
      %v4642 = vpop.f32.mrb[0].mxu0
      %v4643 = vadd.f32 0.0, %v4642
      %v4644 = vpop.f32.mrb[0].mxu0
      %4645 = vmatprep.mubr.bf16.mxu0 0
      %4646 = vmatmul.mubr.bf16.gmra.mrb[0].mxu0 %v4548
      %v4647 = vpop.f32.mrb[0].mxu0
      %v4648 = vadd.f32 0.0, %v4647
      %v4649 = vpop.f32.mrb[0].mxu0
      %v4650 = vpop.f32.mrb[0].mxu0
      %v4651 = vadd.f32 0.0, %v4650
      %v4652 = vpop.f32.mrb[0].mxu0
      %4653 = vmatprep.mubr.bf16.mxu0 0
      %4654 = vmatmul.mubr.bf16.gmra.mrb[0].mxu0 %v4551
      %v4655 = vpop.f32.mrb[0].mxu0
      %v4656 = vadd.f32 0.0, %v4655
      %v4657 = vpop.f32.mrb[0].mxu0
      %v4658 = vpop.f32.mrb[0].mxu0
      %v4659 = vadd.f32 0.0, %v4658
      %v4660 = vpop.f32.mrb[0].mxu0
      %4661 = vmatprep.mubr.bf16.mxu0 0
      %4662 = vmatmul.mubr.bf16.gmra.mrb[0].mxu0 %v4554
      %v4663 = vpop.f32.mrb[0].mxu0
      %v4664 = vadd.f32 0.0, %v4663
      %v4665 = vpop.f32.mrb[0].mxu0
      %v4666 = vpop.f32.mrb[0].mxu0
      %v4667 = vadd.f32 0.0, %v4666
      %v4668 = vpop.f32.mrb[0].mxu0
      %4669 = vmatprep.mubr.bf16.mxu0 0
      %4670 = vmatmul.mubr.bf16.gmra.mrb[0].mxu0 %v4557
      %v4671 = vpop.f32.mrb[0].mxu0
      %v4672 = vadd.f32 0.0, %v4671
      %v4673 = vpop.f32.mrb[0].mxu0
      %v4674 = vpop.f32.mrb[0].mxu0
      %v4675 = vadd.f32 0.0, %v4674
      %v4676 = vpop.f32.mrb[0].mxu0
      %4677 = vmatprep.mubr.bf16.mxu0 0
      %4678 = vmatmul.mubr.bf16.gmra.mrb[0].mxu0 %v4560
      %v4679 = vpop.f32.mrb[0].mxu0
      %v4680 = vadd.f32 0.0, %v4679
      %v4681 = vpop.f32.mrb[0].mxu0
      %v4682 = vpop.f32.mrb[0].mxu0
      %v4683 = vadd.f32 0.0, %v4682
      %v4684 = vpop.f32.mrb[0].mxu0
      %4685 = vmatprep.mubr.bf16.mxu0 0
      %4686 = vmatmul.mubr.bf16.gmra.mrb[0].mxu0 %v4563
      %v4687 = vpop.f32.mrb[0].mxu0
      %v4688 = vadd.f32 0.0, %v4687
      %v4689 = vpop.f32.mrb[0].mxu0
      %v4690 = vpop.f32.mrb[0].mxu0
      %v4691 = vadd.f32 0.0, %v4690
      %v4692 = vpop.f32.mrb[0].mxu0
      %4693 = vmatprep.mubr.bf16.mxu0 0
      %4694 = vmatmul.mubr.bf16.gmra.mrb[0].mxu0 %v4566
      %v4695 = vpop.f32.mrb[0].mxu0
      %v4696 = vadd.f32 0.0, %v4695
      %v4697 = vpop.f32.mrb[0].mxu0
      %v4698 = vpop.f32.mrb[0].mxu0
      %v4699 = vadd.f32 0.0, %v4698
      %v4700 = vpop.f32.mrb[0].mxu0
      %4701 = vmatprep.mubr.bf16.mxu0 0
      %4702 = vmatmul.mubr.bf16.gmra.mrb[0].mxu0 %v4569
      %v4703 = vpop.f32.mrb[0].mxu0
      %v4704 = vadd.f32 0.0, %v4703
      %v4705 = vpop.f32.mrb[0].mxu0
      %v4706 = vpop.f32.mrb[0].mxu0
      %v4707 = vadd.f32 0.0, %v4706
      %v4708 = vpop.f32.mrb[0].mxu0
      %4709 = vmatprep.mubr.bf16.mxu0 0
      %4710 = vmatmul.mubr.bf16.gmra.mrb[0].mxu0 %v4572
      %v4711 = vpop.f32.mrb[0].mxu0
      %v4712 = vadd.f32 0.0, %v4711
      %v4713 = vpop.f32.mrb[0].mxu0
      %v4714 = vpop.f32.mrb[0].mxu0
      %v4715 = vadd.f32 0.0, %v4714
      %v4716 = vpop.f32.mrb[0].mxu0
      %4717 = vmatprep.mubr.bf16.mxu0 0
      %4718 = vmatmul.mubr.bf16.gmra.mrb[0].mxu0 %v4575
      %v4719 = vpop.f32.mrb[0].mxu0
      %v4720 = vadd.f32 0.0, %v4719
      %v4721 = vpop.f32.mrb[0].mxu0
      %v4722 = vpop.f32.mrb[0].mxu0
      %v4723 = vadd.f32 0.0, %v4722
      %v4724 = vpop.f32.mrb[0].mxu0
      %4725 = vmatprep.mubr.bf16.mxu0 0
      %4726 = vmatmul.mubr.bf16.gmra.mrb[0].mxu0 %v4578
      %v4727 = vpop.f32.mrb[0].mxu0
      %v4728 = vadd.f32 0.0, %v4727
      %v4729 = vpop.f32.mrb[0].mxu0
      %v4730 = vpop.f32.mrb[0].mxu0
      %v4731 = vadd.f32 0.0, %v4730
      %v4732 = vpop.f32.mrb[0].mxu0
      %4733 = vmatprep.mubr.bf16.mxu0 0
      %4734 = vmatmul.mubr.bf16.gmra.mrb[0].mxu0 %v4581
      %v4735 = vpop.f32.mrb[0].mxu0
      %v4736 = vadd.f32 0.0, %v4735
      %v4737 = vpop.f32.mrb[0].mxu0
      %v4738 = vpop.f32.mrb[0].mxu0
      %v4739 = vadd.f32 0.0, %v4738
      %v4740 = vpop.f32.mrb[0].mxu0
      %4741 = vmatprep.mubr.bf16.mxu0 0
      %4742 = vmatmul.mubr.bf16.gmra.mrb[0].mxu0 %v4584
      %v4743 = vpop.f32.mrb[0].mxu0
      %v4744 = vadd.f32 0.0, %v4743
      %v4745 = vpop.f32.mrb[0].mxu0
      %v4746 = vpop.f32.mrb[0].mxu0
      %v4747 = vadd.f32 0.0, %v4746
      %v4748 = vpop.f32.mrb[0].mxu0
      %4749 = vdwg.mxu0
      %v4750 = vadd.f32 %v4493, %v4624
      %v4751 = vadd.f32 %v4494, %v4627
      %v4752 = vadd.f32 %v4495, %v4632
      %v4753 = vadd.f32 %v4496, %v4635
      %v4754 = vadd.f32 %v4497, %v4640
      %v4755 = vadd.f32 %v4498, %v4643
      %v4756 = vadd.f32 %v4499, %v4648
      %v4757 = vadd.f32 %v4500, %v4651
      %v4758 = vadd.f32 %v4501, %v4656
      %v4759 = vadd.f32 %v4502, %v4659
      %v4760 = vadd.f32 %v4503, %v4664
      %v4761 = vadd.f32 %v4504, %v4667
      %v4762 = vadd.f32 %v4505, %v4672
      %v4763 = vadd.f32 %v4506, %v4675
      %v4764 = vadd.f32 %v4507, %v4680
      %v4765 = vadd.f32 %v4508, %v4683
      %v4766 = vadd.f32 %v4509, %v4688
      %v4767 = vadd.f32 %v4510, %v4691
      %v4768 = vadd.f32 %v4511, %v4696
      %v4769 = vadd.f32 %v4512, %v4699
      %v4770 = vadd.f32 %v4513, %v4704
      %v4771 = vadd.f32 %v4514, %v4707
      %v4772 = vadd.f32 %v4515, %v4712
      %v4773 = vadd.f32 %v4516, %v4715
      %v4774 = vadd.f32 %v4517, %v4720
      %v4775 = vadd.f32 %v4518, %v4723
      %v4776 = vadd.f32 %v4519, %v4728
      %v4777 = vadd.f32 %v4520, %v4731
      %v4778 = vadd.f32 %v4521, %v4736
      %v4779 = vadd.f32 %v4522, %v4739
      %v4780 = vadd.f32 %v4523, %v4744
      %v4781 = vadd.f32 %v4524, %v4747
      %4782 = vst.msk [vmem:[#allocation4] sm:$0xff] %vm1383, %v4750
      %4783 = vst.msk [vmem:[#allocation4 + $0x8] sm:$0xff] %vm1383, %v4751
      %4784 = vst.msk [vmem:[#allocation4 + $0x10] sm:$0xff] %vm1383, %v4752
      %4785 = vst.msk [vmem:[#allocation4 + $0x18] sm:$0xff] %vm1383, %v4753
      %4786 = vst.msk [vmem:[#allocation4 + $0x20] sm:$0xff] %vm1383, %v4754
      %4787 = vst.msk [vmem:[#allocation4 + $0x28] sm:$0xff] %vm1383, %v4755
      %4788 = vst.msk [vmem:[#allocation4 + $0x30] sm:$0xff] %vm1383, %v4756
      %4789 = vst.msk [vmem:[#allocation4 + $0x38] sm:$0xff] %vm1383, %v4757
      %4790 = vst.msk [vmem:[#allocation4 + $0x40] sm:$0xff] %vm1383, %v4758
      %4791 = vst.msk [vmem:[#allocation4 + $0x48] sm:$0xff] %vm1383, %v4759
      %4792 = vst.msk [vmem:[#allocation4 + $0x50] sm:$0xff] %vm1383, %v4760
      %4793 = vst.msk [vmem:[#allocation4 + $0x58] sm:$0xff] %vm1383, %v4761
      %4794 = vst.msk [vmem:[#allocation4 + $0x60] sm:$0xff] %vm1383, %v4762
      %4795 = vst.msk [vmem:[#allocation4 + $0x68] sm:$0xff] %vm1383, %v4763
      %4796 = vst.msk [vmem:[#allocation4 + $0x70] sm:$0xff] %vm1383, %v4764
      %4797 = vst.msk [vmem:[#allocation4 + $0x78] sm:$0xff] %vm1383, %v4765
      %4798 = vst.msk [vmem:[#allocation4 + $0x80] sm:$0xff] %vm1383, %v4766
      %4799 = vst.msk [vmem:[#allocation4 + $0x88] sm:$0xff] %vm1383, %v4767
      %4800 = vst.msk [vmem:[#allocation4 + $0x90] sm:$0xff] %vm1383, %v4768
      %4801 = vst.msk [vmem:[#allocation4 + $0x98] sm:$0xff] %vm1383, %v4769
      %4802 = vst.msk [vmem:[#allocation4 + $0xa0] sm:$0xff] %vm1383, %v4770
      %4803 = vst.msk [vmem:[#allocation4 + $0xa8] sm:$0xff] %vm1383, %v4771
      %4804 = vst.msk [vmem:[#allocation4 + $0xb0] sm:$0xff] %vm1383, %v4772
      %4805 = vst.msk [vmem:[#allocation4 + $0xb8] sm:$0xff] %vm1383, %v4773
      %4806 = vst.msk [vmem:[#allocation4 + $0xc0] sm:$0xff] %vm1383, %v4774
      %4807 = vst.msk [vmem:[#allocation4 + $0xc8] sm:$0xff] %vm1383, %v4775
      %4808 = vst.msk [vmem:[#allocation4 + $0xd0] sm:$0xff] %vm1383, %v4776
      %4809 = vst.msk [vmem:[#allocation4 + $0xd8] sm:$0xff] %vm1383, %v4777
      %4810 = vst.msk [vmem:[#allocation4 + $0xe0] sm:$0xff] %vm1383, %v4778
      %4811 = vst.msk [vmem:[#allocation4 + $0xe8] sm:$0xff] %vm1383, %v4779
      %4812 = vst.msk [vmem:[#allocation4 + $0xf0] sm:$0xff] %vm1383, %v4780
      %4813 = vst.msk [vmem:[#allocation4 + $0xf8] sm:$0xff] %vm1383, %v4781
      %v4814 = vld [vmem:[#allocation4] sm:$0xff]
      %v4815 = vld [vmem:[#allocation4 + $0x8] sm:$0xff]
      %v4816 = vld [vmem:[#allocation4 + $0x10] sm:$0xff]
      %v4817 = vld [vmem:[#allocation4 + $0x18] sm:$0xff]
      %v4818 = vld [vmem:[#allocation4 + $0x20] sm:$0xff]
      %v4819 = vld [vmem:[#allocation4 + $0x28] sm:$0xff]
      %v4820 = vld [vmem:[#allocation4 + $0x30] sm:$0xff]
      %v4821 = vld [vmem:[#allocation4 + $0x38] sm:$0xff]
      %v4822 = vld [vmem:[#allocation4 + $0x40] sm:$0xff]
      %v4823 = vld [vmem:[#allocation4 + $0x48] sm:$0xff]
      %v4824 = vld [vmem:[#allocation4 + $0x50] sm:$0xff]
      %v4825 = vld [vmem:[#allocation4 + $0x58] sm:$0xff]
      %v4826 = vld [vmem:[#allocation4 + $0x60] sm:$0xff]
      %v4827 = vld [vmem:[#allocation4 + $0x68] sm:$0xff]
      %v4828 = vld [vmem:[#allocation4 + $0x70] sm:$0xff]
      %v4829 = vld [vmem:[#allocation4 + $0x78] sm:$0xff]
      %v4830 = vld [vmem:[#allocation4 + $0x80] sm:$0xff]
      %v4831 = vld [vmem:[#allocation4 + $0x88] sm:$0xff]
      %v4832 = vld [vmem:[#allocation4 + $0x90] sm:$0xff]
      %v4833 = vld [vmem:[#allocation4 + $0x98] sm:$0xff]
      %v4834 = vld [vmem:[#allocation4 + $0xa0] sm:$0xff]
      %v4835 = vld [vmem:[#allocation4 + $0xa8] sm:$0xff]
      %v4836 = vld [vmem:[#allocation4 + $0xb0] sm:$0xff]
      %v4837 = vld [vmem:[#allocation4 + $0xb8] sm:$0xff]
      %v4838 = vld [vmem:[#allocation4 + $0xc0] sm:$0xff]
      %v4839 = vld [vmem:[#allocation4 + $0xc8] sm:$0xff]
      %v4840 = vld [vmem:[#allocation4 + $0xd0] sm:$0xff]
      %v4841 = vld [vmem:[#allocation4 + $0xd8] sm:$0xff]
      %v4842 = vld [vmem:[#allocation4 + $0xe0] sm:$0xff]
      %v4843 = vld [vmem:[#allocation4 + $0xe8] sm:$0xff]
      %v4844 = vld [vmem:[#allocation4 + $0xf0] sm:$0xff]
      %v4845 = vld [vmem:[#allocation4 + $0xf8] sm:$0xff]
      %v4846 = vmax.f32 %v4814, 0.0
      %v4847 = vmax.f32 %v4815, 0.0
      %v4848 = vmax.f32 %v4816, 0.0
      %v4849 = vmax.f32 %v4817, 0.0
      %v4850 = vmax.f32 %v4818, 0.0
      %v4851 = vmax.f32 %v4819, 0.0
      %v4852 = vmax.f32 %v4820, 0.0
      %v4853 = vmax.f32 %v4821, 0.0
      %v4854 = vmax.f32 %v4822, 0.0
      %v4855 = vmax.f32 %v4823, 0.0
      %v4856 = vmax.f32 %v4824, 0.0
      %v4857 = vmax.f32 %v4825, 0.0
      %v4858 = vmax.f32 %v4826, 0.0
      %v4859 = vmax.f32 %v4827, 0.0
      %v4860 = vmax.f32 %v4828, 0.0
      %v4861 = vmax.f32 %v4829, 0.0
      %v4862 = vmax.f32 %v4830, 0.0
      %v4863 = vmax.f32 %v4831, 0.0
      %v4864 = vmax.f32 %v4832, 0.0
      %v4865 = vmax.f32 %v4833, 0.0
      %v4866 = vmax.f32 %v4834, 0.0
      %v4867 = vmax.f32 %v4835, 0.0
      %v4868 = vmax.f32 %v4836, 0.0
      %v4869 = vmax.f32 %v4837, 0.0
      %v4870 = vmax.f32 %v4838, 0.0
      %v4871 = vmax.f32 %v4839, 0.0
      %v4872 = vmax.f32 %v4840, 0.0
      %v4873 = vmax.f32 %v4841, 0.0
      %v4874 = vmax.f32 %v4842, 0.0
      %v4875 = vmax.f32 %v4843, 0.0
      %v4876 = vmax.f32 %v4844, 0.0
      %v4877 = vmax.f32 %v4845, 0.0
      %v4878 = vpack.c.bf16 %v4847, %v4846
      %v4879 = vpack.c.bf16 %v4849, %v4848
      %v4880 = vpack.c.bf16 %v4851, %v4850
      %v4881 = vpack.c.bf16 %v4853, %v4852
      %v4882 = vpack.c.bf16 %v4855, %v4854
      %v4883 = vpack.c.bf16 %v4857, %v4856
      %v4884 = vpack.c.bf16 %v4859, %v4858
      %v4885 = vpack.c.bf16 %v4861, %v4860
      %v4886 = vpack.c.bf16 %v4863, %v4862
      %v4887 = vpack.c.bf16 %v4865, %v4864
      %v4888 = vpack.c.bf16 %v4867, %v4866
      %v4889 = vpack.c.bf16 %v4869, %v4868
      %v4890 = vpack.c.bf16 %v4871, %v4870
      %v4891 = vpack.c.bf16 %v4873, %v4872
      %v4892 = vpack.c.bf16 %v4875, %v4874
      %v4893 = vpack.c.bf16 %v4877, %v4876
      %v4895 = vshrl.u32 %v4878, 16
      %v4897 = vrot.slane %v4895, 7
      %v4898 = vshll.u32 %v4878, 16
      %v4900 = vor.u32 %v4897, %v4898
      %v4902 = vshrl.u32 %v4879, 16
      %v4904 = vrot.slane %v4902, 7
      %v4905 = vshll.u32 %v4879, 16
      %v4907 = vor.u32 %v4904, %v4905
      %v4909 = vshrl.u32 %v4880, 16
      %v4911 = vrot.slane %v4909, 7
      %v4912 = vshll.u32 %v4880, 16
      %v4914 = vor.u32 %v4911, %v4912
      %v4916 = vshrl.u32 %v4881, 16
      %v4918 = vrot.slane %v4916, 7
      %v4919 = vshll.u32 %v4881, 16
      %v4921 = vor.u32 %v4918, %v4919
      %v4923 = vshrl.u32 %v4882, 16
      %v4925 = vrot.slane %v4923, 7
      %v4926 = vshll.u32 %v4882, 16
      %v4928 = vor.u32 %v4925, %v4926
      %v4930 = vshrl.u32 %v4883, 16
      %v4932 = vrot.slane %v4930, 7
      %v4933 = vshll.u32 %v4883, 16
      %v4935 = vor.u32 %v4932, %v4933
      %v4937 = vshrl.u32 %v4884, 16
      %v4939 = vrot.slane %v4937, 7
      %v4940 = vshll.u32 %v4884, 16
      %v4942 = vor.u32 %v4939, %v4940
      %v4944 = vshrl.u32 %v4885, 16
      %v4946 = vrot.slane %v4944, 7
      %v4947 = vshll.u32 %v4885, 16
      %v4949 = vor.u32 %v4946, %v4947
      %v4951 = vshrl.u32 %v4886, 16
      %v4953 = vrot.slane %v4951, 7
      %v4954 = vshll.u32 %v4886, 16
      %v4956 = vor.u32 %v4953, %v4954
      %v4958 = vshrl.u32 %v4887, 16
      %v4960 = vrot.slane %v4958, 7
      %v4961 = vshll.u32 %v4887, 16
      %v4963 = vor.u32 %v4960, %v4961
      %v4965 = vshrl.u32 %v4888, 16
      %v4967 = vrot.slane %v4965, 7
      %v4968 = vshll.u32 %v4888, 16
      %v4970 = vor.u32 %v4967, %v4968
      %v4972 = vshrl.u32 %v4889, 16
      %v4974 = vrot.slane %v4972, 7
      %v4975 = vshll.u32 %v4889, 16
      %v4977 = vor.u32 %v4974, %v4975
      %v4979 = vshrl.u32 %v4890, 16
      %v4981 = vrot.slane %v4979, 7
      %v4982 = vshll.u32 %v4890, 16
      %v4984 = vor.u32 %v4981, %v4982
      %v4986 = vshrl.u32 %v4891, 16
      %v4988 = vrot.slane %v4986, 7
      %v4989 = vshll.u32 %v4891, 16
      %v4991 = vor.u32 %v4988, %v4989
      %v4993 = vshrl.u32 %v4892, 16
      %v4995 = vrot.slane %v4993, 7
      %v4996 = vshll.u32 %v4892, 16
      %v4998 = vor.u32 %v4995, %v4996
      %v5000 = vshrl.u32 %v4893, 16
      %v5002 = vrot.slane %v5000, 7
      %v5003 = vshll.u32 %v4893, 16
      %v5005 = vor.u32 %v5002, %v5003
      %v5022 = vsel %vm1594, 0, %v4900
      %v5023 = vsel %vm1594, 0, %v4907
      %v5024 = vsel %vm1594, 0, %v4914
      %v5025 = vsel %vm1594, 0, %v4921
      %v5026 = vsel %vm1594, 0, %v4928
      %v5027 = vsel %vm1594, 0, %v4935
      %v5028 = vsel %vm1594, 0, %v4942
      %v5029 = vsel %vm1594, 0, %v4949
      %v5030 = vsel %vm1594, 0, %v4956
      %v5031 = vsel %vm1594, 0, %v4963
      %v5032 = vsel %vm1594, 0, %v4970
      %v5033 = vsel %vm1594, 0, %v4977
      %v5034 = vsel %vm1594, 0, %v4984
      %v5035 = vsel %vm1594, 0, %v4991
      %v5036 = vsel %vm1594, 0, %v4998
      %v5037 = vsel %vm1594, 0, %v5005
      %s5038 = scalar_lea.vmem [#allocation3], 8
      %5039 = vst.msk [vmem:[%s5038] sm:$0xff] %vm1383, %v5022
      %5040 = vst.msk [vmem:[%s5038 + $0x8] sm:$0xff] %vm1383, %v5023
      %5041 = vst.msk [vmem:[%s5038 + $0x10] sm:$0xff] %vm1383, %v5024
      %5042 = vst.msk [vmem:[%s5038 + $0x18] sm:$0xff] %vm1383, %v5025
      %5043 = vst.msk [vmem:[%s5038 + $0x20] sm:$0xff] %vm1383, %v5026
      %5044 = vst.msk [vmem:[%s5038 + $0x28] sm:$0xff] %vm1383, %v5027
      %5045 = vst.msk [vmem:[%s5038 + $0x30] sm:$0xff] %vm1383, %v5028
      %5046 = vst.msk [vmem:[%s5038 + $0x38] sm:$0xff] %vm1383, %v5029
      %5047 = vst.msk [vmem:[%s5038 + $0x40] sm:$0xff] %vm1383, %v5030
      %5048 = vst.msk [vmem:[%s5038 + $0x48] sm:$0xff] %vm1383, %v5031
      %5049 = vst.msk [vmem:[%s5038 + $0x50] sm:$0xff] %vm1383, %v5032
      %5050 = vst.msk [vmem:[%s5038 + $0x58] sm:$0xff] %vm1383, %v5033
      %5051 = vst.msk [vmem:[%s5038 + $0x60] sm:$0xff] %vm1383, %v5034
      %5052 = vst.msk [vmem:[%s5038 + $0x68] sm:$0xff] %vm1383, %v5035
      %5053 = vst.msk [vmem:[%s5038 + $0x70] sm:$0xff] %vm1383, %v5036
      %5054 = vst.msk [vmem:[%s5038 + $0x78] sm:$0xff] %vm1383, %v5037
      %s5055 = scalar_lea.vmem [#allocation3], 152
      %5056 = vst.msk [vmem:[%s5055] sm:$0xff] %vm1383, %v4878
      %5057 = vst.msk [vmem:[%s5055 + $0x8] sm:$0xff] %vm1383, %v4879
      %5058 = vst.msk [vmem:[%s5055 + $0x10] sm:$0xff] %vm1383, %v4880
      %5059 = vst.msk [vmem:[%s5055 + $0x18] sm:$0xff] %vm1383, %v4881
      %5060 = vst.msk [vmem:[%s5055 + $0x20] sm:$0xff] %vm1383, %v4882
      %5061 = vst.msk [vmem:[%s5055 + $0x28] sm:$0xff] %vm1383, %v4883
      %5062 = vst.msk [vmem:[%s5055 + $0x30] sm:$0xff] %vm1383, %v4884
      %5063 = vst.msk [vmem:[%s5055 + $0x38] sm:$0xff] %vm1383, %v4885
      %5064 = vst.msk [vmem:[%s5055 + $0x40] sm:$0xff] %vm1383, %v4886
      %5065 = vst.msk [vmem:[%s5055 + $0x48] sm:$0xff] %vm1383, %v4887
      %5066 = vst.msk [vmem:[%s5055 + $0x50] sm:$0xff] %vm1383, %v4888
      %5067 = vst.msk [vmem:[%s5055 + $0x58] sm:$0xff] %vm1383, %v4889
      %5068 = vst.msk [vmem:[%s5055 + $0x60] sm:$0xff] %vm1383, %v4890
      %5069 = vst.msk [vmem:[%s5055 + $0x68] sm:$0xff] %vm1383, %v4891
      %5070 = vst.msk [vmem:[%s5055 + $0x70] sm:$0xff] %vm1383, %v4892
      %5071 = vst.msk [vmem:[%s5055 + $0x78] sm:$0xff] %vm1383, %v4893
      %v5072 = vrot.slane %v4898, 1
      %v5073 = vor.u32 %v4895, %v5072
      %v5074 = vrot.slane %v4905, 1
      %v5075 = vor.u32 %v4902, %v5074
      %v5076 = vrot.slane %v4912, 1
      %v5077 = vor.u32 %v4909, %v5076
      %v5078 = vrot.slane %v4919, 1
      %v5079 = vor.u32 %v4916, %v5078
      %v5080 = vrot.slane %v4926, 1
      %v5081 = vor.u32 %v4923, %v5080
      %v5082 = vrot.slane %v4933, 1
      %v5083 = vor.u32 %v4930, %v5082
      %v5084 = vrot.slane %v4940, 1
      %v5085 = vor.u32 %v4937, %v5084
      %v5086 = vrot.slane %v4947, 1
      %v5087 = vor.u32 %v4944, %v5086
      %v5088 = vrot.slane %v4954, 1
      %v5089 = vor.u32 %v4951, %v5088
      %v5090 = vrot.slane %v4961, 1
      %v5091 = vor.u32 %v4958, %v5090
      %v5092 = vrot.slane %v4968, 1
      %v5093 = vor.u32 %v4965, %v5092
      %v5094 = vrot.slane %v4975, 1
      %v5095 = vor.u32 %v4972, %v5094
      %v5096 = vrot.slane %v4982, 1
      %v5097 = vor.u32 %v4979, %v5096
      %v5098 = vrot.slane %v4989, 1
      %v5099 = vor.u32 %v4986, %v5098
      %v5100 = vrot.slane %v4996, 1
      %v5101 = vor.u32 %v4993, %v5100
      %v5102 = vrot.slane %v5003, 1
      %v5103 = vor.u32 %v5000, %v5102
      %v5120 = vsel %vm1696, %v5073, 0
      %v5121 = vsel %vm1696, %v5075, 0
      %v5122 = vsel %vm1696, %v5077, 0
      %v5123 = vsel %vm1696, %v5079, 0
      %v5124 = vsel %vm1696, %v5081, 0
      %v5125 = vsel %vm1696, %v5083, 0
      %v5126 = vsel %vm1696, %v5085, 0
      %v5127 = vsel %vm1696, %v5087, 0
      %v5128 = vsel %vm1696, %v5089, 0
      %v5129 = vsel %vm1696, %v5091, 0
      %v5130 = vsel %vm1696, %v5093, 0
      %v5131 = vsel %vm1696, %v5095, 0
      %v5132 = vsel %vm1696, %v5097, 0
      %v5133 = vsel %vm1696, %v5099, 0
      %v5134 = vsel %vm1696, %v5101, 0
      %v5135 = vsel %vm1696, %v5103, 0
      %s5136 = scalar_lea.vmem [#allocation3], 296
      %5137 = vst.msk [vmem:[%s5136] sm:$0xff] %vm1383, %v5120
      %5138 = vst.msk [vmem:[%s5136 + $0x8] sm:$0xff] %vm1383, %v5121
      %5139 = vst.msk [vmem:[%s5136 + $0x10] sm:$0xff] %vm1383, %v5122
      %5140 = vst.msk [vmem:[%s5136 + $0x18] sm:$0xff] %vm1383, %v5123
      %5141 = vst.msk [vmem:[%s5136 + $0x20] sm:$0xff] %vm1383, %v5124
      %5142 = vst.msk [vmem:[%s5136 + $0x28] sm:$0xff] %vm1383, %v5125
      %5143 = vst.msk [vmem:[%s5136 + $0x30] sm:$0xff] %vm1383, %v5126
      %5144 = vst.msk [vmem:[%s5136 + $0x38] sm:$0xff] %vm1383, %v5127
      %5145 = vst.msk [vmem:[%s5136 + $0x40] sm:$0xff] %vm1383, %v5128
      %5146 = vst.msk [vmem:[%s5136 + $0x48] sm:$0xff] %vm1383, %v5129
      %5147 = vst.msk [vmem:[%s5136 + $0x50] sm:$0xff] %vm1383, %v5130
      %5148 = vst.msk [vmem:[%s5136 + $0x58] sm:$0xff] %vm1383, %v5131
      %5149 = vst.msk [vmem:[%s5136 + $0x60] sm:$0xff] %vm1383, %v5132
      %5150 = vst.msk [vmem:[%s5136 + $0x68] sm:$0xff] %vm1383, %v5133
      %5151 = vst.msk [vmem:[%s5136 + $0x70] sm:$0xff] %vm1383, %v5134
      %5152 = vst.msk [vmem:[%s5136 + $0x78] sm:$0xff] %vm1383, %v5135
      %5153 = vst.msk [vmem:[#allocation3] sm:$0xff] %vm1383, 0
      %5154 = vst.msk [vmem:[#allocation3 + $0x90] sm:$0xff] %vm1383, 0
      %5155 = vst.msk [vmem:[#allocation3 + $0x120] sm:$0xff] %vm1383, 0
      %s5156 = scalar_lea.vmem [#allocation3], 136
      %5157 = vst.msk [vmem:[%s5156] sm:$0xff] %vm1383, 0
      %5158 = vst.msk [vmem:[%s5156 + $0x90] sm:$0xff] %vm1383, 0
      %5159 = vst.msk [vmem:[%s5156 + $0x120] sm:$0xff] %vm1383, 0
      %v5160 = vld [vmem:[%s9] sm:$0xff]
      %5162 = vset.pattern.permute.xlu0 0
      %5163 = vperm.xlu0 %5162, %v5160
      %v5164 = vpop.permute.xlu0 %5163
      %5166 = vst [vmem:[#allocation5] sm:$0xff] %v5164
      %5167 = vst [vmem:[#allocation5 + $0x8] sm:$0xff] %v5164
      %v5168 = vld [vmem:[#allocation3] sm:$0xff]
      %v5169 = vld [vmem:[#allocation3 + $0x8] sm:$0xff]
      %v5170 = vld [vmem:[#allocation3 + $0x10] sm:$0xff]
      %v5171 = vld [vmem:[#allocation3 + $0x18] sm:$0xff]
      %v5172 = vld [vmem:[#allocation3 + $0x20] sm:$0xff]
      %v5173 = vld [vmem:[#allocation3 + $0x28] sm:$0xff]
      %v5174 = vld [vmem:[#allocation3 + $0x30] sm:$0xff]
      %v5175 = vld [vmem:[#allocation3 + $0x38] sm:$0xff]
      %v5176 = vld [vmem:[#allocation3 + $0x40] sm:$0xff]
      %v5177 = vld [vmem:[#allocation3 + $0x48] sm:$0xff]
      %v5178 = vld [vmem:[#allocation3 + $0x50] sm:$0xff]
      %v5179 = vld [vmem:[#allocation3 + $0x58] sm:$0xff]
      %v5180 = vld [vmem:[#allocation3 + $0x60] sm:$0xff]
      %v5181 = vld [vmem:[#allocation3 + $0x68] sm:$0xff]
      %v5182 = vld [vmem:[#allocation3 + $0x70] sm:$0xff]
      %v5183 = vld [vmem:[#allocation3 + $0x78] sm:$0xff]
      %v5184 = vld [vmem:[#allocation5] sm:$0xff]
      %v5185 = vld [vmem:[#allocation5 + $0x8] sm:$0xff]
      %v5186 = vld [vmem:[%s8] sm:$0xf]
      %v5188 = vsel %vm1383, %v5186, 0
      %v5191 = vsel %vm1383, %v5168, 0
      %v5194 = vsel %vm1383, %v5169, 0
      %v5197 = vsel %vm1383, %v5170, 0
      %v5200 = vsel %vm1383, %v5171, 0
      %v5203 = vsel %vm1383, %v5172, 0
      %v5206 = vsel %vm1383, %v5173, 0
      %v5209 = vsel %vm1383, %v5174, 0
      %v5212 = vsel %vm1383, %v5175, 0
      %v5215 = vsel %vm1383, %v5176, 0
      %v5218 = vsel %vm1383, %v5177, 0
      %v5221 = vsel %vm1383, %v5178, 0
      %v5224 = vsel %vm1383, %v5179, 0
      %v5227 = vsel %vm1383, %v5180, 0
      %v5230 = vsel %vm1383, %v5181, 0
      %v5233 = vsel %vm1383, %v5182, 0
      %v5236 = vsel %vm1383, %v5183, 0
      %5238 = vmatprep.subr.bf16.mxu0 0
      %5239 = vmatpush1.bf16.xpose.msra.mxu0 %v5191
      %5240 = vmatprep.subr.bf16.mxu0 0
      %5241 = vmatpush1.bf16.xpose.msra.mxu0 %v5194
      %5242 = vmatprep.subr.bf16.mxu0 0
      %5243 = vmatpush1.bf16.xpose.msra.mxu0 %v5197
      %5244 = vmatprep.subr.bf16.mxu0 0
      %5245 = vmatpush1.bf16.xpose.msra.mxu0 %v5200
      %5246 = vmatprep.subr.bf16.mxu0 0
      %5247 = vmatpush1.bf16.xpose.msra.mxu0 %v5203
      %5248 = vmatprep.subr.bf16.mxu0 0
      %5249 = vmatpush1.bf16.xpose.msra.mxu0 %v5206
      %5250 = vmatprep.subr.bf16.mxu0 0
      %5251 = vmatpush1.bf16.xpose.msra.mxu0 %v5209
      %5252 = vmatprep.subr.bf16.mxu0 0
      %5253 = vmatpush1.bf16.xpose.msra.mxu0 %v5212
      %5254 = vmatprep.subr.bf16.mxu0 0
      %5255 = vmatpush1.bf16.xpose.msra.mxu0 %v5215
      %5256 = vmatprep.subr.bf16.mxu0 0
      %5257 = vmatpush1.bf16.xpose.msra.mxu0 %v5218
      %5258 = vmatprep.subr.bf16.mxu0 0
      %5259 = vmatpush1.bf16.xpose.msra.mxu0 %v5221
      %5260 = vmatprep.subr.bf16.mxu0 0
      %5261 = vmatpush1.bf16.xpose.msra.mxu0 %v5224
      %5262 = vmatprep.subr.bf16.mxu0 0
      %5263 = vmatpush1.bf16.xpose.msra.mxu0 %v5227
      %5264 = vmatprep.subr.bf16.mxu0 0
      %5265 = vmatpush1.bf16.xpose.msra.mxu0 %v5230
      %5266 = vmatprep.subr.bf16.mxu0 0
      %5267 = vmatpush1.bf16.xpose.msra.mxu0 %v5233
      %5268 = vmatprep.subr.bf16.mxu0 0
      %5269 = vmatpush1.bf16.xpose.msra.mxu0 %v5236
      %5270 = vmatprep.mubr.bf16.mxu0 0
      %5271 = vmatmul.mubr.bf16.gmra.mrb[0].mxu0 %v5188
      %v5272 = vpop.f32.mrb[0].mxu0
      %v5273 = vadd.f32 0.0, %v5272
      %v5274 = vpop.f32.mrb[0].mxu0
      %v5275 = vadd.f32 0.0, %v5274
      %v5276 = vpop.f32.mrb[0].mxu0
      %v5277 = vpop.f32.mrb[0].mxu0
      %5278 = vdwg.mxu0
      %v5279 = vadd.f32 %v5184, %v5273
      %v5280 = vadd.f32 %v5185, %v5275
      %5281 = vst [vmem:[#allocation5] sm:$0xff] %v5279
      %5282 = vst [vmem:[#allocation5 + $0x8] sm:$0xff] %v5280
      %s5283 = scalar_lea.vmem [#allocation3], 144
      %v5284 = vld [vmem:[%s5283] sm:$0xff]
      %v5285 = vld [vmem:[%s5283 + $0x8] sm:$0xff]
      %v5286 = vld [vmem:[%s5283 + $0x10] sm:$0xff]
      %v5287 = vld [vmem:[%s5283 + $0x18] sm:$0xff]
      %v5288 = vld [vmem:[%s5283 + $0x20] sm:$0xff]
      %v5289 = vld [vmem:[%s5283 + $0x28] sm:$0xff]
      %v5290 = vld [vmem:[%s5283 + $0x30] sm:$0xff]
      %v5291 = vld [vmem:[%s5283 + $0x38] sm:$0xff]
      %v5292 = vld [vmem:[%s5283 + $0x40] sm:$0xff]
      %v5293 = vld [vmem:[%s5283 + $0x48] sm:$0xff]
      %v5294 = vld [vmem:[%s5283 + $0x50] sm:$0xff]
      %v5295 = vld [vmem:[%s5283 + $0x58] sm:$0xff]
      %v5296 = vld [vmem:[%s5283 + $0x60] sm:$0xff]
      %v5297 = vld [vmem:[%s5283 + $0x68] sm:$0xff]
      %v5298 = vld [vmem:[%s5283 + $0x70] sm:$0xff]
      %v5299 = vld [vmem:[%s5283 + $0x78] sm:$0xff]
      %v5300 = vld [vmem:[#allocation5] sm:$0xff]
      %v5301 = vld [vmem:[#allocation5 + $0x8] sm:$0xff]
      %s5302 = scalar_lea.vmem %s8, 4
      %v5303 = vld [vmem:[%s5302] sm:$0xf]
      %v5305 = vsel %vm1383, %v5303, 0
      %v5308 = vsel %vm1383, %v5284, 0
      %v5311 = vsel %vm1383, %v5285, 0
      %v5314 = vsel %vm1383, %v5286, 0
      %v5317 = vsel %vm1383, %v5287, 0
      %v5320 = vsel %vm1383, %v5288, 0
      %v5323 = vsel %vm1383, %v5289, 0
      %v5326 = vsel %vm1383, %v5290, 0
      %v5329 = vsel %vm1383, %v5291, 0
      %v5332 = vsel %vm1383, %v5292, 0
      %v5335 = vsel %vm1383, %v5293, 0
      %v5338 = vsel %vm1383, %v5294, 0
      %v5341 = vsel %vm1383, %v5295, 0
      %v5344 = vsel %vm1383, %v5296, 0
      %v5347 = vsel %vm1383, %v5297, 0
      %v5350 = vsel %vm1383, %v5298, 0
      %v5353 = vsel %vm1383, %v5299, 0
      %5355 = vmatprep.subr.bf16.mxu0 0
      %5356 = vmatpush1.bf16.xpose.msra.mxu0 %v5308
      %5357 = vmatprep.subr.bf16.mxu0 0
      %5358 = vmatpush1.bf16.xpose.msra.mxu0 %v5311
      %5359 = vmatprep.subr.bf16.mxu0 0
      %5360 = vmatpush1.bf16.xpose.msra.mxu0 %v5314
      %5361 = vmatprep.subr.bf16.mxu0 0
      %5362 = vmatpush1.bf16.xpose.msra.mxu0 %v5317
      %5363 = vmatprep.subr.bf16.mxu0 0
      %5364 = vmatpush1.bf16.xpose.msra.mxu0 %v5320
      %5365 = vmatprep.subr.bf16.mxu0 0
      %5366 = vmatpush1.bf16.xpose.msra.mxu0 %v5323
      %5367 = vmatprep.subr.bf16.mxu0 0
      %5368 = vmatpush1.bf16.xpose.msra.mxu0 %v5326
      %5369 = vmatprep.subr.bf16.mxu0 0
      %5370 = vmatpush1.bf16.xpose.msra.mxu0 %v5329
      %5371 = vmatprep.subr.bf16.mxu0 0
      %5372 = vmatpush1.bf16.xpose.msra.mxu0 %v5332
      %5373 = vmatprep.subr.bf16.mxu0 0
      %5374 = vmatpush1.bf16.xpose.msra.mxu0 %v5335
      %5375 = vmatprep.subr.bf16.mxu0 0
      %5376 = vmatpush1.bf16.xpose.msra.mxu0 %v5338
      %5377 = vmatprep.subr.bf16.mxu0 0
      %5378 = vmatpush1.bf16.xpose.msra.mxu0 %v5341
      %5379 = vmatprep.subr.bf16.mxu0 0
      %5380 = vmatpush1.bf16.xpose.msra.mxu0 %v5344
      %5381 = vmatprep.subr.bf16.mxu0 0
      %5382 = vmatpush1.bf16.xpose.msra.mxu0 %v5347
      %5383 = vmatprep.subr.bf16.mxu0 0
      %5384 = vmatpush1.bf16.xpose.msra.mxu0 %v5350
      %5385 = vmatprep.subr.bf16.mxu0 0
      %5386 = vmatpush1.bf16.xpose.msra.mxu0 %v5353
      %5387 = vmatprep.mubr.bf16.mxu0 0
      %5388 = vmatmul.mubr.bf16.gmra.mrb[0].mxu0 %v5305
      %v5389 = vpop.f32.mrb[0].mxu0
      %v5390 = vadd.f32 0.0, %v5389
      %v5391 = vpop.f32.mrb[0].mxu0
      %v5392 = vadd.f32 0.0, %v5391
      %v5393 = vpop.f32.mrb[0].mxu0
      %v5394 = vpop.f32.mrb[0].mxu0
      %5395 = vdwg.mxu0
      %v5396 = vadd.f32 %v5300, %v5390
      %v5397 = vadd.f32 %v5301, %v5392
      %5398 = vst [vmem:[#allocation5] sm:$0xff] %v5396
      %5399 = vst [vmem:[#allocation5 + $0x8] sm:$0xff] %v5397
      %s5400 = scalar_lea.vmem [#allocation3], 288
      %v5401 = vld [vmem:[%s5400] sm:$0xff]
      %v5402 = vld [vmem:[%s5400 + $0x8] sm:$0xff]
      %v5403 = vld [vmem:[%s5400 + $0x10] sm:$0xff]
      %v5404 = vld [vmem:[%s5400 + $0x18] sm:$0xff]
      %v5405 = vld [vmem:[%s5400 + $0x20] sm:$0xff]
      %v5406 = vld [vmem:[%s5400 + $0x28] sm:$0xff]
      %v5407 = vld [vmem:[%s5400 + $0x30] sm:$0xff]
      %v5408 = vld [vmem:[%s5400 + $0x38] sm:$0xff]
      %v5409 = vld [vmem:[%s5400 + $0x40] sm:$0xff]
      %v5410 = vld [vmem:[%s5400 + $0x48] sm:$0xff]
      %v5411 = vld [vmem:[%s5400 + $0x50] sm:$0xff]
      %v5412 = vld [vmem:[%s5400 + $0x58] sm:$0xff]
      %v5413 = vld [vmem:[%s5400 + $0x60] sm:$0xff]
      %v5414 = vld [vmem:[%s5400 + $0x68] sm:$0xff]
      %v5415 = vld [vmem:[%s5400 + $0x70] sm:$0xff]
      %v5416 = vld [vmem:[%s5400 + $0x78] sm:$0xff]
      %v5417 = vld [vmem:[#allocation5] sm:$0xff]
      %v5418 = vld [vmem:[#allocation5 + $0x8] sm:$0xff]
      %s5419 = scalar_lea.vmem %s8, 8
      %v5420 = vld [vmem:[%s5419] sm:$0xf]
      %v5422 = vsel %vm1383, %v5420, 0
      %v5425 = vsel %vm1383, %v5401, 0
      %v5428 = vsel %vm1383, %v5402, 0
      %v5431 = vsel %vm1383, %v5403, 0
      %v5434 = vsel %vm1383, %v5404, 0
      %v5437 = vsel %vm1383, %v5405, 0
      %v5440 = vsel %vm1383, %v5406, 0
      %v5443 = vsel %vm1383, %v5407, 0
      %v5446 = vsel %vm1383, %v5408, 0
      %v5449 = vsel %vm1383, %v5409, 0
      %v5452 = vsel %vm1383, %v5410, 0
      %v5455 = vsel %vm1383, %v5411, 0
      %v5458 = vsel %vm1383, %v5412, 0
      %v5461 = vsel %vm1383, %v5413, 0
      %v5464 = vsel %vm1383, %v5414, 0
      %v5467 = vsel %vm1383, %v5415, 0
      %v5470 = vsel %vm1383, %v5416, 0
      %5472 = vmatprep.subr.bf16.mxu0 0
      %5473 = vmatpush1.bf16.xpose.msra.mxu0 %v5425
      %5474 = vmatprep.subr.bf16.mxu0 0
      %5475 = vmatpush1.bf16.xpose.msra.mxu0 %v5428
      %5476 = vmatprep.subr.bf16.mxu0 0
      %5477 = vmatpush1.bf16.xpose.msra.mxu0 %v5431
      %5478 = vmatprep.subr.bf16.mxu0 0
      %5479 = vmatpush1.bf16.xpose.msra.mxu0 %v5434
      %5480 = vmatprep.subr.bf16.mxu0 0
      %5481 = vmatpush1.bf16.xpose.msra.mxu0 %v5437
      %5482 = vmatprep.subr.bf16.mxu0 0
      %5483 = vmatpush1.bf16.xpose.msra.mxu0 %v5440
      %5484 = vmatprep.subr.bf16.mxu0 0
      %5485 = vmatpush1.bf16.xpose.msra.mxu0 %v5443
      %5486 = vmatprep.subr.bf16.mxu0 0
      %5487 = vmatpush1.bf16.xpose.msra.mxu0 %v5446
      %5488 = vmatprep.subr.bf16.mxu0 0
      %5489 = vmatpush1.bf16.xpose.msra.mxu0 %v5449
      %5490 = vmatprep.subr.bf16.mxu0 0
      %5491 = vmatpush1.bf16.xpose.msra.mxu0 %v5452
      %5492 = vmatprep.subr.bf16.mxu0 0
      %5493 = vmatpush1.bf16.xpose.msra.mxu0 %v5455
      %5494 = vmatprep.subr.bf16.mxu0 0
      %5495 = vmatpush1.bf16.xpose.msra.mxu0 %v5458
      %5496 = vmatprep.subr.bf16.mxu0 0
      %5497 = vmatpush1.bf16.xpose.msra.mxu0 %v5461
      %5498 = vmatprep.subr.bf16.mxu0 0
      %5499 = vmatpush1.bf16.xpose.msra.mxu0 %v5464
      %5500 = vmatprep.subr.bf16.mxu0 0
      %5501 = vmatpush1.bf16.xpose.msra.mxu0 %v5467
      %5502 = vmatprep.subr.bf16.mxu0 0
      %5503 = vmatpush1.bf16.xpose.msra.mxu0 %v5470
      %5504 = vmatprep.mubr.bf16.mxu0 0
      %5505 = vmatmul.mubr.bf16.gmra.mrb[0].mxu0 %v5422
      %v5506 = vpop.f32.mrb[0].mxu0
      %v5507 = vadd.f32 0.0, %v5506
      %v5508 = vpop.f32.mrb[0].mxu0
      %v5509 = vadd.f32 0.0, %v5508
      %v5510 = vpop.f32.mrb[0].mxu0
      %v5511 = vpop.f32.mrb[0].mxu0
      %5512 = vdwg.mxu0
      %v5513 = vadd.f32 %v5417, %v5507
      %v5514 = vadd.f32 %v5418, %v5509
      %5515 = vst [vmem:[#allocation5] sm:$0xff] %v5513
      %5516 = vst [vmem:[#allocation5 + $0x8] sm:$0xff] %v5514
      %v5517 = vld [vmem:[%s5038] sm:$0xff]
      %v5518 = vld [vmem:[%s5038 + $0x8] sm:$0xff]
      %v5519 = vld [vmem:[%s5038 + $0x10] sm:$0xff]
      %v5520 = vld [vmem:[%s5038 + $0x18] sm:$0xff]
      %v5521 = vld [vmem:[%s5038 + $0x20] sm:$0xff]
      %v5522 = vld [vmem:[%s5038 + $0x28] sm:$0xff]
      %v5523 = vld [vmem:[%s5038 + $0x30] sm:$0xff]
      %v5524 = vld [vmem:[%s5038 + $0x38] sm:$0xff]
      %v5525 = vld [vmem:[%s5038 + $0x40] sm:$0xff]
      %v5526 = vld [vmem:[%s5038 + $0x48] sm:$0xff]
      %v5527 = vld [vmem:[%s5038 + $0x50] sm:$0xff]
      %v5528 = vld [vmem:[%s5038 + $0x58] sm:$0xff]
      %v5529 = vld [vmem:[%s5038 + $0x60] sm:$0xff]
      %v5530 = vld [vmem:[%s5038 + $0x68] sm:$0xff]
      %v5531 = vld [vmem:[%s5038 + $0x70] sm:$0xff]
      %v5532 = vld [vmem:[%s5038 + $0x78] sm:$0xff]
      %v5533 = vld [vmem:[#allocation5] sm:$0xff]
      %v5534 = vld [vmem:[#allocation5 + $0x8] sm:$0xff]
      %s5535 = scalar_lea.vmem %s8, 12
      %v5536 = vld [vmem:[%s5535] sm:$0xf]
      %v5538 = vsel %vm1383, %v5536, 0
      %v5541 = vsel %vm1383, %v5517, 0
      %v5544 = vsel %vm1383, %v5518, 0
      %v5547 = vsel %vm1383, %v5519, 0
      %v5550 = vsel %vm1383, %v5520, 0
      %v5553 = vsel %vm1383, %v5521, 0
      %v5556 = vsel %vm1383, %v5522, 0
      %v5559 = vsel %vm1383, %v5523, 0
      %v5562 = vsel %vm1383, %v5524, 0
      %v5565 = vsel %vm1383, %v5525, 0
      %v5568 = vsel %vm1383, %v5526, 0
      %v5571 = vsel %vm1383, %v5527, 0
      %v5574 = vsel %vm1383, %v5528, 0
      %v5577 = vsel %vm1383, %v5529, 0
      %v5580 = vsel %vm1383, %v5530, 0
      %v5583 = vsel %vm1383, %v5531, 0
      %v5586 = vsel %vm1383, %v5532, 0
      %5588 = vmatprep.subr.bf16.mxu0 0
      %5589 = vmatpush1.bf16.xpose.msra.mxu0 %v5541
      %5590 = vmatprep.subr.bf16.mxu0 0
      %5591 = vmatpush1.bf16.xpose.msra.mxu0 %v5544
      %5592 = vmatprep.subr.bf16.mxu0 0
      %5593 = vmatpush1.bf16.xpose.msra.mxu0 %v5547
      %5594 = vmatprep.subr.bf16.mxu0 0
      %5595 = vmatpush1.bf16.xpose.msra.mxu0 %v5550
      %5596 = vmatprep.subr.bf16.mxu0 0
      %5597 = vmatpush1.bf16.xpose.msra.mxu0 %v5553
      %5598 = vmatprep.subr.bf16.mxu0 0
      %5599 = vmatpush1.bf16.xpose.msra.mxu0 %v5556
      %5600 = vmatprep.subr.bf16.mxu0 0
      %5601 = vmatpush1.bf16.xpose.msra.mxu0 %v5559
      %5602 = vmatprep.subr.bf16.mxu0 0
      %5603 = vmatpush1.bf16.xpose.msra.mxu0 %v5562
      %5604 = vmatprep.subr.bf16.mxu0 0
      %5605 = vmatpush1.bf16.xpose.msra.mxu0 %v5565
      %5606 = vmatprep.subr.bf16.mxu0 0
      %5607 = vmatpush1.bf16.xpose.msra.mxu0 %v5568
      %5608 = vmatprep.subr.bf16.mxu0 0
      %5609 = vmatpush1.bf16.xpose.msra.mxu0 %v5571
      %5610 = vmatprep.subr.bf16.mxu0 0
      %5611 = vmatpush1.bf16.xpose.msra.mxu0 %v5574
      %5612 = vmatprep.subr.bf16.mxu0 0
      %5613 = vmatpush1.bf16.xpose.msra.mxu0 %v5577
      %5614 = vmatprep.subr.bf16.mxu0 0
      %5615 = vmatpush1.bf16.xpose.msra.mxu0 %v5580
      %5616 = vmatprep.subr.bf16.mxu0 0
      %5617 = vmatpush1.bf16.xpose.msra.mxu0 %v5583
      %5618 = vmatprep.subr.bf16.mxu0 0
      %5619 = vmatpush1.bf16.xpose.msra.mxu0 %v5586
      %5620 = vmatprep.mubr.bf16.mxu0 0
      %5621 = vmatmul.mubr.bf16.gmra.mrb[0].mxu0 %v5538
      %v5622 = vpop.f32.mrb[0].mxu0
      %v5623 = vadd.f32 0.0, %v5622
      %v5624 = vpop.f32.mrb[0].mxu0
      %v5625 = vadd.f32 0.0, %v5624
      %v5626 = vpop.f32.mrb[0].mxu0
      %v5627 = vpop.f32.mrb[0].mxu0
      %5628 = vdwg.mxu0
      %v5629 = vadd.f32 %v5533, %v5623
      %v5630 = vadd.f32 %v5534, %v5625
      %5631 = vst [vmem:[#allocation5] sm:$0xff] %v5629
      %5632 = vst [vmem:[#allocation5 + $0x8] sm:$0xff] %v5630
      %v5633 = vld [vmem:[%s5055] sm:$0xff]
      %v5634 = vld [vmem:[%s5055 + $0x8] sm:$0xff]
      %v5635 = vld [vmem:[%s5055 + $0x10] sm:$0xff]
      %v5636 = vld [vmem:[%s5055 + $0x18] sm:$0xff]
      %v5637 = vld [vmem:[%s5055 + $0x20] sm:$0xff]
      %v5638 = vld [vmem:[%s5055 + $0x28] sm:$0xff]
      %v5639 = vld [vmem:[%s5055 + $0x30] sm:$0xff]
      %v5640 = vld [vmem:[%s5055 + $0x38] sm:$0xff]
      %v5641 = vld [vmem:[%s5055 + $0x40] sm:$0xff]
      %v5642 = vld [vmem:[%s5055 + $0x48] sm:$0xff]
      %v5643 = vld [vmem:[%s5055 + $0x50] sm:$0xff]
      %v5644 = vld [vmem:[%s5055 + $0x58] sm:$0xff]
      %v5645 = vld [vmem:[%s5055 + $0x60] sm:$0xff]
      %v5646 = vld [vmem:[%s5055 + $0x68] sm:$0xff]
      %v5647 = vld [vmem:[%s5055 + $0x70] sm:$0xff]
      %v5648 = vld [vmem:[%s5055 + $0x78] sm:$0xff]
      %v5649 = vld [vmem:[#allocation5] sm:$0xff]
      %v5650 = vld [vmem:[#allocation5 + $0x8] sm:$0xff]
      %s5651 = scalar_lea.vmem %s8, 16
      %v5652 = vld [vmem:[%s5651] sm:$0xf]
      %v5654 = vsel %vm1383, %v5652, 0
      %v5657 = vsel %vm1383, %v5633, 0
      %v5660 = vsel %vm1383, %v5634, 0
      %v5663 = vsel %vm1383, %v5635, 0
      %v5666 = vsel %vm1383, %v5636, 0
      %v5669 = vsel %vm1383, %v5637, 0
      %v5672 = vsel %vm1383, %v5638, 0
      %v5675 = vsel %vm1383, %v5639, 0
      %v5678 = vsel %vm1383, %v5640, 0
      %v5681 = vsel %vm1383, %v5641, 0
      %v5684 = vsel %vm1383, %v5642, 0
      %v5687 = vsel %vm1383, %v5643, 0
      %v5690 = vsel %vm1383, %v5644, 0
      %v5693 = vsel %vm1383, %v5645, 0
      %v5696 = vsel %vm1383, %v5646, 0
      %v5699 = vsel %vm1383, %v5647, 0
      %v5702 = vsel %vm1383, %v5648, 0
      %5704 = vmatprep.subr.bf16.mxu0 0
      %5705 = vmatpush1.bf16.xpose.msra.mxu0 %v5657
      %5706 = vmatprep.subr.bf16.mxu0 0
      %5707 = vmatpush1.bf16.xpose.msra.mxu0 %v5660
      %5708 = vmatprep.subr.bf16.mxu0 0
      %5709 = vmatpush1.bf16.xpose.msra.mxu0 %v5663
      %5710 = vmatprep.subr.bf16.mxu0 0
      %5711 = vmatpush1.bf16.xpose.msra.mxu0 %v5666
      %5712 = vmatprep.subr.bf16.mxu0 0
      %5713 = vmatpush1.bf16.xpose.msra.mxu0 %v5669
      %5714 = vmatprep.subr.bf16.mxu0 0
      %5715 = vmatpush1.bf16.xpose.msra.mxu0 %v5672
      %5716 = vmatprep.subr.bf16.mxu0 0
      %5717 = vmatpush1.bf16.xpose.msra.mxu0 %v5675
      %5718 = vmatprep.subr.bf16.mxu0 0
      %5719 = vmatpush1.bf16.xpose.msra.mxu0 %v5678
      %5720 = vmatprep.subr.bf16.mxu0 0
      %5721 = vmatpush1.bf16.xpose.msra.mxu0 %v5681
      %5722 = vmatprep.subr.bf16.mxu0 0
      %5723 = vmatpush1.bf16.xpose.msra.mxu0 %v5684
      %5724 = vmatprep.subr.bf16.mxu0 0
      %5725 = vmatpush1.bf16.xpose.msra.mxu0 %v5687
      %5726 = vmatprep.subr.bf16.mxu0 0
      %5727 = vmatpush1.bf16.xpose.msra.mxu0 %v5690
      %5728 = vmatprep.subr.bf16.mxu0 0
      %5729 = vmatpush1.bf16.xpose.msra.mxu0 %v5693
      %5730 = vmatprep.subr.bf16.mxu0 0
      %5731 = vmatpush1.bf16.xpose.msra.mxu0 %v5696
      %5732 = vmatprep.subr.bf16.mxu0 0
      %5733 = vmatpush1.bf16.xpose.msra.mxu0 %v5699
      %5734 = vmatprep.subr.bf16.mxu0 0
      %5735 = vmatpush1.bf16.xpose.msra.mxu0 %v5702
      %5736 = vmatprep.mubr.bf16.mxu0 0
      %5737 = vmatmul.mubr.bf16.gmra.mrb[0].mxu0 %v5654
      %v5738 = vpop.f32.mrb[0].mxu0
      %v5739 = vadd.f32 0.0, %v5738
      %v5740 = vpop.f32.mrb[0].mxu0
      %v5741 = vadd.f32 0.0, %v5740
      %v5742 = vpop.f32.mrb[0].mxu0
      %v5743 = vpop.f32.mrb[0].mxu0
      %5744 = vdwg.mxu0
      %v5745 = vadd.f32 %v5649, %v5739
      %v5746 = vadd.f32 %v5650, %v5741
      %5747 = vst [vmem:[#allocation5] sm:$0xff] %v5745
      %5748 = vst [vmem:[#allocation5 + $0x8] sm:$0xff] %v5746
      %v5749 = vld [vmem:[%s5136] sm:$0xff]
      %v5750 = vld [vmem:[%s5136 + $0x8] sm:$0xff]
      %v5751 = vld [vmem:[%s5136 + $0x10] sm:$0xff]
      %v5752 = vld [vmem:[%s5136 + $0x18] sm:$0xff]
      %v5753 = vld [vmem:[%s5136 + $0x20] sm:$0xff]
      %v5754 = vld [vmem:[%s5136 + $0x28] sm:$0xff]
      %v5755 = vld [vmem:[%s5136 + $0x30] sm:$0xff]
      %v5756 = vld [vmem:[%s5136 + $0x38] sm:$0xff]
      %v5757 = vld [vmem:[%s5136 + $0x40] sm:$0xff]
      %v5758 = vld [vmem:[%s5136 + $0x48] sm:$0xff]
      %v5759 = vld [vmem:[%s5136 + $0x50] sm:$0xff]
      %v5760 = vld [vmem:[%s5136 + $0x58] sm:$0xff]
      %v5761 = vld [vmem:[%s5136 + $0x60] sm:$0xff]
      %v5762 = vld [vmem:[%s5136 + $0x68] sm:$0xff]
      %v5763 = vld [vmem:[%s5136 + $0x70] sm:$0xff]
      %v5764 = vld [vmem:[%s5136 + $0x78] sm:$0xff]
      %v5765 = vld [vmem:[#allocation5] sm:$0xff]
      %v5766 = vld [vmem:[#allocation5 + $0x8] sm:$0xff]
      %s5767 = scalar_lea.vmem %s8, 20
      %v5768 = vld [vmem:[%s5767] sm:$0xf]
      %v5770 = vsel %vm1383, %v5768, 0
      %v5773 = vsel %vm1383, %v5749, 0
      %v5776 = vsel %vm1383, %v5750, 0
      %v5779 = vsel %vm1383, %v5751, 0
      %v5782 = vsel %vm1383, %v5752, 0
      %v5785 = vsel %vm1383, %v5753, 0
      %v5788 = vsel %vm1383, %v5754, 0
      %v5791 = vsel %vm1383, %v5755, 0
      %v5794 = vsel %vm1383, %v5756, 0
      %v5797 = vsel %vm1383, %v5757, 0
      %v5800 = vsel %vm1383, %v5758, 0
      %v5803 = vsel %vm1383, %v5759, 0
      %v5806 = vsel %vm1383, %v5760, 0
      %v5809 = vsel %vm1383, %v5761, 0
      %v5812 = vsel %vm1383, %v5762, 0
      %v5815 = vsel %vm1383, %v5763, 0
      %v5818 = vsel %vm1383, %v5764, 0
      %5820 = vmatprep.subr.bf16.mxu0 0
      %5821 = vmatpush1.bf16.xpose.msra.mxu0 %v5773
      %5822 = vmatprep.subr.bf16.mxu0 0
      %5823 = vmatpush1.bf16.xpose.msra.mxu0 %v5776
      %5824 = vmatprep.subr.bf16.mxu0 0
      %5825 = vmatpush1.bf16.xpose.msra.mxu0 %v5779
      %5826 = vmatprep.subr.bf16.mxu0 0
      %5827 = vmatpush1.bf16.xpose.msra.mxu0 %v5782
      %5828 = vmatprep.subr.bf16.mxu0 0
      %5829 = vmatpush1.bf16.xpose.msra.mxu0 %v5785
      %5830 = vmatprep.subr.bf16.mxu0 0
      %5831 = vmatpush1.bf16.xpose.msra.mxu0 %v5788
      %5832 = vmatprep.subr.bf16.mxu0 0
      %5833 = vmatpush1.bf16.xpose.msra.mxu0 %v5791
      %5834 = vmatprep.subr.bf16.mxu0 0
      %5835 = vmatpush1.bf16.xpose.msra.mxu0 %v5794
      %5836 = vmatprep.subr.bf16.mxu0 0
      %5837 = vmatpush1.bf16.xpose.msra.mxu0 %v5797
      %5838 = vmatprep.subr.bf16.mxu0 0
      %5839 = vmatpush1.bf16.xpose.msra.mxu0 %v5800
      %5840 = vmatprep.subr.bf16.mxu0 0
      %5841 = vmatpush1.bf16.xpose.msra.mxu0 %v5803
      %5842 = vmatprep.subr.bf16.mxu0 0
      %5843 = vmatpush1.bf16.xpose.msra.mxu0 %v5806
      %5844 = vmatprep.subr.bf16.mxu0 0
      %5845 = vmatpush1.bf16.xpose.msra.mxu0 %v5809
      %5846 = vmatprep.subr.bf16.mxu0 0
      %5847 = vmatpush1.bf16.xpose.msra.mxu0 %v5812
      %5848 = vmatprep.subr.bf16.mxu0 0
      %5849 = vmatpush1.bf16.xpose.msra.mxu0 %v5815
      %5850 = vmatprep.subr.bf16.mxu0 0
      %5851 = vmatpush1.bf16.xpose.msra.mxu0 %v5818
      %5852 = vmatprep.mubr.bf16.mxu0 0
      %5853 = vmatmul.mubr.bf16.gmra.mrb[0].mxu0 %v5770
      %v5854 = vpop.f32.mrb[0].mxu0
      %v5855 = vadd.f32 0.0, %v5854
      %v5856 = vpop.f32.mrb[0].mxu0
      %v5857 = vadd.f32 0.0, %v5856
      %v5858 = vpop.f32.mrb[0].mxu0
      %v5859 = vpop.f32.mrb[0].mxu0
      %5860 = vdwg.mxu0
      %v5861 = vadd.f32 %v5765, %v5855
      %v5862 = vadd.f32 %v5766, %v5857
      %5863 = vst [vmem:[#allocation5] sm:$0xff] %v5861
      %5864 = vst [vmem:[#allocation5 + $0x8] sm:$0xff] %v5862
      %s5865 = scalar_lea.vmem [#allocation3], 16
      %v5866 = vld [vmem:[%s5865] sm:$0xff]
      %v5867 = vld [vmem:[%s5865 + $0x8] sm:$0xff]
      %v5868 = vld [vmem:[%s5865 + $0x10] sm:$0xff]
      %v5869 = vld [vmem:[%s5865 + $0x18] sm:$0xff]
      %v5870 = vld [vmem:[%s5865 + $0x20] sm:$0xff]
      %v5871 = vld [vmem:[%s5865 + $0x28] sm:$0xff]
      %v5872 = vld [vmem:[%s5865 + $0x30] sm:$0xff]
      %v5873 = vld [vmem:[%s5865 + $0x38] sm:$0xff]
      %v5874 = vld [vmem:[%s5865 + $0x40] sm:$0xff]
      %v5875 = vld [vmem:[%s5865 + $0x48] sm:$0xff]
      %v5876 = vld [vmem:[%s5865 + $0x50] sm:$0xff]
      %v5877 = vld [vmem:[%s5865 + $0x58] sm:$0xff]
      %v5878 = vld [vmem:[%s5865 + $0x60] sm:$0xff]
      %v5879 = vld [vmem:[%s5865 + $0x68] sm:$0xff]
      %v5880 = vld [vmem:[%s5865 + $0x70] sm:$0xff]
      %v5881 = vld [vmem:[%s5865 + $0x78] sm:$0xff]
      %v5882 = vld [vmem:[#allocation5] sm:$0xff]
      %v5883 = vld [vmem:[#allocation5 + $0x8] sm:$0xff]
      %s5884 = scalar_lea.vmem %s8, 24
      %v5885 = vld [vmem:[%s5884] sm:$0xf]
      %v5887 = vsel %vm1383, %v5885, 0
      %v5890 = vsel %vm1383, %v5866, 0
      %v5893 = vsel %vm1383, %v5867, 0
      %v5896 = vsel %vm1383, %v5868, 0
      %v5899 = vsel %vm1383, %v5869, 0
      %v5902 = vsel %vm1383, %v5870, 0
      %v5905 = vsel %vm1383, %v5871, 0
      %v5908 = vsel %vm1383, %v5872, 0
      %v5911 = vsel %vm1383, %v5873, 0
      %v5914 = vsel %vm1383, %v5874, 0
      %v5917 = vsel %vm1383, %v5875, 0
      %v5920 = vsel %vm1383, %v5876, 0
      %v5923 = vsel %vm1383, %v5877, 0
      %v5926 = vsel %vm1383, %v5878, 0
      %v5929 = vsel %vm1383, %v5879, 0
      %v5932 = vsel %vm1383, %v5880, 0
      %v5935 = vsel %vm1383, %v5881, 0
      %5937 = vmatprep.subr.bf16.mxu0 0
      %5938 = vmatpush1.bf16.xpose.msra.mxu0 %v5890
      %5939 = vmatprep.subr.bf16.mxu0 0
      %5940 = vmatpush1.bf16.xpose.msra.mxu0 %v5893
      %5941 = vmatprep.subr.bf16.mxu0 0
      %5942 = vmatpush1.bf16.xpose.msra.mxu0 %v5896
      %5943 = vmatprep.subr.bf16.mxu0 0
      %5944 = vmatpush1.bf16.xpose.msra.mxu0 %v5899
      %5945 = vmatprep.subr.bf16.mxu0 0
      %5946 = vmatpush1.bf16.xpose.msra.mxu0 %v5902
      %5947 = vmatprep.subr.bf16.mxu0 0
      %5948 = vmatpush1.bf16.xpose.msra.mxu0 %v5905
      %5949 = vmatprep.subr.bf16.mxu0 0
      %5950 = vmatpush1.bf16.xpose.msra.mxu0 %v5908
      %5951 = vmatprep.subr.bf16.mxu0 0
      %5952 = vmatpush1.bf16.xpose.msra.mxu0 %v5911
      %5953 = vmatprep.subr.bf16.mxu0 0
      %5954 = vmatpush1.bf16.xpose.msra.mxu0 %v5914
      %5955 = vmatprep.subr.bf16.mxu0 0
      %5956 = vmatpush1.bf16.xpose.msra.mxu0 %v5917
      %5957 = vmatprep.subr.bf16.mxu0 0
      %5958 = vmatpush1.bf16.xpose.msra.mxu0 %v5920
      %5959 = vmatprep.subr.bf16.mxu0 0
      %5960 = vmatpush1.bf16.xpose.msra.mxu0 %v5923
      %5961 = vmatprep.subr.bf16.mxu0 0
      %5962 = vmatpush1.bf16.xpose.msra.mxu0 %v5926
      %5963 = vmatprep.subr.bf16.mxu0 0
      %5964 = vmatpush1.bf16.xpose.msra.mxu0 %v5929
      %5965 = vmatprep.subr.bf16.mxu0 0
      %5966 = vmatpush1.bf16.xpose.msra.mxu0 %v5932
      %5967 = vmatprep.subr.bf16.mxu0 0
      %5968 = vmatpush1.bf16.xpose.msra.mxu0 %v5935
      %5969 = vmatprep.mubr.bf16.mxu0 0
      %5970 = vmatmul.mubr.bf16.gmra.mrb[0].mxu0 %v5887
      %v5971 = vpop.f32.mrb[0].mxu0
      %v5972 = vadd.f32 0.0, %v5971
      %v5973 = vpop.f32.mrb[0].mxu0
      %v5974 = vadd.f32 0.0, %v5973
      %v5975 = vpop.f32.mrb[0].mxu0
      %v5976 = vpop.f32.mrb[0].mxu0
      %5977 = vdwg.mxu0
      %v5978 = vadd.f32 %v5882, %v5972
      %v5979 = vadd.f32 %v5883, %v5974
      %5980 = vst [vmem:[#allocation5] sm:$0xff] %v5978
      %5981 = vst [vmem:[#allocation5 + $0x8] sm:$0xff] %v5979
      %s5982 = scalar_lea.vmem [#allocation3], 160
      %v5983 = vld [vmem:[%s5982] sm:$0xff]
      %v5984 = vld [vmem:[%s5982 + $0x8] sm:$0xff]
      %v5985 = vld [vmem:[%s5982 + $0x10] sm:$0xff]
      %v5986 = vld [vmem:[%s5982 + $0x18] sm:$0xff]
      %v5987 = vld [vmem:[%s5982 + $0x20] sm:$0xff]
      %v5988 = vld [vmem:[%s5982 + $0x28] sm:$0xff]
      %v5989 = vld [vmem:[%s5982 + $0x30] sm:$0xff]
      %v5990 = vld [vmem:[%s5982 + $0x38] sm:$0xff]
      %v5991 = vld [vmem:[%s5982 + $0x40] sm:$0xff]
      %v5992 = vld [vmem:[%s5982 + $0x48] sm:$0xff]
      %v5993 = vld [vmem:[%s5982 + $0x50] sm:$0xff]
      %v5994 = vld [vmem:[%s5982 + $0x58] sm:$0xff]
      %v5995 = vld [vmem:[%s5982 + $0x60] sm:$0xff]
      %v5996 = vld [vmem:[%s5982 + $0x68] sm:$0xff]
      %v5997 = vld [vmem:[%s5982 + $0x70] sm:$0xff]
      %v5998 = vld [vmem:[%s5982 + $0x78] sm:$0xff]
      %v5999 = vld [vmem:[#allocation5] sm:$0xff]
      %v6000 = vld [vmem:[#allocation5 + $0x8] sm:$0xff]
      %s6001 = scalar_lea.vmem %s8, 28
      %v6002 = vld [vmem:[%s6001] sm:$0xf]
      %v6004 = vsel %vm1383, %v6002, 0
      %v6007 = vsel %vm1383, %v5983, 0
      %v6010 = vsel %vm1383, %v5984, 0
      %v6013 = vsel %vm1383, %v5985, 0
      %v6016 = vsel %vm1383, %v5986, 0
      %v6019 = vsel %vm1383, %v5987, 0
      %v6022 = vsel %vm1383, %v5988, 0
      %v6025 = vsel %vm1383, %v5989, 0
      %v6028 = vsel %vm1383, %v5990, 0
      %v6031 = vsel %vm1383, %v5991, 0
      %v6034 = vsel %vm1383, %v5992, 0
      %v6037 = vsel %vm1383, %v5993, 0
      %v6040 = vsel %vm1383, %v5994, 0
      %v6043 = vsel %vm1383, %v5995, 0
      %v6046 = vsel %vm1383, %v5996, 0
      %v6049 = vsel %vm1383, %v5997, 0
      %v6052 = vsel %vm1383, %v5998, 0
      %6054 = vmatprep.subr.bf16.mxu0 0
      %6055 = vmatpush1.bf16.xpose.msra.mxu0 %v6007
      %6056 = vmatprep.subr.bf16.mxu0 0
      %6057 = vmatpush1.bf16.xpose.msra.mxu0 %v6010
      %6058 = vmatprep.subr.bf16.mxu0 0
      %6059 = vmatpush1.bf16.xpose.msra.mxu0 %v6013
      %6060 = vmatprep.subr.bf16.mxu0 0
      %6061 = vmatpush1.bf16.xpose.msra.mxu0 %v6016
      %6062 = vmatprep.subr.bf16.mxu0 0
      %6063 = vmatpush1.bf16.xpose.msra.mxu0 %v6019
      %6064 = vmatprep.subr.bf16.mxu0 0
      %6065 = vmatpush1.bf16.xpose.msra.mxu0 %v6022
      %6066 = vmatprep.subr.bf16.mxu0 0
      %6067 = vmatpush1.bf16.xpose.msra.mxu0 %v6025
      %6068 = vmatprep.subr.bf16.mxu0 0
      %6069 = vmatpush1.bf16.xpose.msra.mxu0 %v6028
      %6070 = vmatprep.subr.bf16.mxu0 0
      %6071 = vmatpush1.bf16.xpose.msra.mxu0 %v6031
      %6072 = vmatprep.subr.bf16.mxu0 0
      %6073 = vmatpush1.bf16.xpose.msra.mxu0 %v6034
      %6074 = vmatprep.subr.bf16.mxu0 0
      %6075 = vmatpush1.bf16.xpose.msra.mxu0 %v6037
      %6076 = vmatprep.subr.bf16.mxu0 0
      %6077 = vmatpush1.bf16.xpose.msra.mxu0 %v6040
      %6078 = vmatprep.subr.bf16.mxu0 0
      %6079 = vmatpush1.bf16.xpose.msra.mxu0 %v6043
      %6080 = vmatprep.subr.bf16.mxu0 0
      %6081 = vmatpush1.bf16.xpose.msra.mxu0 %v6046
      %6082 = vmatprep.subr.bf16.mxu0 0
      %6083 = vmatpush1.bf16.xpose.msra.mxu0 %v6049
      %6084 = vmatprep.subr.bf16.mxu0 0
      %6085 = vmatpush1.bf16.xpose.msra.mxu0 %v6052
      %6086 = vmatprep.mubr.bf16.mxu0 0
      %6087 = vmatmul.mubr.bf16.gmra.mrb[0].mxu0 %v6004
      %v6088 = vpop.f32.mrb[0].mxu0
      %v6089 = vadd.f32 0.0, %v6088
      %v6090 = vpop.f32.mrb[0].mxu0
      %v6091 = vadd.f32 0.0, %v6090
      %v6092 = vpop.f32.mrb[0].mxu0
      %v6093 = vpop.f32.mrb[0].mxu0
      %6094 = vdwg.mxu0
      %v6095 = vadd.f32 %v5999, %v6089
      %v6096 = vadd.f32 %v6000, %v6091
      %6097 = vst [vmem:[#allocation5] sm:$0xff] %v6095
      %6098 = vst [vmem:[#allocation5 + $0x8] sm:$0xff] %v6096
      %s6099 = scalar_lea.vmem [#allocation3], 304
      %v6100 = vld [vmem:[%s6099] sm:$0xff]
      %v6101 = vld [vmem:[%s6099 + $0x8] sm:$0xff]
      %v6102 = vld [vmem:[%s6099 + $0x10] sm:$0xff]
      %v6103 = vld [vmem:[%s6099 + $0x18] sm:$0xff]
      %v6104 = vld [vmem:[%s6099 + $0x20] sm:$0xff]
      %v6105 = vld [vmem:[%s6099 + $0x28] sm:$0xff]
      %v6106 = vld [vmem:[%s6099 + $0x30] sm:$0xff]
      %v6107 = vld [vmem:[%s6099 + $0x38] sm:$0xff]
      %v6108 = vld [vmem:[%s6099 + $0x40] sm:$0xff]
      %v6109 = vld [vmem:[%s6099 + $0x48] sm:$0xff]
      %v6110 = vld [vmem:[%s6099 + $0x50] sm:$0xff]
      %v6111 = vld [vmem:[%s6099 + $0x58] sm:$0xff]
      %v6112 = vld [vmem:[%s6099 + $0x60] sm:$0xff]
      %v6113 = vld [vmem:[%s6099 + $0x68] sm:$0xff]
      %v6114 = vld [vmem:[%s6099 + $0x70] sm:$0xff]
      %v6115 = vld [vmem:[%s6099 + $0x78] sm:$0xff]
      %v6116 = vld [vmem:[#allocation5] sm:$0xff]
      %v6117 = vld [vmem:[#allocation5 + $0x8] sm:$0xff]
      %s6118 = scalar_lea.vmem %s8, 32
      %v6119 = vld [vmem:[%s6118] sm:$0xf]
      %v6121 = vsel %vm1383, %v6119, 0
      %v6124 = vsel %vm1383, %v6100, 0
      %v6127 = vsel %vm1383, %v6101, 0
      %v6130 = vsel %vm1383, %v6102, 0
      %v6133 = vsel %vm1383, %v6103, 0
      %v6136 = vsel %vm1383, %v6104, 0
      %v6139 = vsel %vm1383, %v6105, 0
      %v6142 = vsel %vm1383, %v6106, 0
      %v6145 = vsel %vm1383, %v6107, 0
      %v6148 = vsel %vm1383, %v6108, 0
      %v6151 = vsel %vm1383, %v6109, 0
      %v6154 = vsel %vm1383, %v6110, 0
      %v6157 = vsel %vm1383, %v6111, 0
      %v6160 = vsel %vm1383, %v6112, 0
      %v6163 = vsel %vm1383, %v6113, 0
      %v6166 = vsel %vm1383, %v6114, 0
      %v6169 = vsel %vm1383, %v6115, 0
      %6171 = vmatprep.subr.bf16.mxu0 0
      %6172 = vmatpush1.bf16.xpose.msra.mxu0 %v6124
      %6173 = vmatprep.subr.bf16.mxu0 0
      %6174 = vmatpush1.bf16.xpose.msra.mxu0 %v6127
      %6175 = vmatprep.subr.bf16.mxu0 0
      %6176 = vmatpush1.bf16.xpose.msra.mxu0 %v6130
      %6177 = vmatprep.subr.bf16.mxu0 0
      %6178 = vmatpush1.bf16.xpose.msra.mxu0 %v6133
      %6179 = vmatprep.subr.bf16.mxu0 0
      %6180 = vmatpush1.bf16.xpose.msra.mxu0 %v6136
      %6181 = vmatprep.subr.bf16.mxu0 0
      %6182 = vmatpush1.bf16.xpose.msra.mxu0 %v6139
      %6183 = vmatprep.subr.bf16.mxu0 0
      %6184 = vmatpush1.bf16.xpose.msra.mxu0 %v6142
      %6185 = vmatprep.subr.bf16.mxu0 0
      %6186 = vmatpush1.bf16.xpose.msra.mxu0 %v6145
      %6187 = vmatprep.subr.bf16.mxu0 0
      %6188 = vmatpush1.bf16.xpose.msra.mxu0 %v6148
      %6189 = vmatprep.subr.bf16.mxu0 0
      %6190 = vmatpush1.bf16.xpose.msra.mxu0 %v6151
      %6191 = vmatprep.subr.bf16.mxu0 0
      %6192 = vmatpush1.bf16.xpose.msra.mxu0 %v6154
      %6193 = vmatprep.subr.bf16.mxu0 0
      %6194 = vmatpush1.bf16.xpose.msra.mxu0 %v6157
      %6195 = vmatprep.subr.bf16.mxu0 0
      %6196 = vmatpush1.bf16.xpose.msra.mxu0 %v6160
      %6197 = vmatprep.subr.bf16.mxu0 0
      %6198 = vmatpush1.bf16.xpose.msra.mxu0 %v6163
      %6199 = vmatprep.subr.bf16.mxu0 0
      %6200 = vmatpush1.bf16.xpose.msra.mxu0 %v6166
      %6201 = vmatprep.subr.bf16.mxu0 0
      %6202 = vmatpush1.bf16.xpose.msra.mxu0 %v6169
      %6203 = vmatprep.mubr.bf16.mxu0 0
      %6204 = vmatmul.mubr.bf16.gmra.mrb[0].mxu0 %v6121
      %v6205 = vpop.f32.mrb[0].mxu0
      %v6206 = vadd.f32 0.0, %v6205
      %v6207 = vpop.f32.mrb[0].mxu0
      %v6208 = vadd.f32 0.0, %v6207
      %v6209 = vpop.f32.mrb[0].mxu0
      %v6210 = vpop.f32.mrb[0].mxu0
      %6211 = vdwg.mxu0
      %v6212 = vadd.f32 %v6116, %v6206
      %v6213 = vadd.f32 %v6117, %v6208
      %6214 = vst [vmem:[#allocation5] sm:$0xff] %v6212
      %6215 = vst [vmem:[#allocation5 + $0x8] sm:$0xff] %v6213
      %v6216 = vld [vmem:[#allocation5] sm:$0xff]
      %v6217 = vld [vmem:[#allocation5 + $0x8] sm:$0xff]
      %6218 = vst [vmem:[%s399] sm:$0xff] %v6216
      %6219 = vst [vmem:[%s399 + $0x8] sm:$0xff] %v6217
      %p6220 = scmp.lt.s32.totalorder %s21, 1
      %s6221 = scalar_select %p6220, %s21, 1
      %s6222 = smul.addr %s6221, 2
      %s6223 = smul.addr %s6222, 8
      %s6224 = scalar_lea.vmem %s10, %s6223
      // Predicated region
      $region61: #{merge_tail_forward.1} parent=59 // pred_check
        %p6225 = pneg %p264
      $region62: #{merge_tail_forward.1} parent=59 // pred_check_branch
        %6227 = sbr.rel (%p6225) target = $region64
      $region63: #{merge_tail_forward.1} parent=59 // pred_region
        _
      $region64: #{merge_tail_forward.1} parent=59 // pred_fallthru
        _
    $region60: #{merge_tail_forward.1} parent=5 // pred_fallthru
      _
    %p6228 = scmp.le.s32.totalorder 2, %s16
    // Predicated region
    $region65: #{merge_tail_forward.1} parent=5 // pred_check
      %p6229 = pneg %p6228
    $region66: #{merge_tail_forward.1} parent=5 // pred_check_branch
      %6231 = sbr.rel (%p6229) target = $region68
    $region67: #{merge_tail_forward.1} parent=5 // pred_region
      %s6232 = ssub.s32 %s16, 2
      // Predicated region
      $region69: #{merge_tail_forward.1} parent=67 // pred_check
        %p6233 = pneg %p270
      $region70: #{merge_tail_forward.1} parent=67 // pred_check_branch
        %6235 = sbr.rel (%p6233) target = $region72
      $region71: #{merge_tail_forward.1} parent=67 // pred_region
        %p6236 = scmp.lt.s32.totalorder %s22, 1
        %s6237 = scalar_select %p6236, %s22, 1
        %s6238 = smul.addr %s6237, 2
        %s6239 = smul.addr %s6238, 8
        %s6240 = scalar_lea.vmem %s10, %s6239
      $region72: #{merge_tail_forward.1} parent=67 // pred_fallthru
        _
    $region68: #{merge_tail_forward.1} parent=5 // pred_fallthru
      _
  $region6: #{merge_tail_forward.1} parent=0 // loop_footer
    %s20 = sadd.s32 1, %s16
  $region7: #{merge_tail_forward.1} parent=0 // loop_footer_branch
    %15 = sbr.rel target = $region3
  $region8: #{merge_tail_forward.1} parent=0 // loop_exit
    _

</llo_original>
